<compile_context>
chip_gen: v7x
topology: tpu7x:2x2x1
jax: 0.10.0
libtpu: 0.0.40
codegen_flags: <defaults>
</compile_context>

<pallas_src>
import functools
import math

import jax
import jax.numpy as jnp
from jax.experimental import pallas as pl
from jax.experimental.pallas import tpu as pltpu

LN_EPS = 1e-5  # torch.nn.LayerNorm default


# ---------------------------------------------------------------------------
# in-kernel math helpers (f32)
# ---------------------------------------------------------------------------
def _erf(x):
    # Abramowitz & Stegun 7.1.26 (|err| < 1.5e-7); the exp lands on the EUP.
    a1, a2, a3, a4, a5 = (0.254829592, -0.284496736, 1.421413741,
                          -1.453152027, 1.061405429)
    p = 0.3275911
    ax = jnp.abs(x)
    t = 1.0 / (1.0 + p * ax)
    poly = ((((a5 * t + a4) * t + a3) * t + a2) * t + a1) * t
    y = 1.0 - poly * jnp.exp(-ax * ax)
    return jnp.where(x < 0.0, -y, y)


def _gelu(x):
    # exact (erf-form) GELU == torch.nn.functional.gelu default
    return 0.5 * x * (1.0 + _erf(x * 0.7071067811865476))


def _layernorm(x, g, b):
    mu = jnp.mean(x, axis=-1, keepdims=True)
    var = jnp.mean((x - mu) ** 2, axis=-1, keepdims=True)
    return (x - mu) * jax.lax.rsqrt(var + LN_EPS) * g + b


# ---------------------------------------------------------------------------
# the fused kernel: LN1 + QKV + flat-head SDPA + mhsa_out + LN2 + GLU + out
# ---------------------------------------------------------------------------
def fused_block_kernel(x_ref, bqkv_ref, ln1g_ref, ln1b_ref, wqkv_ref,
                       wo_ref, ln2g_ref, ln2b_ref, w12_ref, wout_ref,
                       o_ref, *, heads, scale):
    bb, T, C = x_ref.shape
    D = C // heads          # per-head feature dim == channel-group width
    TB = T // heads         # tokens per head under the flat reshape
    N = bb * heads          # number of (batch, head) attention problems
    HP = w12_ref.shape[1] // 2
    bf16 = jnp.bfloat16

    x2 = x_ref[...].reshape(bb * T, C).astype(jnp.float32)      # (bb*T, C)

    # ---- LN1 + fused QKV projection (pos folded into the q/k biases) -------
    xn = _layernorm(x2, ln1g_ref[...], ln1b_ref[...])
    qkv = jnp.dot(xn.astype(bf16), wqkv_ref[...],
                  preferred_element_type=jnp.float32)            # (bb*T, 3C)
    qkv = (qkv.reshape(bb, T, 3 * C) + bqkv_ref[...]).reshape(bb * T, 3 * C)

    # ---- flat head split ----------------------------------------------------
    # torch: q.reshape(B, heads, T, D) on a contiguous tensor, i.e.
    #   q4[h, 4*ti+g, d] = q[h*TB+ti, g*D+d].
    # Build row-PERMUTED per-head matrices qh[n, g*TB+ti, d]; the same
    # permutation is used for q, k, v of a head, so softmax(QK^T)V yields the
    # identically permuted output; the inverse permutation is folded into the
    # mhsa_out matmul below.  Only sublane-aligned slices/concats are used.
    def to_heads(col0):
        blocks = [
            qkv[:, col0 + g * D: col0 + (g + 1) * D].reshape(N, TB, D)
            for g in range(heads)
        ]
        return jnp.concatenate(blocks, axis=1)                   # (N, T, D)

    qh = to_heads(0).astype(bf16)
    kh = to_heads(C).astype(bf16)
    vh = to_heads(2 * C).astype(bf16)

    # ---- scaled dot-product attention (f32 softmax) -------------------------
    s = jnp.einsum('ntd,nsd->nts', qh, kh,
                   preferred_element_type=jnp.float32) * scale
    m = jnp.max(s, axis=-1, keepdims=True)
    p = jnp.exp(s - m)
    l = jnp.sum(p, axis=-1, keepdims=True)
    o = jnp.einsum('nts,nsd->ntd', p.astype(bf16), vh,
                   preferred_element_type=jnp.float32)
    o = o * pl.reciprocal(l, approx=True)                        # (N, T, D)

    # ---- mhsa_out with the inverse head relayout folded in ------------------
    # attn @ Wo == sum_g  o[:, g*TB:(g+1)*TB, :].reshape(bb*T, D) @ Wo[g*D:(g+1)*D, :]
    mh = jnp.zeros((bb * T, C), jnp.float32)
    for g in range(heads):
        o_g = o[:, g * TB:(g + 1) * TB, :].reshape(bb * T, D).astype(bf16)
        mh = mh + jnp.dot(o_g, wo_ref[g * D:(g + 1) * D, :],
                          preferred_element_type=jnp.float32)

    x1 = x2 + mh                                                 # residual 1

    # ---- LN2 + GLU (zero-padded hidden) + linear_out + residual -------------
    xn2 = _layernorm(x1, ln2g_ref[...], ln2b_ref[...])
    g12 = jnp.dot(xn2.astype(bf16), w12_ref[...],
                  preferred_element_type=jnp.float32)            # (bb*T, 2*HP)
    glu = _gelu(g12[:, :HP]) * g12[:, HP:]
    # TODO(synk): training-mode Dropout (p=0.1) not modeled (identity at inference).
    out = x1 + jnp.dot(glu.astype(bf16), wout_ref[...],
                       preferred_element_type=jnp.float32)       # residual 2
    o_ref[...] = out.reshape(bb, T, C).astype(o_ref.dtype)


# ---------------------------------------------------------------------------
# wrapper
# ---------------------------------------------------------------------------
def _default_batch_block(B: int) -> int:
    kind = ""
    try:
        kind = jax.devices()[0].device_kind.lower()
    except Exception:
        pass
    if "v7" in kind and B > 1:
        return 1                       # 2 TCs/chip: shard batch across cores
    for cand in range(min(B, 8), 0, -1):   # single-TC: fold batch into one step
        if B % cand == 0:
            return cand
    return 1


def transformer_block_forward(x, params, *, heads, batch_block=None):
    B, T, C = x.shape
    assert C % heads == 0 and T % heads == 0 and (T // heads) % 8 == 0
    D = C // heads
    Hdim = params['w1'].shape[1]
    HP = ((Hdim + 127) // 128) * 128           # GLU hidden padded to lane mult.

    BB = _default_batch_block(B) if batch_block is None else batch_block
    assert B % BB == 0

    f32, bf16 = jnp.float32, jnp.bfloat16

    # ---- tiny one-time parameter prep (stays in the jitted wrapper) ---------
    pos = params['pos'][:T].astype(f32)
    wq, wk, wv = (params['wq'].astype(f32), params['wk'].astype(f32),
                  params['wv'].astype(f32))
    # fold the positional add into q/k biases:  q = ln1(x)@Wq + (pos@Wq + bq)
    bq_eff = jnp.dot(pos, wq) + params['bq'].astype(f32)
    bk_eff = jnp.dot(pos, wk) + params['bk'].astype(f32)
    bv_eff = jnp.broadcast_to(params['bv'].astype(f32), (T, C))
    b_qkv = jnp.concatenate([bq_eff, bk_eff, bv_eff], axis=-1)     # (T, 3C)
    w_qkv = jnp.concatenate([wq, wk, wv], axis=-1).astype(bf16)    # (C, 3C)

    padc = HP - Hdim
    w1p = jnp.pad(params['w1'].astype(f32), ((0, 0), (0, padc)))
    w2p = jnp.pad(params['w2'].astype(f32), ((0, 0), (0, padc)))
    w12 = jnp.concatenate([w1p, w2p], axis=-1).astype(bf16)        # (C, 2*HP)
    wout = jnp.pad(params['wout'].astype(f32), ((0, padc), (0, 0))).astype(bf16)
    wo = params['wo'].astype(bf16)
    ln1g, ln1b = params['ln1_g'].astype(f32), params['ln1_b'].astype(f32)
    ln2g, ln2b = params['ln2_g'].astype(f32), params['ln2_b'].astype(f32)

    param_arrays = (b_qkv, ln1g, ln1b, w_qkv, wo, ln2g, ln2b, w12, wout)

    data_spec = pl.BlockSpec((BB, T, C), lambda i: (i, 0, 0))
    in_specs = [data_spec] + [pl.BlockSpec(a.shape, lambda i: (0, 0))
                              for a in param_arrays]

    flops = 2 * B * T * C * (3 * C + C + 2 * HP + HP) + 4 * B * heads * T * T * D
    transcendentals = B * heads * T * T + 2 * B * T * HP
    bytes_accessed = (2 * B * T * C * 4 + int(b_qkv.size) * 4
                      + 2 * (int(w_qkv.size) + int(wo.size) + int(w12.size)
                             + int(wout.size)) + 4 * 4 * C)

    kernel = functools.partial(fused_block_kernel, heads=heads,
                               scale=1.0 / math.sqrt(D))
    return pl.pallas_call(
        kernel,
        grid=(B // BB,),
        in_specs=in_specs,
        out_specs=data_spec,
        out_shape=jax.ShapeDtypeStruct((B, T, C), jnp.float32),
        compiler_params=pltpu.CompilerParams(
            dimension_semantics=("parallel",)),
        cost_estimate=pl.CostEstimate(flops=flops,
                                      transcendentals=transcendentals,
                                      bytes_accessed=bytes_accessed),
    )(x.astype(jnp.float32), *param_arrays)


# ---------------------------------------------------------------------------
# parameters (deterministic synthetic init; weights stored (in, out), f32)
# ---------------------------------------------------------------------------
def init_params(key, dim=128, heads=4, pos_length=129):
    del heads
    hidden = dim * 3 // 2
    ks = iter(jax.random.split(key, 16))

    def nrm(shape, fan_in):
        return (jax.random.normal(next(ks), shape, jnp.float32)
                / jnp.sqrt(jnp.float32(fan_in)))

    return {
        'pos':   nrm((pos_length, dim), dim),                  # nn.Embedding
        'ln1_g': jnp.ones((1, dim), jnp.float32),
        'ln1_b': jnp.zeros((1, dim), jnp.float32),
        'ln2_g': jnp.ones((1, dim), jnp.float32),
        'ln2_b': jnp.zeros((1, dim), jnp.float32),
        # qk = Linear(dim, 2*dim) split into q / k halves (== chunk(2,-1))
        'wq': nrm((dim, dim), dim), 'bq': nrm((1, dim), dim),
        'wk': nrm((dim, dim), dim), 'bk': nrm((1, dim), dim),
        'wv': nrm((dim, dim), dim), 'bv': nrm((1, dim), dim),  # v = Linear(dim,dim)
        'wo': nrm((dim, dim), dim),                            # mhsa_out, no bias
        'w1': nrm((dim, hidden), dim),                         # GLU.linear1, no bias
        'w2': nrm((dim, hidden), dim),                         # GLU.linear2, no bias
        'wout': nrm((hidden, dim), hidden),                    # linear_out, no bias
    }


if __name__ == "__main__":
    key = jax.random.PRNGKey(0)
    k_x, k_p = jax.random.split(key)

    B, T, DIM, HEADS = 2, 128, 128, 4              # T <= pos_length=129; lane-dense C
    x = jax.random.normal(k_x, (B, T, DIM), jnp.float32)
    params = init_params(k_p, dim=DIM, heads=HEADS, pos_length=129)

    fwd = jax.jit(functools.partial(transformer_block_forward, heads=HEADS))
    out = jax.block_until_ready(fwd(x, params))

    assert out.shape == (B, T, DIM) and out.dtype == jnp.float32
    assert bool(jnp.all(jnp.isfinite(out)))
    print("KERNEL_OK")
</pallas_src>

<mosaic_0001>
module attributes {stable_mosaic.version = 11 : i64} {
  func.func @fused_block_kernel(%arg0: i32, %arg1: memref<2x128x128xf32, #tpu.memory_space<vmem>>, %arg2: memref<128x384xf32, #tpu.memory_space<vmem>>, %arg3: memref<1x128xf32, #tpu.memory_space<vmem>>, %arg4: memref<1x128xf32, #tpu.memory_space<vmem>>, %arg5: memref<128x384xbf16, #tpu.memory_space<vmem>>, %arg6: memref<128x128xbf16, #tpu.memory_space<vmem>>, %arg7: memref<1x128xf32, #tpu.memory_space<vmem>>, %arg8: memref<1x128xf32, #tpu.memory_space<vmem>>, %arg9: memref<128x512xbf16, #tpu.memory_space<vmem>>, %arg10: memref<256x128xbf16, #tpu.memory_space<vmem>>, %arg11: memref<2x128x128xf32, #tpu.memory_space<vmem>>) attributes {dimension_semantics = [#tpu.dimension_semantics<parallel>], iteration_bounds = array<i64: 1>, scalar_prefetch = 0 : i64, scratch_operands = 0 : i64, tpu.core_type = #tpu.core_type<tc>, window_params = [{transform_indices = @transform_0, window_bounds = array<i64: 2, 128, 128>}, {pipeline_mode = #tpu.pipeline_mode<synchronous>, transform_indices = @transform_1, window_bounds = array<i64: 128, 384>}, {pipeline_mode = #tpu.pipeline_mode<synchronous>, transform_indices = @transform_2, window_bounds = array<i64: 1, 128>}, {pipeline_mode = #tpu.pipeline_mode<synchronous>, transform_indices = @transform_3, window_bounds = array<i64: 1, 128>}, {pipeline_mode = #tpu.pipeline_mode<synchronous>, transform_indices = @transform_4, window_bounds = array<i64: 128, 384>}, {pipeline_mode = #tpu.pipeline_mode<synchronous>, transform_indices = @transform_5, window_bounds = array<i64: 128, 128>}, {pipeline_mode = #tpu.pipeline_mode<synchronous>, transform_indices = @transform_6, window_bounds = array<i64: 1, 128>}, {pipeline_mode = #tpu.pipeline_mode<synchronous>, transform_indices = @transform_7, window_bounds = array<i64: 1, 128>}, {pipeline_mode = #tpu.pipeline_mode<synchronous>, transform_indices = @transform_8, window_bounds = array<i64: 128, 512>}, {pipeline_mode = #tpu.pipeline_mode<synchronous>, transform_indices = @transform_9, window_bounds = array<i64: 256, 128>}, {transform_indices = @transform_10, window_bounds = array<i64: 2, 128, 128>}]} {
    %c0 = arith.constant 0 : index
    %c0_0 = arith.constant 0 : index
    %c0_1 = arith.constant 0 : index
    %0 = vector.load %arg1[%c0, %c0_0, %c0_1] : memref<2x128x128xf32, #tpu.memory_space<vmem>>, vector<2x128x128xf32>
    %1 = vector.shape_cast %0 : vector<2x128x128xf32> to vector<256x128xf32>
    %c0_2 = arith.constant 0 : index
    %c0_3 = arith.constant 0 : index
    %2 = vector.load %arg3[%c0_2, %c0_3] : memref<1x128xf32, #tpu.memory_space<vmem>>, vector<1x128xf32>
    %c0_4 = arith.constant 0 : index
    %c0_5 = arith.constant 0 : index
    %3 = vector.load %arg4[%c0_4, %c0_5] : memref<1x128xf32, #tpu.memory_space<vmem>>, vector<1x128xf32>
    %cst = arith.constant dense<0.000000e+00> : vector<256xf32>
    %4 = vector.multi_reduction <add>, %1, %cst [1] : vector<256x128xf32> to vector<256xf32>
    %5 = vector.shape_cast %4 : vector<256xf32> to vector<256x1xf32>
    %cst_6 = arith.constant 1.280000e+02 : f32
    %6 = vector.broadcast %cst_6 : f32 to vector<256x1xf32>
    %7 = arith.divf %5, %6 : vector<256x1xf32>
    %8 = vector.broadcast %7 : vector<256x1xf32> to vector<256x128xf32>
    %9 = arith.subf %1, %8 : vector<256x128xf32>
    %10 = arith.mulf %9, %9 : vector<256x128xf32>
    %cst_7 = arith.constant dense<0.000000e+00> : vector<256xf32>
    %11 = vector.multi_reduction <add>, %10, %cst_7 [1] : vector<256x128xf32> to vector<256xf32>
    %12 = vector.shape_cast %11 : vector<256xf32> to vector<256x1xf32>
    %cst_8 = arith.constant 1.280000e+02 : f32
    %13 = vector.broadcast %cst_8 : f32 to vector<256x1xf32>
    %14 = arith.divf %12, %13 : vector<256x1xf32>
    %15 = vector.broadcast %7 : vector<256x1xf32> to vector<256x128xf32>
    %16 = arith.subf %1, %15 : vector<256x128xf32>
    %cst_9 = arith.constant 9.99999974E-6 : f32
    %17 = vector.broadcast %cst_9 : f32 to vector<256x1xf32>
    %18 = arith.addf %14, %17 : vector<256x1xf32>
    %19 = math.rsqrt %18 : vector<256x1xf32>
    %20 = vector.broadcast %19 : vector<256x1xf32> to vector<256x128xf32>
    %21 = arith.mulf %16, %20 : vector<256x128xf32>
    %22 = vector.broadcast %2 : vector<1x128xf32> to vector<256x128xf32>
    %23 = arith.mulf %21, %22 : vector<256x128xf32>
    %24 = vector.broadcast %3 : vector<1x128xf32> to vector<256x128xf32>
    %25 = arith.addf %23, %24 : vector<256x128xf32>
    %26 = arith.truncf %25 : vector<256x128xf32> to vector<256x128xbf16>
    %c0_10 = arith.constant 0 : index
    %c0_11 = arith.constant 0 : index
    %27 = vector.load %arg5[%c0_10, %c0_11] : memref<128x384xbf16, #tpu.memory_space<vmem>>, vector<128x384xbf16>
    %cst_12 = arith.constant dense<0.000000e+00> : vector<256x384xf32>
    %28 = tpu.matmul %26, %27, %cst_12 {dimension_numbers = #tpu.dot_dimension_numbers<[1], [0], [0], [1], [0, 0, 1, 1], [], []>} : vector<256x128xbf16>, vector<128x384xbf16>, vector<256x384xf32> -> vector<256x384xf32>
    %29 = vector.shape_cast %28 : vector<256x384xf32> to vector<2x128x384xf32>
    %c0_13 = arith.constant 0 : index
    %c0_14 = arith.constant 0 : index
    %30 = vector.load %arg2[%c0_13, %c0_14] : memref<128x384xf32, #tpu.memory_space<vmem>>, vector<128x384xf32>
    %31 = vector.shape_cast %30 : vector<128x384xf32> to vector<1x128x384xf32>
    %32 = vector.broadcast %31 : vector<1x128x384xf32> to vector<2x128x384xf32>
    %33 = arith.addf %29, %32 : vector<2x128x384xf32>
    %34 = vector.shape_cast %33 : vector<2x128x384xf32> to vector<256x384xf32>
    %35 = vector.extract_strided_slice %34 {offsets = [0, 0], sizes = [256, 32], strides = [1, 1]} : vector<256x384xf32> to vector<256x32xf32>
    %36 = vector.shape_cast %35 : vector<256x32xf32> to vector<8x32x32xf32>
    %37 = vector.extract_strided_slice %34 {offsets = [0, 32], sizes = [256, 32], strides = [1, 1]} : vector<256x384xf32> to vector<256x32xf32>
    %38 = vector.shape_cast %37 : vector<256x32xf32> to vector<8x32x32xf32>
    %39 = vector.extract_strided_slice %34 {offsets = [0, 64], sizes = [256, 32], strides = [1, 1]} : vector<256x384xf32> to vector<256x32xf32>
    %40 = vector.shape_cast %39 : vector<256x32xf32> to vector<8x32x32xf32>
    %41 = vector.extract_strided_slice %34 {offsets = [0, 96], sizes = [256, 32], strides = [1, 1]} : vector<256x384xf32> to vector<256x32xf32>
    %42 = vector.shape_cast %41 : vector<256x32xf32> to vector<8x32x32xf32>
    %43 = tpu.concatenate %36, %38, %40, %42 in 1 : vector<8x32x32xf32>, vector<8x32x32xf32>, vector<8x32x32xf32>, vector<8x32x32xf32> -> vector<8x128x32xf32>
    %44 = arith.truncf %43 : vector<8x128x32xf32> to vector<8x128x32xbf16>
    %45 = vector.extract_strided_slice %34 {offsets = [0, 128], sizes = [256, 32], strides = [1, 1]} : vector<256x384xf32> to vector<256x32xf32>
    %46 = vector.shape_cast %45 : vector<256x32xf32> to vector<8x32x32xf32>
    %47 = vector.extract_strided_slice %34 {offsets = [0, 160], sizes = [256, 32], strides = [1, 1]} : vector<256x384xf32> to vector<256x32xf32>
    %48 = vector.shape_cast %47 : vector<256x32xf32> to vector<8x32x32xf32>
    %49 = vector.extract_strided_slice %34 {offsets = [0, 192], sizes = [256, 32], strides = [1, 1]} : vector<256x384xf32> to vector<256x32xf32>
    %50 = vector.shape_cast %49 : vector<256x32xf32> to vector<8x32x32xf32>
    %51 = vector.extract_strided_slice %34 {offsets = [0, 224], sizes = [256, 32], strides = [1, 1]} : vector<256x384xf32> to vector<256x32xf32>
    %52 = vector.shape_cast %51 : vector<256x32xf32> to vector<8x32x32xf32>
    %53 = tpu.concatenate %46, %48, %50, %52 in 1 : vector<8x32x32xf32>, vector<8x32x32xf32>, vector<8x32x32xf32>, vector<8x32x32xf32> -> vector<8x128x32xf32>
    %54 = arith.truncf %53 : vector<8x128x32xf32> to vector<8x128x32xbf16>
    %55 = vector.extract_strided_slice %34 {offsets = [0, 256], sizes = [256, 32], strides = [1, 1]} : vector<256x384xf32> to vector<256x32xf32>
    %56 = vector.shape_cast %55 : vector<256x32xf32> to vector<8x32x32xf32>
    %57 = vector.extract_strided_slice %34 {offsets = [0, 288], sizes = [256, 32], strides = [1, 1]} : vector<256x384xf32> to vector<256x32xf32>
    %58 = vector.shape_cast %57 : vector<256x32xf32> to vector<8x32x32xf32>
    %59 = vector.extract_strided_slice %34 {offsets = [0, 320], sizes = [256, 32], strides = [1, 1]} : vector<256x384xf32> to vector<256x32xf32>
    %60 = vector.shape_cast %59 : vector<256x32xf32> to vector<8x32x32xf32>
    %61 = vector.extract_strided_slice %34 {offsets = [0, 352], sizes = [256, 32], strides = [1, 1]} : vector<256x384xf32> to vector<256x32xf32>
    %62 = vector.shape_cast %61 : vector<256x32xf32> to vector<8x32x32xf32>
    %63 = tpu.concatenate %56, %58, %60, %62 in 1 : vector<8x32x32xf32>, vector<8x32x32xf32>, vector<8x32x32xf32>, vector<8x32x32xf32> -> vector<8x128x32xf32>
    %64 = arith.truncf %63 : vector<8x128x32xf32> to vector<8x128x32xbf16>
    "tpu.trace_start"() <{level = 10 : i32, message = "ntd,nsd->nts"}> : () -> ()
    %cst_15 = arith.constant dense<0.000000e+00> : vector<8x128x128xf32>
    %65 = tpu.matmul %44, %54, %cst_15 {dimension_numbers = #tpu.dot_dimension_numbers<[2], [2], [1], [1], [0, 0, 0, 1, 1, 1], [0], [0]>} : vector<8x128x32xbf16>, vector<8x128x32xbf16>, vector<8x128x128xf32> -> vector<8x128x128xf32>
    "tpu.trace_stop"() : () -> ()
    %cst_16 = arith.constant 0.176776692 : f32
    %66 = vector.broadcast %cst_16 : f32 to vector<8x128x128xf32>
    %67 = arith.mulf %65, %66 : vector<8x128x128xf32>
    %cst_17 = arith.constant dense<0xFF800000> : vector<8x128xf32>
    %68 = vector.multi_reduction <maximumf>, %67, %cst_17 [2] : vector<8x128x128xf32> to vector<8x128xf32>
    %69 = vector.shape_cast %68 : vector<8x128xf32> to vector<8x128x1xf32>
    %70 = vector.broadcast %69 : vector<8x128x1xf32> to vector<8x128x128xf32>
    %71 = arith.subf %67, %70 : vector<8x128x128xf32>
    %72 = math.exp %71 : vector<8x128x128xf32>
    %cst_18 = arith.constant dense<0.000000e+00> : vector<8x128xf32>
    %73 = vector.multi_reduction <add>, %72, %cst_18 [2] : vector<8x128x128xf32> to vector<8x128xf32>
    %74 = vector.shape_cast %73 : vector<8x128xf32> to vector<8x128x1xf32>
    %75 = arith.truncf %72 : vector<8x128x128xf32> to vector<8x128x128xbf16>
    "tpu.trace_start"() <{level = 10 : i32, message = "nts,nsd->ntd"}> : () -> ()
    %cst_19 = arith.constant dense<0.000000e+00> : vector<8x128x32xf32>
    %76 = tpu.matmul %75, %64, %cst_19 {dimension_numbers = #tpu.dot_dimension_numbers<[2], [1], [1], [2], [0, 0, 0, 1, 1, 2], [0], [0]>} : vector<8x128x128xbf16>, vector<8x128x32xbf16>, vector<8x128x32xf32> -> vector<8x128x32xf32>
    "tpu.trace_stop"() : () -> ()
    %77 = tpu.reciprocal %74 {approx = true} : vector<8x128x1xf32> -> vector<8x128x1xf32>
    %78 = vector.broadcast %77 : vector<8x128x1xf32> to vector<8x128x32xf32>
    %79 = arith.mulf %76, %78 : vector<8x128x32xf32>
    %cst_20 = arith.constant 0.000000e+00 : f32
    %80 = vector.broadcast %cst_20 : f32 to vector<256x128xf32>
    %81 = vector.extract_strided_slice %79 {offsets = [0, 0, 0], sizes = [8, 32, 32], strides = [1, 1, 1]} : vector<8x128x32xf32> to vector<8x32x32xf32>
    %82 = vector.shape_cast %81 : vector<8x32x32xf32> to vector<256x32xf32>
    %83 = arith.truncf %82 : vector<256x32xf32> to vector<256x32xbf16>
    %c0_21 = arith.constant 0 : index
    %c0_22 = arith.constant 0 : index
    %84 = vector.load %arg6[%c0_21, %c0_22] : memref<128x128xbf16, #tpu.memory_space<vmem>>, vector<32x128xbf16>
    %cst_23 = arith.constant dense<0.000000e+00> : vector<256x128xf32>
    %85 = tpu.matmul %83, %84, %cst_23 {dimension_numbers = #tpu.dot_dimension_numbers<[1], [0], [0], [1], [0, 0, 1, 1], [], []>} : vector<256x32xbf16>, vector<32x128xbf16>, vector<256x128xf32> -> vector<256x128xf32>
    %86 = arith.addf %80, %85 : vector<256x128xf32>
    %87 = vector.extract_strided_slice %79 {offsets = [0, 32, 0], sizes = [8, 32, 32], strides = [1, 1, 1]} : vector<8x128x32xf32> to vector<8x32x32xf32>
    %88 = vector.shape_cast %87 : vector<8x32x32xf32> to vector<256x32xf32>
    %89 = arith.truncf %88 : vector<256x32xf32> to vector<256x32xbf16>
    %c32 = arith.constant 32 : index
    %c0_24 = arith.constant 0 : index
    %90 = vector.load %arg6[%c32, %c0_24] : memref<128x128xbf16, #tpu.memory_space<vmem>>, vector<32x128xbf16>
    %cst_25 = arith.constant dense<0.000000e+00> : vector<256x128xf32>
    %91 = tpu.matmul %89, %90, %cst_25 {dimension_numbers = #tpu.dot_dimension_numbers<[1], [0], [0], [1], [0, 0, 1, 1], [], []>} : vector<256x32xbf16>, vector<32x128xbf16>, vector<256x128xf32> -> vector<256x128xf32>
    %92 = arith.addf %86, %91 : vector<256x128xf32>
    %93 = vector.extract_strided_slice %79 {offsets = [0, 64, 0], sizes = [8, 32, 32], strides = [1, 1, 1]} : vector<8x128x32xf32> to vector<8x32x32xf32>
    %94 = vector.shape_cast %93 : vector<8x32x32xf32> to vector<256x32xf32>
    %95 = arith.truncf %94 : vector<256x32xf32> to vector<256x32xbf16>
    %c64 = arith.constant 64 : index
    %c0_26 = arith.constant 0 : index
    %96 = vector.load %arg6[%c64, %c0_26] : memref<128x128xbf16, #tpu.memory_space<vmem>>, vector<32x128xbf16>
    %cst_27 = arith.constant dense<0.000000e+00> : vector<256x128xf32>
    %97 = tpu.matmul %95, %96, %cst_27 {dimension_numbers = #tpu.dot_dimension_numbers<[1], [0], [0], [1], [0, 0, 1, 1], [], []>} : vector<256x32xbf16>, vector<32x128xbf16>, vector<256x128xf32> -> vector<256x128xf32>
    %98 = arith.addf %92, %97 : vector<256x128xf32>
    %99 = vector.extract_strided_slice %79 {offsets = [0, 96, 0], sizes = [8, 32, 32], strides = [1, 1, 1]} : vector<8x128x32xf32> to vector<8x32x32xf32>
    %100 = vector.shape_cast %99 : vector<8x32x32xf32> to vector<256x32xf32>
    %101 = arith.truncf %100 : vector<256x32xf32> to vector<256x32xbf16>
    %c96 = arith.constant 96 : index
    %c0_28 = arith.constant 0 : index
    %102 = vector.load %arg6[%c96, %c0_28] : memref<128x128xbf16, #tpu.memory_space<vmem>>, vector<32x128xbf16>
    %cst_29 = arith.constant dense<0.000000e+00> : vector<256x128xf32>
    %103 = tpu.matmul %101, %102, %cst_29 {dimension_numbers = #tpu.dot_dimension_numbers<[1], [0], [0], [1], [0, 0, 1, 1], [], []>} : vector<256x32xbf16>, vector<32x128xbf16>, vector<256x128xf32> -> vector<256x128xf32>
    %104 = arith.addf %98, %103 : vector<256x128xf32>
    %105 = arith.addf %1, %104 : vector<256x128xf32>
    %c0_30 = arith.constant 0 : index
    %c0_31 = arith.constant 0 : index
    %106 = vector.load %arg7[%c0_30, %c0_31] : memref<1x128xf32, #tpu.memory_space<vmem>>, vector<1x128xf32>
    %c0_32 = arith.constant 0 : index
    %c0_33 = arith.constant 0 : index
    %107 = vector.load %arg8[%c0_32, %c0_33] : memref<1x128xf32, #tpu.memory_space<vmem>>, vector<1x128xf32>
    %cst_34 = arith.constant dense<0.000000e+00> : vector<256xf32>
    %108 = vector.multi_reduction <add>, %105, %cst_34 [1] : vector<256x128xf32> to vector<256xf32>
    %109 = vector.shape_cast %108 : vector<256xf32> to vector<256x1xf32>
    %cst_35 = arith.constant 1.280000e+02 : f32
    %110 = vector.broadcast %cst_35 : f32 to vector<256x1xf32>
    %111 = arith.divf %109, %110 : vector<256x1xf32>
    %112 = vector.broadcast %111 : vector<256x1xf32> to vector<256x128xf32>
    %113 = arith.subf %105, %112 : vector<256x128xf32>
    %114 = arith.mulf %113, %113 : vector<256x128xf32>
    %cst_36 = arith.constant dense<0.000000e+00> : vector<256xf32>
    %115 = vector.multi_reduction <add>, %114, %cst_36 [1] : vector<256x128xf32> to vector<256xf32>
    %116 = vector.shape_cast %115 : vector<256xf32> to vector<256x1xf32>
    %cst_37 = arith.constant 1.280000e+02 : f32
    %117 = vector.broadcast %cst_37 : f32 to vector<256x1xf32>
    %118 = arith.divf %116, %117 : vector<256x1xf32>
    %119 = vector.broadcast %111 : vector<256x1xf32> to vector<256x128xf32>
    %120 = arith.subf %105, %119 : vector<256x128xf32>
    %cst_38 = arith.constant 9.99999974E-6 : f32
    %121 = vector.broadcast %cst_38 : f32 to vector<256x1xf32>
    %122 = arith.addf %118, %121 : vector<256x1xf32>
    %123 = math.rsqrt %122 : vector<256x1xf32>
    %124 = vector.broadcast %123 : vector<256x1xf32> to vector<256x128xf32>
    %125 = arith.mulf %120, %124 : vector<256x128xf32>
    %126 = vector.broadcast %106 : vector<1x128xf32> to vector<256x128xf32>
    %127 = arith.mulf %125, %126 : vector<256x128xf32>
    %128 = vector.broadcast %107 : vector<1x128xf32> to vector<256x128xf32>
    %129 = arith.addf %127, %128 : vector<256x128xf32>
    %130 = arith.truncf %129 : vector<256x128xf32> to vector<256x128xbf16>
    %c0_39 = arith.constant 0 : index
    %c0_40 = arith.constant 0 : index
    %131 = vector.load %arg9[%c0_39, %c0_40] : memref<128x512xbf16, #tpu.memory_space<vmem>>, vector<128x512xbf16>
    %cst_41 = arith.constant dense<0.000000e+00> : vector<256x512xf32>
    %132 = tpu.matmul %130, %131, %cst_41 {dimension_numbers = #tpu.dot_dimension_numbers<[1], [0], [0], [1], [0, 0, 1, 1], [], []>} : vector<256x128xbf16>, vector<128x512xbf16>, vector<256x512xf32> -> vector<256x512xf32>
    %133 = vector.extract_strided_slice %132 {offsets = [0, 0], sizes = [256, 256], strides = [1, 1]} : vector<256x512xf32> to vector<256x256xf32>
    %cst_42 = arith.constant 5.000000e-01 : f32
    %134 = vector.broadcast %cst_42 : f32 to vector<256x256xf32>
    %135 = arith.mulf %134, %133 : vector<256x256xf32>
    %cst_43 = arith.constant 0.707106769 : f32
    %136 = vector.broadcast %cst_43 : f32 to vector<256x256xf32>
    %137 = arith.mulf %133, %136 : vector<256x256xf32>
    %138 = math.absf %137 : vector<256x256xf32>
    %cst_44 = arith.constant 0.327591091 : f32
    %139 = vector.broadcast %cst_44 : f32 to vector<256x256xf32>
    %140 = arith.mulf %139, %138 : vector<256x256xf32>
    %cst_45 = arith.constant 1.000000e+00 : f32
    %141 = vector.broadcast %cst_45 : f32 to vector<256x256xf32>
    %142 = arith.addf %141, %140 : vector<256x256xf32>
    %cst_46 = arith.constant 1.000000e+00 : f32
    %143 = vector.broadcast %cst_46 : f32 to vector<256x256xf32>
    %144 = arith.divf %143, %142 : vector<256x256xf32>
    %cst_47 = arith.constant 1.06140542 : f32
    %145 = vector.broadcast %cst_47 : f32 to vector<256x256xf32>
    %146 = arith.mulf %145, %144 : vector<256x256xf32>
    %cst_48 = arith.constant -1.45315206 : f32
    %147 = vector.broadcast %cst_48 : f32 to vector<256x256xf32>
    %148 = arith.addf %146, %147 : vector<256x256xf32>
    %149 = arith.mulf %148, %144 : vector<256x256xf32>
    %cst_49 = arith.constant 1.42141378 : f32
    %150 = vector.broadcast %cst_49 : f32 to vector<256x256xf32>
    %151 = arith.addf %149, %150 : vector<256x256xf32>
    %152 = arith.mulf %151, %144 : vector<256x256xf32>
    %cst_50 = arith.constant -0.284496725 : f32
    %153 = vector.broadcast %cst_50 : f32 to vector<256x256xf32>
    %154 = arith.addf %152, %153 : vector<256x256xf32>
    %155 = arith.mulf %154, %144 : vector<256x256xf32>
    %cst_51 = arith.constant 0.254829586 : f32
    %156 = vector.broadcast %cst_51 : f32 to vector<256x256xf32>
    %157 = arith.addf %155, %156 : vector<256x256xf32>
    %158 = arith.mulf %157, %144 : vector<256x256xf32>
    %cst_52 = arith.constant 0.000000e+00 : f32
    %159 = vector.broadcast %cst_52 : f32 to vector<256x256xf32>
    %160 = arith.subf %159, %138 : vector<256x256xf32>
    %161 = arith.mulf %160, %138 : vector<256x256xf32>
    %162 = math.exp %161 : vector<256x256xf32>
    %163 = arith.mulf %158, %162 : vector<256x256xf32>
    %cst_53 = arith.constant 1.000000e+00 : f32
    %164 = vector.broadcast %cst_53 : f32 to vector<256x256xf32>
    %165 = arith.subf %164, %163 : vector<256x256xf32>
    %cst_54 = arith.constant 0.000000e+00 : f32
    %166 = vector.broadcast %cst_54 : f32 to vector<256x256xf32>
    %167 = arith.cmpf olt, %137, %166 : vector<256x256xf32>
    %cst_55 = arith.constant 0.000000e+00 : f32
    %168 = vector.broadcast %cst_55 : f32 to vector<256x256xf32>
    %169 = arith.subf %168, %165 : vector<256x256xf32>
    %170 = arith.select %167, %169, %165 : vector<256x256xi1>, vector<256x256xf32>
    %cst_56 = arith.constant 1.000000e+00 : f32
    %171 = vector.broadcast %cst_56 : f32 to vector<256x256xf32>
    %172 = arith.addf %171, %170 : vector<256x256xf32>
    %173 = arith.mulf %135, %172 : vector<256x256xf32>
    %174 = vector.extract_strided_slice %132 {offsets = [0, 256], sizes = [256, 256], strides = [1, 1]} : vector<256x512xf32> to vector<256x256xf32>
    %175 = arith.mulf %173, %174 : vector<256x256xf32>
    %176 = arith.truncf %175 : vector<256x256xf32> to vector<256x256xbf16>
    %c0_57 = arith.constant 0 : index
    %c0_58 = arith.constant 0 : index
    %177 = vector.load %arg10[%c0_57, %c0_58] : memref<256x128xbf16, #tpu.memory_space<vmem>>, vector<256x128xbf16>
    %cst_59 = arith.constant dense<0.000000e+00> : vector<256x128xf32>
    %178 = tpu.matmul %176, %177, %cst_59 {dimension_numbers = #tpu.dot_dimension_numbers<[1], [0], [0], [1], [0, 0, 1, 1], [], []>} : vector<256x256xbf16>, vector<256x128xbf16>, vector<256x128xf32> -> vector<256x128xf32>
    %179 = arith.addf %105, %178 : vector<256x128xf32>
    %180 = vector.shape_cast %179 : vector<256x128xf32> to vector<2x128x128xf32>
    %c0_60 = arith.constant 0 : index
    %c0_61 = arith.constant 0 : index
    %c0_62 = arith.constant 0 : index
    %181 = vector.load %arg11[%c0_60, %c0_61, %c0_62] : memref<2x128x128xf32, #tpu.memory_space<vmem>>, vector<2x128x128xf32>
    tpu.vector_store %arg11[%c0_60, %c0_61, %c0_62], %180 {strides = array<i32>} : memref<2x128x128xf32, #tpu.memory_space<vmem>>, vector<2x128x128xf32>,
    return
  }
  func.func @transform_0(%arg0: i32) -> (i32, i32, i32) {
    %c0_i32 = arith.constant 0 : i32
    %c0_i32_0 = arith.constant 0 : i32
    %c0_i32_1 = arith.constant 0 : i32
    return %arg0, %c0_i32, %c0_i32_0 : i32, i32, i32
  }
  func.func @transform_1(%arg0: i32) -> (i32, i32) {
    %c0_i32 = arith.constant 0 : i32
    %c0_i32_0 = arith.constant 0 : i32
    %c0_i32_1 = arith.constant 0 : i32
    return %c0_i32, %c0_i32_0 : i32, i32
  }
  func.func @transform_2(%arg0: i32) -> (i32, i32) {
    %c0_i32 = arith.constant 0 : i32
    %c0_i32_0 = arith.constant 0 : i32
    %c0_i32_1 = arith.constant 0 : i32
    return %c0_i32, %c0_i32_0 : i32, i32
  }
  func.func @transform_3(%arg0: i32) -> (i32, i32) {
    %c0_i32 = arith.constant 0 : i32
    %c0_i32_0 = arith.constant 0 : i32
    %c0_i32_1 = arith.constant 0 : i32
    return %c0_i32, %c0_i32_0 : i32, i32
  }
  func.func @transform_4(%arg0: i32) -> (i32, i32) {
    %c0_i32 = arith.constant 0 : i32
    %c0_i32_0 = arith.constant 0 : i32
    %c0_i32_1 = arith.constant 0 : i32
    return %c0_i32, %c0_i32_0 : i32, i32
  }
  func.func @transform_5(%arg0: i32) -> (i32, i32) {
    %c0_i32 = arith.constant 0 : i32
    %c0_i32_0 = arith.constant 0 : i32
    %c0_i32_1 = arith.constant 0 : i32
    return %c0_i32, %c0_i32_0 : i32, i32
  }
  func.func @transform_6(%arg0: i32) -> (i32, i32) {
    %c0_i32 = arith.constant 0 : i32
    %c0_i32_0 = arith.constant 0 : i32
    %c0_i32_1 = arith.constant 0 : i32
    return %c0_i32, %c0_i32_0 : i32, i32
  }
  func.func @transform_7(%arg0: i32) -> (i32, i32) {
    %c0_i32 = arith.constant 0 : i32
    %c0_i32_0 = arith.constant 0 : i32
    %c0_i32_1 = arith.constant 0 : i32
    return %c0_i32, %c0_i32_0 : i32, i32
  }
  func.func @transform_8(%arg0: i32) -> (i32, i32) {
    %c0_i32 = arith.constant 0 : i32
    %c0_i32_0 = arith.constant 0 : i32
    %c0_i32_1 = arith.constant 0 : i32
    return %c0_i32, %c0_i32_0 : i32, i32
  }
  func.func @transform_9(%arg0: i32) -> (i32, i32) {
    %c0_i32 = arith.constant 0 : i32
    %c0_i32_0 = arith.constant 0 : i32
    %c0_i32_1 = arith.constant 0 : i32
    return %c0_i32, %c0_i32_0 : i32, i32
  }
  func.func @transform_10(%arg0: i32) -> (i32, i32, i32) {
    %c0_i32 = arith.constant 0 : i32
    %c0_i32_0 = arith.constant 0 : i32
    %c0_i32_1 = arith.constant 0 : i32
    return %arg0, %c0_i32, %c0_i32_0 : i32, i32, i32
  }
}

</mosaic_0001>

<llo_original>
// kernel: transformer_block_forward.1
$region0: #{transformer_block_forward.1}
  #allocation0 [shape = 'u32[]', space=smem, size = 0x4, offset = 0x4, fixed_abs, tag = 'smem constant byte address 0x4 - core index']
  #allocation1 [shape = 'u32[144,128]{1,0:T(1,128)}', space=vmem, size = 0x12000, scoped, tag = 'internal scratch']
  %s0 = inlined_call_operand.vmem [shape: f32[2,128,128], index: 0, kind: input, shape index: {}]
  %s1 = inlined_call_operand.vmem [shape: f32[128,384], index: 1, kind: input, shape index: {}]
  %s2 = inlined_call_operand.vmem [shape: f32[1,128], index: 2, kind: input, shape index: {}]
  %s3 = inlined_call_operand.vmem [shape: f32[1,128], index: 3, kind: input, shape index: {}]
  %s4 = inlined_call_operand.vmem [shape: bf16[128,384], index: 4, kind: input, shape index: {}]
  %s5 = inlined_call_operand.vmem [shape: bf16[128,128], index: 5, kind: input, shape index: {}]
  %s6 = inlined_call_operand.vmem [shape: f32[1,128], index: 6, kind: input, shape index: {}]
  %s7 = inlined_call_operand.vmem [shape: f32[1,128], index: 7, kind: input, shape index: {}]
  %s8 = inlined_call_operand.vmem [shape: bf16[128,512], index: 8, kind: input, shape index: {}]
  %s9 = inlined_call_operand.vmem [shape: bf16[256,128], index: 9, kind: input, shape index: {}]
  %s10 = inlined_call_operand.hbm [shape: f32[2,128,128], index: 10, kind: output, shape index: {}]
  %s11 = sld [smem:[#allocation0]]
  $region50: #{transformer_block_forward.1} parent=0
    _
  %s13 = ssub.s32 1, %s11
  %s14 = scalar_select 0, %s13, %s11
  $region1: #{transformer_block_forward.1} parent=0
    #allocation2 [shape = 'u8[131072]{0}', space=vmem, size = 0x20000, scoped, tag = 'output window, operand 0, single buffered']
    #allocation3 [shape = 's32[1]{0}', space=sflag, size = 0x4, scoped, tag = 'scoped memory for transformer_block_forward.1']
    %15 = vsyncpa [#allocation3], 0
    // Predicated region
    $region2: #{transformer_block_forward.1} parent=1 // pred_check
      _
    $region3: #{transformer_block_forward.1} parent=1 // pred_check_branch
      %17 = sbr.rel (0) target = $region5
    $region4: #{transformer_block_forward.1} parent=1 // pred_region
      _
    $region5: #{transformer_block_forward.1} parent=1 // pred_fallthru
      _
    // Predicated region
    $region6: #{transformer_block_forward.1} parent=1 // pred_check
      _
    $region7: #{transformer_block_forward.1} parent=1 // pred_check_branch
      %19 = sbr.rel (0) target = $region9
    $region8: #{transformer_block_forward.1} parent=1 // pred_region
      _
    $region9: #{transformer_block_forward.1} parent=1 // pred_fallthru
      _
    // Predicated region
    $region10: #{transformer_block_forward.1} parent=1 // pred_check
      _
    $region11: #{transformer_block_forward.1} parent=1 // pred_check_branch
      %21 = sbr.rel (0) target = $region13
    $region12: #{transformer_block_forward.1} parent=1 // pred_region
      _
    $region13: #{transformer_block_forward.1} parent=1 // pred_fallthru
      _
    // Predicated region
    $region14: #{transformer_block_forward.1} parent=1 // pred_check
      _
    $region15: #{transformer_block_forward.1} parent=1 // pred_check_branch
      %23 = sbr.rel (0) target = $region17
    $region16: #{transformer_block_forward.1} parent=1 // pred_region
      _
    $region17: #{transformer_block_forward.1} parent=1 // pred_fallthru
      _
    // Predicated region
    $region18: #{transformer_block_forward.1} parent=1 // pred_check
      _
    $region19: #{transformer_block_forward.1} parent=1 // pred_check_branch
      %25 = sbr.rel (0) target = $region21
    $region20: #{transformer_block_forward.1} parent=1 // pred_region
      _
    $region21: #{transformer_block_forward.1} parent=1 // pred_fallthru
      _
    // Predicated region
    $region22: #{transformer_block_forward.1} parent=1 // pred_check
      _
    $region23: #{transformer_block_forward.1} parent=1 // pred_check_branch
      %27 = sbr.rel (0) target = $region25
    $region24: #{transformer_block_forward.1} parent=1 // pred_region
      _
    $region25: #{transformer_block_forward.1} parent=1 // pred_fallthru
      _
    // Predicated region
    $region26: #{transformer_block_forward.1} parent=1 // pred_check
      _
    $region27: #{transformer_block_forward.1} parent=1 // pred_check_branch
      %29 = sbr.rel (0) target = $region29
    $region28: #{transformer_block_forward.1} parent=1 // pred_region
      _
    $region29: #{transformer_block_forward.1} parent=1 // pred_fallthru
      _
    // Predicated region
    $region30: #{transformer_block_forward.1} parent=1 // pred_check
      _
    $region31: #{transformer_block_forward.1} parent=1 // pred_check_branch
      %31 = sbr.rel (0) target = $region33
    $region32: #{transformer_block_forward.1} parent=1 // pred_region
      _
    $region33: #{transformer_block_forward.1} parent=1 // pred_fallthru
      _
    // Predicated region
    $region34: #{transformer_block_forward.1} parent=1 // pred_check
      _
    $region35: #{transformer_block_forward.1} parent=1 // pred_check_branch
      %33 = sbr.rel (0) target = $region37
    $region36: #{transformer_block_forward.1} parent=1 // pred_region
      _
    $region37: #{transformer_block_forward.1} parent=1 // pred_fallthru
      _
    // Predicated region
    $region38: #{transformer_block_forward.1} parent=1 // pred_check
      _
    $region39: #{transformer_block_forward.1} parent=1 // pred_check_branch
      %35 = sbr.rel (0) target = $region41
    $region40: #{transformer_block_forward.1} parent=1 // pred_region
      _
    $region41: #{transformer_block_forward.1} parent=1 // pred_fallthru
      _
    %v37 = vld [vmem:[%s0] sm:$0xff]
    %v38 = vld [vmem:[%s0 + $0x8] sm:$0xff]
    %v39 = vld [vmem:[%s0 + $0x10] sm:$0xff]
    %v40 = vld [vmem:[%s0 + $0x18] sm:$0xff]
    %v41 = vld [vmem:[%s0 + $0x20] sm:$0xff]
    %v42 = vld [vmem:[%s0 + $0x28] sm:$0xff]
    %v43 = vld [vmem:[%s0 + $0x30] sm:$0xff]
    %v44 = vld [vmem:[%s0 + $0x38] sm:$0xff]
    %v45 = vld [vmem:[%s0 + $0x40] sm:$0xff]
    %v46 = vld [vmem:[%s0 + $0x48] sm:$0xff]
    %v47 = vld [vmem:[%s0 + $0x50] sm:$0xff]
    %v48 = vld [vmem:[%s0 + $0x58] sm:$0xff]
    %v49 = vld [vmem:[%s0 + $0x60] sm:$0xff]
    %v50 = vld [vmem:[%s0 + $0x68] sm:$0xff]
    %v51 = vld [vmem:[%s0 + $0x70] sm:$0xff]
    %v52 = vld [vmem:[%s0 + $0x78] sm:$0xff]
    %v53 = vld [vmem:[%s0 + $0x80] sm:$0xff]
    %v54 = vld [vmem:[%s0 + $0x88] sm:$0xff]
    %v55 = vld [vmem:[%s0 + $0x90] sm:$0xff]
    %v56 = vld [vmem:[%s0 + $0x98] sm:$0xff]
    %v57 = vld [vmem:[%s0 + $0xa0] sm:$0xff]
    %v58 = vld [vmem:[%s0 + $0xa8] sm:$0xff]
    %v59 = vld [vmem:[%s0 + $0xb0] sm:$0xff]
    %v60 = vld [vmem:[%s0 + $0xb8] sm:$0xff]
    %v61 = vld [vmem:[%s0 + $0xc0] sm:$0xff]
    %v62 = vld [vmem:[%s0 + $0xc8] sm:$0xff]
    %v63 = vld [vmem:[%s0 + $0xd0] sm:$0xff]
    %v64 = vld [vmem:[%s0 + $0xd8] sm:$0xff]
    %v65 = vld [vmem:[%s0 + $0xe0] sm:$0xff]
    %v66 = vld [vmem:[%s0 + $0xe8] sm:$0xff]
    %v67 = vld [vmem:[%s0 + $0xf0] sm:$0xff]
    %v68 = vld [vmem:[%s0 + $0xf8] sm:$0xff]
    %v69 = vld [vmem:[%s2] sm:$0x1]
    %v70 = vld [vmem:[%s3] sm:$0x1]
    %71 = vadd.xlane.f32.xlu0 %v37
    %v72 = vpop.xlane.xlu0 %71
    %73 = vadd.xlane.f32.xlu0 %v38
    %v74 = vpop.xlane.xlu0 %73
    %75 = vadd.xlane.f32.xlu0 %v39
    %v76 = vpop.xlane.xlu0 %75
    %77 = vadd.xlane.f32.xlu0 %v40
    %v78 = vpop.xlane.xlu0 %77
    %79 = vadd.xlane.f32.xlu0 %v41
    %v80 = vpop.xlane.xlu0 %79
    %81 = vadd.xlane.f32.xlu0 %v42
    %v82 = vpop.xlane.xlu0 %81
    %83 = vadd.xlane.f32.xlu0 %v43
    %v84 = vpop.xlane.xlu0 %83
    %85 = vadd.xlane.f32.xlu0 %v44
    %v86 = vpop.xlane.xlu0 %85
    %87 = vadd.xlane.f32.xlu0 %v45
    %v88 = vpop.xlane.xlu0 %87
    %89 = vadd.xlane.f32.xlu0 %v46
    %v90 = vpop.xlane.xlu0 %89
    %91 = vadd.xlane.f32.xlu0 %v47
    %v92 = vpop.xlane.xlu0 %91
    %93 = vadd.xlane.f32.xlu0 %v48
    %v94 = vpop.xlane.xlu0 %93
    %95 = vadd.xlane.f32.xlu0 %v49
    %v96 = vpop.xlane.xlu0 %95
    %97 = vadd.xlane.f32.xlu0 %v50
    %v98 = vpop.xlane.xlu0 %97
    %99 = vadd.xlane.f32.xlu0 %v51
    %v100 = vpop.xlane.xlu0 %99
    %101 = vadd.xlane.f32.xlu0 %v52
    %v102 = vpop.xlane.xlu0 %101
    %103 = vadd.xlane.f32.xlu0 %v53
    %v104 = vpop.xlane.xlu0 %103
    %105 = vadd.xlane.f32.xlu0 %v54
    %v106 = vpop.xlane.xlu0 %105
    %107 = vadd.xlane.f32.xlu0 %v55
    %v108 = vpop.xlane.xlu0 %107
    %109 = vadd.xlane.f32.xlu0 %v56
    %v110 = vpop.xlane.xlu0 %109
    %111 = vadd.xlane.f32.xlu0 %v57
    %v112 = vpop.xlane.xlu0 %111
    %113 = vadd.xlane.f32.xlu0 %v58
    %v114 = vpop.xlane.xlu0 %113
    %115 = vadd.xlane.f32.xlu0 %v59
    %v116 = vpop.xlane.xlu0 %115
    %117 = vadd.xlane.f32.xlu0 %v60
    %v118 = vpop.xlane.xlu0 %117
    %119 = vadd.xlane.f32.xlu0 %v61
    %v120 = vpop.xlane.xlu0 %119
    %121 = vadd.xlane.f32.xlu0 %v62
    %v122 = vpop.xlane.xlu0 %121
    %123 = vadd.xlane.f32.xlu0 %v63
    %v124 = vpop.xlane.xlu0 %123
    %125 = vadd.xlane.f32.xlu0 %v64
    %v126 = vpop.xlane.xlu0 %125
    %127 = vadd.xlane.f32.xlu0 %v65
    %v128 = vpop.xlane.xlu0 %127
    %129 = vadd.xlane.f32.xlu0 %v66
    %v130 = vpop.xlane.xlu0 %129
    %131 = vadd.xlane.f32.xlu0 %v67
    %v132 = vpop.xlane.xlu0 %131
    %133 = vadd.xlane.f32.xlu0 %v68
    %v134 = vpop.xlane.xlu0 %133
    %v135 = vrcp.pop 128.0
    %v136 = vmul.f32 %v72, %v135
    %v137 = vmul.f32 %v74, %v135
    %v138 = vmul.f32 %v76, %v135
    %v139 = vmul.f32 %v78, %v135
    %v140 = vmul.f32 %v80, %v135
    %v141 = vmul.f32 %v82, %v135
    %v142 = vmul.f32 %v84, %v135
    %v143 = vmul.f32 %v86, %v135
    %v144 = vmul.f32 %v88, %v135
    %v145 = vmul.f32 %v90, %v135
    %v146 = vmul.f32 %v92, %v135
    %v147 = vmul.f32 %v94, %v135
    %v148 = vmul.f32 %v96, %v135
    %v149 = vmul.f32 %v98, %v135
    %v150 = vmul.f32 %v100, %v135
    %v151 = vmul.f32 %v102, %v135
    %v152 = vmul.f32 %v104, %v135
    %v153 = vmul.f32 %v106, %v135
    %v154 = vmul.f32 %v108, %v135
    %v155 = vmul.f32 %v110, %v135
    %v156 = vmul.f32 %v112, %v135
    %v157 = vmul.f32 %v114, %v135
    %v158 = vmul.f32 %v116, %v135
    %v159 = vmul.f32 %v118, %v135
    %v160 = vmul.f32 %v120, %v135
    %v161 = vmul.f32 %v122, %v135
    %v162 = vmul.f32 %v124, %v135
    %v163 = vmul.f32 %v126, %v135
    %v164 = vmul.f32 %v128, %v135
    %v165 = vmul.f32 %v130, %v135
    %v166 = vmul.f32 %v132, %v135
    %v167 = vmul.f32 %v134, %v135
    %v168 = vsub.f32 %v37, %v136
    %v169 = vsub.f32 %v38, %v137
    %v170 = vsub.f32 %v39, %v138
    %v171 = vsub.f32 %v40, %v139
    %v172 = vsub.f32 %v41, %v140
    %v173 = vsub.f32 %v42, %v141
    %v174 = vsub.f32 %v43, %v142
    %v175 = vsub.f32 %v44, %v143
    %v176 = vsub.f32 %v45, %v144
    %v177 = vsub.f32 %v46, %v145
    %v178 = vsub.f32 %v47, %v146
    %v179 = vsub.f32 %v48, %v147
    %v180 = vsub.f32 %v49, %v148
    %v181 = vsub.f32 %v50, %v149
    %v182 = vsub.f32 %v51, %v150
    %v183 = vsub.f32 %v52, %v151
    %v184 = vsub.f32 %v53, %v152
    %v185 = vsub.f32 %v54, %v153
    %v186 = vsub.f32 %v55, %v154
    %v187 = vsub.f32 %v56, %v155
    %v188 = vsub.f32 %v57, %v156
    %v189 = vsub.f32 %v58, %v157
    %v190 = vsub.f32 %v59, %v158
    %v191 = vsub.f32 %v60, %v159
    %v192 = vsub.f32 %v61, %v160
    %v193 = vsub.f32 %v62, %v161
    %v194 = vsub.f32 %v63, %v162
    %v195 = vsub.f32 %v64, %v163
    %v196 = vsub.f32 %v65, %v164
    %v197 = vsub.f32 %v66, %v165
    %v198 = vsub.f32 %v67, %v166
    %v199 = vsub.f32 %v68, %v167
    %v200 = vmul.f32 %v168, %v168
    %v201 = vmul.f32 %v169, %v169
    %v202 = vmul.f32 %v170, %v170
    %v203 = vmul.f32 %v171, %v171
    %v204 = vmul.f32 %v172, %v172
    %v205 = vmul.f32 %v173, %v173
    %v206 = vmul.f32 %v174, %v174
    %v207 = vmul.f32 %v175, %v175
    %v208 = vmul.f32 %v176, %v176
    %v209 = vmul.f32 %v177, %v177
    %v210 = vmul.f32 %v178, %v178
    %v211 = vmul.f32 %v179, %v179
    %v212 = vmul.f32 %v180, %v180
    %v213 = vmul.f32 %v181, %v181
    %v214 = vmul.f32 %v182, %v182
    %v215 = vmul.f32 %v183, %v183
    %v216 = vmul.f32 %v184, %v184
    %v217 = vmul.f32 %v185, %v185
    %v218 = vmul.f32 %v186, %v186
    %v219 = vmul.f32 %v187, %v187
    %v220 = vmul.f32 %v188, %v188
    %v221 = vmul.f32 %v189, %v189
    %v222 = vmul.f32 %v190, %v190
    %v223 = vmul.f32 %v191, %v191
    %v224 = vmul.f32 %v192, %v192
    %v225 = vmul.f32 %v193, %v193
    %v226 = vmul.f32 %v194, %v194
    %v227 = vmul.f32 %v195, %v195
    %v228 = vmul.f32 %v196, %v196
    %v229 = vmul.f32 %v197, %v197
    %v230 = vmul.f32 %v198, %v198
    %v231 = vmul.f32 %v199, %v199
    %232 = vadd.xlane.f32.xlu0 %v200
    %v233 = vpop.xlane.xlu0 %232
    %234 = vadd.xlane.f32.xlu0 %v201
    %v235 = vpop.xlane.xlu0 %234
    %236 = vadd.xlane.f32.xlu0 %v202
    %v237 = vpop.xlane.xlu0 %236
    %238 = vadd.xlane.f32.xlu0 %v203
    %v239 = vpop.xlane.xlu0 %238
    %240 = vadd.xlane.f32.xlu0 %v204
    %v241 = vpop.xlane.xlu0 %240
    %242 = vadd.xlane.f32.xlu0 %v205
    %v243 = vpop.xlane.xlu0 %242
    %244 = vadd.xlane.f32.xlu0 %v206
    %v245 = vpop.xlane.xlu0 %244
    %246 = vadd.xlane.f32.xlu0 %v207
    %v247 = vpop.xlane.xlu0 %246
    %248 = vadd.xlane.f32.xlu0 %v208
    %v249 = vpop.xlane.xlu0 %248
    %250 = vadd.xlane.f32.xlu0 %v209
    %v251 = vpop.xlane.xlu0 %250
    %252 = vadd.xlane.f32.xlu0 %v210
    %v253 = vpop.xlane.xlu0 %252
    %254 = vadd.xlane.f32.xlu0 %v211
    %v255 = vpop.xlane.xlu0 %254
    %256 = vadd.xlane.f32.xlu0 %v212
    %v257 = vpop.xlane.xlu0 %256
    %258 = vadd.xlane.f32.xlu0 %v213
    %v259 = vpop.xlane.xlu0 %258
    %260 = vadd.xlane.f32.xlu0 %v214
    %v261 = vpop.xlane.xlu0 %260
    %262 = vadd.xlane.f32.xlu0 %v215
    %v263 = vpop.xlane.xlu0 %262
    %264 = vadd.xlane.f32.xlu0 %v216
    %v265 = vpop.xlane.xlu0 %264
    %266 = vadd.xlane.f32.xlu0 %v217
    %v267 = vpop.xlane.xlu0 %266
    %268 = vadd.xlane.f32.xlu0 %v218
    %v269 = vpop.xlane.xlu0 %268
    %270 = vadd.xlane.f32.xlu0 %v219
    %v271 = vpop.xlane.xlu0 %270
    %272 = vadd.xlane.f32.xlu0 %v220
    %v273 = vpop.xlane.xlu0 %272
    %274 = vadd.xlane.f32.xlu0 %v221
    %v275 = vpop.xlane.xlu0 %274
    %276 = vadd.xlane.f32.xlu0 %v222
    %v277 = vpop.xlane.xlu0 %276
    %278 = vadd.xlane.f32.xlu0 %v223
    %v279 = vpop.xlane.xlu0 %278
    %280 = vadd.xlane.f32.xlu0 %v224
    %v281 = vpop.xlane.xlu0 %280
    %282 = vadd.xlane.f32.xlu0 %v225
    %v283 = vpop.xlane.xlu0 %282
    %284 = vadd.xlane.f32.xlu0 %v226
    %v285 = vpop.xlane.xlu0 %284
    %286 = vadd.xlane.f32.xlu0 %v227
    %v287 = vpop.xlane.xlu0 %286
    %288 = vadd.xlane.f32.xlu0 %v228
    %v289 = vpop.xlane.xlu0 %288
    %290 = vadd.xlane.f32.xlu0 %v229
    %v291 = vpop.xlane.xlu0 %290
    %292 = vadd.xlane.f32.xlu0 %v230
    %v293 = vpop.xlane.xlu0 %292
    %294 = vadd.xlane.f32.xlu0 %v231
    %v295 = vpop.xlane.xlu0 %294
    %v296 = vmul.f32 %v233, %v135
    %v297 = vmul.f32 %v235, %v135
    %v298 = vmul.f32 %v237, %v135
    %v299 = vmul.f32 %v239, %v135
    %v300 = vmul.f32 %v241, %v135
    %v301 = vmul.f32 %v243, %v135
    %v302 = vmul.f32 %v245, %v135
    %v303 = vmul.f32 %v247, %v135
    %v304 = vmul.f32 %v249, %v135
    %v305 = vmul.f32 %v251, %v135
    %v306 = vmul.f32 %v253, %v135
    %v307 = vmul.f32 %v255, %v135
    %v308 = vmul.f32 %v257, %v135
    %v309 = vmul.f32 %v259, %v135
    %v310 = vmul.f32 %v261, %v135
    %v311 = vmul.f32 %v263, %v135
    %v312 = vmul.f32 %v265, %v135
    %v313 = vmul.f32 %v267, %v135
    %v314 = vmul.f32 %v269, %v135
    %v315 = vmul.f32 %v271, %v135
    %v316 = vmul.f32 %v273, %v135
    %v317 = vmul.f32 %v275, %v135
    %v318 = vmul.f32 %v277, %v135
    %v319 = vmul.f32 %v279, %v135
    %v320 = vmul.f32 %v281, %v135
    %v321 = vmul.f32 %v283, %v135
    %v322 = vmul.f32 %v285, %v135
    %v323 = vmul.f32 %v287, %v135
    %v324 = vmul.f32 %v289, %v135
    %v325 = vmul.f32 %v291, %v135
    %v326 = vmul.f32 %v293, %v135
    %v327 = vmul.f32 %v295, %v135
    %v328 = vadd.f32 %v296, 1e-05
    %v329 = vadd.f32 %v297, 1e-05
    %v330 = vadd.f32 %v298, 1e-05
    %v331 = vadd.f32 %v299, 1e-05
    %v332 = vadd.f32 %v300, 1e-05
    %v333 = vadd.f32 %v301, 1e-05
    %v334 = vadd.f32 %v302, 1e-05
    %v335 = vadd.f32 %v303, 1e-05
    %v336 = vadd.f32 %v304, 1e-05
    %v337 = vadd.f32 %v305, 1e-05
    %v338 = vadd.f32 %v306, 1e-05
    %v339 = vadd.f32 %v307, 1e-05
    %v340 = vadd.f32 %v308, 1e-05
    %v341 = vadd.f32 %v309, 1e-05
    %v342 = vadd.f32 %v310, 1e-05
    %v343 = vadd.f32 %v311, 1e-05
    %v344 = vadd.f32 %v312, 1e-05
    %v345 = vadd.f32 %v313, 1e-05
    %v346 = vadd.f32 %v314, 1e-05
    %v347 = vadd.f32 %v315, 1e-05
    %v348 = vadd.f32 %v316, 1e-05
    %v349 = vadd.f32 %v317, 1e-05
    %v350 = vadd.f32 %v318, 1e-05
    %v351 = vadd.f32 %v319, 1e-05
    %v352 = vadd.f32 %v320, 1e-05
    %v353 = vadd.f32 %v321, 1e-05
    %v354 = vadd.f32 %v322, 1e-05
    %v355 = vadd.f32 %v323, 1e-05
    %v356 = vadd.f32 %v324, 1e-05
    %v357 = vadd.f32 %v325, 1e-05
    %v358 = vadd.f32 %v326, 1e-05
    %v359 = vadd.f32 %v327, 1e-05
    %v360 = vrsqrt.pop %v328
    %v361 = vrsqrt.pop %v329
    %v362 = vrsqrt.pop %v330
    %v363 = vrsqrt.pop %v331
    %v364 = vrsqrt.pop %v332
    %v365 = vrsqrt.pop %v333
    %v366 = vrsqrt.pop %v334
    %v367 = vrsqrt.pop %v335
    %v368 = vrsqrt.pop %v336
    %v369 = vrsqrt.pop %v337
    %v370 = vrsqrt.pop %v338
    %v371 = vrsqrt.pop %v339
    %v372 = vrsqrt.pop %v340
    %v373 = vrsqrt.pop %v341
    %v374 = vrsqrt.pop %v342
    %v375 = vrsqrt.pop %v343
    %v376 = vrsqrt.pop %v344
    %v377 = vrsqrt.pop %v345
    %v378 = vrsqrt.pop %v346
    %v379 = vrsqrt.pop %v347
    %v380 = vrsqrt.pop %v348
    %v381 = vrsqrt.pop %v349
    %v382 = vrsqrt.pop %v350
    %v383 = vrsqrt.pop %v351
    %v384 = vrsqrt.pop %v352
    %v385 = vrsqrt.pop %v353
    %v386 = vrsqrt.pop %v354
    %v387 = vrsqrt.pop %v355
    %v388 = vrsqrt.pop %v356
    %v389 = vrsqrt.pop %v357
    %v390 = vrsqrt.pop %v358
    %v391 = vrsqrt.pop %v359
    %v392 = vmul.f32 %v168, %v360
    %v393 = vmul.f32 %v169, %v361
    %v394 = vmul.f32 %v170, %v362
    %v395 = vmul.f32 %v171, %v363
    %v396 = vmul.f32 %v172, %v364
    %v397 = vmul.f32 %v173, %v365
    %v398 = vmul.f32 %v174, %v366
    %v399 = vmul.f32 %v175, %v367
    %v400 = vmul.f32 %v176, %v368
    %v401 = vmul.f32 %v177, %v369
    %v402 = vmul.f32 %v178, %v370
    %v403 = vmul.f32 %v179, %v371
    %v404 = vmul.f32 %v180, %v372
    %v405 = vmul.f32 %v181, %v373
    %v406 = vmul.f32 %v182, %v374
    %v407 = vmul.f32 %v183, %v375
    %v408 = vmul.f32 %v184, %v376
    %v409 = vmul.f32 %v185, %v377
    %v410 = vmul.f32 %v186, %v378
    %v411 = vmul.f32 %v187, %v379
    %v412 = vmul.f32 %v188, %v380
    %v413 = vmul.f32 %v189, %v381
    %v414 = vmul.f32 %v190, %v382
    %v415 = vmul.f32 %v191, %v383
    %v416 = vmul.f32 %v192, %v384
    %v417 = vmul.f32 %v193, %v385
    %v418 = vmul.f32 %v194, %v386
    %v419 = vmul.f32 %v195, %v387
    %v420 = vmul.f32 %v196, %v388
    %v421 = vmul.f32 %v197, %v389
    %v422 = vmul.f32 %v198, %v390
    %v423 = vmul.f32 %v199, %v391
    %v425 = vlaneseq
    %v426 = vshrl.u32 %v425, 7
    %v427 = vsub.s32 0, %v426
    %v428 = vrot.slane %v69, %v427
    %v430 = vmul.f32 %v392, %v428
    %v431 = vmul.f32 %v393, %v428
    %v432 = vmul.f32 %v394, %v428
    %v433 = vmul.f32 %v395, %v428
    %v434 = vmul.f32 %v396, %v428
    %v435 = vmul.f32 %v397, %v428
    %v436 = vmul.f32 %v398, %v428
    %v437 = vmul.f32 %v399, %v428
    %v438 = vmul.f32 %v400, %v428
    %v439 = vmul.f32 %v401, %v428
    %v440 = vmul.f32 %v402, %v428
    %v441 = vmul.f32 %v403, %v428
    %v442 = vmul.f32 %v404, %v428
    %v443 = vmul.f32 %v405, %v428
    %v444 = vmul.f32 %v406, %v428
    %v445 = vmul.f32 %v407, %v428
    %v446 = vmul.f32 %v408, %v428
    %v447 = vmul.f32 %v409, %v428
    %v448 = vmul.f32 %v410, %v428
    %v449 = vmul.f32 %v411, %v428
    %v450 = vmul.f32 %v412, %v428
    %v451 = vmul.f32 %v413, %v428
    %v452 = vmul.f32 %v414, %v428
    %v453 = vmul.f32 %v415, %v428
    %v454 = vmul.f32 %v416, %v428
    %v455 = vmul.f32 %v417, %v428
    %v456 = vmul.f32 %v418, %v428
    %v457 = vmul.f32 %v419, %v428
    %v458 = vmul.f32 %v420, %v428
    %v459 = vmul.f32 %v421, %v428
    %v460 = vmul.f32 %v422, %v428
    %v461 = vmul.f32 %v423, %v428
    %v463 = vlaneseq
    %v464 = vshrl.u32 %v463, 7
    %v465 = vsub.s32 0, %v464
    %v466 = vrot.slane %v70, %v465
    %v468 = vadd.f32 %v430, %v466
    %v469 = vadd.f32 %v431, %v466
    %v470 = vadd.f32 %v432, %v466
    %v471 = vadd.f32 %v433, %v466
    %v472 = vadd.f32 %v434, %v466
    %v473 = vadd.f32 %v435, %v466
    %v474 = vadd.f32 %v436, %v466
    %v475 = vadd.f32 %v437, %v466
    %v476 = vadd.f32 %v438, %v466
    %v477 = vadd.f32 %v439, %v466
    %v478 = vadd.f32 %v440, %v466
    %v479 = vadd.f32 %v441, %v466
    %v480 = vadd.f32 %v442, %v466
    %v481 = vadd.f32 %v443, %v466
    %v482 = vadd.f32 %v444, %v466
    %v483 = vadd.f32 %v445, %v466
    %v484 = vadd.f32 %v446, %v466
    %v485 = vadd.f32 %v447, %v466
    %v486 = vadd.f32 %v448, %v466
    %v487 = vadd.f32 %v449, %v466
    %v488 = vadd.f32 %v450, %v466
    %v489 = vadd.f32 %v451, %v466
    %v490 = vadd.f32 %v452, %v466
    %v491 = vadd.f32 %v453, %v466
    %v492 = vadd.f32 %v454, %v466
    %v493 = vadd.f32 %v455, %v466
    %v494 = vadd.f32 %v456, %v466
    %v495 = vadd.f32 %v457, %v466
    %v496 = vadd.f32 %v458, %v466
    %v497 = vadd.f32 %v459, %v466
    %v498 = vadd.f32 %v460, %v466
    %v499 = vadd.f32 %v461, %v466
    %v500 = vpack.c.bf16 %v469, %v468
    %v501 = vpack.c.bf16 %v471, %v470
    %v502 = vpack.c.bf16 %v473, %v472
    %v503 = vpack.c.bf16 %v475, %v474
    %v504 = vpack.c.bf16 %v477, %v476
    %v505 = vpack.c.bf16 %v479, %v478
    %v506 = vpack.c.bf16 %v481, %v480
    %v507 = vpack.c.bf16 %v483, %v482
    %v508 = vpack.c.bf16 %v485, %v484
    %v509 = vpack.c.bf16 %v487, %v486
    %v510 = vpack.c.bf16 %v489, %v488
    %v511 = vpack.c.bf16 %v491, %v490
    %v512 = vpack.c.bf16 %v493, %v492
    %v513 = vpack.c.bf16 %v495, %v494
    %v514 = vpack.c.bf16 %v497, %v496
    %v515 = vpack.c.bf16 %v499, %v498
    %v516 = vld [vmem:[%s4] sm:$0xff]
    %v517 = vld [vmem:[%s4 + $0x8] sm:$0xf]
    %v518 = vld [vmem:[%s4 + $0xc] sm:$0xff]
    %v519 = vld [vmem:[%s4 + $0x14] sm:$0xf]
    %v520 = vld [vmem:[%s4 + $0x18] sm:$0xff]
    %v521 = vld [vmem:[%s4 + $0x20] sm:$0xf]
    %v522 = vld [vmem:[%s4 + $0x24] sm:$0xff]
    %v523 = vld [vmem:[%s4 + $0x2c] sm:$0xf]
    %v524 = vld [vmem:[%s4 + $0x30] sm:$0xff]
    %v525 = vld [vmem:[%s4 + $0x38] sm:$0xf]
    %v526 = vld [vmem:[%s4 + $0x3c] sm:$0xff]
    %v527 = vld [vmem:[%s4 + $0x44] sm:$0xf]
    %v528 = vld [vmem:[%s4 + $0x48] sm:$0xff]
    %v529 = vld [vmem:[%s4 + $0x50] sm:$0xf]
    %v530 = vld [vmem:[%s4 + $0x54] sm:$0xff]
    %v531 = vld [vmem:[%s4 + $0x5c] sm:$0xf]
    %v532 = vld [vmem:[%s4 + $0x60] sm:$0xff]
    %v533 = vld [vmem:[%s4 + $0x68] sm:$0xf]
    %v534 = vld [vmem:[%s4 + $0x6c] sm:$0xff]
    %v535 = vld [vmem:[%s4 + $0x74] sm:$0xf]
    %v536 = vld [vmem:[%s4 + $0x78] sm:$0xff]
    %v537 = vld [vmem:[%s4 + $0x80] sm:$0xf]
    %v538 = vld [vmem:[%s4 + $0x84] sm:$0xff]
    %v539 = vld [vmem:[%s4 + $0x8c] sm:$0xf]
    %v540 = vld [vmem:[%s4 + $0x90] sm:$0xff]
    %v541 = vld [vmem:[%s4 + $0x98] sm:$0xf]
    %v542 = vld [vmem:[%s4 + $0x9c] sm:$0xff]
    %v543 = vld [vmem:[%s4 + $0xa4] sm:$0xf]
    %v544 = vld [vmem:[%s4 + $0xa8] sm:$0xff]
    %v545 = vld [vmem:[%s4 + $0xb0] sm:$0xf]
    %v546 = vld [vmem:[%s4 + $0xb4] sm:$0xff]
    %v547 = vld [vmem:[%s4 + $0xbc] sm:$0xf]
    %v580 = vunpack.c.l.b16 %v516
    %v581 = vunpack.c.h.b16 %v516
    %v582 = vunpack.c.l.b16 %v517
    %v583 = vunpack.c.l.b16 %v518
    %v584 = vunpack.c.h.b16 %v518
    %v585 = vunpack.c.l.b16 %v519
    %v586 = vunpack.c.l.b16 %v520
    %v587 = vunpack.c.h.b16 %v520
    %v588 = vunpack.c.l.b16 %v521
    %v589 = vunpack.c.l.b16 %v522
    %v590 = vunpack.c.h.b16 %v522
    %v591 = vunpack.c.l.b16 %v523
    %v592 = vunpack.c.l.b16 %v524
    %v593 = vunpack.c.h.b16 %v524
    %v594 = vunpack.c.l.b16 %v525
    %v595 = vunpack.c.l.b16 %v526
    %v596 = vunpack.c.h.b16 %v526
    %v597 = vunpack.c.l.b16 %v527
    %v598 = vunpack.c.l.b16 %v528
    %v599 = vunpack.c.h.b16 %v528
    %v600 = vunpack.c.l.b16 %v529
    %v601 = vunpack.c.l.b16 %v530
    %v602 = vunpack.c.h.b16 %v530
    %v603 = vunpack.c.l.b16 %v531
    %v604 = vunpack.c.l.b16 %v532
    %v605 = vunpack.c.h.b16 %v532
    %v606 = vunpack.c.l.b16 %v533
    %v607 = vunpack.c.l.b16 %v534
    %v608 = vunpack.c.h.b16 %v534
    %v609 = vunpack.c.l.b16 %v535
    %v610 = vunpack.c.l.b16 %v536
    %v611 = vunpack.c.h.b16 %v536
    %v612 = vunpack.c.l.b16 %v537
    %v613 = vunpack.c.l.b16 %v538
    %v614 = vunpack.c.h.b16 %v538
    %v615 = vunpack.c.l.b16 %v539
    %v616 = vunpack.c.l.b16 %v540
    %v617 = vunpack.c.h.b16 %v540
    %v618 = vunpack.c.l.b16 %v541
    %v619 = vunpack.c.l.b16 %v542
    %v620 = vunpack.c.h.b16 %v542
    %v621 = vunpack.c.l.b16 %v543
    %v622 = vunpack.c.l.b16 %v544
    %v623 = vunpack.c.h.b16 %v544
    %v624 = vunpack.c.l.b16 %v545
    %v625 = vunpack.c.l.b16 %v546
    %v626 = vunpack.c.h.b16 %v546
    %v627 = vunpack.c.l.b16 %v547
    %v628 = vpack.c.b16 %v583, %v580
    %v629 = vpack.c.b16 %v584, %v581
    %v630 = vpack.c.b16 %v585, %v582
    %v631 = vpack.c.b16 %v589, %v586
    %v632 = vpack.c.b16 %v590, %v587
    %v633 = vpack.c.b16 %v591, %v588
    %v634 = vpack.c.b16 %v595, %v592
    %v635 = vpack.c.b16 %v596, %v593
    %v636 = vpack.c.b16 %v597, %v594
    %v637 = vpack.c.b16 %v601, %v598
    %v638 = vpack.c.b16 %v602, %v599
    %v639 = vpack.c.b16 %v603, %v600
    %v640 = vpack.c.b16 %v607, %v604
    %v641 = vpack.c.b16 %v608, %v605
    %v642 = vpack.c.b16 %v609, %v606
    %v643 = vpack.c.b16 %v613, %v610
    %v644 = vpack.c.b16 %v614, %v611
    %v645 = vpack.c.b16 %v615, %v612
    %v646 = vpack.c.b16 %v619, %v616
    %v647 = vpack.c.b16 %v620, %v617
    %v648 = vpack.c.b16 %v621, %v618
    %v649 = vpack.c.b16 %v625, %v622
    %v650 = vpack.c.b16 %v626, %v623
    %v651 = vpack.c.b16 %v627, %v624
    %676 = vmatprep.subr.bf16.mxu0 %v629
    %677 = vmatpush1.bf16.msra.mxu0 %v628
    %678 = vmatprep.subr.bf16.mxu0 %v632
    %679 = vmatpush1.bf16.msra.mxu0 %v631
    %680 = vmatprep.subr.bf16.mxu0 %v635
    %681 = vmatpush1.bf16.msra.mxu0 %v634
    %682 = vmatprep.subr.bf16.mxu0 %v638
    %683 = vmatpush1.bf16.msra.mxu0 %v637
    %684 = vmatprep.subr.bf16.mxu0 %v641
    %685 = vmatpush1.bf16.msra.mxu0 %v640
    %686 = vmatprep.subr.bf16.mxu0 %v644
    %687 = vmatpush1.bf16.msra.mxu0 %v643
    %688 = vmatprep.subr.bf16.mxu0 %v647
    %689 = vmatpush1.bf16.msra.mxu0 %v646
    %690 = vmatprep.subr.bf16.mxu0 %v650
    %691 = vmatpush1.bf16.msra.mxu0 %v649
    %692 = vmatprep.subr.bf16.mxu0 0
    %693 = vmatpush1.bf16.msra.mxu0 0
    %694 = vmatprep.subr.bf16.mxu0 0
    %695 = vmatpush1.bf16.msra.mxu0 0
    %696 = vmatprep.subr.bf16.mxu0 0
    %697 = vmatpush1.bf16.msra.mxu0 0
    %698 = vmatprep.subr.bf16.mxu0 0
    %699 = vmatpush1.bf16.msra.mxu0 0
    %700 = vmatprep.subr.bf16.mxu0 0
    %701 = vmatpush1.bf16.msra.mxu0 0
    %702 = vmatprep.subr.bf16.mxu0 0
    %703 = vmatpush1.bf16.msra.mxu0 0
    %704 = vmatprep.subr.bf16.mxu0 0
    %705 = vmatpush1.bf16.msra.mxu0 0
    %706 = vmatprep.subr.bf16.mxu0 0
    %707 = vmatpush1.bf16.msra.mxu0 0
    %708 = vmatprep.mubr.bf16.mxu0 0
    %709 = vmatmul.mubr.bf16.gmra.mrb[0].mxu0 %v500
    %v710 = vpop.f32.mrb[0].mxu0
    %v711 = vadd.f32 0.0, %v710
    %v712 = vpop.f32.mrb[0].mxu0
    %v713 = vadd.f32 0.0, %v712
    %v714 = vpop.f32.mrb[0].mxu0
    %v715 = vadd.f32 0.0, %v714
    %v716 = vpop.f32.mrb[0].mxu0
    %v717 = vadd.f32 0.0, %v716
    %718 = vmatprep.mubr.bf16.mxu0 0
    %719 = vmatmul.mubr.bf16.gmra.mrb[0].mxu0 %v501
    %v720 = vpop.f32.mrb[0].mxu0
    %v721 = vadd.f32 0.0, %v720
    %v722 = vpop.f32.mrb[0].mxu0
    %v723 = vadd.f32 0.0, %v722
    %v724 = vpop.f32.mrb[0].mxu0
    %v725 = vadd.f32 0.0, %v724
    %v726 = vpop.f32.mrb[0].mxu0
    %v727 = vadd.f32 0.0, %v726
    %728 = vmatprep.mubr.bf16.mxu0 0
    %729 = vmatmul.mubr.bf16.gmra.mrb[0].mxu0 %v502
    %v730 = vpop.f32.mrb[0].mxu0
    %v731 = vadd.f32 0.0, %v730
    %v732 = vpop.f32.mrb[0].mxu0
    %v733 = vadd.f32 0.0, %v732
    %v734 = vpop.f32.mrb[0].mxu0
    %v735 = vadd.f32 0.0, %v734
    %v736 = vpop.f32.mrb[0].mxu0
    %v737 = vadd.f32 0.0, %v736
    %738 = vmatprep.mubr.bf16.mxu0 0
    %739 = vmatmul.mubr.bf16.gmra.mrb[0].mxu0 %v503
    %v740 = vpop.f32.mrb[0].mxu0
    %v741 = vadd.f32 0.0, %v740
    %v742 = vpop.f32.mrb[0].mxu0
    %v743 = vadd.f32 0.0, %v742
    %v744 = vpop.f32.mrb[0].mxu0
    %v745 = vadd.f32 0.0, %v744
    %v746 = vpop.f32.mrb[0].mxu0
    %v747 = vadd.f32 0.0, %v746
    %748 = vmatprep.mubr.bf16.mxu0 0
    %749 = vmatmul.mubr.bf16.gmra.mrb[0].mxu0 %v504
    %v750 = vpop.f32.mrb[0].mxu0
    %v751 = vadd.f32 0.0, %v750
    %v752 = vpop.f32.mrb[0].mxu0
    %v753 = vadd.f32 0.0, %v752
    %v754 = vpop.f32.mrb[0].mxu0
    %v755 = vadd.f32 0.0, %v754
    %v756 = vpop.f32.mrb[0].mxu0
    %v757 = vadd.f32 0.0, %v756
    %758 = vmatprep.mubr.bf16.mxu0 0
    %759 = vmatmul.mubr.bf16.gmra.mrb[0].mxu0 %v505
    %v760 = vpop.f32.mrb[0].mxu0
    %v761 = vadd.f32 0.0, %v760
    %v762 = vpop.f32.mrb[0].mxu0
    %v763 = vadd.f32 0.0, %v762
    %v764 = vpop.f32.mrb[0].mxu0
    %v765 = vadd.f32 0.0, %v764
    %v766 = vpop.f32.mrb[0].mxu0
    %v767 = vadd.f32 0.0, %v766
    %768 = vmatprep.mubr.bf16.mxu0 0
    %769 = vmatmul.mubr.bf16.gmra.mrb[0].mxu0 %v506
    %v770 = vpop.f32.mrb[0].mxu0
    %v771 = vadd.f32 0.0, %v770
    %v772 = vpop.f32.mrb[0].mxu0
    %v773 = vadd.f32 0.0, %v772
    %v774 = vpop.f32.mrb[0].mxu0
    %v775 = vadd.f32 0.0, %v774
    %v776 = vpop.f32.mrb[0].mxu0
    %v777 = vadd.f32 0.0, %v776
    %778 = vmatprep.mubr.bf16.mxu0 0
    %779 = vmatmul.mubr.bf16.gmra.mrb[0].mxu0 %v507
    %v780 = vpop.f32.mrb[0].mxu0
    %v781 = vadd.f32 0.0, %v780
    %v782 = vpop.f32.mrb[0].mxu0
    %v783 = vadd.f32 0.0, %v782
    %v784 = vpop.f32.mrb[0].mxu0
    %v785 = vadd.f32 0.0, %v784
    %v786 = vpop.f32.mrb[0].mxu0
    %v787 = vadd.f32 0.0, %v786
    %788 = vmatprep.mubr.bf16.mxu0 0
    %789 = vmatmul.mubr.bf16.gmra.mrb[0].mxu0 %v508
    %v790 = vpop.f32.mrb[0].mxu0
    %v791 = vadd.f32 0.0, %v790
    %v792 = vpop.f32.mrb[0].mxu0
    %v793 = vadd.f32 0.0, %v792
    %v794 = vpop.f32.mrb[0].mxu0
    %v795 = vadd.f32 0.0, %v794
    %v796 = vpop.f32.mrb[0].mxu0
    %v797 = vadd.f32 0.0, %v796
    %798 = vmatprep.mubr.bf16.mxu0 0
    %799 = vmatmul.mubr.bf16.gmra.mrb[0].mxu0 %v509
    %v800 = vpop.f32.mrb[0].mxu0
    %v801 = vadd.f32 0.0, %v800
    %v802 = vpop.f32.mrb[0].mxu0
    %v803 = vadd.f32 0.0, %v802
    %v804 = vpop.f32.mrb[0].mxu0
    %v805 = vadd.f32 0.0, %v804
    %v806 = vpop.f32.mrb[0].mxu0
    %v807 = vadd.f32 0.0, %v806
    %808 = vmatprep.mubr.bf16.mxu0 0
    %809 = vmatmul.mubr.bf16.gmra.mrb[0].mxu0 %v510
    %v810 = vpop.f32.mrb[0].mxu0
    %v811 = vadd.f32 0.0, %v810
    %v812 = vpop.f32.mrb[0].mxu0
    %v813 = vadd.f32 0.0, %v812
    %v814 = vpop.f32.mrb[0].mxu0
    %v815 = vadd.f32 0.0, %v814
    %v816 = vpop.f32.mrb[0].mxu0
    %v817 = vadd.f32 0.0, %v816
    %818 = vmatprep.mubr.bf16.mxu0 0
    %819 = vmatmul.mubr.bf16.gmra.mrb[0].mxu0 %v511
    %v820 = vpop.f32.mrb[0].mxu0
    %v821 = vadd.f32 0.0, %v820
    %v822 = vpop.f32.mrb[0].mxu0
    %v823 = vadd.f32 0.0, %v822
    %v824 = vpop.f32.mrb[0].mxu0
    %v825 = vadd.f32 0.0, %v824
    %v826 = vpop.f32.mrb[0].mxu0
    %v827 = vadd.f32 0.0, %v826
    %828 = vmatprep.mubr.bf16.mxu0 0
    %829 = vmatmul.mubr.bf16.gmra.mrb[0].mxu0 %v512
    %v830 = vpop.f32.mrb[0].mxu0
    %v831 = vadd.f32 0.0, %v830
    %v832 = vpop.f32.mrb[0].mxu0
    %v833 = vadd.f32 0.0, %v832
    %v834 = vpop.f32.mrb[0].mxu0
    %v835 = vadd.f32 0.0, %v834
    %v836 = vpop.f32.mrb[0].mxu0
    %v837 = vadd.f32 0.0, %v836
    %838 = vmatprep.mubr.bf16.mxu0 0
    %839 = vmatmul.mubr.bf16.gmra.mrb[0].mxu0 %v513
    %v840 = vpop.f32.mrb[0].mxu0
    %v841 = vadd.f32 0.0, %v840
    %v842 = vpop.f32.mrb[0].mxu0
    %v843 = vadd.f32 0.0, %v842
    %v844 = vpop.f32.mrb[0].mxu0
    %v845 = vadd.f32 0.0, %v844
    %v846 = vpop.f32.mrb[0].mxu0
    %v847 = vadd.f32 0.0, %v846
    %848 = vmatprep.mubr.bf16.mxu0 0
    %849 = vmatmul.mubr.bf16.gmra.mrb[0].mxu0 %v514
    %v850 = vpop.f32.mrb[0].mxu0
    %v851 = vadd.f32 0.0, %v850
    %v852 = vpop.f32.mrb[0].mxu0
    %v853 = vadd.f32 0.0, %v852
    %v854 = vpop.f32.mrb[0].mxu0
    %v855 = vadd.f32 0.0, %v854
    %v856 = vpop.f32.mrb[0].mxu0
    %v857 = vadd.f32 0.0, %v856
    %858 = vmatprep.mubr.bf16.mxu0 0
    %859 = vmatmul.mubr.bf16.gmra.mrb[0].mxu0 %v515
    %v860 = vpop.f32.mrb[0].mxu0
    %v861 = vadd.f32 0.0, %v860
    %v862 = vpop.f32.mrb[0].mxu0
    %v863 = vadd.f32 0.0, %v862
    %v864 = vpop.f32.mrb[0].mxu0
    %v865 = vadd.f32 0.0, %v864
    %v866 = vpop.f32.mrb[0].mxu0
    %v867 = vadd.f32 0.0, %v866
    %868 = vdwg.mxu0
    %869 = vmatprep.subr.bf16.mxu0 0
    %870 = vmatpush1.bf16.msra.mxu0 %v630
    %871 = vmatprep.subr.bf16.mxu0 0
    %872 = vmatpush1.bf16.msra.mxu0 %v633
    %873 = vmatprep.subr.bf16.mxu0 0
    %874 = vmatpush1.bf16.msra.mxu0 %v636
    %875 = vmatprep.subr.bf16.mxu0 0
    %876 = vmatpush1.bf16.msra.mxu0 %v639
    %877 = vmatprep.subr.bf16.mxu0 0
    %878 = vmatpush1.bf16.msra.mxu0 %v642
    %879 = vmatprep.subr.bf16.mxu0 0
    %880 = vmatpush1.bf16.msra.mxu0 %v645
    %881 = vmatprep.subr.bf16.mxu0 0
    %882 = vmatpush1.bf16.msra.mxu0 %v648
    %883 = vmatprep.subr.bf16.mxu0 0
    %884 = vmatpush1.bf16.msra.mxu0 %v651
    %885 = vmatprep.subr.bf16.mxu0 0
    %886 = vmatpush1.bf16.msra.mxu0 0
    %887 = vmatprep.subr.bf16.mxu0 0
    %888 = vmatpush1.bf16.msra.mxu0 0
    %889 = vmatprep.subr.bf16.mxu0 0
    %890 = vmatpush1.bf16.msra.mxu0 0
    %891 = vmatprep.subr.bf16.mxu0 0
    %892 = vmatpush1.bf16.msra.mxu0 0
    %893 = vmatprep.subr.bf16.mxu0 0
    %894 = vmatpush1.bf16.msra.mxu0 0
    %895 = vmatprep.subr.bf16.mxu0 0
    %896 = vmatpush1.bf16.msra.mxu0 0
    %897 = vmatprep.subr.bf16.mxu0 0
    %898 = vmatpush1.bf16.msra.mxu0 0
    %899 = vmatprep.subr.bf16.mxu0 0
    %900 = vmatpush1.bf16.msra.mxu0 0
    %901 = vmatprep.mubr.bf16.mxu0 0
    %902 = vmatmul.mubr.bf16.gmra.mrb[0].mxu0 %v500
    %v903 = vpop.f32.mrb[0].mxu0
    %v904 = vadd.f32 0.0, %v903
    %v905 = vpop.f32.mrb[0].mxu0
    %v906 = vpop.f32.mrb[0].mxu0
    %v907 = vadd.f32 0.0, %v906
    %v908 = vpop.f32.mrb[0].mxu0
    %909 = vmatprep.mubr.bf16.mxu0 0
    %910 = vmatmul.mubr.bf16.gmra.mrb[0].mxu0 %v501
    %v911 = vpop.f32.mrb[0].mxu0
    %v912 = vadd.f32 0.0, %v911
    %v913 = vpop.f32.mrb[0].mxu0
    %v914 = vpop.f32.mrb[0].mxu0
    %v915 = vadd.f32 0.0, %v914
    %v916 = vpop.f32.mrb[0].mxu0
    %917 = vmatprep.mubr.bf16.mxu0 0
    %918 = vmatmul.mubr.bf16.gmra.mrb[0].mxu0 %v502
    %v919 = vpop.f32.mrb[0].mxu0
    %v920 = vadd.f32 0.0, %v919
    %v921 = vpop.f32.mrb[0].mxu0
    %v922 = vpop.f32.mrb[0].mxu0
    %v923 = vadd.f32 0.0, %v922
    %v924 = vpop.f32.mrb[0].mxu0
    %925 = vmatprep.mubr.bf16.mxu0 0
    %926 = vmatmul.mubr.bf16.gmra.mrb[0].mxu0 %v503
    %v927 = vpop.f32.mrb[0].mxu0
    %v928 = vadd.f32 0.0, %v927
    %v929 = vpop.f32.mrb[0].mxu0
    %v930 = vpop.f32.mrb[0].mxu0
    %v931 = vadd.f32 0.0, %v930
    %v932 = vpop.f32.mrb[0].mxu0
    %933 = vmatprep.mubr.bf16.mxu0 0
    %934 = vmatmul.mubr.bf16.gmra.mrb[0].mxu0 %v504
    %v935 = vpop.f32.mrb[0].mxu0
    %v936 = vadd.f32 0.0, %v935
    %v937 = vpop.f32.mrb[0].mxu0
    %v938 = vpop.f32.mrb[0].mxu0
    %v939 = vadd.f32 0.0, %v938
    %v940 = vpop.f32.mrb[0].mxu0
    %941 = vmatprep.mubr.bf16.mxu0 0
    %942 = vmatmul.mubr.bf16.gmra.mrb[0].mxu0 %v505
    %v943 = vpop.f32.mrb[0].mxu0
    %v944 = vadd.f32 0.0, %v943
    %v945 = vpop.f32.mrb[0].mxu0
    %v946 = vpop.f32.mrb[0].mxu0
    %v947 = vadd.f32 0.0, %v946
    %v948 = vpop.f32.mrb[0].mxu0
    %949 = vmatprep.mubr.bf16.mxu0 0
    %950 = vmatmul.mubr.bf16.gmra.mrb[0].mxu0 %v506
    %v951 = vpop.f32.mrb[0].mxu0
    %v952 = vadd.f32 0.0, %v951
    %v953 = vpop.f32.mrb[0].mxu0
    %v954 = vpop.f32.mrb[0].mxu0
    %v955 = vadd.f32 0.0, %v954
    %v956 = vpop.f32.mrb[0].mxu0
    %957 = vmatprep.mubr.bf16.mxu0 0
    %958 = vmatmul.mubr.bf16.gmra.mrb[0].mxu0 %v507
    %v959 = vpop.f32.mrb[0].mxu0
    %v960 = vadd.f32 0.0, %v959
    %v961 = vpop.f32.mrb[0].mxu0
    %v962 = vpop.f32.mrb[0].mxu0
    %v963 = vadd.f32 0.0, %v962
    %v964 = vpop.f32.mrb[0].mxu0
    %965 = vmatprep.mubr.bf16.mxu0 0
    %966 = vmatmul.mubr.bf16.gmra.mrb[0].mxu0 %v508
    %v967 = vpop.f32.mrb[0].mxu0
    %v968 = vadd.f32 0.0, %v967
    %v969 = vpop.f32.mrb[0].mxu0
    %v970 = vpop.f32.mrb[0].mxu0
    %v971 = vadd.f32 0.0, %v970
    %v972 = vpop.f32.mrb[0].mxu0
    %973 = vmatprep.mubr.bf16.mxu0 0
    %974 = vmatmul.mubr.bf16.gmra.mrb[0].mxu0 %v509
    %v975 = vpop.f32.mrb[0].mxu0
    %v976 = vadd.f32 0.0, %v975
    %v977 = vpop.f32.mrb[0].mxu0
    %v978 = vpop.f32.mrb[0].mxu0
    %v979 = vadd.f32 0.0, %v978
    %v980 = vpop.f32.mrb[0].mxu0
    %981 = vmatprep.mubr.bf16.mxu0 0
    %982 = vmatmul.mubr.bf16.gmra.mrb[0].mxu0 %v510
    %v983 = vpop.f32.mrb[0].mxu0
    %v984 = vadd.f32 0.0, %v983
    %v985 = vpop.f32.mrb[0].mxu0
    %v986 = vpop.f32.mrb[0].mxu0
    %v987 = vadd.f32 0.0, %v986
    %v988 = vpop.f32.mrb[0].mxu0
    %989 = vmatprep.mubr.bf16.mxu0 0
    %990 = vmatmul.mubr.bf16.gmra.mrb[0].mxu0 %v511
    %v991 = vpop.f32.mrb[0].mxu0
    %v992 = vadd.f32 0.0, %v991
    %v993 = vpop.f32.mrb[0].mxu0
    %v994 = vpop.f32.mrb[0].mxu0
    %v995 = vadd.f32 0.0, %v994
    %v996 = vpop.f32.mrb[0].mxu0
    %997 = vmatprep.mubr.bf16.mxu0 0
    %998 = vmatmul.mubr.bf16.gmra.mrb[0].mxu0 %v512
    %v999 = vpop.f32.mrb[0].mxu0
    %v1000 = vadd.f32 0.0, %v999
    %v1001 = vpop.f32.mrb[0].mxu0
    %v1002 = vpop.f32.mrb[0].mxu0
    %v1003 = vadd.f32 0.0, %v1002
    %v1004 = vpop.f32.mrb[0].mxu0
    %1005 = vmatprep.mubr.bf16.mxu0 0
    %1006 = vmatmul.mubr.bf16.gmra.mrb[0].mxu0 %v513
    %v1007 = vpop.f32.mrb[0].mxu0
    %v1008 = vadd.f32 0.0, %v1007
    %v1009 = vpop.f32.mrb[0].mxu0
    %v1010 = vpop.f32.mrb[0].mxu0
    %v1011 = vadd.f32 0.0, %v1010
    %v1012 = vpop.f32.mrb[0].mxu0
    %1013 = vmatprep.mubr.bf16.mxu0 0
    %1014 = vmatmul.mubr.bf16.gmra.mrb[0].mxu0 %v514
    %v1015 = vpop.f32.mrb[0].mxu0
    %v1016 = vadd.f32 0.0, %v1015
    %v1017 = vpop.f32.mrb[0].mxu0
    %v1018 = vpop.f32.mrb[0].mxu0
    %v1019 = vadd.f32 0.0, %v1018
    %v1020 = vpop.f32.mrb[0].mxu0
    %1021 = vmatprep.mubr.bf16.mxu0 0
    %1022 = vmatmul.mubr.bf16.gmra.mrb[0].mxu0 %v515
    %v1023 = vpop.f32.mrb[0].mxu0
    %v1024 = vadd.f32 0.0, %v1023
    %v1025 = vpop.f32.mrb[0].mxu0
    %v1026 = vpop.f32.mrb[0].mxu0
    %v1027 = vadd.f32 0.0, %v1026
    %v1028 = vpop.f32.mrb[0].mxu0
    %1029 = vdwg.mxu0
    %v1030 = vld [vmem:[%s1] sm:$0xff]
    %v1031 = vld [vmem:[%s1 + $0x8] sm:$0xff]
    %v1032 = vld [vmem:[%s1 + $0x10] sm:$0xff]
    %v1033 = vld [vmem:[%s1 + $0x18] sm:$0xff]
    %v1034 = vld [vmem:[%s1 + $0x20] sm:$0xff]
    %v1035 = vld [vmem:[%s1 + $0x28] sm:$0xff]
    %v1036 = vld [vmem:[%s1 + $0x30] sm:$0xff]
    %v1037 = vld [vmem:[%s1 + $0x38] sm:$0xff]
    %v1038 = vld [vmem:[%s1 + $0x40] sm:$0xff]
    %v1039 = vld [vmem:[%s1 + $0x48] sm:$0xff]
    %v1040 = vld [vmem:[%s1 + $0x50] sm:$0xff]
    %v1041 = vld [vmem:[%s1 + $0x58] sm:$0xff]
    %v1042 = vld [vmem:[%s1 + $0x60] sm:$0xff]
    %v1043 = vld [vmem:[%s1 + $0x68] sm:$0xff]
    %v1044 = vld [vmem:[%s1 + $0x70] sm:$0xff]
    %v1045 = vld [vmem:[%s1 + $0x78] sm:$0xff]
    %v1046 = vld [vmem:[%s1 + $0x80] sm:$0xff]
    %v1047 = vld [vmem:[%s1 + $0x88] sm:$0xff]
    %v1048 = vld [vmem:[%s1 + $0x90] sm:$0xff]
    %v1049 = vld [vmem:[%s1 + $0x98] sm:$0xff]
    %v1050 = vld [vmem:[%s1 + $0xa0] sm:$0xff]
    %v1051 = vld [vmem:[%s1 + $0xa8] sm:$0xff]
    %v1052 = vld [vmem:[%s1 + $0xb0] sm:$0xff]
    %v1053 = vld [vmem:[%s1 + $0xb8] sm:$0xff]
    %v1054 = vld [vmem:[%s1 + $0xc0] sm:$0xff]
    %v1055 = vld [vmem:[%s1 + $0xc8] sm:$0xff]
    %v1056 = vld [vmem:[%s1 + $0xd0] sm:$0xff]
    %v1057 = vld [vmem:[%s1 + $0xd8] sm:$0xff]
    %v1058 = vld [vmem:[%s1 + $0xe0] sm:$0xff]
    %v1059 = vld [vmem:[%s1 + $0xe8] sm:$0xff]
    %v1060 = vld [vmem:[%s1 + $0xf0] sm:$0xff]
    %v1061 = vld [vmem:[%s1 + $0xf8] sm:$0xff]
    %v1062 = vld [vmem:[%s1 + $0x100] sm:$0xff]
    %v1063 = vld [vmem:[%s1 + $0x108] sm:$0xff]
    %v1064 = vld [vmem:[%s1 + $0x110] sm:$0xff]
    %v1065 = vld [vmem:[%s1 + $0x118] sm:$0xff]
    %v1066 = vld [vmem:[%s1 + $0x120] sm:$0xff]
    %v1067 = vld [vmem:[%s1 + $0x128] sm:$0xff]
    %v1068 = vld [vmem:[%s1 + $0x130] sm:$0xff]
    %v1069 = vld [vmem:[%s1 + $0x138] sm:$0xff]
    %v1070 = vld [vmem:[%s1 + $0x140] sm:$0xff]
    %v1071 = vld [vmem:[%s1 + $0x148] sm:$0xff]
    %v1072 = vld [vmem:[%s1 + $0x150] sm:$0xff]
    %v1073 = vld [vmem:[%s1 + $0x158] sm:$0xff]
    %v1074 = vld [vmem:[%s1 + $0x160] sm:$0xff]
    %v1075 = vld [vmem:[%s1 + $0x168] sm:$0xff]
    %v1076 = vld [vmem:[%s1 + $0x170] sm:$0xff]
    %v1077 = vld [vmem:[%s1 + $0x178] sm:$0xff]
    %v1078 = vadd.f32 %v711, %v1030
    %v1079 = vadd.f32 %v713, %v1031
    %v1080 = vadd.f32 %v904, %v1032
    %v1081 = vadd.f32 %v715, %v1033
    %v1082 = vadd.f32 %v717, %v1034
    %v1083 = vadd.f32 %v907, %v1035
    %v1084 = vadd.f32 %v721, %v1036
    %v1085 = vadd.f32 %v723, %v1037
    %v1086 = vadd.f32 %v912, %v1038
    %v1087 = vadd.f32 %v725, %v1039
    %v1088 = vadd.f32 %v727, %v1040
    %v1089 = vadd.f32 %v915, %v1041
    %v1090 = vadd.f32 %v731, %v1042
    %v1091 = vadd.f32 %v733, %v1043
    %v1092 = vadd.f32 %v920, %v1044
    %v1093 = vadd.f32 %v735, %v1045
    %v1094 = vadd.f32 %v737, %v1046
    %v1095 = vadd.f32 %v923, %v1047
    %v1096 = vadd.f32 %v741, %v1048
    %v1097 = vadd.f32 %v743, %v1049
    %v1098 = vadd.f32 %v928, %v1050
    %v1099 = vadd.f32 %v745, %v1051
    %v1100 = vadd.f32 %v747, %v1052
    %v1101 = vadd.f32 %v931, %v1053
    %v1102 = vadd.f32 %v751, %v1054
    %v1103 = vadd.f32 %v753, %v1055
    %v1104 = vadd.f32 %v936, %v1056
    %v1105 = vadd.f32 %v755, %v1057
    %v1106 = vadd.f32 %v757, %v1058
    %v1107 = vadd.f32 %v939, %v1059
    %v1108 = vadd.f32 %v761, %v1060
    %v1109 = vadd.f32 %v763, %v1061
    %v1110 = vadd.f32 %v944, %v1062
    %v1111 = vadd.f32 %v765, %v1063
    %v1112 = vadd.f32 %v767, %v1064
    %v1113 = vadd.f32 %v947, %v1065
    %v1114 = vadd.f32 %v771, %v1066
    %v1115 = vadd.f32 %v773, %v1067
    %v1116 = vadd.f32 %v952, %v1068
    %v1117 = vadd.f32 %v775, %v1069
    %v1118 = vadd.f32 %v777, %v1070
    %v1119 = vadd.f32 %v955, %v1071
    %v1120 = vadd.f32 %v781, %v1072
    %v1121 = vadd.f32 %v783, %v1073
    %v1122 = vadd.f32 %v960, %v1074
    %v1123 = vadd.f32 %v785, %v1075
    %v1124 = vadd.f32 %v787, %v1076
    %v1125 = vadd.f32 %v963, %v1077
    %v1126 = vadd.f32 %v791, %v1030
    %v1127 = vadd.f32 %v793, %v1031
    %v1128 = vadd.f32 %v968, %v1032
    %v1129 = vadd.f32 %v795, %v1033
    %v1130 = vadd.f32 %v797, %v1034
    %v1131 = vadd.f32 %v971, %v1035
    %v1132 = vadd.f32 %v801, %v1036
    %v1133 = vadd.f32 %v803, %v1037
    %v1134 = vadd.f32 %v976, %v1038
    %v1135 = vadd.f32 %v805, %v1039
    %v1136 = vadd.f32 %v807, %v1040
    %v1137 = vadd.f32 %v979, %v1041
    %v1138 = vadd.f32 %v811, %v1042
    %v1139 = vadd.f32 %v813, %v1043
    %v1140 = vadd.f32 %v984, %v1044
    %v1141 = vadd.f32 %v815, %v1045
    %v1142 = vadd.f32 %v817, %v1046
    %v1143 = vadd.f32 %v987, %v1047
    %v1144 = vadd.f32 %v821, %v1048
    %v1145 = vadd.f32 %v823, %v1049
    %v1146 = vadd.f32 %v992, %v1050
    %v1147 = vadd.f32 %v825, %v1051
    %v1148 = vadd.f32 %v827, %v1052
    %v1149 = vadd.f32 %v995, %v1053
    %v1150 = vadd.f32 %v831, %v1054
    %v1151 = vadd.f32 %v833, %v1055
    %v1152 = vadd.f32 %v1000, %v1056
    %v1153 = vadd.f32 %v835, %v1057
    %v1154 = vadd.f32 %v837, %v1058
    %v1155 = vadd.f32 %v1003, %v1059
    %v1156 = vadd.f32 %v841, %v1060
    %v1157 = vadd.f32 %v843, %v1061
    %v1158 = vadd.f32 %v1008, %v1062
    %v1159 = vadd.f32 %v845, %v1063
    %v1160 = vadd.f32 %v847, %v1064
    %v1161 = vadd.f32 %v1011, %v1065
    %v1162 = vadd.f32 %v851, %v1066
    %v1163 = vadd.f32 %v853, %v1067
    %v1164 = vadd.f32 %v1016, %v1068
    %v1165 = vadd.f32 %v855, %v1069
    %v1166 = vadd.f32 %v857, %v1070
    %v1167 = vadd.f32 %v1019, %v1071
    %v1168 = vadd.f32 %v861, %v1072
    %v1169 = vadd.f32 %v863, %v1073
    %v1170 = vadd.f32 %v1024, %v1074
    %v1171 = vadd.f32 %v865, %v1075
    %v1172 = vadd.f32 %v867, %v1076
    %v1173 = vadd.f32 %v1027, %v1077
    %1206 = vrot.lane.b32.xlu0 %v1078, 96
    %v1207 = vpop.permute.xlu0 %1206
    %1208 = vrot.lane.b32.xlu0 %v1081, 96
    %v1209 = vpop.permute.xlu0 %1208
    %1210 = vrot.lane.b32.xlu0 %v1084, 96
    %v1211 = vpop.permute.xlu0 %1210
    %1212 = vrot.lane.b32.xlu0 %v1087, 96
    %v1213 = vpop.permute.xlu0 %1212
    %1214 = vrot.lane.b32.xlu0 %v1090, 96
    %v1215 = vpop.permute.xlu0 %1214
    %1216 = vrot.lane.b32.xlu0 %v1093, 96
    %v1217 = vpop.permute.xlu0 %1216
    %1218 = vrot.lane.b32.xlu0 %v1096, 96
    %v1219 = vpop.permute.xlu0 %1218
    %1220 = vrot.lane.b32.xlu0 %v1099, 96
    %v1221 = vpop.permute.xlu0 %1220
    %1222 = vrot.lane.b32.xlu0 %v1102, 96
    %v1223 = vpop.permute.xlu0 %1222
    %1224 = vrot.lane.b32.xlu0 %v1105, 96
    %v1225 = vpop.permute.xlu0 %1224
    %1226 = vrot.lane.b32.xlu0 %v1108, 96
    %v1227 = vpop.permute.xlu0 %1226
    %1228 = vrot.lane.b32.xlu0 %v1111, 96
    %v1229 = vpop.permute.xlu0 %1228
    %1230 = vrot.lane.b32.xlu0 %v1114, 96
    %v1231 = vpop.permute.xlu0 %1230
    %1232 = vrot.lane.b32.xlu0 %v1117, 96
    %v1233 = vpop.permute.xlu0 %1232
    %1234 = vrot.lane.b32.xlu0 %v1120, 96
    %v1235 = vpop.permute.xlu0 %1234
    %1236 = vrot.lane.b32.xlu0 %v1123, 96
    %v1237 = vpop.permute.xlu0 %1236
    %1238 = vrot.lane.b32.xlu0 %v1126, 96
    %v1239 = vpop.permute.xlu0 %1238
    %1240 = vrot.lane.b32.xlu0 %v1129, 96
    %v1241 = vpop.permute.xlu0 %1240
    %1242 = vrot.lane.b32.xlu0 %v1132, 96
    %v1243 = vpop.permute.xlu0 %1242
    %1244 = vrot.lane.b32.xlu0 %v1135, 96
    %v1245 = vpop.permute.xlu0 %1244
    %1246 = vrot.lane.b32.xlu0 %v1138, 96
    %v1247 = vpop.permute.xlu0 %1246
    %1248 = vrot.lane.b32.xlu0 %v1141, 96
    %v1249 = vpop.permute.xlu0 %1248
    %1250 = vrot.lane.b32.xlu0 %v1144, 96
    %v1251 = vpop.permute.xlu0 %1250
    %1252 = vrot.lane.b32.xlu0 %v1147, 96
    %v1253 = vpop.permute.xlu0 %1252
    %1254 = vrot.lane.b32.xlu0 %v1150, 96
    %v1255 = vpop.permute.xlu0 %1254
    %1256 = vrot.lane.b32.xlu0 %v1153, 96
    %v1257 = vpop.permute.xlu0 %1256
    %1258 = vrot.lane.b32.xlu0 %v1156, 96
    %v1259 = vpop.permute.xlu0 %1258
    %1260 = vrot.lane.b32.xlu0 %v1159, 96
    %v1261 = vpop.permute.xlu0 %1260
    %1262 = vrot.lane.b32.xlu0 %v1162, 96
    %v1263 = vpop.permute.xlu0 %1262
    %1264 = vrot.lane.b32.xlu0 %v1165, 96
    %v1265 = vpop.permute.xlu0 %1264
    %1266 = vrot.lane.b32.xlu0 %v1168, 96
    %v1267 = vpop.permute.xlu0 %1266
    %1268 = vrot.lane.b32.xlu0 %v1171, 96
    %v1269 = vpop.permute.xlu0 %1268
    %1302 = vrot.lane.b32.xlu0 %v1078, 64
    %v1303 = vpop.permute.xlu0 %1302
    %1304 = vrot.lane.b32.xlu0 %v1081, 64
    %v1305 = vpop.permute.xlu0 %1304
    %1306 = vrot.lane.b32.xlu0 %v1084, 64
    %v1307 = vpop.permute.xlu0 %1306
    %1308 = vrot.lane.b32.xlu0 %v1087, 64
    %v1309 = vpop.permute.xlu0 %1308
    %1310 = vrot.lane.b32.xlu0 %v1090, 64
    %v1311 = vpop.permute.xlu0 %1310
    %1312 = vrot.lane.b32.xlu0 %v1093, 64
    %v1313 = vpop.permute.xlu0 %1312
    %1314 = vrot.lane.b32.xlu0 %v1096, 64
    %v1315 = vpop.permute.xlu0 %1314
    %1316 = vrot.lane.b32.xlu0 %v1099, 64
    %v1317 = vpop.permute.xlu0 %1316
    %1318 = vrot.lane.b32.xlu0 %v1102, 64
    %v1319 = vpop.permute.xlu0 %1318
    %1320 = vrot.lane.b32.xlu0 %v1105, 64
    %v1321 = vpop.permute.xlu0 %1320
    %1322 = vrot.lane.b32.xlu0 %v1108, 64
    %v1323 = vpop.permute.xlu0 %1322
    %1324 = vrot.lane.b32.xlu0 %v1111, 64
    %v1325 = vpop.permute.xlu0 %1324
    %1326 = vrot.lane.b32.xlu0 %v1114, 64
    %v1327 = vpop.permute.xlu0 %1326
    %1328 = vrot.lane.b32.xlu0 %v1117, 64
    %v1329 = vpop.permute.xlu0 %1328
    %1330 = vrot.lane.b32.xlu0 %v1120, 64
    %v1331 = vpop.permute.xlu0 %1330
    %1332 = vrot.lane.b32.xlu0 %v1123, 64
    %v1333 = vpop.permute.xlu0 %1332
    %1334 = vrot.lane.b32.xlu0 %v1126, 64
    %v1335 = vpop.permute.xlu0 %1334
    %1336 = vrot.lane.b32.xlu0 %v1129, 64
    %v1337 = vpop.permute.xlu0 %1336
    %1338 = vrot.lane.b32.xlu0 %v1132, 64
    %v1339 = vpop.permute.xlu0 %1338
    %1340 = vrot.lane.b32.xlu0 %v1135, 64
    %v1341 = vpop.permute.xlu0 %1340
    %1342 = vrot.lane.b32.xlu0 %v1138, 64
    %v1343 = vpop.permute.xlu0 %1342
    %1344 = vrot.lane.b32.xlu0 %v1141, 64
    %v1345 = vpop.permute.xlu0 %1344
    %1346 = vrot.lane.b32.xlu0 %v1144, 64
    %v1347 = vpop.permute.xlu0 %1346
    %1348 = vrot.lane.b32.xlu0 %v1147, 64
    %v1349 = vpop.permute.xlu0 %1348
    %1350 = vrot.lane.b32.xlu0 %v1150, 64
    %v1351 = vpop.permute.xlu0 %1350
    %1352 = vrot.lane.b32.xlu0 %v1153, 64
    %v1353 = vpop.permute.xlu0 %1352
    %1354 = vrot.lane.b32.xlu0 %v1156, 64
    %v1355 = vpop.permute.xlu0 %1354
    %1356 = vrot.lane.b32.xlu0 %v1159, 64
    %v1357 = vpop.permute.xlu0 %1356
    %1358 = vrot.lane.b32.xlu0 %v1162, 64
    %v1359 = vpop.permute.xlu0 %1358
    %1360 = vrot.lane.b32.xlu0 %v1165, 64
    %v1361 = vpop.permute.xlu0 %1360
    %1362 = vrot.lane.b32.xlu0 %v1168, 64
    %v1363 = vpop.permute.xlu0 %1362
    %1364 = vrot.lane.b32.xlu0 %v1171, 64
    %v1365 = vpop.permute.xlu0 %1364
    %1398 = vrot.lane.b32.xlu0 %v1078, 32
    %v1399 = vpop.permute.xlu0 %1398
    %1400 = vrot.lane.b32.xlu0 %v1081, 32
    %v1401 = vpop.permute.xlu0 %1400
    %1402 = vrot.lane.b32.xlu0 %v1084, 32
    %v1403 = vpop.permute.xlu0 %1402
    %1404 = vrot.lane.b32.xlu0 %v1087, 32
    %v1405 = vpop.permute.xlu0 %1404
    %1406 = vrot.lane.b32.xlu0 %v1090, 32
    %v1407 = vpop.permute.xlu0 %1406
    %1408 = vrot.lane.b32.xlu0 %v1093, 32
    %v1409 = vpop.permute.xlu0 %1408
    %1410 = vrot.lane.b32.xlu0 %v1096, 32
    %v1411 = vpop.permute.xlu0 %1410
    %1412 = vrot.lane.b32.xlu0 %v1099, 32
    %v1413 = vpop.permute.xlu0 %1412
    %1414 = vrot.lane.b32.xlu0 %v1102, 32
    %v1415 = vpop.permute.xlu0 %1414
    %1416 = vrot.lane.b32.xlu0 %v1105, 32
    %v1417 = vpop.permute.xlu0 %1416
    %1418 = vrot.lane.b32.xlu0 %v1108, 32
    %v1419 = vpop.permute.xlu0 %1418
    %1420 = vrot.lane.b32.xlu0 %v1111, 32
    %v1421 = vpop.permute.xlu0 %1420
    %1422 = vrot.lane.b32.xlu0 %v1114, 32
    %v1423 = vpop.permute.xlu0 %1422
    %1424 = vrot.lane.b32.xlu0 %v1117, 32
    %v1425 = vpop.permute.xlu0 %1424
    %1426 = vrot.lane.b32.xlu0 %v1120, 32
    %v1427 = vpop.permute.xlu0 %1426
    %1428 = vrot.lane.b32.xlu0 %v1123, 32
    %v1429 = vpop.permute.xlu0 %1428
    %1430 = vrot.lane.b32.xlu0 %v1126, 32
    %v1431 = vpop.permute.xlu0 %1430
    %1432 = vrot.lane.b32.xlu0 %v1129, 32
    %v1433 = vpop.permute.xlu0 %1432
    %1434 = vrot.lane.b32.xlu0 %v1132, 32
    %v1435 = vpop.permute.xlu0 %1434
    %1436 = vrot.lane.b32.xlu0 %v1135, 32
    %v1437 = vpop.permute.xlu0 %1436
    %1438 = vrot.lane.b32.xlu0 %v1138, 32
    %v1439 = vpop.permute.xlu0 %1438
    %1440 = vrot.lane.b32.xlu0 %v1141, 32
    %v1441 = vpop.permute.xlu0 %1440
    %1442 = vrot.lane.b32.xlu0 %v1144, 32
    %v1443 = vpop.permute.xlu0 %1442
    %1444 = vrot.lane.b32.xlu0 %v1147, 32
    %v1445 = vpop.permute.xlu0 %1444
    %1446 = vrot.lane.b32.xlu0 %v1150, 32
    %v1447 = vpop.permute.xlu0 %1446
    %1448 = vrot.lane.b32.xlu0 %v1153, 32
    %v1449 = vpop.permute.xlu0 %1448
    %1450 = vrot.lane.b32.xlu0 %v1156, 32
    %v1451 = vpop.permute.xlu0 %1450
    %1452 = vrot.lane.b32.xlu0 %v1159, 32
    %v1453 = vpop.permute.xlu0 %1452
    %1454 = vrot.lane.b32.xlu0 %v1162, 32
    %v1455 = vpop.permute.xlu0 %1454
    %1456 = vrot.lane.b32.xlu0 %v1165, 32
    %v1457 = vpop.permute.xlu0 %1456
    %1458 = vrot.lane.b32.xlu0 %v1168, 32
    %v1459 = vpop.permute.xlu0 %1458
    %1460 = vrot.lane.b32.xlu0 %v1171, 32
    %v1461 = vpop.permute.xlu0 %1460
    %v1494 = vpack.c.bf16 %v1081, %v1078
    %v1495 = vpack.c.bf16 %v1087, %v1084
    %v1496 = vpack.c.bf16 %v1209, %v1207
    %v1497 = vpack.c.bf16 %v1213, %v1211
    %v1498 = vpack.c.bf16 %v1305, %v1303
    %v1499 = vpack.c.bf16 %v1309, %v1307
    %v1500 = vpack.c.bf16 %v1401, %v1399
    %v1501 = vpack.c.bf16 %v1405, %v1403
    %v1502 = vpack.c.bf16 %v1093, %v1090
    %v1503 = vpack.c.bf16 %v1099, %v1096
    %v1504 = vpack.c.bf16 %v1217, %v1215
    %v1505 = vpack.c.bf16 %v1221, %v1219
    %v1506 = vpack.c.bf16 %v1313, %v1311
    %v1507 = vpack.c.bf16 %v1317, %v1315
    %v1508 = vpack.c.bf16 %v1409, %v1407
    %v1509 = vpack.c.bf16 %v1413, %v1411
    %v1510 = vpack.c.bf16 %v1105, %v1102
    %v1511 = vpack.c.bf16 %v1111, %v1108
    %v1512 = vpack.c.bf16 %v1225, %v1223
    %v1513 = vpack.c.bf16 %v1229, %v1227
    %v1514 = vpack.c.bf16 %v1321, %v1319
    %v1515 = vpack.c.bf16 %v1325, %v1323
    %v1516 = vpack.c.bf16 %v1417, %v1415
    %v1517 = vpack.c.bf16 %v1421, %v1419
    %v1518 = vpack.c.bf16 %v1117, %v1114
    %v1519 = vpack.c.bf16 %v1123, %v1120
    %v1520 = vpack.c.bf16 %v1233, %v1231
    %v1521 = vpack.c.bf16 %v1237, %v1235
    %v1522 = vpack.c.bf16 %v1329, %v1327
    %v1523 = vpack.c.bf16 %v1333, %v1331
    %v1524 = vpack.c.bf16 %v1425, %v1423
    %v1525 = vpack.c.bf16 %v1429, %v1427
    %v1526 = vpack.c.bf16 %v1129, %v1126
    %v1527 = vpack.c.bf16 %v1135, %v1132
    %v1528 = vpack.c.bf16 %v1241, %v1239
    %v1529 = vpack.c.bf16 %v1245, %v1243
    %v1530 = vpack.c.bf16 %v1337, %v1335
    %v1531 = vpack.c.bf16 %v1341, %v1339
    %v1532 = vpack.c.bf16 %v1433, %v1431
    %v1533 = vpack.c.bf16 %v1437, %v1435
    %v1534 = vpack.c.bf16 %v1141, %v1138
    %v1535 = vpack.c.bf16 %v1147, %v1144
    %v1536 = vpack.c.bf16 %v1249, %v1247
    %v1537 = vpack.c.bf16 %v1253, %v1251
    %v1538 = vpack.c.bf16 %v1345, %v1343
    %v1539 = vpack.c.bf16 %v1349, %v1347
    %v1540 = vpack.c.bf16 %v1441, %v1439
    %v1541 = vpack.c.bf16 %v1445, %v1443
    %v1542 = vpack.c.bf16 %v1153, %v1150
    %v1543 = vpack.c.bf16 %v1159, %v1156
    %v1544 = vpack.c.bf16 %v1257, %v1255
    %v1545 = vpack.c.bf16 %v1261, %v1259
    %v1546 = vpack.c.bf16 %v1353, %v1351
    %v1547 = vpack.c.bf16 %v1357, %v1355
    %v1548 = vpack.c.bf16 %v1449, %v1447
    %v1549 = vpack.c.bf16 %v1453, %v1451
    %v1550 = vpack.c.bf16 %v1165, %v1162
    %v1551 = vpack.c.bf16 %v1171, %v1168
    %v1552 = vpack.c.bf16 %v1265, %v1263
    %v1553 = vpack.c.bf16 %v1269, %v1267
    %v1554 = vpack.c.bf16 %v1361, %v1359
    %v1555 = vpack.c.bf16 %v1365, %v1363
    %v1556 = vpack.c.bf16 %v1457, %v1455
    %v1557 = vpack.c.bf16 %v1461, %v1459
    %1590 = vrot.lane.b32.xlu0 %v1079, 96
    %v1591 = vpop.permute.xlu0 %1590
    %1592 = vrot.lane.b32.xlu0 %v1082, 96
    %v1593 = vpop.permute.xlu0 %1592
    %1594 = vrot.lane.b32.xlu0 %v1085, 96
    %v1595 = vpop.permute.xlu0 %1594
    %1596 = vrot.lane.b32.xlu0 %v1088, 96
    %v1597 = vpop.permute.xlu0 %1596
    %1598 = vrot.lane.b32.xlu0 %v1091, 96
    %v1599 = vpop.permute.xlu0 %1598
    %1600 = vrot.lane.b32.xlu0 %v1094, 96
    %v1601 = vpop.permute.xlu0 %1600
    %1602 = vrot.lane.b32.xlu0 %v1097, 96
    %v1603 = vpop.permute.xlu0 %1602
    %1604 = vrot.lane.b32.xlu0 %v1100, 96
    %v1605 = vpop.permute.xlu0 %1604
    %1606 = vrot.lane.b32.xlu0 %v1103, 96
    %v1607 = vpop.permute.xlu0 %1606
    %1608 = vrot.lane.b32.xlu0 %v1106, 96
    %v1609 = vpop.permute.xlu0 %1608
    %1610 = vrot.lane.b32.xlu0 %v1109, 96
    %v1611 = vpop.permute.xlu0 %1610
    %1612 = vrot.lane.b32.xlu0 %v1112, 96
    %v1613 = vpop.permute.xlu0 %1612
    %1614 = vrot.lane.b32.xlu0 %v1115, 96
    %v1615 = vpop.permute.xlu0 %1614
    %1616 = vrot.lane.b32.xlu0 %v1118, 96
    %v1617 = vpop.permute.xlu0 %1616
    %1618 = vrot.lane.b32.xlu0 %v1121, 96
    %v1619 = vpop.permute.xlu0 %1618
    %1620 = vrot.lane.b32.xlu0 %v1124, 96
    %v1621 = vpop.permute.xlu0 %1620
    %1622 = vrot.lane.b32.xlu0 %v1127, 96
    %v1623 = vpop.permute.xlu0 %1622
    %1624 = vrot.lane.b32.xlu0 %v1130, 96
    %v1625 = vpop.permute.xlu0 %1624
    %1626 = vrot.lane.b32.xlu0 %v1133, 96
    %v1627 = vpop.permute.xlu0 %1626
    %1628 = vrot.lane.b32.xlu0 %v1136, 96
    %v1629 = vpop.permute.xlu0 %1628
    %1630 = vrot.lane.b32.xlu0 %v1139, 96
    %v1631 = vpop.permute.xlu0 %1630
    %1632 = vrot.lane.b32.xlu0 %v1142, 96
    %v1633 = vpop.permute.xlu0 %1632
    %1634 = vrot.lane.b32.xlu0 %v1145, 96
    %v1635 = vpop.permute.xlu0 %1634
    %1636 = vrot.lane.b32.xlu0 %v1148, 96
    %v1637 = vpop.permute.xlu0 %1636
    %1638 = vrot.lane.b32.xlu0 %v1151, 96
    %v1639 = vpop.permute.xlu0 %1638
    %1640 = vrot.lane.b32.xlu0 %v1154, 96
    %v1641 = vpop.permute.xlu0 %1640
    %1642 = vrot.lane.b32.xlu0 %v1157, 96
    %v1643 = vpop.permute.xlu0 %1642
    %1644 = vrot.lane.b32.xlu0 %v1160, 96
    %v1645 = vpop.permute.xlu0 %1644
    %1646 = vrot.lane.b32.xlu0 %v1163, 96
    %v1647 = vpop.permute.xlu0 %1646
    %1648 = vrot.lane.b32.xlu0 %v1166, 96
    %v1649 = vpop.permute.xlu0 %1648
    %1650 = vrot.lane.b32.xlu0 %v1169, 96
    %v1651 = vpop.permute.xlu0 %1650
    %1652 = vrot.lane.b32.xlu0 %v1172, 96
    %v1653 = vpop.permute.xlu0 %1652
    %1686 = vrot.lane.b32.xlu0 %v1079, 64
    %v1687 = vpop.permute.xlu0 %1686
    %1688 = vrot.lane.b32.xlu0 %v1082, 64
    %v1689 = vpop.permute.xlu0 %1688
    %1690 = vrot.lane.b32.xlu0 %v1085, 64
    %v1691 = vpop.permute.xlu0 %1690
    %1692 = vrot.lane.b32.xlu0 %v1088, 64
    %v1693 = vpop.permute.xlu0 %1692
    %1694 = vrot.lane.b32.xlu0 %v1091, 64
    %v1695 = vpop.permute.xlu0 %1694
    %1696 = vrot.lane.b32.xlu0 %v1094, 64
    %v1697 = vpop.permute.xlu0 %1696
    %1698 = vrot.lane.b32.xlu0 %v1097, 64
    %v1699 = vpop.permute.xlu0 %1698
    %1700 = vrot.lane.b32.xlu0 %v1100, 64
    %v1701 = vpop.permute.xlu0 %1700
    %1702 = vrot.lane.b32.xlu0 %v1103, 64
    %v1703 = vpop.permute.xlu0 %1702
    %1704 = vrot.lane.b32.xlu0 %v1106, 64
    %v1705 = vpop.permute.xlu0 %1704
    %1706 = vrot.lane.b32.xlu0 %v1109, 64
    %v1707 = vpop.permute.xlu0 %1706
    %1708 = vrot.lane.b32.xlu0 %v1112, 64
    %v1709 = vpop.permute.xlu0 %1708
    %1710 = vrot.lane.b32.xlu0 %v1115, 64
    %v1711 = vpop.permute.xlu0 %1710
    %1712 = vrot.lane.b32.xlu0 %v1118, 64
    %v1713 = vpop.permute.xlu0 %1712
    %1714 = vrot.lane.b32.xlu0 %v1121, 64
    %v1715 = vpop.permute.xlu0 %1714
    %1716 = vrot.lane.b32.xlu0 %v1124, 64
    %v1717 = vpop.permute.xlu0 %1716
    %1718 = vrot.lane.b32.xlu0 %v1127, 64
    %v1719 = vpop.permute.xlu0 %1718
    %1720 = vrot.lane.b32.xlu0 %v1130, 64
    %v1721 = vpop.permute.xlu0 %1720
    %1722 = vrot.lane.b32.xlu0 %v1133, 64
    %v1723 = vpop.permute.xlu0 %1722
    %1724 = vrot.lane.b32.xlu0 %v1136, 64
    %v1725 = vpop.permute.xlu0 %1724
    %1726 = vrot.lane.b32.xlu0 %v1139, 64
    %v1727 = vpop.permute.xlu0 %1726
    %1728 = vrot.lane.b32.xlu0 %v1142, 64
    %v1729 = vpop.permute.xlu0 %1728
    %1730 = vrot.lane.b32.xlu0 %v1145, 64
    %v1731 = vpop.permute.xlu0 %1730
    %1732 = vrot.lane.b32.xlu0 %v1148, 64
    %v1733 = vpop.permute.xlu0 %1732
    %1734 = vrot.lane.b32.xlu0 %v1151, 64
    %v1735 = vpop.permute.xlu0 %1734
    %1736 = vrot.lane.b32.xlu0 %v1154, 64
    %v1737 = vpop.permute.xlu0 %1736
    %1738 = vrot.lane.b32.xlu0 %v1157, 64
    %v1739 = vpop.permute.xlu0 %1738
    %1740 = vrot.lane.b32.xlu0 %v1160, 64
    %v1741 = vpop.permute.xlu0 %1740
    %1742 = vrot.lane.b32.xlu0 %v1163, 64
    %v1743 = vpop.permute.xlu0 %1742
    %1744 = vrot.lane.b32.xlu0 %v1166, 64
    %v1745 = vpop.permute.xlu0 %1744
    %1746 = vrot.lane.b32.xlu0 %v1169, 64
    %v1747 = vpop.permute.xlu0 %1746
    %1748 = vrot.lane.b32.xlu0 %v1172, 64
    %v1749 = vpop.permute.xlu0 %1748
    %1782 = vrot.lane.b32.xlu0 %v1079, 32
    %v1783 = vpop.permute.xlu0 %1782
    %1784 = vrot.lane.b32.xlu0 %v1082, 32
    %v1785 = vpop.permute.xlu0 %1784
    %1786 = vrot.lane.b32.xlu0 %v1085, 32
    %v1787 = vpop.permute.xlu0 %1786
    %1788 = vrot.lane.b32.xlu0 %v1088, 32
    %v1789 = vpop.permute.xlu0 %1788
    %1790 = vrot.lane.b32.xlu0 %v1091, 32
    %v1791 = vpop.permute.xlu0 %1790
    %1792 = vrot.lane.b32.xlu0 %v1094, 32
    %v1793 = vpop.permute.xlu0 %1792
    %1794 = vrot.lane.b32.xlu0 %v1097, 32
    %v1795 = vpop.permute.xlu0 %1794
    %1796 = vrot.lane.b32.xlu0 %v1100, 32
    %v1797 = vpop.permute.xlu0 %1796
    %1798 = vrot.lane.b32.xlu0 %v1103, 32
    %v1799 = vpop.permute.xlu0 %1798
    %1800 = vrot.lane.b32.xlu0 %v1106, 32
    %v1801 = vpop.permute.xlu0 %1800
    %1802 = vrot.lane.b32.xlu0 %v1109, 32
    %v1803 = vpop.permute.xlu0 %1802
    %1804 = vrot.lane.b32.xlu0 %v1112, 32
    %v1805 = vpop.permute.xlu0 %1804
    %1806 = vrot.lane.b32.xlu0 %v1115, 32
    %v1807 = vpop.permute.xlu0 %1806
    %1808 = vrot.lane.b32.xlu0 %v1118, 32
    %v1809 = vpop.permute.xlu0 %1808
    %1810 = vrot.lane.b32.xlu0 %v1121, 32
    %v1811 = vpop.permute.xlu0 %1810
    %1812 = vrot.lane.b32.xlu0 %v1124, 32
    %v1813 = vpop.permute.xlu0 %1812
    %1814 = vrot.lane.b32.xlu0 %v1127, 32
    %v1815 = vpop.permute.xlu0 %1814
    %1816 = vrot.lane.b32.xlu0 %v1130, 32
    %v1817 = vpop.permute.xlu0 %1816
    %1818 = vrot.lane.b32.xlu0 %v1133, 32
    %v1819 = vpop.permute.xlu0 %1818
    %1820 = vrot.lane.b32.xlu0 %v1136, 32
    %v1821 = vpop.permute.xlu0 %1820
    %1822 = vrot.lane.b32.xlu0 %v1139, 32
    %v1823 = vpop.permute.xlu0 %1822
    %1824 = vrot.lane.b32.xlu0 %v1142, 32
    %v1825 = vpop.permute.xlu0 %1824
    %1826 = vrot.lane.b32.xlu0 %v1145, 32
    %v1827 = vpop.permute.xlu0 %1826
    %1828 = vrot.lane.b32.xlu0 %v1148, 32
    %v1829 = vpop.permute.xlu0 %1828
    %1830 = vrot.lane.b32.xlu0 %v1151, 32
    %v1831 = vpop.permute.xlu0 %1830
    %1832 = vrot.lane.b32.xlu0 %v1154, 32
    %v1833 = vpop.permute.xlu0 %1832
    %1834 = vrot.lane.b32.xlu0 %v1157, 32
    %v1835 = vpop.permute.xlu0 %1834
    %1836 = vrot.lane.b32.xlu0 %v1160, 32
    %v1837 = vpop.permute.xlu0 %1836
    %1838 = vrot.lane.b32.xlu0 %v1163, 32
    %v1839 = vpop.permute.xlu0 %1838
    %1840 = vrot.lane.b32.xlu0 %v1166, 32
    %v1841 = vpop.permute.xlu0 %1840
    %1842 = vrot.lane.b32.xlu0 %v1169, 32
    %v1843 = vpop.permute.xlu0 %1842
    %1844 = vrot.lane.b32.xlu0 %v1172, 32
    %v1845 = vpop.permute.xlu0 %1844
    %v1878 = vpack.c.bf16 %v1082, %v1079
    %v1879 = vpack.c.bf16 %v1088, %v1085
    %v1880 = vpack.c.bf16 %v1593, %v1591
    %v1881 = vpack.c.bf16 %v1597, %v1595
    %v1882 = vpack.c.bf16 %v1689, %v1687
    %v1883 = vpack.c.bf16 %v1693, %v1691
    %v1884 = vpack.c.bf16 %v1785, %v1783
    %v1885 = vpack.c.bf16 %v1789, %v1787
    %v1886 = vpack.c.bf16 %v1094, %v1091
    %v1887 = vpack.c.bf16 %v1100, %v1097
    %v1888 = vpack.c.bf16 %v1601, %v1599
    %v1889 = vpack.c.bf16 %v1605, %v1603
    %v1890 = vpack.c.bf16 %v1697, %v1695
    %v1891 = vpack.c.bf16 %v1701, %v1699
    %v1892 = vpack.c.bf16 %v1793, %v1791
    %v1893 = vpack.c.bf16 %v1797, %v1795
    %v1894 = vpack.c.bf16 %v1106, %v1103
    %v1895 = vpack.c.bf16 %v1112, %v1109
    %v1896 = vpack.c.bf16 %v1609, %v1607
    %v1897 = vpack.c.bf16 %v1613, %v1611
    %v1898 = vpack.c.bf16 %v1705, %v1703
    %v1899 = vpack.c.bf16 %v1709, %v1707
    %v1900 = vpack.c.bf16 %v1801, %v1799
    %v1901 = vpack.c.bf16 %v1805, %v1803
    %v1902 = vpack.c.bf16 %v1118, %v1115
    %v1903 = vpack.c.bf16 %v1124, %v1121
    %v1904 = vpack.c.bf16 %v1617, %v1615
    %v1905 = vpack.c.bf16 %v1621, %v1619
    %v1906 = vpack.c.bf16 %v1713, %v1711
    %v1907 = vpack.c.bf16 %v1717, %v1715
    %v1908 = vpack.c.bf16 %v1809, %v1807
    %v1909 = vpack.c.bf16 %v1813, %v1811
    %v1910 = vpack.c.bf16 %v1130, %v1127
    %v1911 = vpack.c.bf16 %v1136, %v1133
    %v1912 = vpack.c.bf16 %v1625, %v1623
    %v1913 = vpack.c.bf16 %v1629, %v1627
    %v1914 = vpack.c.bf16 %v1721, %v1719
    %v1915 = vpack.c.bf16 %v1725, %v1723
    %v1916 = vpack.c.bf16 %v1817, %v1815
    %v1917 = vpack.c.bf16 %v1821, %v1819
    %v1918 = vpack.c.bf16 %v1142, %v1139
    %v1919 = vpack.c.bf16 %v1148, %v1145
    %v1920 = vpack.c.bf16 %v1633, %v1631
    %v1921 = vpack.c.bf16 %v1637, %v1635
    %v1922 = vpack.c.bf16 %v1729, %v1727
    %v1923 = vpack.c.bf16 %v1733, %v1731
    %v1924 = vpack.c.bf16 %v1825, %v1823
    %v1925 = vpack.c.bf16 %v1829, %v1827
    %v1926 = vpack.c.bf16 %v1154, %v1151
    %v1927 = vpack.c.bf16 %v1160, %v1157
    %v1928 = vpack.c.bf16 %v1641, %v1639
    %v1929 = vpack.c.bf16 %v1645, %v1643
    %v1930 = vpack.c.bf16 %v1737, %v1735
    %v1931 = vpack.c.bf16 %v1741, %v1739
    %v1932 = vpack.c.bf16 %v1833, %v1831
    %v1933 = vpack.c.bf16 %v1837, %v1835
    %v1934 = vpack.c.bf16 %v1166, %v1163
    %v1935 = vpack.c.bf16 %v1172, %v1169
    %v1936 = vpack.c.bf16 %v1649, %v1647
    %v1937 = vpack.c.bf16 %v1653, %v1651
    %v1938 = vpack.c.bf16 %v1745, %v1743
    %v1939 = vpack.c.bf16 %v1749, %v1747
    %v1940 = vpack.c.bf16 %v1841, %v1839
    %v1941 = vpack.c.bf16 %v1845, %v1843
    %1974 = vrot.lane.b32.xlu0 %v1080, 96
    %v1975 = vpop.permute.xlu0 %1974
    %1976 = vrot.lane.b32.xlu0 %v1083, 96
    %v1977 = vpop.permute.xlu0 %1976
    %1978 = vrot.lane.b32.xlu0 %v1086, 96
    %v1979 = vpop.permute.xlu0 %1978
    %1980 = vrot.lane.b32.xlu0 %v1089, 96
    %v1981 = vpop.permute.xlu0 %1980
    %1982 = vrot.lane.b32.xlu0 %v1092, 96
    %v1983 = vpop.permute.xlu0 %1982
    %1984 = vrot.lane.b32.xlu0 %v1095, 96
    %v1985 = vpop.permute.xlu0 %1984
    %1986 = vrot.lane.b32.xlu0 %v1098, 96
    %v1987 = vpop.permute.xlu0 %1986
    %1988 = vrot.lane.b32.xlu0 %v1101, 96
    %v1989 = vpop.permute.xlu0 %1988
    %1990 = vrot.lane.b32.xlu0 %v1104, 96
    %v1991 = vpop.permute.xlu0 %1990
    %1992 = vrot.lane.b32.xlu0 %v1107, 96
    %v1993 = vpop.permute.xlu0 %1992
    %1994 = vrot.lane.b32.xlu0 %v1110, 96
    %v1995 = vpop.permute.xlu0 %1994
    %1996 = vrot.lane.b32.xlu0 %v1113, 96
    %v1997 = vpop.permute.xlu0 %1996
    %1998 = vrot.lane.b32.xlu0 %v1116, 96
    %v1999 = vpop.permute.xlu0 %1998
    %2000 = vrot.lane.b32.xlu0 %v1119, 96
    %v2001 = vpop.permute.xlu0 %2000
    %2002 = vrot.lane.b32.xlu0 %v1122, 96
    %v2003 = vpop.permute.xlu0 %2002
    %2004 = vrot.lane.b32.xlu0 %v1125, 96
    %v2005 = vpop.permute.xlu0 %2004
    %2006 = vrot.lane.b32.xlu0 %v1128, 96
    %v2007 = vpop.permute.xlu0 %2006
    %2008 = vrot.lane.b32.xlu0 %v1131, 96
    %v2009 = vpop.permute.xlu0 %2008
    %2010 = vrot.lane.b32.xlu0 %v1134, 96
    %v2011 = vpop.permute.xlu0 %2010
    %2012 = vrot.lane.b32.xlu0 %v1137, 96
    %v2013 = vpop.permute.xlu0 %2012
    %2014 = vrot.lane.b32.xlu0 %v1140, 96
    %v2015 = vpop.permute.xlu0 %2014
    %2016 = vrot.lane.b32.xlu0 %v1143, 96
    %v2017 = vpop.permute.xlu0 %2016
    %2018 = vrot.lane.b32.xlu0 %v1146, 96
    %v2019 = vpop.permute.xlu0 %2018
    %2020 = vrot.lane.b32.xlu0 %v1149, 96
    %v2021 = vpop.permute.xlu0 %2020
    %2022 = vrot.lane.b32.xlu0 %v1152, 96
    %v2023 = vpop.permute.xlu0 %2022
    %2024 = vrot.lane.b32.xlu0 %v1155, 96
    %v2025 = vpop.permute.xlu0 %2024
    %2026 = vrot.lane.b32.xlu0 %v1158, 96
    %v2027 = vpop.permute.xlu0 %2026
    %2028 = vrot.lane.b32.xlu0 %v1161, 96
    %v2029 = vpop.permute.xlu0 %2028
    %2030 = vrot.lane.b32.xlu0 %v1164, 96
    %v2031 = vpop.permute.xlu0 %2030
    %2032 = vrot.lane.b32.xlu0 %v1167, 96
    %v2033 = vpop.permute.xlu0 %2032
    %2034 = vrot.lane.b32.xlu0 %v1170, 96
    %v2035 = vpop.permute.xlu0 %2034
    %2036 = vrot.lane.b32.xlu0 %v1173, 96
    %v2037 = vpop.permute.xlu0 %2036
    %2070 = vrot.lane.b32.xlu0 %v1080, 64
    %v2071 = vpop.permute.xlu0 %2070
    %2072 = vrot.lane.b32.xlu0 %v1083, 64
    %v2073 = vpop.permute.xlu0 %2072
    %2074 = vrot.lane.b32.xlu0 %v1086, 64
    %v2075 = vpop.permute.xlu0 %2074
    %2076 = vrot.lane.b32.xlu0 %v1089, 64
    %v2077 = vpop.permute.xlu0 %2076
    %2078 = vrot.lane.b32.xlu0 %v1092, 64
    %v2079 = vpop.permute.xlu0 %2078
    %2080 = vrot.lane.b32.xlu0 %v1095, 64
    %v2081 = vpop.permute.xlu0 %2080
    %2082 = vrot.lane.b32.xlu0 %v1098, 64
    %v2083 = vpop.permute.xlu0 %2082
    %2084 = vrot.lane.b32.xlu0 %v1101, 64
    %v2085 = vpop.permute.xlu0 %2084
    %2086 = vrot.lane.b32.xlu0 %v1104, 64
    %v2087 = vpop.permute.xlu0 %2086
    %2088 = vrot.lane.b32.xlu0 %v1107, 64
    %v2089 = vpop.permute.xlu0 %2088
    %2090 = vrot.lane.b32.xlu0 %v1110, 64
    %v2091 = vpop.permute.xlu0 %2090
    %2092 = vrot.lane.b32.xlu0 %v1113, 64
    %v2093 = vpop.permute.xlu0 %2092
    %2094 = vrot.lane.b32.xlu0 %v1116, 64
    %v2095 = vpop.permute.xlu0 %2094
    %2096 = vrot.lane.b32.xlu0 %v1119, 64
    %v2097 = vpop.permute.xlu0 %2096
    %2098 = vrot.lane.b32.xlu0 %v1122, 64
    %v2099 = vpop.permute.xlu0 %2098
    %2100 = vrot.lane.b32.xlu0 %v1125, 64
    %v2101 = vpop.permute.xlu0 %2100
    %2102 = vrot.lane.b32.xlu0 %v1128, 64
    %v2103 = vpop.permute.xlu0 %2102
    %2104 = vrot.lane.b32.xlu0 %v1131, 64
    %v2105 = vpop.permute.xlu0 %2104
    %2106 = vrot.lane.b32.xlu0 %v1134, 64
    %v2107 = vpop.permute.xlu0 %2106
    %2108 = vrot.lane.b32.xlu0 %v1137, 64
    %v2109 = vpop.permute.xlu0 %2108
    %2110 = vrot.lane.b32.xlu0 %v1140, 64
    %v2111 = vpop.permute.xlu0 %2110
    %2112 = vrot.lane.b32.xlu0 %v1143, 64
    %v2113 = vpop.permute.xlu0 %2112
    %2114 = vrot.lane.b32.xlu0 %v1146, 64
    %v2115 = vpop.permute.xlu0 %2114
    %2116 = vrot.lane.b32.xlu0 %v1149, 64
    %v2117 = vpop.permute.xlu0 %2116
    %2118 = vrot.lane.b32.xlu0 %v1152, 64
    %v2119 = vpop.permute.xlu0 %2118
    %2120 = vrot.lane.b32.xlu0 %v1155, 64
    %v2121 = vpop.permute.xlu0 %2120
    %2122 = vrot.lane.b32.xlu0 %v1158, 64
    %v2123 = vpop.permute.xlu0 %2122
    %2124 = vrot.lane.b32.xlu0 %v1161, 64
    %v2125 = vpop.permute.xlu0 %2124
    %2126 = vrot.lane.b32.xlu0 %v1164, 64
    %v2127 = vpop.permute.xlu0 %2126
    %2128 = vrot.lane.b32.xlu0 %v1167, 64
    %v2129 = vpop.permute.xlu0 %2128
    %2130 = vrot.lane.b32.xlu0 %v1170, 64
    %v2131 = vpop.permute.xlu0 %2130
    %2132 = vrot.lane.b32.xlu0 %v1173, 64
    %v2133 = vpop.permute.xlu0 %2132
    %2166 = vrot.lane.b32.xlu0 %v1080, 32
    %v2167 = vpop.permute.xlu0 %2166
    %2168 = vrot.lane.b32.xlu0 %v1083, 32
    %v2169 = vpop.permute.xlu0 %2168
    %2170 = vrot.lane.b32.xlu0 %v1086, 32
    %v2171 = vpop.permute.xlu0 %2170
    %2172 = vrot.lane.b32.xlu0 %v1089, 32
    %v2173 = vpop.permute.xlu0 %2172
    %2174 = vrot.lane.b32.xlu0 %v1092, 32
    %v2175 = vpop.permute.xlu0 %2174
    %2176 = vrot.lane.b32.xlu0 %v1095, 32
    %v2177 = vpop.permute.xlu0 %2176
    %2178 = vrot.lane.b32.xlu0 %v1098, 32
    %v2179 = vpop.permute.xlu0 %2178
    %2180 = vrot.lane.b32.xlu0 %v1101, 32
    %v2181 = vpop.permute.xlu0 %2180
    %2182 = vrot.lane.b32.xlu0 %v1104, 32
    %v2183 = vpop.permute.xlu0 %2182
    %2184 = vrot.lane.b32.xlu0 %v1107, 32
    %v2185 = vpop.permute.xlu0 %2184
    %2186 = vrot.lane.b32.xlu0 %v1110, 32
    %v2187 = vpop.permute.xlu0 %2186
    %2188 = vrot.lane.b32.xlu0 %v1113, 32
    %v2189 = vpop.permute.xlu0 %2188
    %2190 = vrot.lane.b32.xlu0 %v1116, 32
    %v2191 = vpop.permute.xlu0 %2190
    %2192 = vrot.lane.b32.xlu0 %v1119, 32
    %v2193 = vpop.permute.xlu0 %2192
    %2194 = vrot.lane.b32.xlu0 %v1122, 32
    %v2195 = vpop.permute.xlu0 %2194
    %2196 = vrot.lane.b32.xlu0 %v1125, 32
    %v2197 = vpop.permute.xlu0 %2196
    %2198 = vrot.lane.b32.xlu0 %v1128, 32
    %v2199 = vpop.permute.xlu0 %2198
    %2200 = vrot.lane.b32.xlu0 %v1131, 32
    %v2201 = vpop.permute.xlu0 %2200
    %2202 = vrot.lane.b32.xlu0 %v1134, 32
    %v2203 = vpop.permute.xlu0 %2202
    %2204 = vrot.lane.b32.xlu0 %v1137, 32
    %v2205 = vpop.permute.xlu0 %2204
    %2206 = vrot.lane.b32.xlu0 %v1140, 32
    %v2207 = vpop.permute.xlu0 %2206
    %2208 = vrot.lane.b32.xlu0 %v1143, 32
    %v2209 = vpop.permute.xlu0 %2208
    %2210 = vrot.lane.b32.xlu0 %v1146, 32
    %v2211 = vpop.permute.xlu0 %2210
    %2212 = vrot.lane.b32.xlu0 %v1149, 32
    %v2213 = vpop.permute.xlu0 %2212
    %2214 = vrot.lane.b32.xlu0 %v1152, 32
    %v2215 = vpop.permute.xlu0 %2214
    %2216 = vrot.lane.b32.xlu0 %v1155, 32
    %v2217 = vpop.permute.xlu0 %2216
    %2218 = vrot.lane.b32.xlu0 %v1158, 32
    %v2219 = vpop.permute.xlu0 %2218
    %2220 = vrot.lane.b32.xlu0 %v1161, 32
    %v2221 = vpop.permute.xlu0 %2220
    %2222 = vrot.lane.b32.xlu0 %v1164, 32
    %v2223 = vpop.permute.xlu0 %2222
    %2224 = vrot.lane.b32.xlu0 %v1167, 32
    %v2225 = vpop.permute.xlu0 %2224
    %2226 = vrot.lane.b32.xlu0 %v1170, 32
    %v2227 = vpop.permute.xlu0 %2226
    %2228 = vrot.lane.b32.xlu0 %v1173, 32
    %v2229 = vpop.permute.xlu0 %2228
    %v2262 = vpack.c.bf16 %v1083, %v1080
    %v2263 = vpack.c.bf16 %v1089, %v1086
    %v2264 = vpack.c.bf16 %v1977, %v1975
    %v2265 = vpack.c.bf16 %v1981, %v1979
    %v2266 = vpack.c.bf16 %v2073, %v2071
    %v2267 = vpack.c.bf16 %v2077, %v2075
    %v2268 = vpack.c.bf16 %v2169, %v2167
    %v2269 = vpack.c.bf16 %v2173, %v2171
    %v2270 = vpack.c.bf16 %v1095, %v1092
    %v2271 = vpack.c.bf16 %v1101, %v1098
    %v2272 = vpack.c.bf16 %v1985, %v1983
    %v2273 = vpack.c.bf16 %v1989, %v1987
    %v2274 = vpack.c.bf16 %v2081, %v2079
    %v2275 = vpack.c.bf16 %v2085, %v2083
    %v2276 = vpack.c.bf16 %v2177, %v2175
    %v2277 = vpack.c.bf16 %v2181, %v2179
    %v2278 = vpack.c.bf16 %v1107, %v1104
    %v2279 = vpack.c.bf16 %v1113, %v1110
    %v2280 = vpack.c.bf16 %v1993, %v1991
    %v2281 = vpack.c.bf16 %v1997, %v1995
    %v2282 = vpack.c.bf16 %v2089, %v2087
    %v2283 = vpack.c.bf16 %v2093, %v2091
    %v2284 = vpack.c.bf16 %v2185, %v2183
    %v2285 = vpack.c.bf16 %v2189, %v2187
    %v2286 = vpack.c.bf16 %v1119, %v1116
    %v2287 = vpack.c.bf16 %v1125, %v1122
    %v2288 = vpack.c.bf16 %v2001, %v1999
    %v2289 = vpack.c.bf16 %v2005, %v2003
    %v2290 = vpack.c.bf16 %v2097, %v2095
    %v2291 = vpack.c.bf16 %v2101, %v2099
    %v2292 = vpack.c.bf16 %v2193, %v2191
    %v2293 = vpack.c.bf16 %v2197, %v2195
    %v2294 = vpack.c.bf16 %v1131, %v1128
    %v2295 = vpack.c.bf16 %v1137, %v1134
    %v2296 = vpack.c.bf16 %v2009, %v2007
    %v2297 = vpack.c.bf16 %v2013, %v2011
    %v2298 = vpack.c.bf16 %v2105, %v2103
    %v2299 = vpack.c.bf16 %v2109, %v2107
    %v2300 = vpack.c.bf16 %v2201, %v2199
    %v2301 = vpack.c.bf16 %v2205, %v2203
    %v2302 = vpack.c.bf16 %v1143, %v1140
    %v2303 = vpack.c.bf16 %v1149, %v1146
    %v2304 = vpack.c.bf16 %v2017, %v2015
    %v2305 = vpack.c.bf16 %v2021, %v2019
    %v2306 = vpack.c.bf16 %v2113, %v2111
    %v2307 = vpack.c.bf16 %v2117, %v2115
    %v2308 = vpack.c.bf16 %v2209, %v2207
    %v2309 = vpack.c.bf16 %v2213, %v2211
    %v2310 = vpack.c.bf16 %v1155, %v1152
    %v2311 = vpack.c.bf16 %v1161, %v1158
    %v2312 = vpack.c.bf16 %v2025, %v2023
    %v2313 = vpack.c.bf16 %v2029, %v2027
    %v2314 = vpack.c.bf16 %v2121, %v2119
    %v2315 = vpack.c.bf16 %v2125, %v2123
    %v2316 = vpack.c.bf16 %v2217, %v2215
    %v2317 = vpack.c.bf16 %v2221, %v2219
    %v2318 = vpack.c.bf16 %v1167, %v1164
    %v2319 = vpack.c.bf16 %v1173, %v1170
    %v2320 = vpack.c.bf16 %v2033, %v2031
    %v2321 = vpack.c.bf16 %v2037, %v2035
    %v2322 = vpack.c.bf16 %v2129, %v2127
    %v2323 = vpack.c.bf16 %v2133, %v2131
    %v2324 = vpack.c.bf16 %v2225, %v2223
    %v2325 = vpack.c.bf16 %v2229, %v2227
    %vm2326 = vcmask 261120
    %v2328 = vsel %vm2326, %v1494, 0
    %v2331 = vsel %vm2326, %v1495, 0
    %v2334 = vsel %vm2326, %v1496, 0
    %v2337 = vsel %vm2326, %v1497, 0
    %v2340 = vsel %vm2326, %v1498, 0
    %v2343 = vsel %vm2326, %v1499, 0
    %v2346 = vsel %vm2326, %v1500, 0
    %v2349 = vsel %vm2326, %v1501, 0
    %v2352 = vsel %vm2326, %v1878, 0
    %v2355 = vsel %vm2326, %v1879, 0
    %v2358 = vsel %vm2326, %v1880, 0
    %v2361 = vsel %vm2326, %v1881, 0
    %v2364 = vsel %vm2326, %v1882, 0
    %v2367 = vsel %vm2326, %v1883, 0
    %v2370 = vsel %vm2326, %v1884, 0
    %v2373 = vsel %vm2326, %v1885, 0
    %2375 = vmatprep.subr.bf16.mxu0 0
    %2376 = vmatpush1.bf16.xpose.msra.mxu0 %v2352
    %2377 = vmatprep.subr.bf16.mxu0 0
    %2378 = vmatpush1.bf16.xpose.msra.mxu0 %v2355
    %2379 = vmatprep.subr.bf16.mxu0 0
    %2380 = vmatpush1.bf16.xpose.msra.mxu0 %v2358
    %2381 = vmatprep.subr.bf16.mxu0 0
    %2382 = vmatpush1.bf16.xpose.msra.mxu0 %v2361
    %2383 = vmatprep.subr.bf16.mxu0 0
    %2384 = vmatpush1.bf16.xpose.msra.mxu0 %v2364
    %2385 = vmatprep.subr.bf16.mxu0 0
    %2386 = vmatpush1.bf16.xpose.msra.mxu0 %v2367
    %2387 = vmatprep.subr.bf16.mxu0 0
    %2388 = vmatpush1.bf16.xpose.msra.mxu0 %v2370
    %2389 = vmatprep.subr.bf16.mxu0 0
    %2390 = vmatpush1.bf16.xpose.msra.mxu0 %v2373
    %2391 = vmatprep.subr.bf16.mxu0 0
    %2392 = vmatpush1.bf16.xpose.msra.mxu0 0
    %2393 = vmatprep.subr.bf16.mxu0 0
    %2394 = vmatpush1.bf16.xpose.msra.mxu0 0
    %2395 = vmatprep.subr.bf16.mxu0 0
    %2396 = vmatpush1.bf16.xpose.msra.mxu0 0
    %2397 = vmatprep.subr.bf16.mxu0 0
    %2398 = vmatpush1.bf16.xpose.msra.mxu0 0
    %2399 = vmatprep.subr.bf16.mxu0 0
    %2400 = vmatpush1.bf16.xpose.msra.mxu0 0
    %2401 = vmatprep.subr.bf16.mxu0 0
    %2402 = vmatpush1.bf16.xpose.msra.mxu0 0
    %2403 = vmatprep.subr.bf16.mxu0 0
    %2404 = vmatpush1.bf16.xpose.msra.mxu0 0
    %2405 = vmatprep.subr.bf16.mxu0 0
    %2406 = vmatpush1.bf16.xpose.msra.mxu0 0
    %2407 = vmatprep.mubr.bf16.mxu0 0
    %2408 = vmatmul.mubr.bf16.gmra.mrb[0].mxu0 %v2328
    %v2409 = vpop.f32.mrb[0].mxu0
    %v2410 = vadd.f32 0.0, %v2409
    %v2411 = vpop.f32.mrb[0].mxu0
    %v2412 = vpop.f32.mrb[0].mxu0
    %v2413 = vadd.f32 0.0, %v2412
    %v2414 = vpop.f32.mrb[0].mxu0
    %2415 = vmatprep.mubr.bf16.mxu0 0
    %2416 = vmatmul.mubr.bf16.gmra.mrb[0].mxu0 %v2331
    %v2417 = vpop.f32.mrb[0].mxu0
    %v2418 = vadd.f32 0.0, %v2417
    %v2419 = vpop.f32.mrb[0].mxu0
    %v2420 = vpop.f32.mrb[0].mxu0
    %v2421 = vadd.f32 0.0, %v2420
    %v2422 = vpop.f32.mrb[0].mxu0
    %2423 = vmatprep.mubr.bf16.mxu0 0
    %2424 = vmatmul.mubr.bf16.gmra.mrb[0].mxu0 %v2334
    %v2425 = vpop.f32.mrb[0].mxu0
    %v2426 = vadd.f32 0.0, %v2425
    %v2427 = vpop.f32.mrb[0].mxu0
    %v2428 = vpop.f32.mrb[0].mxu0
    %v2429 = vadd.f32 0.0, %v2428
    %v2430 = vpop.f32.mrb[0].mxu0
    %2431 = vmatprep.mubr.bf16.mxu0 0
    %2432 = vmatmul.mubr.bf16.gmra.mrb[0].mxu0 %v2337
    %v2433 = vpop.f32.mrb[0].mxu0
    %v2434 = vadd.f32 0.0, %v2433
    %v2435 = vpop.f32.mrb[0].mxu0
    %v2436 = vpop.f32.mrb[0].mxu0
    %v2437 = vadd.f32 0.0, %v2436
    %v2438 = vpop.f32.mrb[0].mxu0
    %2439 = vmatprep.mubr.bf16.mxu0 0
    %2440 = vmatmul.mubr.bf16.gmra.mrb[0].mxu0 %v2340
    %v2441 = vpop.f32.mrb[0].mxu0
    %v2442 = vadd.f32 0.0, %v2441
    %v2443 = vpop.f32.mrb[0].mxu0
    %v2444 = vpop.f32.mrb[0].mxu0
    %v2445 = vadd.f32 0.0, %v2444
    %v2446 = vpop.f32.mrb[0].mxu0
    %2447 = vmatprep.mubr.bf16.mxu0 0
    %2448 = vmatmul.mubr.bf16.gmra.mrb[0].mxu0 %v2343
    %v2449 = vpop.f32.mrb[0].mxu0
    %v2450 = vadd.f32 0.0, %v2449
    %v2451 = vpop.f32.mrb[0].mxu0
    %v2452 = vpop.f32.mrb[0].mxu0
    %v2453 = vadd.f32 0.0, %v2452
    %v2454 = vpop.f32.mrb[0].mxu0
    %2455 = vmatprep.mubr.bf16.mxu0 0
    %2456 = vmatmul.mubr.bf16.gmra.mrb[0].mxu0 %v2346
    %v2457 = vpop.f32.mrb[0].mxu0
    %v2458 = vadd.f32 0.0, %v2457
    %v2459 = vpop.f32.mrb[0].mxu0
    %v2460 = vpop.f32.mrb[0].mxu0
    %v2461 = vadd.f32 0.0, %v2460
    %v2462 = vpop.f32.mrb[0].mxu0
    %2463 = vmatprep.mubr.bf16.mxu0 0
    %2464 = vmatmul.mubr.bf16.gmra.mrb[0].mxu0 %v2349
    %v2465 = vpop.f32.mrb[0].mxu0
    %v2466 = vadd.f32 0.0, %v2465
    %v2467 = vpop.f32.mrb[0].mxu0
    %v2468 = vpop.f32.mrb[0].mxu0
    %v2469 = vadd.f32 0.0, %v2468
    %v2470 = vpop.f32.mrb[0].mxu0
    %2471 = vdwg.mxu0
    %v2473 = vsel %vm2326, %v1502, 0
    %v2476 = vsel %vm2326, %v1503, 0
    %v2479 = vsel %vm2326, %v1504, 0
    %v2482 = vsel %vm2326, %v1505, 0
    %v2485 = vsel %vm2326, %v1506, 0
    %v2488 = vsel %vm2326, %v1507, 0
    %v2491 = vsel %vm2326, %v1508, 0
    %v2494 = vsel %vm2326, %v1509, 0
    %v2497 = vsel %vm2326, %v1886, 0
    %v2500 = vsel %vm2326, %v1887, 0
    %v2503 = vsel %vm2326, %v1888, 0
    %v2506 = vsel %vm2326, %v1889, 0
    %v2509 = vsel %vm2326, %v1890, 0
    %v2512 = vsel %vm2326, %v1891, 0
    %v2515 = vsel %vm2326, %v1892, 0
    %v2518 = vsel %vm2326, %v1893, 0
    %2520 = vmatprep.subr.bf16.mxu0 0
    %2521 = vmatpush1.bf16.xpose.msra.mxu0 %v2497
    %2522 = vmatprep.subr.bf16.mxu0 0
    %2523 = vmatpush1.bf16.xpose.msra.mxu0 %v2500
    %2524 = vmatprep.subr.bf16.mxu0 0
    %2525 = vmatpush1.bf16.xpose.msra.mxu0 %v2503
    %2526 = vmatprep.subr.bf16.mxu0 0
    %2527 = vmatpush1.bf16.xpose.msra.mxu0 %v2506
    %2528 = vmatprep.subr.bf16.mxu0 0
    %2529 = vmatpush1.bf16.xpose.msra.mxu0 %v2509
    %2530 = vmatprep.subr.bf16.mxu0 0
    %2531 = vmatpush1.bf16.xpose.msra.mxu0 %v2512
    %2532 = vmatprep.subr.bf16.mxu0 0
    %2533 = vmatpush1.bf16.xpose.msra.mxu0 %v2515
    %2534 = vmatprep.subr.bf16.mxu0 0
    %2535 = vmatpush1.bf16.xpose.msra.mxu0 %v2518
    %2536 = vmatprep.subr.bf16.mxu0 0
    %2537 = vmatpush1.bf16.xpose.msra.mxu0 0
    %2538 = vmatprep.subr.bf16.mxu0 0
    %2539 = vmatpush1.bf16.xpose.msra.mxu0 0
    %2540 = vmatprep.subr.bf16.mxu0 0
    %2541 = vmatpush1.bf16.xpose.msra.mxu0 0
    %2542 = vmatprep.subr.bf16.mxu0 0
    %2543 = vmatpush1.bf16.xpose.msra.mxu0 0
    %2544 = vmatprep.subr.bf16.mxu0 0
    %2545 = vmatpush1.bf16.xpose.msra.mxu0 0
    %2546 = vmatprep.subr.bf16.mxu0 0
    %2547 = vmatpush1.bf16.xpose.msra.mxu0 0
    %2548 = vmatprep.subr.bf16.mxu0 0
    %2549 = vmatpush1.bf16.xpose.msra.mxu0 0
    %2550 = vmatprep.subr.bf16.mxu0 0
    %2551 = vmatpush1.bf16.xpose.msra.mxu0 0
    %2552 = vmatprep.mubr.bf16.mxu0 0
    %2553 = vmatmul.mubr.bf16.gmra.mrb[0].mxu0 %v2473
    %v2554 = vpop.f32.mrb[0].mxu0
    %v2555 = vadd.f32 0.0, %v2554
    %v2556 = vpop.f32.mrb[0].mxu0
    %v2557 = vpop.f32.mrb[0].mxu0
    %v2558 = vadd.f32 0.0, %v2557
    %v2559 = vpop.f32.mrb[0].mxu0
    %2560 = vmatprep.mubr.bf16.mxu0 0
    %2561 = vmatmul.mubr.bf16.gmra.mrb[0].mxu0 %v2476
    %v2562 = vpop.f32.mrb[0].mxu0
    %v2563 = vadd.f32 0.0, %v2562
    %v2564 = vpop.f32.mrb[0].mxu0
    %v2565 = vpop.f32.mrb[0].mxu0
    %v2566 = vadd.f32 0.0, %v2565
    %v2567 = vpop.f32.mrb[0].mxu0
    %2568 = vmatprep.mubr.bf16.mxu0 0
    %2569 = vmatmul.mubr.bf16.gmra.mrb[0].mxu0 %v2479
    %v2570 = vpop.f32.mrb[0].mxu0
    %v2571 = vadd.f32 0.0, %v2570
    %v2572 = vpop.f32.mrb[0].mxu0
    %v2573 = vpop.f32.mrb[0].mxu0
    %v2574 = vadd.f32 0.0, %v2573
    %v2575 = vpop.f32.mrb[0].mxu0
    %2576 = vmatprep.mubr.bf16.mxu0 0
    %2577 = vmatmul.mubr.bf16.gmra.mrb[0].mxu0 %v2482
    %v2578 = vpop.f32.mrb[0].mxu0
    %v2579 = vadd.f32 0.0, %v2578
    %v2580 = vpop.f32.mrb[0].mxu0
    %v2581 = vpop.f32.mrb[0].mxu0
    %v2582 = vadd.f32 0.0, %v2581
    %v2583 = vpop.f32.mrb[0].mxu0
    %2584 = vmatprep.mubr.bf16.mxu0 0
    %2585 = vmatmul.mubr.bf16.gmra.mrb[0].mxu0 %v2485
    %v2586 = vpop.f32.mrb[0].mxu0
    %v2587 = vadd.f32 0.0, %v2586
    %v2588 = vpop.f32.mrb[0].mxu0
    %v2589 = vpop.f32.mrb[0].mxu0
    %v2590 = vadd.f32 0.0, %v2589
    %v2591 = vpop.f32.mrb[0].mxu0
    %2592 = vmatprep.mubr.bf16.mxu0 0
    %2593 = vmatmul.mubr.bf16.gmra.mrb[0].mxu0 %v2488
    %v2594 = vpop.f32.mrb[0].mxu0
    %v2595 = vadd.f32 0.0, %v2594
    %v2596 = vpop.f32.mrb[0].mxu0
    %v2597 = vpop.f32.mrb[0].mxu0
    %v2598 = vadd.f32 0.0, %v2597
    %v2599 = vpop.f32.mrb[0].mxu0
    %2600 = vmatprep.mubr.bf16.mxu0 0
    %2601 = vmatmul.mubr.bf16.gmra.mrb[0].mxu0 %v2491
    %v2602 = vpop.f32.mrb[0].mxu0
    %v2603 = vadd.f32 0.0, %v2602
    %v2604 = vpop.f32.mrb[0].mxu0
    %v2605 = vpop.f32.mrb[0].mxu0
    %v2606 = vadd.f32 0.0, %v2605
    %v2607 = vpop.f32.mrb[0].mxu0
    %2608 = vmatprep.mubr.bf16.mxu0 0
    %2609 = vmatmul.mubr.bf16.gmra.mrb[0].mxu0 %v2494
    %v2610 = vpop.f32.mrb[0].mxu0
    %v2611 = vadd.f32 0.0, %v2610
    %v2612 = vpop.f32.mrb[0].mxu0
    %v2613 = vpop.f32.mrb[0].mxu0
    %v2614 = vadd.f32 0.0, %v2613
    %v2615 = vpop.f32.mrb[0].mxu0
    %2616 = vdwg.mxu0
    %v2618 = vsel %vm2326, %v1510, 0
    %v2621 = vsel %vm2326, %v1511, 0
    %v2624 = vsel %vm2326, %v1512, 0
    %v2627 = vsel %vm2326, %v1513, 0
    %v2630 = vsel %vm2326, %v1514, 0
    %v2633 = vsel %vm2326, %v1515, 0
    %v2636 = vsel %vm2326, %v1516, 0
    %v2639 = vsel %vm2326, %v1517, 0
    %v2642 = vsel %vm2326, %v1894, 0
    %v2645 = vsel %vm2326, %v1895, 0
    %v2648 = vsel %vm2326, %v1896, 0
    %v2651 = vsel %vm2326, %v1897, 0
    %v2654 = vsel %vm2326, %v1898, 0
    %v2657 = vsel %vm2326, %v1899, 0
    %v2660 = vsel %vm2326, %v1900, 0
    %v2663 = vsel %vm2326, %v1901, 0
    %2665 = vmatprep.subr.bf16.mxu0 0
    %2666 = vmatpush1.bf16.xpose.msra.mxu0 %v2642
    %2667 = vmatprep.subr.bf16.mxu0 0
    %2668 = vmatpush1.bf16.xpose.msra.mxu0 %v2645
    %2669 = vmatprep.subr.bf16.mxu0 0
    %2670 = vmatpush1.bf16.xpose.msra.mxu0 %v2648
    %2671 = vmatprep.subr.bf16.mxu0 0
    %2672 = vmatpush1.bf16.xpose.msra.mxu0 %v2651
    %2673 = vmatprep.subr.bf16.mxu0 0
    %2674 = vmatpush1.bf16.xpose.msra.mxu0 %v2654
    %2675 = vmatprep.subr.bf16.mxu0 0
    %2676 = vmatpush1.bf16.xpose.msra.mxu0 %v2657
    %2677 = vmatprep.subr.bf16.mxu0 0
    %2678 = vmatpush1.bf16.xpose.msra.mxu0 %v2660
    %2679 = vmatprep.subr.bf16.mxu0 0
    %2680 = vmatpush1.bf16.xpose.msra.mxu0 %v2663
    %2681 = vmatprep.subr.bf16.mxu0 0
    %2682 = vmatpush1.bf16.xpose.msra.mxu0 0
    %2683 = vmatprep.subr.bf16.mxu0 0
    %2684 = vmatpush1.bf16.xpose.msra.mxu0 0
    %2685 = vmatprep.subr.bf16.mxu0 0
    %2686 = vmatpush1.bf16.xpose.msra.mxu0 0
    %2687 = vmatprep.subr.bf16.mxu0 0
    %2688 = vmatpush1.bf16.xpose.msra.mxu0 0
    %2689 = vmatprep.subr.bf16.mxu0 0
    %2690 = vmatpush1.bf16.xpose.msra.mxu0 0
    %2691 = vmatprep.subr.bf16.mxu0 0
    %2692 = vmatpush1.bf16.xpose.msra.mxu0 0
    %2693 = vmatprep.subr.bf16.mxu0 0
    %2694 = vmatpush1.bf16.xpose.msra.mxu0 0
    %2695 = vmatprep.subr.bf16.mxu0 0
    %2696 = vmatpush1.bf16.xpose.msra.mxu0 0
    %2697 = vmatprep.mubr.bf16.mxu0 0
    %2698 = vmatmul.mubr.bf16.gmra.mrb[0].mxu0 %v2618
    %v2699 = vpop.f32.mrb[0].mxu0
    %v2700 = vadd.f32 0.0, %v2699
    %v2701 = vpop.f32.mrb[0].mxu0
    %v2702 = vpop.f32.mrb[0].mxu0
    %v2703 = vadd.f32 0.0, %v2702
    %v2704 = vpop.f32.mrb[0].mxu0
    %2705 = vmatprep.mubr.bf16.mxu0 0
    %2706 = vmatmul.mubr.bf16.gmra.mrb[0].mxu0 %v2621
    %v2707 = vpop.f32.mrb[0].mxu0
    %v2708 = vadd.f32 0.0, %v2707
    %v2709 = vpop.f32.mrb[0].mxu0
    %v2710 = vpop.f32.mrb[0].mxu0
    %v2711 = vadd.f32 0.0, %v2710
    %v2712 = vpop.f32.mrb[0].mxu0
    %2713 = vmatprep.mubr.bf16.mxu0 0
    %2714 = vmatmul.mubr.bf16.gmra.mrb[0].mxu0 %v2624
    %v2715 = vpop.f32.mrb[0].mxu0
    %v2716 = vadd.f32 0.0, %v2715
    %v2717 = vpop.f32.mrb[0].mxu0
    %v2718 = vpop.f32.mrb[0].mxu0
    %v2719 = vadd.f32 0.0, %v2718
    %v2720 = vpop.f32.mrb[0].mxu0
    %2721 = vmatprep.mubr.bf16.mxu0 0
    %2722 = vmatmul.mubr.bf16.gmra.mrb[0].mxu0 %v2627
    %v2723 = vpop.f32.mrb[0].mxu0
    %v2724 = vadd.f32 0.0, %v2723
    %v2725 = vpop.f32.mrb[0].mxu0
    %v2726 = vpop.f32.mrb[0].mxu0
    %v2727 = vadd.f32 0.0, %v2726
    %v2728 = vpop.f32.mrb[0].mxu0
    %2729 = vmatprep.mubr.bf16.mxu0 0
    %2730 = vmatmul.mubr.bf16.gmra.mrb[0].mxu0 %v2630
    %v2731 = vpop.f32.mrb[0].mxu0
    %v2732 = vadd.f32 0.0, %v2731
    %v2733 = vpop.f32.mrb[0].mxu0
    %v2734 = vpop.f32.mrb[0].mxu0
    %v2735 = vadd.f32 0.0, %v2734
    %v2736 = vpop.f32.mrb[0].mxu0
    %2737 = vmatprep.mubr.bf16.mxu0 0
    %2738 = vmatmul.mubr.bf16.gmra.mrb[0].mxu0 %v2633
    %v2739 = vpop.f32.mrb[0].mxu0
    %v2740 = vadd.f32 0.0, %v2739
    %v2741 = vpop.f32.mrb[0].mxu0
    %v2742 = vpop.f32.mrb[0].mxu0
    %v2743 = vadd.f32 0.0, %v2742
    %v2744 = vpop.f32.mrb[0].mxu0
    %2745 = vmatprep.mubr.bf16.mxu0 0
    %2746 = vmatmul.mubr.bf16.gmra.mrb[0].mxu0 %v2636
    %v2747 = vpop.f32.mrb[0].mxu0
    %v2748 = vadd.f32 0.0, %v2747
    %v2749 = vpop.f32.mrb[0].mxu0
    %v2750 = vpop.f32.mrb[0].mxu0
    %v2751 = vadd.f32 0.0, %v2750
    %v2752 = vpop.f32.mrb[0].mxu0
    %2753 = vmatprep.mubr.bf16.mxu0 0
    %2754 = vmatmul.mubr.bf16.gmra.mrb[0].mxu0 %v2639
    %v2755 = vpop.f32.mrb[0].mxu0
    %v2756 = vadd.f32 0.0, %v2755
    %v2757 = vpop.f32.mrb[0].mxu0
    %v2758 = vpop.f32.mrb[0].mxu0
    %v2759 = vadd.f32 0.0, %v2758
    %v2760 = vpop.f32.mrb[0].mxu0
    %2761 = vdwg.mxu0
    %v2763 = vsel %vm2326, %v1518, 0
    %v2766 = vsel %vm2326, %v1519, 0
    %v2769 = vsel %vm2326, %v1520, 0
    %v2772 = vsel %vm2326, %v1521, 0
    %v2775 = vsel %vm2326, %v1522, 0
    %v2778 = vsel %vm2326, %v1523, 0
    %v2781 = vsel %vm2326, %v1524, 0
    %v2784 = vsel %vm2326, %v1525, 0
    %v2787 = vsel %vm2326, %v1902, 0
    %v2790 = vsel %vm2326, %v1903, 0
    %v2793 = vsel %vm2326, %v1904, 0
    %v2796 = vsel %vm2326, %v1905, 0
    %v2799 = vsel %vm2326, %v1906, 0
    %v2802 = vsel %vm2326, %v1907, 0
    %v2805 = vsel %vm2326, %v1908, 0
    %v2808 = vsel %vm2326, %v1909, 0
    %2810 = vmatprep.subr.bf16.mxu0 0
    %2811 = vmatpush1.bf16.xpose.msra.mxu0 %v2787
    %2812 = vmatprep.subr.bf16.mxu0 0
    %2813 = vmatpush1.bf16.xpose.msra.mxu0 %v2790
    %2814 = vmatprep.subr.bf16.mxu0 0
    %2815 = vmatpush1.bf16.xpose.msra.mxu0 %v2793
    %2816 = vmatprep.subr.bf16.mxu0 0
    %2817 = vmatpush1.bf16.xpose.msra.mxu0 %v2796
    %2818 = vmatprep.subr.bf16.mxu0 0
    %2819 = vmatpush1.bf16.xpose.msra.mxu0 %v2799
    %2820 = vmatprep.subr.bf16.mxu0 0
    %2821 = vmatpush1.bf16.xpose.msra.mxu0 %v2802
    %2822 = vmatprep.subr.bf16.mxu0 0
    %2823 = vmatpush1.bf16.xpose.msra.mxu0 %v2805
    %2824 = vmatprep.subr.bf16.mxu0 0
    %2825 = vmatpush1.bf16.xpose.msra.mxu0 %v2808
    %2826 = vmatprep.subr.bf16.mxu0 0
    %2827 = vmatpush1.bf16.xpose.msra.mxu0 0
    %2828 = vmatprep.subr.bf16.mxu0 0
    %2829 = vmatpush1.bf16.xpose.msra.mxu0 0
    %2830 = vmatprep.subr.bf16.mxu0 0
    %2831 = vmatpush1.bf16.xpose.msra.mxu0 0
    %2832 = vmatprep.subr.bf16.mxu0 0
    %2833 = vmatpush1.bf16.xpose.msra.mxu0 0
    %2834 = vmatprep.subr.bf16.mxu0 0
    %2835 = vmatpush1.bf16.xpose.msra.mxu0 0
    %2836 = vmatprep.subr.bf16.mxu0 0
    %2837 = vmatpush1.bf16.xpose.msra.mxu0 0
    %2838 = vmatprep.subr.bf16.mxu0 0
    %2839 = vmatpush1.bf16.xpose.msra.mxu0 0
    %2840 = vmatprep.subr.bf16.mxu0 0
    %2841 = vmatpush1.bf16.xpose.msra.mxu0 0
    %2842 = vmatprep.mubr.bf16.mxu0 0
    %2843 = vmatmul.mubr.bf16.gmra.mrb[0].mxu0 %v2763
    %v2844 = vpop.f32.mrb[0].mxu0
    %v2845 = vadd.f32 0.0, %v2844
    %v2846 = vpop.f32.mrb[0].mxu0
    %v2847 = vpop.f32.mrb[0].mxu0
    %v2848 = vadd.f32 0.0, %v2847
    %v2849 = vpop.f32.mrb[0].mxu0
    %2850 = vmatprep.mubr.bf16.mxu0 0
    %2851 = vmatmul.mubr.bf16.gmra.mrb[0].mxu0 %v2766
    %v2852 = vpop.f32.mrb[0].mxu0
    %v2853 = vadd.f32 0.0, %v2852
    %v2854 = vpop.f32.mrb[0].mxu0
    %v2855 = vpop.f32.mrb[0].mxu0
    %v2856 = vadd.f32 0.0, %v2855
    %v2857 = vpop.f32.mrb[0].mxu0
    %2858 = vmatprep.mubr.bf16.mxu0 0
    %2859 = vmatmul.mubr.bf16.gmra.mrb[0].mxu0 %v2769
    %v2860 = vpop.f32.mrb[0].mxu0
    %v2861 = vadd.f32 0.0, %v2860
    %v2862 = vpop.f32.mrb[0].mxu0
    %v2863 = vpop.f32.mrb[0].mxu0
    %v2864 = vadd.f32 0.0, %v2863
    %v2865 = vpop.f32.mrb[0].mxu0
    %2866 = vmatprep.mubr.bf16.mxu0 0
    %2867 = vmatmul.mubr.bf16.gmra.mrb[0].mxu0 %v2772
    %v2868 = vpop.f32.mrb[0].mxu0
    %v2869 = vadd.f32 0.0, %v2868
    %v2870 = vpop.f32.mrb[0].mxu0
    %v2871 = vpop.f32.mrb[0].mxu0
    %v2872 = vadd.f32 0.0, %v2871
    %v2873 = vpop.f32.mrb[0].mxu0
    %2874 = vmatprep.mubr.bf16.mxu0 0
    %2875 = vmatmul.mubr.bf16.gmra.mrb[0].mxu0 %v2775
    %v2876 = vpop.f32.mrb[0].mxu0
    %v2877 = vadd.f32 0.0, %v2876
    %v2878 = vpop.f32.mrb[0].mxu0
    %v2879 = vpop.f32.mrb[0].mxu0
    %v2880 = vadd.f32 0.0, %v2879
    %v2881 = vpop.f32.mrb[0].mxu0
    %2882 = vmatprep.mubr.bf16.mxu0 0
    %2883 = vmatmul.mubr.bf16.gmra.mrb[0].mxu0 %v2778
    %v2884 = vpop.f32.mrb[0].mxu0
    %v2885 = vadd.f32 0.0, %v2884
    %v2886 = vpop.f32.mrb[0].mxu0
    %v2887 = vpop.f32.mrb[0].mxu0
    %v2888 = vadd.f32 0.0, %v2887
    %v2889 = vpop.f32.mrb[0].mxu0
    %2890 = vmatprep.mubr.bf16.mxu0 0
    %2891 = vmatmul.mubr.bf16.gmra.mrb[0].mxu0 %v2781
    %v2892 = vpop.f32.mrb[0].mxu0
    %v2893 = vadd.f32 0.0, %v2892
    %v2894 = vpop.f32.mrb[0].mxu0
    %v2895 = vpop.f32.mrb[0].mxu0
    %v2896 = vadd.f32 0.0, %v2895
    %v2897 = vpop.f32.mrb[0].mxu0
    %2898 = vmatprep.mubr.bf16.mxu0 0
    %2899 = vmatmul.mubr.bf16.gmra.mrb[0].mxu0 %v2784
    %v2900 = vpop.f32.mrb[0].mxu0
    %v2901 = vadd.f32 0.0, %v2900
    %v2902 = vpop.f32.mrb[0].mxu0
    %v2903 = vpop.f32.mrb[0].mxu0
    %v2904 = vadd.f32 0.0, %v2903
    %v2905 = vpop.f32.mrb[0].mxu0
    %2906 = vdwg.mxu0
    %v2908 = vsel %vm2326, %v1526, 0
    %v2911 = vsel %vm2326, %v1527, 0
    %v2914 = vsel %vm2326, %v1528, 0
    %v2917 = vsel %vm2326, %v1529, 0
    %v2920 = vsel %vm2326, %v1530, 0
    %v2923 = vsel %vm2326, %v1531, 0
    %v2926 = vsel %vm2326, %v1532, 0
    %v2929 = vsel %vm2326, %v1533, 0
    %v2932 = vsel %vm2326, %v1910, 0
    %v2935 = vsel %vm2326, %v1911, 0
    %v2938 = vsel %vm2326, %v1912, 0
    %v2941 = vsel %vm2326, %v1913, 0
    %v2944 = vsel %vm2326, %v1914, 0
    %v2947 = vsel %vm2326, %v1915, 0
    %v2950 = vsel %vm2326, %v1916, 0
    %v2953 = vsel %vm2326, %v1917, 0
    %2955 = vmatprep.subr.bf16.mxu0 0
    %2956 = vmatpush1.bf16.xpose.msra.mxu0 %v2932
    %2957 = vmatprep.subr.bf16.mxu0 0
    %2958 = vmatpush1.bf16.xpose.msra.mxu0 %v2935
    %2959 = vmatprep.subr.bf16.mxu0 0
    %2960 = vmatpush1.bf16.xpose.msra.mxu0 %v2938
    %2961 = vmatprep.subr.bf16.mxu0 0
    %2962 = vmatpush1.bf16.xpose.msra.mxu0 %v2941
    %2963 = vmatprep.subr.bf16.mxu0 0
    %2964 = vmatpush1.bf16.xpose.msra.mxu0 %v2944
    %2965 = vmatprep.subr.bf16.mxu0 0
    %2966 = vmatpush1.bf16.xpose.msra.mxu0 %v2947
    %2967 = vmatprep.subr.bf16.mxu0 0
    %2968 = vmatpush1.bf16.xpose.msra.mxu0 %v2950
    %2969 = vmatprep.subr.bf16.mxu0 0
    %2970 = vmatpush1.bf16.xpose.msra.mxu0 %v2953
    %2971 = vmatprep.subr.bf16.mxu0 0
    %2972 = vmatpush1.bf16.xpose.msra.mxu0 0
    %2973 = vmatprep.subr.bf16.mxu0 0
    %2974 = vmatpush1.bf16.xpose.msra.mxu0 0
    %2975 = vmatprep.subr.bf16.mxu0 0
    %2976 = vmatpush1.bf16.xpose.msra.mxu0 0
    %2977 = vmatprep.subr.bf16.mxu0 0
    %2978 = vmatpush1.bf16.xpose.msra.mxu0 0
    %2979 = vmatprep.subr.bf16.mxu0 0
    %2980 = vmatpush1.bf16.xpose.msra.mxu0 0
    %2981 = vmatprep.subr.bf16.mxu0 0
    %2982 = vmatpush1.bf16.xpose.msra.mxu0 0
    %2983 = vmatprep.subr.bf16.mxu0 0
    %2984 = vmatpush1.bf16.xpose.msra.mxu0 0
    %2985 = vmatprep.subr.bf16.mxu0 0
    %2986 = vmatpush1.bf16.xpose.msra.mxu0 0
    %2987 = vmatprep.mubr.bf16.mxu0 0
    %2988 = vmatmul.mubr.bf16.gmra.mrb[0].mxu0 %v2908
    %v2989 = vpop.f32.mrb[0].mxu0
    %v2990 = vadd.f32 0.0, %v2989
    %v2991 = vpop.f32.mrb[0].mxu0
    %v2992 = vpop.f32.mrb[0].mxu0
    %v2993 = vadd.f32 0.0, %v2992
    %v2994 = vpop.f32.mrb[0].mxu0
    %2995 = vmatprep.mubr.bf16.mxu0 0
    %2996 = vmatmul.mubr.bf16.gmra.mrb[0].mxu0 %v2911
    %v2997 = vpop.f32.mrb[0].mxu0
    %v2998 = vadd.f32 0.0, %v2997
    %v2999 = vpop.f32.mrb[0].mxu0
    %v3000 = vpop.f32.mrb[0].mxu0
    %v3001 = vadd.f32 0.0, %v3000
    %v3002 = vpop.f32.mrb[0].mxu0
    %3003 = vmatprep.mubr.bf16.mxu0 0
    %3004 = vmatmul.mubr.bf16.gmra.mrb[0].mxu0 %v2914
    %v3005 = vpop.f32.mrb[0].mxu0
    %v3006 = vadd.f32 0.0, %v3005
    %v3007 = vpop.f32.mrb[0].mxu0
    %v3008 = vpop.f32.mrb[0].mxu0
    %v3009 = vadd.f32 0.0, %v3008
    %v3010 = vpop.f32.mrb[0].mxu0
    %3011 = vmatprep.mubr.bf16.mxu0 0
    %3012 = vmatmul.mubr.bf16.gmra.mrb[0].mxu0 %v2917
    %v3013 = vpop.f32.mrb[0].mxu0
    %v3014 = vadd.f32 0.0, %v3013
    %v3015 = vpop.f32.mrb[0].mxu0
    %v3016 = vpop.f32.mrb[0].mxu0
    %v3017 = vadd.f32 0.0, %v3016
    %v3018 = vpop.f32.mrb[0].mxu0
    %3019 = vmatprep.mubr.bf16.mxu0 0
    %3020 = vmatmul.mubr.bf16.gmra.mrb[0].mxu0 %v2920
    %v3021 = vpop.f32.mrb[0].mxu0
    %v3022 = vadd.f32 0.0, %v3021
    %v3023 = vpop.f32.mrb[0].mxu0
    %v3024 = vpop.f32.mrb[0].mxu0
    %v3025 = vadd.f32 0.0, %v3024
    %v3026 = vpop.f32.mrb[0].mxu0
    %3027 = vmatprep.mubr.bf16.mxu0 0
    %3028 = vmatmul.mubr.bf16.gmra.mrb[0].mxu0 %v2923
    %v3029 = vpop.f32.mrb[0].mxu0
    %v3030 = vadd.f32 0.0, %v3029
    %v3031 = vpop.f32.mrb[0].mxu0
    %v3032 = vpop.f32.mrb[0].mxu0
    %v3033 = vadd.f32 0.0, %v3032
    %v3034 = vpop.f32.mrb[0].mxu0
    %3035 = vmatprep.mubr.bf16.mxu0 0
    %3036 = vmatmul.mubr.bf16.gmra.mrb[0].mxu0 %v2926
    %v3037 = vpop.f32.mrb[0].mxu0
    %v3038 = vadd.f32 0.0, %v3037
    %v3039 = vpop.f32.mrb[0].mxu0
    %v3040 = vpop.f32.mrb[0].mxu0
    %v3041 = vadd.f32 0.0, %v3040
    %v3042 = vpop.f32.mrb[0].mxu0
    %3043 = vmatprep.mubr.bf16.mxu0 0
    %3044 = vmatmul.mubr.bf16.gmra.mrb[0].mxu0 %v2929
    %v3045 = vpop.f32.mrb[0].mxu0
    %v3046 = vadd.f32 0.0, %v3045
    %v3047 = vpop.f32.mrb[0].mxu0
    %v3048 = vpop.f32.mrb[0].mxu0
    %v3049 = vadd.f32 0.0, %v3048
    %v3050 = vpop.f32.mrb[0].mxu0
    %3051 = vdwg.mxu0
    %v3053 = vsel %vm2326, %v1534, 0
    %v3056 = vsel %vm2326, %v1535, 0
    %v3059 = vsel %vm2326, %v1536, 0
    %v3062 = vsel %vm2326, %v1537, 0
    %v3065 = vsel %vm2326, %v1538, 0
    %v3068 = vsel %vm2326, %v1539, 0
    %v3071 = vsel %vm2326, %v1540, 0
    %v3074 = vsel %vm2326, %v1541, 0
    %v3077 = vsel %vm2326, %v1918, 0
    %v3080 = vsel %vm2326, %v1919, 0
    %v3083 = vsel %vm2326, %v1920, 0
    %v3086 = vsel %vm2326, %v1921, 0
    %v3089 = vsel %vm2326, %v1922, 0
    %v3092 = vsel %vm2326, %v1923, 0
    %v3095 = vsel %vm2326, %v1924, 0
    %v3098 = vsel %vm2326, %v1925, 0
    %3100 = vmatprep.subr.bf16.mxu0 0
    %3101 = vmatpush1.bf16.xpose.msra.mxu0 %v3077
    %3102 = vmatprep.subr.bf16.mxu0 0
    %3103 = vmatpush1.bf16.xpose.msra.mxu0 %v3080
    %3104 = vmatprep.subr.bf16.mxu0 0
    %3105 = vmatpush1.bf16.xpose.msra.mxu0 %v3083
    %3106 = vmatprep.subr.bf16.mxu0 0
    %3107 = vmatpush1.bf16.xpose.msra.mxu0 %v3086
    %3108 = vmatprep.subr.bf16.mxu0 0
    %3109 = vmatpush1.bf16.xpose.msra.mxu0 %v3089
    %3110 = vmatprep.subr.bf16.mxu0 0
    %3111 = vmatpush1.bf16.xpose.msra.mxu0 %v3092
    %3112 = vmatprep.subr.bf16.mxu0 0
    %3113 = vmatpush1.bf16.xpose.msra.mxu0 %v3095
    %3114 = vmatprep.subr.bf16.mxu0 0
    %3115 = vmatpush1.bf16.xpose.msra.mxu0 %v3098
    %3116 = vmatprep.subr.bf16.mxu0 0
    %3117 = vmatpush1.bf16.xpose.msra.mxu0 0
    %3118 = vmatprep.subr.bf16.mxu0 0
    %3119 = vmatpush1.bf16.xpose.msra.mxu0 0
    %3120 = vmatprep.subr.bf16.mxu0 0
    %3121 = vmatpush1.bf16.xpose.msra.mxu0 0
    %3122 = vmatprep.subr.bf16.mxu0 0
    %3123 = vmatpush1.bf16.xpose.msra.mxu0 0
    %3124 = vmatprep.subr.bf16.mxu0 0
    %3125 = vmatpush1.bf16.xpose.msra.mxu0 0
    %3126 = vmatprep.subr.bf16.mxu0 0
    %3127 = vmatpush1.bf16.xpose.msra.mxu0 0
    %3128 = vmatprep.subr.bf16.mxu0 0
    %3129 = vmatpush1.bf16.xpose.msra.mxu0 0
    %3130 = vmatprep.subr.bf16.mxu0 0
    %3131 = vmatpush1.bf16.xpose.msra.mxu0 0
    %3132 = vmatprep.mubr.bf16.mxu0 0
    %3133 = vmatmul.mubr.bf16.gmra.mrb[0].mxu0 %v3053
    %v3134 = vpop.f32.mrb[0].mxu0
    %v3135 = vadd.f32 0.0, %v3134
    %v3136 = vpop.f32.mrb[0].mxu0
    %v3137 = vpop.f32.mrb[0].mxu0
    %v3138 = vadd.f32 0.0, %v3137
    %v3139 = vpop.f32.mrb[0].mxu0
    %3140 = vmatprep.mubr.bf16.mxu0 0
    %3141 = vmatmul.mubr.bf16.gmra.mrb[0].mxu0 %v3056
    %v3142 = vpop.f32.mrb[0].mxu0
    %v3143 = vadd.f32 0.0, %v3142
    %v3144 = vpop.f32.mrb[0].mxu0
    %v3145 = vpop.f32.mrb[0].mxu0
    %v3146 = vadd.f32 0.0, %v3145
    %v3147 = vpop.f32.mrb[0].mxu0
    %3148 = vmatprep.mubr.bf16.mxu0 0
    %3149 = vmatmul.mubr.bf16.gmra.mrb[0].mxu0 %v3059
    %v3150 = vpop.f32.mrb[0].mxu0
    %v3151 = vadd.f32 0.0, %v3150
    %v3152 = vpop.f32.mrb[0].mxu0
    %v3153 = vpop.f32.mrb[0].mxu0
    %v3154 = vadd.f32 0.0, %v3153
    %v3155 = vpop.f32.mrb[0].mxu0
    %3156 = vmatprep.mubr.bf16.mxu0 0
    %3157 = vmatmul.mubr.bf16.gmra.mrb[0].mxu0 %v3062
    %v3158 = vpop.f32.mrb[0].mxu0
    %v3159 = vadd.f32 0.0, %v3158
    %v3160 = vpop.f32.mrb[0].mxu0
    %v3161 = vpop.f32.mrb[0].mxu0
    %v3162 = vadd.f32 0.0, %v3161
    %v3163 = vpop.f32.mrb[0].mxu0
    %3164 = vmatprep.mubr.bf16.mxu0 0
    %3165 = vmatmul.mubr.bf16.gmra.mrb[0].mxu0 %v3065
    %v3166 = vpop.f32.mrb[0].mxu0
    %v3167 = vadd.f32 0.0, %v3166
    %v3168 = vpop.f32.mrb[0].mxu0
    %v3169 = vpop.f32.mrb[0].mxu0
    %v3170 = vadd.f32 0.0, %v3169
    %v3171 = vpop.f32.mrb[0].mxu0
    %3172 = vmatprep.mubr.bf16.mxu0 0
    %3173 = vmatmul.mubr.bf16.gmra.mrb[0].mxu0 %v3068
    %v3174 = vpop.f32.mrb[0].mxu0
    %v3175 = vadd.f32 0.0, %v3174
    %v3176 = vpop.f32.mrb[0].mxu0
    %v3177 = vpop.f32.mrb[0].mxu0
    %v3178 = vadd.f32 0.0, %v3177
    %v3179 = vpop.f32.mrb[0].mxu0
    %3180 = vmatprep.mubr.bf16.mxu0 0
    %3181 = vmatmul.mubr.bf16.gmra.mrb[0].mxu0 %v3071
    %v3182 = vpop.f32.mrb[0].mxu0
    %v3183 = vadd.f32 0.0, %v3182
    %v3184 = vpop.f32.mrb[0].mxu0
    %v3185 = vpop.f32.mrb[0].mxu0
    %v3186 = vadd.f32 0.0, %v3185
    %v3187 = vpop.f32.mrb[0].mxu0
    %3188 = vmatprep.mubr.bf16.mxu0 0
    %3189 = vmatmul.mubr.bf16.gmra.mrb[0].mxu0 %v3074
    %v3190 = vpop.f32.mrb[0].mxu0
    %v3191 = vadd.f32 0.0, %v3190
    %v3192 = vpop.f32.mrb[0].mxu0
    %v3193 = vpop.f32.mrb[0].mxu0
    %v3194 = vadd.f32 0.0, %v3193
    %v3195 = vpop.f32.mrb[0].mxu0
    %3196 = vdwg.mxu0
    %v3198 = vsel %vm2326, %v1542, 0
    %v3201 = vsel %vm2326, %v1543, 0
    %v3204 = vsel %vm2326, %v1544, 0
    %v3207 = vsel %vm2326, %v1545, 0
    %v3210 = vsel %vm2326, %v1546, 0
    %v3213 = vsel %vm2326, %v1547, 0
    %v3216 = vsel %vm2326, %v1548, 0
    %v3219 = vsel %vm2326, %v1549, 0
    %v3222 = vsel %vm2326, %v1926, 0
    %v3225 = vsel %vm2326, %v1927, 0
    %v3228 = vsel %vm2326, %v1928, 0
    %v3231 = vsel %vm2326, %v1929, 0
    %v3234 = vsel %vm2326, %v1930, 0
    %v3237 = vsel %vm2326, %v1931, 0
    %v3240 = vsel %vm2326, %v1932, 0
    %v3243 = vsel %vm2326, %v1933, 0
    %3245 = vmatprep.subr.bf16.mxu0 0
    %3246 = vmatpush1.bf16.xpose.msra.mxu0 %v3222
    %3247 = vmatprep.subr.bf16.mxu0 0
    %3248 = vmatpush1.bf16.xpose.msra.mxu0 %v3225
    %3249 = vmatprep.subr.bf16.mxu0 0
    %3250 = vmatpush1.bf16.xpose.msra.mxu0 %v3228
    %3251 = vmatprep.subr.bf16.mxu0 0
    %3252 = vmatpush1.bf16.xpose.msra.mxu0 %v3231
    %3253 = vmatprep.subr.bf16.mxu0 0
    %3254 = vmatpush1.bf16.xpose.msra.mxu0 %v3234
    %3255 = vmatprep.subr.bf16.mxu0 0
    %3256 = vmatpush1.bf16.xpose.msra.mxu0 %v3237
    %3257 = vmatprep.subr.bf16.mxu0 0
    %3258 = vmatpush1.bf16.xpose.msra.mxu0 %v3240
    %3259 = vmatprep.subr.bf16.mxu0 0
    %3260 = vmatpush1.bf16.xpose.msra.mxu0 %v3243
    %3261 = vmatprep.subr.bf16.mxu0 0
    %3262 = vmatpush1.bf16.xpose.msra.mxu0 0
    %3263 = vmatprep.subr.bf16.mxu0 0
    %3264 = vmatpush1.bf16.xpose.msra.mxu0 0
    %3265 = vmatprep.subr.bf16.mxu0 0
    %3266 = vmatpush1.bf16.xpose.msra.mxu0 0
    %3267 = vmatprep.subr.bf16.mxu0 0
    %3268 = vmatpush1.bf16.xpose.msra.mxu0 0
    %3269 = vmatprep.subr.bf16.mxu0 0
    %3270 = vmatpush1.bf16.xpose.msra.mxu0 0
    %3271 = vmatprep.subr.bf16.mxu0 0
    %3272 = vmatpush1.bf16.xpose.msra.mxu0 0
    %3273 = vmatprep.subr.bf16.mxu0 0
    %3274 = vmatpush1.bf16.xpose.msra.mxu0 0
    %3275 = vmatprep.subr.bf16.mxu0 0
    %3276 = vmatpush1.bf16.xpose.msra.mxu0 0
    %3277 = vmatprep.mubr.bf16.mxu0 0
    %3278 = vmatmul.mubr.bf16.gmra.mrb[0].mxu0 %v3198
    %v3279 = vpop.f32.mrb[0].mxu0
    %v3280 = vadd.f32 0.0, %v3279
    %v3281 = vpop.f32.mrb[0].mxu0
    %v3282 = vpop.f32.mrb[0].mxu0
    %v3283 = vadd.f32 0.0, %v3282
    %v3284 = vpop.f32.mrb[0].mxu0
    %3285 = vmatprep.mubr.bf16.mxu0 0
    %3286 = vmatmul.mubr.bf16.gmra.mrb[0].mxu0 %v3201
    %v3287 = vpop.f32.mrb[0].mxu0
    %v3288 = vadd.f32 0.0, %v3287
    %v3289 = vpop.f32.mrb[0].mxu0
    %v3290 = vpop.f32.mrb[0].mxu0
    %v3291 = vadd.f32 0.0, %v3290
    %v3292 = vpop.f32.mrb[0].mxu0
    %3293 = vmatprep.mubr.bf16.mxu0 0
    %3294 = vmatmul.mubr.bf16.gmra.mrb[0].mxu0 %v3204
    %v3295 = vpop.f32.mrb[0].mxu0
    %v3296 = vadd.f32 0.0, %v3295
    %v3297 = vpop.f32.mrb[0].mxu0
    %v3298 = vpop.f32.mrb[0].mxu0
    %v3299 = vadd.f32 0.0, %v3298
    %v3300 = vpop.f32.mrb[0].mxu0
    %3301 = vmatprep.mubr.bf16.mxu0 0
    %3302 = vmatmul.mubr.bf16.gmra.mrb[0].mxu0 %v3207
    %v3303 = vpop.f32.mrb[0].mxu0
    %v3304 = vadd.f32 0.0, %v3303
    %v3305 = vpop.f32.mrb[0].mxu0
    %v3306 = vpop.f32.mrb[0].mxu0
    %v3307 = vadd.f32 0.0, %v3306
    %v3308 = vpop.f32.mrb[0].mxu0
    %3309 = vmatprep.mubr.bf16.mxu0 0
    %3310 = vmatmul.mubr.bf16.gmra.mrb[0].mxu0 %v3210
    %v3311 = vpop.f32.mrb[0].mxu0
    %v3312 = vadd.f32 0.0, %v3311
    %v3313 = vpop.f32.mrb[0].mxu0
    %v3314 = vpop.f32.mrb[0].mxu0
    %v3315 = vadd.f32 0.0, %v3314
    %v3316 = vpop.f32.mrb[0].mxu0
    %3317 = vmatprep.mubr.bf16.mxu0 0
    %3318 = vmatmul.mubr.bf16.gmra.mrb[0].mxu0 %v3213
    %v3319 = vpop.f32.mrb[0].mxu0
    %v3320 = vadd.f32 0.0, %v3319
    %v3321 = vpop.f32.mrb[0].mxu0
    %v3322 = vpop.f32.mrb[0].mxu0
    %v3323 = vadd.f32 0.0, %v3322
    %v3324 = vpop.f32.mrb[0].mxu0
    %3325 = vmatprep.mubr.bf16.mxu0 0
    %3326 = vmatmul.mubr.bf16.gmra.mrb[0].mxu0 %v3216
    %v3327 = vpop.f32.mrb[0].mxu0
    %v3328 = vadd.f32 0.0, %v3327
    %v3329 = vpop.f32.mrb[0].mxu0
    %v3330 = vpop.f32.mrb[0].mxu0
    %v3331 = vadd.f32 0.0, %v3330
    %v3332 = vpop.f32.mrb[0].mxu0
    %3333 = vmatprep.mubr.bf16.mxu0 0
    %3334 = vmatmul.mubr.bf16.gmra.mrb[0].mxu0 %v3219
    %v3335 = vpop.f32.mrb[0].mxu0
    %v3336 = vadd.f32 0.0, %v3335
    %v3337 = vpop.f32.mrb[0].mxu0
    %v3338 = vpop.f32.mrb[0].mxu0
    %v3339 = vadd.f32 0.0, %v3338
    %v3340 = vpop.f32.mrb[0].mxu0
    %3341 = vdwg.mxu0
    %v3343 = vsel %vm2326, %v1550, 0
    %v3346 = vsel %vm2326, %v1551, 0
    %v3349 = vsel %vm2326, %v1552, 0
    %v3352 = vsel %vm2326, %v1553, 0
    %v3355 = vsel %vm2326, %v1554, 0
    %v3358 = vsel %vm2326, %v1555, 0
    %v3361 = vsel %vm2326, %v1556, 0
    %v3364 = vsel %vm2326, %v1557, 0
    %v3367 = vsel %vm2326, %v1934, 0
    %v3370 = vsel %vm2326, %v1935, 0
    %v3373 = vsel %vm2326, %v1936, 0
    %v3376 = vsel %vm2326, %v1937, 0
    %v3379 = vsel %vm2326, %v1938, 0
    %v3382 = vsel %vm2326, %v1939, 0
    %v3385 = vsel %vm2326, %v1940, 0
    %v3388 = vsel %vm2326, %v1941, 0
    %3390 = vmatprep.subr.bf16.mxu0 0
    %3391 = vmatpush1.bf16.xpose.msra.mxu0 %v3367
    %3392 = vmatprep.subr.bf16.mxu0 0
    %3393 = vmatpush1.bf16.xpose.msra.mxu0 %v3370
    %3394 = vmatprep.subr.bf16.mxu0 0
    %3395 = vmatpush1.bf16.xpose.msra.mxu0 %v3373
    %3396 = vmatprep.subr.bf16.mxu0 0
    %3397 = vmatpush1.bf16.xpose.msra.mxu0 %v3376
    %3398 = vmatprep.subr.bf16.mxu0 0
    %3399 = vmatpush1.bf16.xpose.msra.mxu0 %v3379
    %3400 = vmatprep.subr.bf16.mxu0 0
    %3401 = vmatpush1.bf16.xpose.msra.mxu0 %v3382
    %3402 = vmatprep.subr.bf16.mxu0 0
    %3403 = vmatpush1.bf16.xpose.msra.mxu0 %v3385
    %3404 = vmatprep.subr.bf16.mxu0 0
    %3405 = vmatpush1.bf16.xpose.msra.mxu0 %v3388
    %3406 = vmatprep.subr.bf16.mxu0 0
    %3407 = vmatpush1.bf16.xpose.msra.mxu0 0
    %3408 = vmatprep.subr.bf16.mxu0 0
    %3409 = vmatpush1.bf16.xpose.msra.mxu0 0
    %3410 = vmatprep.subr.bf16.mxu0 0
    %3411 = vmatpush1.bf16.xpose.msra.mxu0 0
    %3412 = vmatprep.subr.bf16.mxu0 0
    %3413 = vmatpush1.bf16.xpose.msra.mxu0 0
    %3414 = vmatprep.subr.bf16.mxu0 0
    %3415 = vmatpush1.bf16.xpose.msra.mxu0 0
    %3416 = vmatprep.subr.bf16.mxu0 0
    %3417 = vmatpush1.bf16.xpose.msra.mxu0 0
    %3418 = vmatprep.subr.bf16.mxu0 0
    %3419 = vmatpush1.bf16.xpose.msra.mxu0 0
    %3420 = vmatprep.subr.bf16.mxu0 0
    %3421 = vmatpush1.bf16.xpose.msra.mxu0 0
    %3422 = vmatprep.mubr.bf16.mxu0 0
    %3423 = vmatmul.mubr.bf16.gmra.mrb[0].mxu0 %v3343
    %v3424 = vpop.f32.mrb[0].mxu0
    %v3425 = vadd.f32 0.0, %v3424
    %v3426 = vpop.f32.mrb[0].mxu0
    %v3427 = vpop.f32.mrb[0].mxu0
    %v3428 = vadd.f32 0.0, %v3427
    %v3429 = vpop.f32.mrb[0].mxu0
    %3430 = vmatprep.mubr.bf16.mxu0 0
    %3431 = vmatmul.mubr.bf16.gmra.mrb[0].mxu0 %v3346
    %v3432 = vpop.f32.mrb[0].mxu0
    %v3433 = vadd.f32 0.0, %v3432
    %v3434 = vpop.f32.mrb[0].mxu0
    %v3435 = vpop.f32.mrb[0].mxu0
    %v3436 = vadd.f32 0.0, %v3435
    %v3437 = vpop.f32.mrb[0].mxu0
    %3438 = vmatprep.mubr.bf16.mxu0 0
    %3439 = vmatmul.mubr.bf16.gmra.mrb[0].mxu0 %v3349
    %v3440 = vpop.f32.mrb[0].mxu0
    %v3441 = vadd.f32 0.0, %v3440
    %v3442 = vpop.f32.mrb[0].mxu0
    %v3443 = vpop.f32.mrb[0].mxu0
    %v3444 = vadd.f32 0.0, %v3443
    %v3445 = vpop.f32.mrb[0].mxu0
    %3446 = vmatprep.mubr.bf16.mxu0 0
    %3447 = vmatmul.mubr.bf16.gmra.mrb[0].mxu0 %v3352
    %v3448 = vpop.f32.mrb[0].mxu0
    %v3449 = vadd.f32 0.0, %v3448
    %v3450 = vpop.f32.mrb[0].mxu0
    %v3451 = vpop.f32.mrb[0].mxu0
    %v3452 = vadd.f32 0.0, %v3451
    %v3453 = vpop.f32.mrb[0].mxu0
    %3454 = vmatprep.mubr.bf16.mxu0 0
    %3455 = vmatmul.mubr.bf16.gmra.mrb[0].mxu0 %v3355
    %v3456 = vpop.f32.mrb[0].mxu0
    %v3457 = vadd.f32 0.0, %v3456
    %v3458 = vpop.f32.mrb[0].mxu0
    %v3459 = vpop.f32.mrb[0].mxu0
    %v3460 = vadd.f32 0.0, %v3459
    %v3461 = vpop.f32.mrb[0].mxu0
    %3462 = vmatprep.mubr.bf16.mxu0 0
    %3463 = vmatmul.mubr.bf16.gmra.mrb[0].mxu0 %v3358
    %v3464 = vpop.f32.mrb[0].mxu0
    %v3465 = vadd.f32 0.0, %v3464
    %v3466 = vpop.f32.mrb[0].mxu0
    %v3467 = vpop.f32.mrb[0].mxu0
    %v3468 = vadd.f32 0.0, %v3467
    %v3469 = vpop.f32.mrb[0].mxu0
    %3470 = vmatprep.mubr.bf16.mxu0 0
    %3471 = vmatmul.mubr.bf16.gmra.mrb[0].mxu0 %v3361
    %v3472 = vpop.f32.mrb[0].mxu0
    %v3473 = vadd.f32 0.0, %v3472
    %v3474 = vpop.f32.mrb[0].mxu0
    %v3475 = vpop.f32.mrb[0].mxu0
    %v3476 = vadd.f32 0.0, %v3475
    %v3477 = vpop.f32.mrb[0].mxu0
    %3478 = vmatprep.mubr.bf16.mxu0 0
    %3479 = vmatmul.mubr.bf16.gmra.mrb[0].mxu0 %v3364
    %v3480 = vpop.f32.mrb[0].mxu0
    %v3481 = vadd.f32 0.0, %v3480
    %v3482 = vpop.f32.mrb[0].mxu0
    %v3483 = vpop.f32.mrb[0].mxu0
    %v3484 = vadd.f32 0.0, %v3483
    %v3485 = vpop.f32.mrb[0].mxu0
    %3486 = vdwg.mxu0
    %v3487 = vmul.f32 %v2410, 0.17677669
    %v3488 = vmul.f32 %v2413, 0.17677669
    %v3489 = vmul.f32 %v2418, 0.17677669
    %v3490 = vmul.f32 %v2421, 0.17677669
    %v3491 = vmul.f32 %v2426, 0.17677669
    %v3492 = vmul.f32 %v2429, 0.17677669
    %v3493 = vmul.f32 %v2434, 0.17677669
    %v3494 = vmul.f32 %v2437, 0.17677669
    %v3495 = vmul.f32 %v2442, 0.17677669
    %v3496 = vmul.f32 %v2445, 0.17677669
    %v3497 = vmul.f32 %v2450, 0.17677669
    %v3498 = vmul.f32 %v2453, 0.17677669
    %v3499 = vmul.f32 %v2458, 0.17677669
    %v3500 = vmul.f32 %v2461, 0.17677669
    %v3501 = vmul.f32 %v2466, 0.17677669
    %v3502 = vmul.f32 %v2469, 0.17677669
    %v3503 = vmul.f32 %v2555, 0.17677669
    %v3504 = vmul.f32 %v2558, 0.17677669
    %v3505 = vmul.f32 %v2563, 0.17677669
    %v3506 = vmul.f32 %v2566, 0.17677669
    %v3507 = vmul.f32 %v2571, 0.17677669
    %v3508 = vmul.f32 %v2574, 0.17677669
    %v3509 = vmul.f32 %v2579, 0.17677669
    %v3510 = vmul.f32 %v2582, 0.17677669
    %v3511 = vmul.f32 %v2587, 0.17677669
    %v3512 = vmul.f32 %v2590, 0.17677669
    %v3513 = vmul.f32 %v2595, 0.17677669
    %v3514 = vmul.f32 %v2598, 0.17677669
    %v3515 = vmul.f32 %v2603, 0.17677669
    %v3516 = vmul.f32 %v2606, 0.17677669
    %v3517 = vmul.f32 %v2611, 0.17677669
    %v3518 = vmul.f32 %v2614, 0.17677669
    %v3519 = vmul.f32 %v2700, 0.17677669
    %v3520 = vmul.f32 %v2703, 0.17677669
    %v3521 = vmul.f32 %v2708, 0.17677669
    %v3522 = vmul.f32 %v2711, 0.17677669
    %v3523 = vmul.f32 %v2716, 0.17677669
    %v3524 = vmul.f32 %v2719, 0.17677669
    %v3525 = vmul.f32 %v2724, 0.17677669
    %v3526 = vmul.f32 %v2727, 0.17677669
    %v3527 = vmul.f32 %v2732, 0.17677669
    %v3528 = vmul.f32 %v2735, 0.17677669
    %v3529 = vmul.f32 %v2740, 0.17677669
    %v3530 = vmul.f32 %v2743, 0.17677669
    %v3531 = vmul.f32 %v2748, 0.17677669
    %v3532 = vmul.f32 %v2751, 0.17677669
    %v3533 = vmul.f32 %v2756, 0.17677669
    %v3534 = vmul.f32 %v2759, 0.17677669
    %v3535 = vmul.f32 %v2845, 0.17677669
    %v3536 = vmul.f32 %v2848, 0.17677669
    %v3537 = vmul.f32 %v2853, 0.17677669
    %v3538 = vmul.f32 %v2856, 0.17677669
    %v3539 = vmul.f32 %v2861, 0.17677669
    %v3540 = vmul.f32 %v2864, 0.17677669
    %v3541 = vmul.f32 %v2869, 0.17677669
    %v3542 = vmul.f32 %v2872, 0.17677669
    %v3543 = vmul.f32 %v2877, 0.17677669
    %v3544 = vmul.f32 %v2880, 0.17677669
    %v3545 = vmul.f32 %v2885, 0.17677669
    %v3546 = vmul.f32 %v2888, 0.17677669
    %v3547 = vmul.f32 %v2893, 0.17677669
    %v3548 = vmul.f32 %v2896, 0.17677669
    %v3549 = vmul.f32 %v2901, 0.17677669
    %v3550 = vmul.f32 %v2904, 0.17677669
    %v3551 = vmul.f32 %v2990, 0.17677669
    %v3552 = vmul.f32 %v2993, 0.17677669
    %v3553 = vmul.f32 %v2998, 0.17677669
    %v3554 = vmul.f32 %v3001, 0.17677669
    %v3555 = vmul.f32 %v3006, 0.17677669
    %v3556 = vmul.f32 %v3009, 0.17677669
    %v3557 = vmul.f32 %v3014, 0.17677669
    %v3558 = vmul.f32 %v3017, 0.17677669
    %v3559 = vmul.f32 %v3022, 0.17677669
    %v3560 = vmul.f32 %v3025, 0.17677669
    %v3561 = vmul.f32 %v3030, 0.17677669
    %v3562 = vmul.f32 %v3033, 0.17677669
    %v3563 = vmul.f32 %v3038, 0.17677669
    %v3564 = vmul.f32 %v3041, 0.17677669
    %v3565 = vmul.f32 %v3046, 0.17677669
    %v3566 = vmul.f32 %v3049, 0.17677669
    %v3567 = vmul.f32 %v3135, 0.17677669
    %v3568 = vmul.f32 %v3138, 0.17677669
    %v3569 = vmul.f32 %v3143, 0.17677669
    %v3570 = vmul.f32 %v3146, 0.17677669
    %v3571 = vmul.f32 %v3151, 0.17677669
    %v3572 = vmul.f32 %v3154, 0.17677669
    %v3573 = vmul.f32 %v3159, 0.17677669
    %v3574 = vmul.f32 %v3162, 0.17677669
    %v3575 = vmul.f32 %v3167, 0.17677669
    %v3576 = vmul.f32 %v3170, 0.17677669
    %v3577 = vmul.f32 %v3175, 0.17677669
    %v3578 = vmul.f32 %v3178, 0.17677669
    %v3579 = vmul.f32 %v3183, 0.17677669
    %v3580 = vmul.f32 %v3186, 0.17677669
    %v3581 = vmul.f32 %v3191, 0.17677669
    %v3582 = vmul.f32 %v3194, 0.17677669
    %v3583 = vmul.f32 %v3280, 0.17677669
    %v3584 = vmul.f32 %v3283, 0.17677669
    %v3585 = vmul.f32 %v3288, 0.17677669
    %v3586 = vmul.f32 %v3291, 0.17677669
    %v3587 = vmul.f32 %v3296, 0.17677669
    %v3588 = vmul.f32 %v3299, 0.17677669
    %v3589 = vmul.f32 %v3304, 0.17677669
    %v3590 = vmul.f32 %v3307, 0.17677669
    %v3591 = vmul.f32 %v3312, 0.17677669
    %v3592 = vmul.f32 %v3315, 0.17677669
    %v3593 = vmul.f32 %v3320, 0.17677669
    %v3594 = vmul.f32 %v3323, 0.17677669
    %v3595 = vmul.f32 %v3328, 0.17677669
    %v3596 = vmul.f32 %v3331, 0.17677669
    %v3597 = vmul.f32 %v3336, 0.17677669
    %v3598 = vmul.f32 %v3339, 0.17677669
    %v3599 = vmul.f32 %v3425, 0.17677669
    %v3600 = vmul.f32 %v3428, 0.17677669
    %v3601 = vmul.f32 %v3433, 0.17677669
    %v3602 = vmul.f32 %v3436, 0.17677669
    %v3603 = vmul.f32 %v3441, 0.17677669
    %v3604 = vmul.f32 %v3444, 0.17677669
    %v3605 = vmul.f32 %v3449, 0.17677669
    %v3606 = vmul.f32 %v3452, 0.17677669
    %v3607 = vmul.f32 %v3457, 0.17677669
    %v3608 = vmul.f32 %v3460, 0.17677669
    %v3609 = vmul.f32 %v3465, 0.17677669
    %v3610 = vmul.f32 %v3468, 0.17677669
    %v3611 = vmul.f32 %v3473, 0.17677669
    %v3612 = vmul.f32 %v3476, 0.17677669
    %v3613 = vmul.f32 %v3481, 0.17677669
    %v3614 = vmul.f32 %v3484, 0.17677669
    %3615 = vmax.xlane.f32.xlu0 %v3487
    %v3616 = vpop.xlane.xlu0 %3615
    %3617 = vmax.xlane.f32.xlu0 %v3488
    %v3618 = vpop.xlane.xlu0 %3617
    %3619 = vmax.xlane.f32.xlu0 %v3489
    %v3620 = vpop.xlane.xlu0 %3619
    %3621 = vmax.xlane.f32.xlu0 %v3490
    %v3622 = vpop.xlane.xlu0 %3621
    %3623 = vmax.xlane.f32.xlu0 %v3491
    %v3624 = vpop.xlane.xlu0 %3623
    %3625 = vmax.xlane.f32.xlu0 %v3492
    %v3626 = vpop.xlane.xlu0 %3625
    %3627 = vmax.xlane.f32.xlu0 %v3493
    %v3628 = vpop.xlane.xlu0 %3627
    %3629 = vmax.xlane.f32.xlu0 %v3494
    %v3630 = vpop.xlane.xlu0 %3629
    %3631 = vmax.xlane.f32.xlu0 %v3495
    %v3632 = vpop.xlane.xlu0 %3631
    %3633 = vmax.xlane.f32.xlu0 %v3496
    %v3634 = vpop.xlane.xlu0 %3633
    %3635 = vmax.xlane.f32.xlu0 %v3497
    %v3636 = vpop.xlane.xlu0 %3635
    %3637 = vmax.xlane.f32.xlu0 %v3498
    %v3638 = vpop.xlane.xlu0 %3637
    %3639 = vmax.xlane.f32.xlu0 %v3499
    %v3640 = vpop.xlane.xlu0 %3639
    %3641 = vmax.xlane.f32.xlu0 %v3500
    %v3642 = vpop.xlane.xlu0 %3641
    %3643 = vmax.xlane.f32.xlu0 %v3501
    %v3644 = vpop.xlane.xlu0 %3643
    %3645 = vmax.xlane.f32.xlu0 %v3502
    %v3646 = vpop.xlane.xlu0 %3645
    %3647 = vmax.xlane.f32.xlu0 %v3503
    %v3648 = vpop.xlane.xlu0 %3647
    %3649 = vmax.xlane.f32.xlu0 %v3504
    %v3650 = vpop.xlane.xlu0 %3649
    %3651 = vmax.xlane.f32.xlu0 %v3505
    %v3652 = vpop.xlane.xlu0 %3651
    %3653 = vmax.xlane.f32.xlu0 %v3506
    %v3654 = vpop.xlane.xlu0 %3653
    %3655 = vmax.xlane.f32.xlu0 %v3507
    %v3656 = vpop.xlane.xlu0 %3655
    %3657 = vmax.xlane.f32.xlu0 %v3508
    %v3658 = vpop.xlane.xlu0 %3657
    %3659 = vmax.xlane.f32.xlu0 %v3509
    %v3660 = vpop.xlane.xlu0 %3659
    %3661 = vmax.xlane.f32.xlu0 %v3510
    %v3662 = vpop.xlane.xlu0 %3661
    %3663 = vmax.xlane.f32.xlu0 %v3511
    %v3664 = vpop.xlane.xlu0 %3663
    %3665 = vmax.xlane.f32.xlu0 %v3512
    %v3666 = vpop.xlane.xlu0 %3665
    %3667 = vmax.xlane.f32.xlu0 %v3513
    %v3668 = vpop.xlane.xlu0 %3667
    %3669 = vmax.xlane.f32.xlu0 %v3514
    %v3670 = vpop.xlane.xlu0 %3669
    %3671 = vmax.xlane.f32.xlu0 %v3515
    %v3672 = vpop.xlane.xlu0 %3671
    %3673 = vmax.xlane.f32.xlu0 %v3516
    %v3674 = vpop.xlane.xlu0 %3673
    %3675 = vmax.xlane.f32.xlu0 %v3517
    %v3676 = vpop.xlane.xlu0 %3675
    %3677 = vmax.xlane.f32.xlu0 %v3518
    %v3678 = vpop.xlane.xlu0 %3677
    %3679 = vmax.xlane.f32.xlu0 %v3519
    %v3680 = vpop.xlane.xlu0 %3679
    %3681 = vmax.xlane.f32.xlu0 %v3520
    %v3682 = vpop.xlane.xlu0 %3681
    %3683 = vmax.xlane.f32.xlu0 %v3521
    %v3684 = vpop.xlane.xlu0 %3683
    %3685 = vmax.xlane.f32.xlu0 %v3522
    %v3686 = vpop.xlane.xlu0 %3685
    %3687 = vmax.xlane.f32.xlu0 %v3523
    %v3688 = vpop.xlane.xlu0 %3687
    %3689 = vmax.xlane.f32.xlu0 %v3524
    %v3690 = vpop.xlane.xlu0 %3689
    %3691 = vmax.xlane.f32.xlu0 %v3525
    %v3692 = vpop.xlane.xlu0 %3691
    %3693 = vmax.xlane.f32.xlu0 %v3526
    %v3694 = vpop.xlane.xlu0 %3693
    %3695 = vmax.xlane.f32.xlu0 %v3527
    %v3696 = vpop.xlane.xlu0 %3695
    %3697 = vmax.xlane.f32.xlu0 %v3528
    %v3698 = vpop.xlane.xlu0 %3697
    %3699 = vmax.xlane.f32.xlu0 %v3529
    %v3700 = vpop.xlane.xlu0 %3699
    %3701 = vmax.xlane.f32.xlu0 %v3530
    %v3702 = vpop.xlane.xlu0 %3701
    %3703 = vmax.xlane.f32.xlu0 %v3531
    %v3704 = vpop.xlane.xlu0 %3703
    %3705 = vmax.xlane.f32.xlu0 %v3532
    %v3706 = vpop.xlane.xlu0 %3705
    %3707 = vmax.xlane.f32.xlu0 %v3533
    %v3708 = vpop.xlane.xlu0 %3707
    %3709 = vmax.xlane.f32.xlu0 %v3534
    %v3710 = vpop.xlane.xlu0 %3709
    %3711 = vmax.xlane.f32.xlu0 %v3535
    %v3712 = vpop.xlane.xlu0 %3711
    %3713 = vmax.xlane.f32.xlu0 %v3536
    %v3714 = vpop.xlane.xlu0 %3713
    %3715 = vmax.xlane.f32.xlu0 %v3537
    %v3716 = vpop.xlane.xlu0 %3715
    %3717 = vmax.xlane.f32.xlu0 %v3538
    %v3718 = vpop.xlane.xlu0 %3717
    %3719 = vmax.xlane.f32.xlu0 %v3539
    %v3720 = vpop.xlane.xlu0 %3719
    %3721 = vmax.xlane.f32.xlu0 %v3540
    %v3722 = vpop.xlane.xlu0 %3721
    %3723 = vmax.xlane.f32.xlu0 %v3541
    %v3724 = vpop.xlane.xlu0 %3723
    %3725 = vmax.xlane.f32.xlu0 %v3542
    %v3726 = vpop.xlane.xlu0 %3725
    %3727 = vmax.xlane.f32.xlu0 %v3543
    %v3728 = vpop.xlane.xlu0 %3727
    %3729 = vmax.xlane.f32.xlu0 %v3544
    %v3730 = vpop.xlane.xlu0 %3729
    %3731 = vmax.xlane.f32.xlu0 %v3545
    %v3732 = vpop.xlane.xlu0 %3731
    %3733 = vmax.xlane.f32.xlu0 %v3546
    %v3734 = vpop.xlane.xlu0 %3733
    %3735 = vmax.xlane.f32.xlu0 %v3547
    %v3736 = vpop.xlane.xlu0 %3735
    %3737 = vmax.xlane.f32.xlu0 %v3548
    %v3738 = vpop.xlane.xlu0 %3737
    %3739 = vmax.xlane.f32.xlu0 %v3549
    %v3740 = vpop.xlane.xlu0 %3739
    %3741 = vmax.xlane.f32.xlu0 %v3550
    %v3742 = vpop.xlane.xlu0 %3741
    %3743 = vmax.xlane.f32.xlu0 %v3551
    %v3744 = vpop.xlane.xlu0 %3743
    %3745 = vmax.xlane.f32.xlu0 %v3552
    %v3746 = vpop.xlane.xlu0 %3745
    %3747 = vmax.xlane.f32.xlu0 %v3553
    %v3748 = vpop.xlane.xlu0 %3747
    %3749 = vmax.xlane.f32.xlu0 %v3554
    %v3750 = vpop.xlane.xlu0 %3749
    %3751 = vmax.xlane.f32.xlu0 %v3555
    %v3752 = vpop.xlane.xlu0 %3751
    %3753 = vmax.xlane.f32.xlu0 %v3556
    %v3754 = vpop.xlane.xlu0 %3753
    %3755 = vmax.xlane.f32.xlu0 %v3557
    %v3756 = vpop.xlane.xlu0 %3755
    %3757 = vmax.xlane.f32.xlu0 %v3558
    %v3758 = vpop.xlane.xlu0 %3757
    %3759 = vmax.xlane.f32.xlu0 %v3559
    %v3760 = vpop.xlane.xlu0 %3759
    %3761 = vmax.xlane.f32.xlu0 %v3560
    %v3762 = vpop.xlane.xlu0 %3761
    %3763 = vmax.xlane.f32.xlu0 %v3561
    %v3764 = vpop.xlane.xlu0 %3763
    %3765 = vmax.xlane.f32.xlu0 %v3562
    %v3766 = vpop.xlane.xlu0 %3765
    %3767 = vmax.xlane.f32.xlu0 %v3563
    %v3768 = vpop.xlane.xlu0 %3767
    %3769 = vmax.xlane.f32.xlu0 %v3564
    %v3770 = vpop.xlane.xlu0 %3769
    %3771 = vmax.xlane.f32.xlu0 %v3565
    %v3772 = vpop.xlane.xlu0 %3771
    %3773 = vmax.xlane.f32.xlu0 %v3566
    %v3774 = vpop.xlane.xlu0 %3773
    %3775 = vmax.xlane.f32.xlu0 %v3567
    %v3776 = vpop.xlane.xlu0 %3775
    %3777 = vmax.xlane.f32.xlu0 %v3568
    %v3778 = vpop.xlane.xlu0 %3777
    %3779 = vmax.xlane.f32.xlu0 %v3569
    %v3780 = vpop.xlane.xlu0 %3779
    %3781 = vmax.xlane.f32.xlu0 %v3570
    %v3782 = vpop.xlane.xlu0 %3781
    %3783 = vmax.xlane.f32.xlu0 %v3571
    %v3784 = vpop.xlane.xlu0 %3783
    %3785 = vmax.xlane.f32.xlu0 %v3572
    %v3786 = vpop.xlane.xlu0 %3785
    %3787 = vmax.xlane.f32.xlu0 %v3573
    %v3788 = vpop.xlane.xlu0 %3787
    %3789 = vmax.xlane.f32.xlu0 %v3574
    %v3790 = vpop.xlane.xlu0 %3789
    %3791 = vmax.xlane.f32.xlu0 %v3575
    %v3792 = vpop.xlane.xlu0 %3791
    %3793 = vmax.xlane.f32.xlu0 %v3576
    %v3794 = vpop.xlane.xlu0 %3793
    %3795 = vmax.xlane.f32.xlu0 %v3577
    %v3796 = vpop.xlane.xlu0 %3795
    %3797 = vmax.xlane.f32.xlu0 %v3578
    %v3798 = vpop.xlane.xlu0 %3797
    %3799 = vmax.xlane.f32.xlu0 %v3579
    %v3800 = vpop.xlane.xlu0 %3799
    %3801 = vmax.xlane.f32.xlu0 %v3580
    %v3802 = vpop.xlane.xlu0 %3801
    %3803 = vmax.xlane.f32.xlu0 %v3581
    %v3804 = vpop.xlane.xlu0 %3803
    %3805 = vmax.xlane.f32.xlu0 %v3582
    %v3806 = vpop.xlane.xlu0 %3805
    %3807 = vmax.xlane.f32.xlu0 %v3583
    %v3808 = vpop.xlane.xlu0 %3807
    %3809 = vmax.xlane.f32.xlu0 %v3584
    %v3810 = vpop.xlane.xlu0 %3809
    %3811 = vmax.xlane.f32.xlu0 %v3585
    %v3812 = vpop.xlane.xlu0 %3811
    %3813 = vmax.xlane.f32.xlu0 %v3586
    %v3814 = vpop.xlane.xlu0 %3813
    %3815 = vmax.xlane.f32.xlu0 %v3587
    %v3816 = vpop.xlane.xlu0 %3815
    %3817 = vmax.xlane.f32.xlu0 %v3588
    %v3818 = vpop.xlane.xlu0 %3817
    %3819 = vmax.xlane.f32.xlu0 %v3589
    %v3820 = vpop.xlane.xlu0 %3819
    %3821 = vmax.xlane.f32.xlu0 %v3590
    %v3822 = vpop.xlane.xlu0 %3821
    %3823 = vmax.xlane.f32.xlu0 %v3591
    %v3824 = vpop.xlane.xlu0 %3823
    %3825 = vmax.xlane.f32.xlu0 %v3592
    %v3826 = vpop.xlane.xlu0 %3825
    %3827 = vmax.xlane.f32.xlu0 %v3593
    %v3828 = vpop.xlane.xlu0 %3827
    %3829 = vmax.xlane.f32.xlu0 %v3594
    %v3830 = vpop.xlane.xlu0 %3829
    %3831 = vmax.xlane.f32.xlu0 %v3595
    %v3832 = vpop.xlane.xlu0 %3831
    %3833 = vmax.xlane.f32.xlu0 %v3596
    %v3834 = vpop.xlane.xlu0 %3833
    %3835 = vmax.xlane.f32.xlu0 %v3597
    %v3836 = vpop.xlane.xlu0 %3835
    %3837 = vmax.xlane.f32.xlu0 %v3598
    %v3838 = vpop.xlane.xlu0 %3837
    %3839 = vmax.xlane.f32.xlu0 %v3599
    %v3840 = vpop.xlane.xlu0 %3839
    %3841 = vmax.xlane.f32.xlu0 %v3600
    %v3842 = vpop.xlane.xlu0 %3841
    %3843 = vmax.xlane.f32.xlu0 %v3601
    %v3844 = vpop.xlane.xlu0 %3843
    %3845 = vmax.xlane.f32.xlu0 %v3602
    %v3846 = vpop.xlane.xlu0 %3845
    %3847 = vmax.xlane.f32.xlu0 %v3603
    %v3848 = vpop.xlane.xlu0 %3847
    %3849 = vmax.xlane.f32.xlu0 %v3604
    %v3850 = vpop.xlane.xlu0 %3849
    %3851 = vmax.xlane.f32.xlu0 %v3605
    %v3852 = vpop.xlane.xlu0 %3851
    %3853 = vmax.xlane.f32.xlu0 %v3606
    %v3854 = vpop.xlane.xlu0 %3853
    %3855 = vmax.xlane.f32.xlu0 %v3607
    %v3856 = vpop.xlane.xlu0 %3855
    %3857 = vmax.xlane.f32.xlu0 %v3608
    %v3858 = vpop.xlane.xlu0 %3857
    %3859 = vmax.xlane.f32.xlu0 %v3609
    %v3860 = vpop.xlane.xlu0 %3859
    %3861 = vmax.xlane.f32.xlu0 %v3610
    %v3862 = vpop.xlane.xlu0 %3861
    %3863 = vmax.xlane.f32.xlu0 %v3611
    %v3864 = vpop.xlane.xlu0 %3863
    %3865 = vmax.xlane.f32.xlu0 %v3612
    %v3866 = vpop.xlane.xlu0 %3865
    %3867 = vmax.xlane.f32.xlu0 %v3613
    %v3868 = vpop.xlane.xlu0 %3867
    %3869 = vmax.xlane.f32.xlu0 %v3614
    %v3870 = vpop.xlane.xlu0 %3869
    %v3871 = vsub.f32 %v3487, %v3616
    %v3872 = vsub.f32 %v3488, %v3618
    %v3873 = vsub.f32 %v3489, %v3620
    %v3874 = vsub.f32 %v3490, %v3622
    %v3875 = vsub.f32 %v3491, %v3624
    %v3876 = vsub.f32 %v3492, %v3626
    %v3877 = vsub.f32 %v3493, %v3628
    %v3878 = vsub.f32 %v3494, %v3630
    %v3879 = vsub.f32 %v3495, %v3632
    %v3880 = vsub.f32 %v3496, %v3634
    %v3881 = vsub.f32 %v3497, %v3636
    %v3882 = vsub.f32 %v3498, %v3638
    %v3883 = vsub.f32 %v3499, %v3640
    %v3884 = vsub.f32 %v3500, %v3642
    %v3885 = vsub.f32 %v3501, %v3644
    %v3886 = vsub.f32 %v3502, %v3646
    %v3887 = vsub.f32 %v3503, %v3648
    %v3888 = vsub.f32 %v3504, %v3650
    %v3889 = vsub.f32 %v3505, %v3652
    %v3890 = vsub.f32 %v3506, %v3654
    %v3891 = vsub.f32 %v3507, %v3656
    %v3892 = vsub.f32 %v3508, %v3658
    %v3893 = vsub.f32 %v3509, %v3660
    %v3894 = vsub.f32 %v3510, %v3662
    %v3895 = vsub.f32 %v3511, %v3664
    %v3896 = vsub.f32 %v3512, %v3666
    %v3897 = vsub.f32 %v3513, %v3668
    %v3898 = vsub.f32 %v3514, %v3670
    %v3899 = vsub.f32 %v3515, %v3672
    %v3900 = vsub.f32 %v3516, %v3674
    %v3901 = vsub.f32 %v3517, %v3676
    %v3902 = vsub.f32 %v3518, %v3678
    %v3903 = vsub.f32 %v3519, %v3680
    %v3904 = vsub.f32 %v3520, %v3682
    %v3905 = vsub.f32 %v3521, %v3684
    %v3906 = vsub.f32 %v3522, %v3686
    %v3907 = vsub.f32 %v3523, %v3688
    %v3908 = vsub.f32 %v3524, %v3690
    %v3909 = vsub.f32 %v3525, %v3692
    %v3910 = vsub.f32 %v3526, %v3694
    %v3911 = vsub.f32 %v3527, %v3696
    %v3912 = vsub.f32 %v3528, %v3698
    %v3913 = vsub.f32 %v3529, %v3700
    %v3914 = vsub.f32 %v3530, %v3702
    %v3915 = vsub.f32 %v3531, %v3704
    %v3916 = vsub.f32 %v3532, %v3706
    %v3917 = vsub.f32 %v3533, %v3708
    %v3918 = vsub.f32 %v3534, %v3710
    %v3919 = vsub.f32 %v3535, %v3712
    %v3920 = vsub.f32 %v3536, %v3714
    %v3921 = vsub.f32 %v3537, %v3716
    %v3922 = vsub.f32 %v3538, %v3718
    %v3923 = vsub.f32 %v3539, %v3720
    %v3924 = vsub.f32 %v3540, %v3722
    %v3925 = vsub.f32 %v3541, %v3724
    %v3926 = vsub.f32 %v3542, %v3726
    %v3927 = vsub.f32 %v3543, %v3728
    %v3928 = vsub.f32 %v3544, %v3730
    %v3929 = vsub.f32 %v3545, %v3732
    %v3930 = vsub.f32 %v3546, %v3734
    %v3931 = vsub.f32 %v3547, %v3736
    %v3932 = vsub.f32 %v3548, %v3738
    %v3933 = vsub.f32 %v3549, %v3740
    %v3934 = vsub.f32 %v3550, %v3742
    %v3935 = vsub.f32 %v3551, %v3744
    %v3936 = vsub.f32 %v3552, %v3746
    %v3937 = vsub.f32 %v3553, %v3748
    %v3938 = vsub.f32 %v3554, %v3750
    %v3939 = vsub.f32 %v3555, %v3752
    %v3940 = vsub.f32 %v3556, %v3754
    %v3941 = vsub.f32 %v3557, %v3756
    %v3942 = vsub.f32 %v3558, %v3758
    %v3943 = vsub.f32 %v3559, %v3760
    %v3944 = vsub.f32 %v3560, %v3762
    %v3945 = vsub.f32 %v3561, %v3764
    %v3946 = vsub.f32 %v3562, %v3766
    %v3947 = vsub.f32 %v3563, %v3768
    %v3948 = vsub.f32 %v3564, %v3770
    %v3949 = vsub.f32 %v3565, %v3772
    %v3950 = vsub.f32 %v3566, %v3774
    %v3951 = vsub.f32 %v3567, %v3776
    %v3952 = vsub.f32 %v3568, %v3778
    %v3953 = vsub.f32 %v3569, %v3780
    %v3954 = vsub.f32 %v3570, %v3782
    %v3955 = vsub.f32 %v3571, %v3784
    %v3956 = vsub.f32 %v3572, %v3786
    %v3957 = vsub.f32 %v3573, %v3788
    %v3958 = vsub.f32 %v3574, %v3790
    %v3959 = vsub.f32 %v3575, %v3792
    %v3960 = vsub.f32 %v3576, %v3794
    %v3961 = vsub.f32 %v3577, %v3796
    %v3962 = vsub.f32 %v3578, %v3798
    %v3963 = vsub.f32 %v3579, %v3800
    %v3964 = vsub.f32 %v3580, %v3802
    %v3965 = vsub.f32 %v3581, %v3804
    %v3966 = vsub.f32 %v3582, %v3806
    %v3967 = vsub.f32 %v3583, %v3808
    %v3968 = vsub.f32 %v3584, %v3810
    %v3969 = vsub.f32 %v3585, %v3812
    %v3970 = vsub.f32 %v3586, %v3814
    %v3971 = vsub.f32 %v3587, %v3816
    %v3972 = vsub.f32 %v3588, %v3818
    %v3973 = vsub.f32 %v3589, %v3820
    %v3974 = vsub.f32 %v3590, %v3822
    %v3975 = vsub.f32 %v3591, %v3824
    %v3976 = vsub.f32 %v3592, %v3826
    %v3977 = vsub.f32 %v3593, %v3828
    %v3978 = vsub.f32 %v3594, %v3830
    %v3979 = vsub.f32 %v3595, %v3832
    %v3980 = vsub.f32 %v3596, %v3834
    %v3981 = vsub.f32 %v3597, %v3836
    %v3982 = vsub.f32 %v3598, %v3838
    %v3983 = vsub.f32 %v3599, %v3840
    %v3984 = vsub.f32 %v3600, %v3842
    %v3985 = vsub.f32 %v3601, %v3844
    %v3986 = vsub.f32 %v3602, %v3846
    %v3987 = vsub.f32 %v3603, %v3848
    %v3988 = vsub.f32 %v3604, %v3850
    %v3989 = vsub.f32 %v3605, %v3852
    %v3990 = vsub.f32 %v3606, %v3854
    %v3991 = vsub.f32 %v3607, %v3856
    %v3992 = vsub.f32 %v3608, %v3858
    %v3993 = vsub.f32 %v3609, %v3860
    %v3994 = vsub.f32 %v3610, %v3862
    %v3995 = vsub.f32 %v3611, %v3864
    %v3996 = vsub.f32 %v3612, %v3866
    %v3997 = vsub.f32 %v3613, %v3868
    %v3998 = vsub.f32 %v3614, %v3870
    %v3999 = vmul.f32 %v3871, 1.442695
    %v4000 = vpow.pop %v3999
    %v4001 = vmul.f32 %v3872, 1.442695
    %v4002 = vpow.pop %v4001
    %v4003 = vmul.f32 %v3873, 1.442695
    %v4004 = vpow.pop %v4003
    %v4005 = vmul.f32 %v3874, 1.442695
    %v4006 = vpow.pop %v4005
    %v4007 = vmul.f32 %v3875, 1.442695
    %v4008 = vpow.pop %v4007
    %v4009 = vmul.f32 %v3876, 1.442695
    %v4010 = vpow.pop %v4009
    %v4011 = vmul.f32 %v3877, 1.442695
    %v4012 = vpow.pop %v4011
    %v4013 = vmul.f32 %v3878, 1.442695
    %v4014 = vpow.pop %v4013
    %v4015 = vmul.f32 %v3879, 1.442695
    %v4016 = vpow.pop %v4015
    %v4017 = vmul.f32 %v3880, 1.442695
    %v4018 = vpow.pop %v4017
    %v4019 = vmul.f32 %v3881, 1.442695
    %v4020 = vpow.pop %v4019
    %v4021 = vmul.f32 %v3882, 1.442695
    %v4022 = vpow.pop %v4021
    %v4023 = vmul.f32 %v3883, 1.442695
    %v4024 = vpow.pop %v4023
    %v4025 = vmul.f32 %v3884, 1.442695
    %v4026 = vpow.pop %v4025
    %v4027 = vmul.f32 %v3885, 1.442695
    %v4028 = vpow.pop %v4027
    %v4029 = vmul.f32 %v3886, 1.442695
    %v4030 = vpow.pop %v4029
    %v4031 = vmul.f32 %v3887, 1.442695
    %v4032 = vpow.pop %v4031
    %v4033 = vmul.f32 %v3888, 1.442695
    %v4034 = vpow.pop %v4033
    %v4035 = vmul.f32 %v3889, 1.442695
    %v4036 = vpow.pop %v4035
    %v4037 = vmul.f32 %v3890, 1.442695
    %v4038 = vpow.pop %v4037
    %v4039 = vmul.f32 %v3891, 1.442695
    %v4040 = vpow.pop %v4039
    %v4041 = vmul.f32 %v3892, 1.442695
    %v4042 = vpow.pop %v4041
    %v4043 = vmul.f32 %v3893, 1.442695
    %v4044 = vpow.pop %v4043
    %v4045 = vmul.f32 %v3894, 1.442695
    %v4046 = vpow.pop %v4045
    %v4047 = vmul.f32 %v3895, 1.442695
    %v4048 = vpow.pop %v4047
    %v4049 = vmul.f32 %v3896, 1.442695
    %v4050 = vpow.pop %v4049
    %v4051 = vmul.f32 %v3897, 1.442695
    %v4052 = vpow.pop %v4051
    %v4053 = vmul.f32 %v3898, 1.442695
    %v4054 = vpow.pop %v4053
    %v4055 = vmul.f32 %v3899, 1.442695
    %v4056 = vpow.pop %v4055
    %v4057 = vmul.f32 %v3900, 1.442695
    %v4058 = vpow.pop %v4057
    %v4059 = vmul.f32 %v3901, 1.442695
    %v4060 = vpow.pop %v4059
    %v4061 = vmul.f32 %v3902, 1.442695
    %v4062 = vpow.pop %v4061
    %v4063 = vmul.f32 %v3903, 1.442695
    %v4064 = vpow.pop %v4063
    %v4065 = vmul.f32 %v3904, 1.442695
    %v4066 = vpow.pop %v4065
    %v4067 = vmul.f32 %v3905, 1.442695
    %v4068 = vpow.pop %v4067
    %v4069 = vmul.f32 %v3906, 1.442695
    %v4070 = vpow.pop %v4069
    %v4071 = vmul.f32 %v3907, 1.442695
    %v4072 = vpow.pop %v4071
    %v4073 = vmul.f32 %v3908, 1.442695
    %v4074 = vpow.pop %v4073
    %v4075 = vmul.f32 %v3909, 1.442695
    %v4076 = vpow.pop %v4075
    %v4077 = vmul.f32 %v3910, 1.442695
    %v4078 = vpow.pop %v4077
    %v4079 = vmul.f32 %v3911, 1.442695
    %v4080 = vpow.pop %v4079
    %v4081 = vmul.f32 %v3912, 1.442695
    %v4082 = vpow.pop %v4081
    %v4083 = vmul.f32 %v3913, 1.442695
    %v4084 = vpow.pop %v4083
    %v4085 = vmul.f32 %v3914, 1.442695
    %v4086 = vpow.pop %v4085
    %v4087 = vmul.f32 %v3915, 1.442695
    %v4088 = vpow.pop %v4087
    %v4089 = vmul.f32 %v3916, 1.442695
    %v4090 = vpow.pop %v4089
    %v4091 = vmul.f32 %v3917, 1.442695
    %v4092 = vpow.pop %v4091
    %v4093 = vmul.f32 %v3918, 1.442695
    %v4094 = vpow.pop %v4093
    %v4095 = vmul.f32 %v3919, 1.442695
    %v4096 = vpow.pop %v4095
    %v4097 = vmul.f32 %v3920, 1.442695
    %v4098 = vpow.pop %v4097
    %v4099 = vmul.f32 %v3921, 1.442695
    %v4100 = vpow.pop %v4099
    %v4101 = vmul.f32 %v3922, 1.442695
    %v4102 = vpow.pop %v4101
    %v4103 = vmul.f32 %v3923, 1.442695
    %v4104 = vpow.pop %v4103
    %v4105 = vmul.f32 %v3924, 1.442695
    %v4106 = vpow.pop %v4105
    %v4107 = vmul.f32 %v3925, 1.442695
    %v4108 = vpow.pop %v4107
    %v4109 = vmul.f32 %v3926, 1.442695
    %v4110 = vpow.pop %v4109
    %v4111 = vmul.f32 %v3927, 1.442695
    %v4112 = vpow.pop %v4111
    %v4113 = vmul.f32 %v3928, 1.442695
    %v4114 = vpow.pop %v4113
    %v4115 = vmul.f32 %v3929, 1.442695
    %v4116 = vpow.pop %v4115
    %v4117 = vmul.f32 %v3930, 1.442695
    %v4118 = vpow.pop %v4117
    %v4119 = vmul.f32 %v3931, 1.442695
    %v4120 = vpow.pop %v4119
    %v4121 = vmul.f32 %v3932, 1.442695
    %v4122 = vpow.pop %v4121
    %v4123 = vmul.f32 %v3933, 1.442695
    %v4124 = vpow.pop %v4123
    %v4125 = vmul.f32 %v3934, 1.442695
    %v4126 = vpow.pop %v4125
    %v4127 = vmul.f32 %v3935, 1.442695
    %v4128 = vpow.pop %v4127
    %v4129 = vmul.f32 %v3936, 1.442695
    %v4130 = vpow.pop %v4129
    %v4131 = vmul.f32 %v3937, 1.442695
    %v4132 = vpow.pop %v4131
    %v4133 = vmul.f32 %v3938, 1.442695
    %v4134 = vpow.pop %v4133
    %v4135 = vmul.f32 %v3939, 1.442695
    %v4136 = vpow.pop %v4135
    %v4137 = vmul.f32 %v3940, 1.442695
    %v4138 = vpow.pop %v4137
    %v4139 = vmul.f32 %v3941, 1.442695
    %v4140 = vpow.pop %v4139
    %v4141 = vmul.f32 %v3942, 1.442695
    %v4142 = vpow.pop %v4141
    %v4143 = vmul.f32 %v3943, 1.442695
    %v4144 = vpow.pop %v4143
    %v4145 = vmul.f32 %v3944, 1.442695
    %v4146 = vpow.pop %v4145
    %v4147 = vmul.f32 %v3945, 1.442695
    %v4148 = vpow.pop %v4147
    %v4149 = vmul.f32 %v3946, 1.442695
    %v4150 = vpow.pop %v4149
    %v4151 = vmul.f32 %v3947, 1.442695
    %v4152 = vpow.pop %v4151
    %v4153 = vmul.f32 %v3948, 1.442695
    %v4154 = vpow.pop %v4153
    %v4155 = vmul.f32 %v3949, 1.442695
    %v4156 = vpow.pop %v4155
    %v4157 = vmul.f32 %v3950, 1.442695
    %v4158 = vpow.pop %v4157
    %v4159 = vmul.f32 %v3951, 1.442695
    %v4160 = vpow.pop %v4159
    %v4161 = vmul.f32 %v3952, 1.442695
    %v4162 = vpow.pop %v4161
    %v4163 = vmul.f32 %v3953, 1.442695
    %v4164 = vpow.pop %v4163
    %v4165 = vmul.f32 %v3954, 1.442695
    %v4166 = vpow.pop %v4165
    %v4167 = vmul.f32 %v3955, 1.442695
    %v4168 = vpow.pop %v4167
    %v4169 = vmul.f32 %v3956, 1.442695
    %v4170 = vpow.pop %v4169
    %v4171 = vmul.f32 %v3957, 1.442695
    %v4172 = vpow.pop %v4171
    %v4173 = vmul.f32 %v3958, 1.442695
    %v4174 = vpow.pop %v4173
    %v4175 = vmul.f32 %v3959, 1.442695
    %v4176 = vpow.pop %v4175
    %v4177 = vmul.f32 %v3960, 1.442695
    %v4178 = vpow.pop %v4177
    %v4179 = vmul.f32 %v3961, 1.442695
    %v4180 = vpow.pop %v4179
    %v4181 = vmul.f32 %v3962, 1.442695
    %v4182 = vpow.pop %v4181
    %v4183 = vmul.f32 %v3963, 1.442695
    %v4184 = vpow.pop %v4183
    %v4185 = vmul.f32 %v3964, 1.442695
    %v4186 = vpow.pop %v4185
    %v4187 = vmul.f32 %v3965, 1.442695
    %v4188 = vpow.pop %v4187
    %v4189 = vmul.f32 %v3966, 1.442695
    %v4190 = vpow.pop %v4189
    %v4191 = vmul.f32 %v3967, 1.442695
    %v4192 = vpow.pop %v4191
    %v4193 = vmul.f32 %v3968, 1.442695
    %v4194 = vpow.pop %v4193
    %v4195 = vmul.f32 %v3969, 1.442695
    %v4196 = vpow.pop %v4195
    %v4197 = vmul.f32 %v3970, 1.442695
    %v4198 = vpow.pop %v4197
    %v4199 = vmul.f32 %v3971, 1.442695
    %v4200 = vpow.pop %v4199
    %v4201 = vmul.f32 %v3972, 1.442695
    %v4202 = vpow.pop %v4201
    %v4203 = vmul.f32 %v3973, 1.442695
    %v4204 = vpow.pop %v4203
    %v4205 = vmul.f32 %v3974, 1.442695
    %v4206 = vpow.pop %v4205
    %v4207 = vmul.f32 %v3975, 1.442695
    %v4208 = vpow.pop %v4207
    %v4209 = vmul.f32 %v3976, 1.442695
    %v4210 = vpow.pop %v4209
    %v4211 = vmul.f32 %v3977, 1.442695
    %v4212 = vpow.pop %v4211
    %v4213 = vmul.f32 %v3978, 1.442695
    %v4214 = vpow.pop %v4213
    %v4215 = vmul.f32 %v3979, 1.442695
    %v4216 = vpow.pop %v4215
    %v4217 = vmul.f32 %v3980, 1.442695
    %v4218 = vpow.pop %v4217
    %v4219 = vmul.f32 %v3981, 1.442695
    %v4220 = vpow.pop %v4219
    %v4221 = vmul.f32 %v3982, 1.442695
    %v4222 = vpow.pop %v4221
    %v4223 = vmul.f32 %v3983, 1.442695
    %v4224 = vpow.pop %v4223
    %v4225 = vmul.f32 %v3984, 1.442695
    %v4226 = vpow.pop %v4225
    %v4227 = vmul.f32 %v3985, 1.442695
    %v4228 = vpow.pop %v4227
    %v4229 = vmul.f32 %v3986, 1.442695
    %v4230 = vpow.pop %v4229
    %v4231 = vmul.f32 %v3987, 1.442695
    %v4232 = vpow.pop %v4231
    %v4233 = vmul.f32 %v3988, 1.442695
    %v4234 = vpow.pop %v4233
    %v4235 = vmul.f32 %v3989, 1.442695
    %v4236 = vpow.pop %v4235
    %v4237 = vmul.f32 %v3990, 1.442695
    %v4238 = vpow.pop %v4237
    %v4239 = vmul.f32 %v3991, 1.442695
    %v4240 = vpow.pop %v4239
    %v4241 = vmul.f32 %v3992, 1.442695
    %v4242 = vpow.pop %v4241
    %v4243 = vmul.f32 %v3993, 1.442695
    %v4244 = vpow.pop %v4243
    %v4245 = vmul.f32 %v3994, 1.442695
    %v4246 = vpow.pop %v4245
    %v4247 = vmul.f32 %v3995, 1.442695
    %v4248 = vpow.pop %v4247
    %v4249 = vmul.f32 %v3996, 1.442695
    %v4250 = vpow.pop %v4249
    %v4251 = vmul.f32 %v3997, 1.442695
    %v4252 = vpow.pop %v4251
    %v4253 = vmul.f32 %v3998, 1.442695
    %v4254 = vpow.pop %v4253
    %4255 = vadd.xlane.f32.xlu0 %v4000
    %v4256 = vpop.xlane.xlu0 %4255
    %4257 = vadd.xlane.f32.xlu0 %v4002
    %v4258 = vpop.xlane.xlu0 %4257
    %4259 = vadd.xlane.f32.xlu0 %v4004
    %v4260 = vpop.xlane.xlu0 %4259
    %4261 = vadd.xlane.f32.xlu0 %v4006
    %v4262 = vpop.xlane.xlu0 %4261
    %4263 = vadd.xlane.f32.xlu0 %v4008
    %v4264 = vpop.xlane.xlu0 %4263
    %4265 = vadd.xlane.f32.xlu0 %v4010
    %v4266 = vpop.xlane.xlu0 %4265
    %4267 = vadd.xlane.f32.xlu0 %v4012
    %v4268 = vpop.xlane.xlu0 %4267
    %4269 = vadd.xlane.f32.xlu0 %v4014
    %v4270 = vpop.xlane.xlu0 %4269
    %4271 = vadd.xlane.f32.xlu0 %v4016
    %v4272 = vpop.xlane.xlu0 %4271
    %4273 = vadd.xlane.f32.xlu0 %v4018
    %v4274 = vpop.xlane.xlu0 %4273
    %4275 = vadd.xlane.f32.xlu0 %v4020
    %v4276 = vpop.xlane.xlu0 %4275
    %4277 = vadd.xlane.f32.xlu0 %v4022
    %v4278 = vpop.xlane.xlu0 %4277
    %4279 = vadd.xlane.f32.xlu0 %v4024
    %v4280 = vpop.xlane.xlu0 %4279
    %4281 = vadd.xlane.f32.xlu0 %v4026
    %v4282 = vpop.xlane.xlu0 %4281
    %4283 = vadd.xlane.f32.xlu0 %v4028
    %v4284 = vpop.xlane.xlu0 %4283
    %4285 = vadd.xlane.f32.xlu0 %v4030
    %v4286 = vpop.xlane.xlu0 %4285
    %4287 = vadd.xlane.f32.xlu0 %v4032
    %v4288 = vpop.xlane.xlu0 %4287
    %4289 = vadd.xlane.f32.xlu0 %v4034
    %v4290 = vpop.xlane.xlu0 %4289
    %4291 = vadd.xlane.f32.xlu0 %v4036
    %v4292 = vpop.xlane.xlu0 %4291
    %4293 = vadd.xlane.f32.xlu0 %v4038
    %v4294 = vpop.xlane.xlu0 %4293
    %4295 = vadd.xlane.f32.xlu0 %v4040
    %v4296 = vpop.xlane.xlu0 %4295
    %4297 = vadd.xlane.f32.xlu0 %v4042
    %v4298 = vpop.xlane.xlu0 %4297
    %4299 = vadd.xlane.f32.xlu0 %v4044
    %v4300 = vpop.xlane.xlu0 %4299
    %4301 = vadd.xlane.f32.xlu0 %v4046
    %v4302 = vpop.xlane.xlu0 %4301
    %4303 = vadd.xlane.f32.xlu0 %v4048
    %v4304 = vpop.xlane.xlu0 %4303
    %4305 = vadd.xlane.f32.xlu0 %v4050
    %v4306 = vpop.xlane.xlu0 %4305
    %4307 = vadd.xlane.f32.xlu0 %v4052
    %v4308 = vpop.xlane.xlu0 %4307
    %4309 = vadd.xlane.f32.xlu0 %v4054
    %v4310 = vpop.xlane.xlu0 %4309
    %4311 = vadd.xlane.f32.xlu0 %v4056
    %v4312 = vpop.xlane.xlu0 %4311
    %4313 = vadd.xlane.f32.xlu0 %v4058
    %v4314 = vpop.xlane.xlu0 %4313
    %4315 = vadd.xlane.f32.xlu0 %v4060
    %v4316 = vpop.xlane.xlu0 %4315
    %4317 = vadd.xlane.f32.xlu0 %v4062
    %v4318 = vpop.xlane.xlu0 %4317
    %4319 = vadd.xlane.f32.xlu0 %v4064
    %v4320 = vpop.xlane.xlu0 %4319
    %4321 = vadd.xlane.f32.xlu0 %v4066
    %v4322 = vpop.xlane.xlu0 %4321
    %4323 = vadd.xlane.f32.xlu0 %v4068
    %v4324 = vpop.xlane.xlu0 %4323
    %4325 = vadd.xlane.f32.xlu0 %v4070
    %v4326 = vpop.xlane.xlu0 %4325
    %4327 = vadd.xlane.f32.xlu0 %v4072
    %v4328 = vpop.xlane.xlu0 %4327
    %4329 = vadd.xlane.f32.xlu0 %v4074
    %v4330 = vpop.xlane.xlu0 %4329
    %4331 = vadd.xlane.f32.xlu0 %v4076
    %v4332 = vpop.xlane.xlu0 %4331
    %4333 = vadd.xlane.f32.xlu0 %v4078
    %v4334 = vpop.xlane.xlu0 %4333
    %4335 = vadd.xlane.f32.xlu0 %v4080
    %v4336 = vpop.xlane.xlu0 %4335
    %4337 = vadd.xlane.f32.xlu0 %v4082
    %v4338 = vpop.xlane.xlu0 %4337
    %4339 = vadd.xlane.f32.xlu0 %v4084
    %v4340 = vpop.xlane.xlu0 %4339
    %4341 = vadd.xlane.f32.xlu0 %v4086
    %v4342 = vpop.xlane.xlu0 %4341
    %4343 = vadd.xlane.f32.xlu0 %v4088
    %v4344 = vpop.xlane.xlu0 %4343
    %4345 = vadd.xlane.f32.xlu0 %v4090
    %v4346 = vpop.xlane.xlu0 %4345
    %4347 = vadd.xlane.f32.xlu0 %v4092
    %v4348 = vpop.xlane.xlu0 %4347
    %4349 = vadd.xlane.f32.xlu0 %v4094
    %v4350 = vpop.xlane.xlu0 %4349
    %4351 = vadd.xlane.f32.xlu0 %v4096
    %v4352 = vpop.xlane.xlu0 %4351
    %4353 = vadd.xlane.f32.xlu0 %v4098
    %v4354 = vpop.xlane.xlu0 %4353
    %4355 = vadd.xlane.f32.xlu0 %v4100
    %v4356 = vpop.xlane.xlu0 %4355
    %4357 = vadd.xlane.f32.xlu0 %v4102
    %v4358 = vpop.xlane.xlu0 %4357
    %4359 = vadd.xlane.f32.xlu0 %v4104
    %v4360 = vpop.xlane.xlu0 %4359
    %4361 = vadd.xlane.f32.xlu0 %v4106
    %v4362 = vpop.xlane.xlu0 %4361
    %4363 = vadd.xlane.f32.xlu0 %v4108
    %v4364 = vpop.xlane.xlu0 %4363
    %4365 = vadd.xlane.f32.xlu0 %v4110
    %v4366 = vpop.xlane.xlu0 %4365
    %4367 = vadd.xlane.f32.xlu0 %v4112
    %v4368 = vpop.xlane.xlu0 %4367
    %4369 = vadd.xlane.f32.xlu0 %v4114
    %v4370 = vpop.xlane.xlu0 %4369
    %4371 = vadd.xlane.f32.xlu0 %v4116
    %v4372 = vpop.xlane.xlu0 %4371
    %4373 = vadd.xlane.f32.xlu0 %v4118
    %v4374 = vpop.xlane.xlu0 %4373
    %4375 = vadd.xlane.f32.xlu0 %v4120
    %v4376 = vpop.xlane.xlu0 %4375
    %4377 = vadd.xlane.f32.xlu0 %v4122
    %v4378 = vpop.xlane.xlu0 %4377
    %4379 = vadd.xlane.f32.xlu0 %v4124
    %v4380 = vpop.xlane.xlu0 %4379
    %4381 = vadd.xlane.f32.xlu0 %v4126
    %v4382 = vpop.xlane.xlu0 %4381
    %4383 = vadd.xlane.f32.xlu0 %v4128
    %v4384 = vpop.xlane.xlu0 %4383
    %4385 = vadd.xlane.f32.xlu0 %v4130
    %v4386 = vpop.xlane.xlu0 %4385
    %4387 = vadd.xlane.f32.xlu0 %v4132
    %v4388 = vpop.xlane.xlu0 %4387
    %4389 = vadd.xlane.f32.xlu0 %v4134
    %v4390 = vpop.xlane.xlu0 %4389
    %4391 = vadd.xlane.f32.xlu0 %v4136
    %v4392 = vpop.xlane.xlu0 %4391
    %4393 = vadd.xlane.f32.xlu0 %v4138
    %v4394 = vpop.xlane.xlu0 %4393
    %4395 = vadd.xlane.f32.xlu0 %v4140
    %v4396 = vpop.xlane.xlu0 %4395
    %4397 = vadd.xlane.f32.xlu0 %v4142
    %v4398 = vpop.xlane.xlu0 %4397
    %4399 = vadd.xlane.f32.xlu0 %v4144
    %v4400 = vpop.xlane.xlu0 %4399
    %4401 = vadd.xlane.f32.xlu0 %v4146
    %v4402 = vpop.xlane.xlu0 %4401
    %4403 = vadd.xlane.f32.xlu0 %v4148
    %v4404 = vpop.xlane.xlu0 %4403
    %4405 = vadd.xlane.f32.xlu0 %v4150
    %v4406 = vpop.xlane.xlu0 %4405
    %4407 = vadd.xlane.f32.xlu0 %v4152
    %v4408 = vpop.xlane.xlu0 %4407
    %4409 = vadd.xlane.f32.xlu0 %v4154
    %v4410 = vpop.xlane.xlu0 %4409
    %4411 = vadd.xlane.f32.xlu0 %v4156
    %v4412 = vpop.xlane.xlu0 %4411
    %4413 = vadd.xlane.f32.xlu0 %v4158
    %v4414 = vpop.xlane.xlu0 %4413
    %4415 = vadd.xlane.f32.xlu0 %v4160
    %v4416 = vpop.xlane.xlu0 %4415
    %4417 = vadd.xlane.f32.xlu0 %v4162
    %v4418 = vpop.xlane.xlu0 %4417
    %4419 = vadd.xlane.f32.xlu0 %v4164
    %v4420 = vpop.xlane.xlu0 %4419
    %4421 = vadd.xlane.f32.xlu0 %v4166
    %v4422 = vpop.xlane.xlu0 %4421
    %4423 = vadd.xlane.f32.xlu0 %v4168
    %v4424 = vpop.xlane.xlu0 %4423
    %4425 = vadd.xlane.f32.xlu0 %v4170
    %v4426 = vpop.xlane.xlu0 %4425
    %4427 = vadd.xlane.f32.xlu0 %v4172
    %v4428 = vpop.xlane.xlu0 %4427
    %4429 = vadd.xlane.f32.xlu0 %v4174
    %v4430 = vpop.xlane.xlu0 %4429
    %4431 = vadd.xlane.f32.xlu0 %v4176
    %v4432 = vpop.xlane.xlu0 %4431
    %4433 = vadd.xlane.f32.xlu0 %v4178
    %v4434 = vpop.xlane.xlu0 %4433
    %4435 = vadd.xlane.f32.xlu0 %v4180
    %v4436 = vpop.xlane.xlu0 %4435
    %4437 = vadd.xlane.f32.xlu0 %v4182
    %v4438 = vpop.xlane.xlu0 %4437
    %4439 = vadd.xlane.f32.xlu0 %v4184
    %v4440 = vpop.xlane.xlu0 %4439
    %4441 = vadd.xlane.f32.xlu0 %v4186
    %v4442 = vpop.xlane.xlu0 %4441
    %4443 = vadd.xlane.f32.xlu0 %v4188
    %v4444 = vpop.xlane.xlu0 %4443
    %4445 = vadd.xlane.f32.xlu0 %v4190
    %v4446 = vpop.xlane.xlu0 %4445
    %4447 = vadd.xlane.f32.xlu0 %v4192
    %v4448 = vpop.xlane.xlu0 %4447
    %4449 = vadd.xlane.f32.xlu0 %v4194
    %v4450 = vpop.xlane.xlu0 %4449
    %4451 = vadd.xlane.f32.xlu0 %v4196
    %v4452 = vpop.xlane.xlu0 %4451
    %4453 = vadd.xlane.f32.xlu0 %v4198
    %v4454 = vpop.xlane.xlu0 %4453
    %4455 = vadd.xlane.f32.xlu0 %v4200
    %v4456 = vpop.xlane.xlu0 %4455
    %4457 = vadd.xlane.f32.xlu0 %v4202
    %v4458 = vpop.xlane.xlu0 %4457
    %4459 = vadd.xlane.f32.xlu0 %v4204
    %v4460 = vpop.xlane.xlu0 %4459
    %4461 = vadd.xlane.f32.xlu0 %v4206
    %v4462 = vpop.xlane.xlu0 %4461
    %4463 = vadd.xlane.f32.xlu0 %v4208
    %v4464 = vpop.xlane.xlu0 %4463
    %4465 = vadd.xlane.f32.xlu0 %v4210
    %v4466 = vpop.xlane.xlu0 %4465
    %4467 = vadd.xlane.f32.xlu0 %v4212
    %v4468 = vpop.xlane.xlu0 %4467
    %4469 = vadd.xlane.f32.xlu0 %v4214
    %v4470 = vpop.xlane.xlu0 %4469
    %4471 = vadd.xlane.f32.xlu0 %v4216
    %v4472 = vpop.xlane.xlu0 %4471
    %4473 = vadd.xlane.f32.xlu0 %v4218
    %v4474 = vpop.xlane.xlu0 %4473
    %4475 = vadd.xlane.f32.xlu0 %v4220
    %v4476 = vpop.xlane.xlu0 %4475
    %4477 = vadd.xlane.f32.xlu0 %v4222
    %v4478 = vpop.xlane.xlu0 %4477
    %4479 = vadd.xlane.f32.xlu0 %v4224
    %v4480 = vpop.xlane.xlu0 %4479
    %4481 = vadd.xlane.f32.xlu0 %v4226
    %v4482 = vpop.xlane.xlu0 %4481
    %4483 = vadd.xlane.f32.xlu0 %v4228
    %v4484 = vpop.xlane.xlu0 %4483
    %4485 = vadd.xlane.f32.xlu0 %v4230
    %v4486 = vpop.xlane.xlu0 %4485
    %4487 = vadd.xlane.f32.xlu0 %v4232
    %v4488 = vpop.xlane.xlu0 %4487
    %4489 = vadd.xlane.f32.xlu0 %v4234
    %v4490 = vpop.xlane.xlu0 %4489
    %4491 = vadd.xlane.f32.xlu0 %v4236
    %v4492 = vpop.xlane.xlu0 %4491
    %4493 = vadd.xlane.f32.xlu0 %v4238
    %v4494 = vpop.xlane.xlu0 %4493
    %4495 = vadd.xlane.f32.xlu0 %v4240
    %v4496 = vpop.xlane.xlu0 %4495
    %4497 = vadd.xlane.f32.xlu0 %v4242
    %v4498 = vpop.xlane.xlu0 %4497
    %4499 = vadd.xlane.f32.xlu0 %v4244
    %v4500 = vpop.xlane.xlu0 %4499
    %4501 = vadd.xlane.f32.xlu0 %v4246
    %v4502 = vpop.xlane.xlu0 %4501
    %4503 = vadd.xlane.f32.xlu0 %v4248
    %v4504 = vpop.xlane.xlu0 %4503
    %4505 = vadd.xlane.f32.xlu0 %v4250
    %v4506 = vpop.xlane.xlu0 %4505
    %4507 = vadd.xlane.f32.xlu0 %v4252
    %v4508 = vpop.xlane.xlu0 %4507
    %4509 = vadd.xlane.f32.xlu0 %v4254
    %v4510 = vpop.xlane.xlu0 %4509
    %v4511 = vpack.c.bf16 %v4002, %v4000
    %v4512 = vpack.c.bf16 %v4006, %v4004
    %v4513 = vpack.c.bf16 %v4010, %v4008
    %v4514 = vpack.c.bf16 %v4014, %v4012
    %v4515 = vpack.c.bf16 %v4018, %v4016
    %v4516 = vpack.c.bf16 %v4022, %v4020
    %v4517 = vpack.c.bf16 %v4026, %v4024
    %v4518 = vpack.c.bf16 %v4030, %v4028
    %v4519 = vpack.c.bf16 %v4034, %v4032
    %v4520 = vpack.c.bf16 %v4038, %v4036
    %v4521 = vpack.c.bf16 %v4042, %v4040
    %v4522 = vpack.c.bf16 %v4046, %v4044
    %v4523 = vpack.c.bf16 %v4050, %v4048
    %v4524 = vpack.c.bf16 %v4054, %v4052
    %v4525 = vpack.c.bf16 %v4058, %v4056
    %v4526 = vpack.c.bf16 %v4062, %v4060
    %v4527 = vpack.c.bf16 %v4066, %v4064
    %v4528 = vpack.c.bf16 %v4070, %v4068
    %v4529 = vpack.c.bf16 %v4074, %v4072
    %v4530 = vpack.c.bf16 %v4078, %v4076
    %v4531 = vpack.c.bf16 %v4082, %v4080
    %v4532 = vpack.c.bf16 %v4086, %v4084
    %v4533 = vpack.c.bf16 %v4090, %v4088
    %v4534 = vpack.c.bf16 %v4094, %v4092
    %v4535 = vpack.c.bf16 %v4098, %v4096
    %v4536 = vpack.c.bf16 %v4102, %v4100
    %v4537 = vpack.c.bf16 %v4106, %v4104
    %v4538 = vpack.c.bf16 %v4110, %v4108
    %v4539 = vpack.c.bf16 %v4114, %v4112
    %v4540 = vpack.c.bf16 %v4118, %v4116
    %v4541 = vpack.c.bf16 %v4122, %v4120
    %v4542 = vpack.c.bf16 %v4126, %v4124
    %v4543 = vpack.c.bf16 %v4130, %v4128
    %v4544 = vpack.c.bf16 %v4134, %v4132
    %v4545 = vpack.c.bf16 %v4138, %v4136
    %v4546 = vpack.c.bf16 %v4142, %v4140
    %v4547 = vpack.c.bf16 %v4146, %v4144
    %v4548 = vpack.c.bf16 %v4150, %v4148
    %v4549 = vpack.c.bf16 %v4154, %v4152
    %v4550 = vpack.c.bf16 %v4158, %v4156
    %v4551 = vpack.c.bf16 %v4162, %v4160
    %v4552 = vpack.c.bf16 %v4166, %v4164
    %v4553 = vpack.c.bf16 %v4170, %v4168
    %v4554 = vpack.c.bf16 %v4174, %v4172
    %v4555 = vpack.c.bf16 %v4178, %v4176
    %v4556 = vpack.c.bf16 %v4182, %v4180
    %v4557 = vpack.c.bf16 %v4186, %v4184
    %v4558 = vpack.c.bf16 %v4190, %v4188
    %v4559 = vpack.c.bf16 %v4194, %v4192
    %v4560 = vpack.c.bf16 %v4198, %v4196
    %v4561 = vpack.c.bf16 %v4202, %v4200
    %v4562 = vpack.c.bf16 %v4206, %v4204
    %v4563 = vpack.c.bf16 %v4210, %v4208
    %v4564 = vpack.c.bf16 %v4214, %v4212
    %v4565 = vpack.c.bf16 %v4218, %v4216
    %v4566 = vpack.c.bf16 %v4222, %v4220
    %v4567 = vpack.c.bf16 %v4226, %v4224
    %v4568 = vpack.c.bf16 %v4230, %v4228
    %v4569 = vpack.c.bf16 %v4234, %v4232
    %v4570 = vpack.c.bf16 %v4238, %v4236
    %v4571 = vpack.c.bf16 %v4242, %v4240
    %v4572 = vpack.c.bf16 %v4246, %v4244
    %v4573 = vpack.c.bf16 %v4250, %v4248
    %v4574 = vpack.c.bf16 %v4254, %v4252
    %4575 = vmatprep.subr.bf16.mxu0 0
    %4576 = vmatpush1.bf16.msra.mxu0 %v2262
    %4577 = vmatprep.subr.bf16.mxu0 0
    %4578 = vmatpush1.bf16.msra.mxu0 %v2263
    %4579 = vmatprep.subr.bf16.mxu0 0
    %4580 = vmatpush1.bf16.msra.mxu0 %v2264
    %4581 = vmatprep.subr.bf16.mxu0 0
    %4582 = vmatpush1.bf16.msra.mxu0 %v2265
    %4583 = vmatprep.subr.bf16.mxu0 0
    %4584 = vmatpush1.bf16.msra.mxu0 %v2266
    %4585 = vmatprep.subr.bf16.mxu0 0
    %4586 = vmatpush1.bf16.msra.mxu0 %v2267
    %4587 = vmatprep.subr.bf16.mxu0 0
    %4588 = vmatpush1.bf16.msra.mxu0 %v2268
    %4589 = vmatprep.subr.bf16.mxu0 0
    %4590 = vmatpush1.bf16.msra.mxu0 %v2269
    %4591 = vmatprep.subr.bf16.mxu0 0
    %4592 = vmatpush1.bf16.msra.mxu0 0
    %4593 = vmatprep.subr.bf16.mxu0 0
    %4594 = vmatpush1.bf16.msra.mxu0 0
    %4595 = vmatprep.subr.bf16.mxu0 0
    %4596 = vmatpush1.bf16.msra.mxu0 0
    %4597 = vmatprep.subr.bf16.mxu0 0
    %4598 = vmatpush1.bf16.msra.mxu0 0
    %4599 = vmatprep.subr.bf16.mxu0 0
    %4600 = vmatpush1.bf16.msra.mxu0 0
    %4601 = vmatprep.subr.bf16.mxu0 0
    %4602 = vmatpush1.bf16.msra.mxu0 0
    %4603 = vmatprep.subr.bf16.mxu0 0
    %4604 = vmatpush1.bf16.msra.mxu0 0
    %4605 = vmatprep.subr.bf16.mxu0 0
    %4606 = vmatpush1.bf16.msra.mxu0 0
    %4607 = vmatprep.mubr.bf16.mxu0 0
    %4608 = vmatmul.mubr.bf16.gmra.mrb[0].mxu0 %v4511
    %v4609 = vpop.f32.mrb[0].mxu0
    %v4610 = vadd.f32 0.0, %v4609
    %v4611 = vpop.f32.mrb[0].mxu0
    %v4612 = vpop.f32.mrb[0].mxu0
    %v4613 = vadd.f32 0.0, %v4612
    %v4614 = vpop.f32.mrb[0].mxu0
    %4615 = vmatprep.mubr.bf16.mxu0 0
    %4616 = vmatmul.mubr.bf16.gmra.mrb[0].mxu0 %v4512
    %v4617 = vpop.f32.mrb[0].mxu0
    %v4618 = vadd.f32 0.0, %v4617
    %v4619 = vpop.f32.mrb[0].mxu0
    %v4620 = vpop.f32.mrb[0].mxu0
    %v4621 = vadd.f32 0.0, %v4620
    %v4622 = vpop.f32.mrb[0].mxu0
    %4623 = vmatprep.mubr.bf16.mxu0 0
    %4624 = vmatmul.mubr.bf16.gmra.mrb[0].mxu0 %v4513
    %v4625 = vpop.f32.mrb[0].mxu0
    %v4626 = vadd.f32 0.0, %v4625
    %v4627 = vpop.f32.mrb[0].mxu0
    %v4628 = vpop.f32.mrb[0].mxu0
    %v4629 = vadd.f32 0.0, %v4628
    %v4630 = vpop.f32.mrb[0].mxu0
    %4631 = vmatprep.mubr.bf16.mxu0 0
    %4632 = vmatmul.mubr.bf16.gmra.mrb[0].mxu0 %v4514
    %v4633 = vpop.f32.mrb[0].mxu0
    %v4634 = vadd.f32 0.0, %v4633
    %v4635 = vpop.f32.mrb[0].mxu0
    %v4636 = vpop.f32.mrb[0].mxu0
    %v4637 = vadd.f32 0.0, %v4636
    %v4638 = vpop.f32.mrb[0].mxu0
    %4639 = vmatprep.mubr.bf16.mxu0 0
    %4640 = vmatmul.mubr.bf16.gmra.mrb[0].mxu0 %v4515
    %v4641 = vpop.f32.mrb[0].mxu0
    %v4642 = vadd.f32 0.0, %v4641
    %v4643 = vpop.f32.mrb[0].mxu0
    %v4644 = vpop.f32.mrb[0].mxu0
    %v4645 = vadd.f32 0.0, %v4644
    %v4646 = vpop.f32.mrb[0].mxu0
    %4647 = vmatprep.mubr.bf16.mxu0 0
    %4648 = vmatmul.mubr.bf16.gmra.mrb[0].mxu0 %v4516
    %v4649 = vpop.f32.mrb[0].mxu0
    %v4650 = vadd.f32 0.0, %v4649
    %v4651 = vpop.f32.mrb[0].mxu0
    %v4652 = vpop.f32.mrb[0].mxu0
    %v4653 = vadd.f32 0.0, %v4652
    %v4654 = vpop.f32.mrb[0].mxu0
    %4655 = vmatprep.mubr.bf16.mxu0 0
    %4656 = vmatmul.mubr.bf16.gmra.mrb[0].mxu0 %v4517
    %v4657 = vpop.f32.mrb[0].mxu0
    %v4658 = vadd.f32 0.0, %v4657
    %v4659 = vpop.f32.mrb[0].mxu0
    %v4660 = vpop.f32.mrb[0].mxu0
    %v4661 = vadd.f32 0.0, %v4660
    %v4662 = vpop.f32.mrb[0].mxu0
    %4663 = vmatprep.mubr.bf16.mxu0 0
    %4664 = vmatmul.mubr.bf16.gmra.mrb[0].mxu0 %v4518
    %v4665 = vpop.f32.mrb[0].mxu0
    %v4666 = vadd.f32 0.0, %v4665
    %v4667 = vpop.f32.mrb[0].mxu0
    %v4668 = vpop.f32.mrb[0].mxu0
    %v4669 = vadd.f32 0.0, %v4668
    %v4670 = vpop.f32.mrb[0].mxu0
    %4671 = vdwg.mxu0
    %4672 = vmatprep.subr.bf16.mxu0 0
    %4673 = vmatpush1.bf16.msra.mxu0 %v2270
    %4674 = vmatprep.subr.bf16.mxu0 0
    %4675 = vmatpush1.bf16.msra.mxu0 %v2271
    %4676 = vmatprep.subr.bf16.mxu0 0
    %4677 = vmatpush1.bf16.msra.mxu0 %v2272
    %4678 = vmatprep.subr.bf16.mxu0 0
    %4679 = vmatpush1.bf16.msra.mxu0 %v2273
    %4680 = vmatprep.subr.bf16.mxu0 0
    %4681 = vmatpush1.bf16.msra.mxu0 %v2274
    %4682 = vmatprep.subr.bf16.mxu0 0
    %4683 = vmatpush1.bf16.msra.mxu0 %v2275
    %4684 = vmatprep.subr.bf16.mxu0 0
    %4685 = vmatpush1.bf16.msra.mxu0 %v2276
    %4686 = vmatprep.subr.bf16.mxu0 0
    %4687 = vmatpush1.bf16.msra.mxu0 %v2277
    %4688 = vmatprep.subr.bf16.mxu0 0
    %4689 = vmatpush1.bf16.msra.mxu0 0
    %4690 = vmatprep.subr.bf16.mxu0 0
    %4691 = vmatpush1.bf16.msra.mxu0 0
    %4692 = vmatprep.subr.bf16.mxu0 0
    %4693 = vmatpush1.bf16.msra.mxu0 0
    %4694 = vmatprep.subr.bf16.mxu0 0
    %4695 = vmatpush1.bf16.msra.mxu0 0
    %4696 = vmatprep.subr.bf16.mxu0 0
    %4697 = vmatpush1.bf16.msra.mxu0 0
    %4698 = vmatprep.subr.bf16.mxu0 0
    %4699 = vmatpush1.bf16.msra.mxu0 0
    %4700 = vmatprep.subr.bf16.mxu0 0
    %4701 = vmatpush1.bf16.msra.mxu0 0
    %4702 = vmatprep.subr.bf16.mxu0 0
    %4703 = vmatpush1.bf16.msra.mxu0 0
    %4704 = vmatprep.mubr.bf16.mxu0 0
    %4705 = vmatmul.mubr.bf16.gmra.mrb[0].mxu0 %v4519
    %v4706 = vpop.f32.mrb[0].mxu0
    %v4707 = vadd.f32 0.0, %v4706
    %v4708 = vpop.f32.mrb[0].mxu0
    %v4709 = vpop.f32.mrb[0].mxu0
    %v4710 = vadd.f32 0.0, %v4709
    %v4711 = vpop.f32.mrb[0].mxu0
    %4712 = vmatprep.mubr.bf16.mxu0 0
    %4713 = vmatmul.mubr.bf16.gmra.mrb[0].mxu0 %v4520
    %v4714 = vpop.f32.mrb[0].mxu0
    %v4715 = vadd.f32 0.0, %v4714
    %v4716 = vpop.f32.mrb[0].mxu0
    %v4717 = vpop.f32.mrb[0].mxu0
    %v4718 = vadd.f32 0.0, %v4717
    %v4719 = vpop.f32.mrb[0].mxu0
    %4720 = vmatprep.mubr.bf16.mxu0 0
    %4721 = vmatmul.mubr.bf16.gmra.mrb[0].mxu0 %v4521
    %v4722 = vpop.f32.mrb[0].mxu0
    %v4723 = vadd.f32 0.0, %v4722
    %v4724 = vpop.f32.mrb[0].mxu0
    %v4725 = vpop.f32.mrb[0].mxu0
    %v4726 = vadd.f32 0.0, %v4725
    %v4727 = vpop.f32.mrb[0].mxu0
    %4728 = vmatprep.mubr.bf16.mxu0 0
    %4729 = vmatmul.mubr.bf16.gmra.mrb[0].mxu0 %v4522
    %v4730 = vpop.f32.mrb[0].mxu0
    %v4731 = vadd.f32 0.0, %v4730
    %v4732 = vpop.f32.mrb[0].mxu0
    %v4733 = vpop.f32.mrb[0].mxu0
    %v4734 = vadd.f32 0.0, %v4733
    %v4735 = vpop.f32.mrb[0].mxu0
    %4736 = vmatprep.mubr.bf16.mxu0 0
    %4737 = vmatmul.mubr.bf16.gmra.mrb[0].mxu0 %v4523
    %v4738 = vpop.f32.mrb[0].mxu0
    %v4739 = vadd.f32 0.0, %v4738
    %v4740 = vpop.f32.mrb[0].mxu0
    %v4741 = vpop.f32.mrb[0].mxu0
    %v4742 = vadd.f32 0.0, %v4741
    %v4743 = vpop.f32.mrb[0].mxu0
    %4744 = vmatprep.mubr.bf16.mxu0 0
    %4745 = vmatmul.mubr.bf16.gmra.mrb[0].mxu0 %v4524
    %v4746 = vpop.f32.mrb[0].mxu0
    %v4747 = vadd.f32 0.0, %v4746
    %v4748 = vpop.f32.mrb[0].mxu0
    %v4749 = vpop.f32.mrb[0].mxu0
    %v4750 = vadd.f32 0.0, %v4749
    %v4751 = vpop.f32.mrb[0].mxu0
    %4752 = vmatprep.mubr.bf16.mxu0 0
    %4753 = vmatmul.mubr.bf16.gmra.mrb[0].mxu0 %v4525
    %v4754 = vpop.f32.mrb[0].mxu0
    %v4755 = vadd.f32 0.0, %v4754
    %v4756 = vpop.f32.mrb[0].mxu0
    %v4757 = vpop.f32.mrb[0].mxu0
    %v4758 = vadd.f32 0.0, %v4757
    %v4759 = vpop.f32.mrb[0].mxu0
    %4760 = vmatprep.mubr.bf16.mxu0 0
    %4761 = vmatmul.mubr.bf16.gmra.mrb[0].mxu0 %v4526
    %v4762 = vpop.f32.mrb[0].mxu0
    %v4763 = vadd.f32 0.0, %v4762
    %v4764 = vpop.f32.mrb[0].mxu0
    %v4765 = vpop.f32.mrb[0].mxu0
    %v4766 = vadd.f32 0.0, %v4765
    %v4767 = vpop.f32.mrb[0].mxu0
    %4768 = vdwg.mxu0
    %4769 = vmatprep.subr.bf16.mxu0 0
    %4770 = vmatpush1.bf16.msra.mxu0 %v2278
    %4771 = vmatprep.subr.bf16.mxu0 0
    %4772 = vmatpush1.bf16.msra.mxu0 %v2279
    %4773 = vmatprep.subr.bf16.mxu0 0
    %4774 = vmatpush1.bf16.msra.mxu0 %v2280
    %4775 = vmatprep.subr.bf16.mxu0 0
    %4776 = vmatpush1.bf16.msra.mxu0 %v2281
    %4777 = vmatprep.subr.bf16.mxu0 0
    %4778 = vmatpush1.bf16.msra.mxu0 %v2282
    %4779 = vmatprep.subr.bf16.mxu0 0
    %4780 = vmatpush1.bf16.msra.mxu0 %v2283
    %4781 = vmatprep.subr.bf16.mxu0 0
    %4782 = vmatpush1.bf16.msra.mxu0 %v2284
    %4783 = vmatprep.subr.bf16.mxu0 0
    %4784 = vmatpush1.bf16.msra.mxu0 %v2285
    %4785 = vmatprep.subr.bf16.mxu0 0
    %4786 = vmatpush1.bf16.msra.mxu0 0
    %4787 = vmatprep.subr.bf16.mxu0 0
    %4788 = vmatpush1.bf16.msra.mxu0 0
    %4789 = vmatprep.subr.bf16.mxu0 0
    %4790 = vmatpush1.bf16.msra.mxu0 0
    %4791 = vmatprep.subr.bf16.mxu0 0
    %4792 = vmatpush1.bf16.msra.mxu0 0
    %4793 = vmatprep.subr.bf16.mxu0 0
    %4794 = vmatpush1.bf16.msra.mxu0 0
    %4795 = vmatprep.subr.bf16.mxu0 0
    %4796 = vmatpush1.bf16.msra.mxu0 0
    %4797 = vmatprep.subr.bf16.mxu0 0
    %4798 = vmatpush1.bf16.msra.mxu0 0
    %4799 = vmatprep.subr.bf16.mxu0 0
    %4800 = vmatpush1.bf16.msra.mxu0 0
    %4801 = vmatprep.mubr.bf16.mxu0 0
    %4802 = vmatmul.mubr.bf16.gmra.mrb[0].mxu0 %v4527
    %v4803 = vpop.f32.mrb[0].mxu0
    %v4804 = vadd.f32 0.0, %v4803
    %v4805 = vpop.f32.mrb[0].mxu0
    %v4806 = vpop.f32.mrb[0].mxu0
    %v4807 = vadd.f32 0.0, %v4806
    %v4808 = vpop.f32.mrb[0].mxu0
    %4809 = vmatprep.mubr.bf16.mxu0 0
    %4810 = vmatmul.mubr.bf16.gmra.mrb[0].mxu0 %v4528
    %v4811 = vpop.f32.mrb[0].mxu0
    %v4812 = vadd.f32 0.0, %v4811
    %v4813 = vpop.f32.mrb[0].mxu0
    %v4814 = vpop.f32.mrb[0].mxu0
    %v4815 = vadd.f32 0.0, %v4814
    %v4816 = vpop.f32.mrb[0].mxu0
    %4817 = vmatprep.mubr.bf16.mxu0 0
    %4818 = vmatmul.mubr.bf16.gmra.mrb[0].mxu0 %v4529
    %v4819 = vpop.f32.mrb[0].mxu0
    %v4820 = vadd.f32 0.0, %v4819
    %v4821 = vpop.f32.mrb[0].mxu0
    %v4822 = vpop.f32.mrb[0].mxu0
    %v4823 = vadd.f32 0.0, %v4822
    %v4824 = vpop.f32.mrb[0].mxu0
    %4825 = vmatprep.mubr.bf16.mxu0 0
    %4826 = vmatmul.mubr.bf16.gmra.mrb[0].mxu0 %v4530
    %v4827 = vpop.f32.mrb[0].mxu0
    %v4828 = vadd.f32 0.0, %v4827
    %v4829 = vpop.f32.mrb[0].mxu0
    %v4830 = vpop.f32.mrb[0].mxu0
    %v4831 = vadd.f32 0.0, %v4830
    %v4832 = vpop.f32.mrb[0].mxu0
    %4833 = vmatprep.mubr.bf16.mxu0 0
    %4834 = vmatmul.mubr.bf16.gmra.mrb[0].mxu0 %v4531
    %v4835 = vpop.f32.mrb[0].mxu0
    %v4836 = vadd.f32 0.0, %v4835
    %v4837 = vpop.f32.mrb[0].mxu0
    %v4838 = vpop.f32.mrb[0].mxu0
    %v4839 = vadd.f32 0.0, %v4838
    %v4840 = vpop.f32.mrb[0].mxu0
    %4841 = vmatprep.mubr.bf16.mxu0 0
    %4842 = vmatmul.mubr.bf16.gmra.mrb[0].mxu0 %v4532
    %v4843 = vpop.f32.mrb[0].mxu0
    %v4844 = vadd.f32 0.0, %v4843
    %v4845 = vpop.f32.mrb[0].mxu0
    %v4846 = vpop.f32.mrb[0].mxu0
    %v4847 = vadd.f32 0.0, %v4846
    %v4848 = vpop.f32.mrb[0].mxu0
    %4849 = vmatprep.mubr.bf16.mxu0 0
    %4850 = vmatmul.mubr.bf16.gmra.mrb[0].mxu0 %v4533
    %v4851 = vpop.f32.mrb[0].mxu0
    %v4852 = vadd.f32 0.0, %v4851
    %v4853 = vpop.f32.mrb[0].mxu0
    %v4854 = vpop.f32.mrb[0].mxu0
    %v4855 = vadd.f32 0.0, %v4854
    %v4856 = vpop.f32.mrb[0].mxu0
    %4857 = vmatprep.mubr.bf16.mxu0 0
    %4858 = vmatmul.mubr.bf16.gmra.mrb[0].mxu0 %v4534
    %v4859 = vpop.f32.mrb[0].mxu0
    %v4860 = vadd.f32 0.0, %v4859
    %v4861 = vpop.f32.mrb[0].mxu0
    %v4862 = vpop.f32.mrb[0].mxu0
    %v4863 = vadd.f32 0.0, %v4862
    %v4864 = vpop.f32.mrb[0].mxu0
    %4865 = vdwg.mxu0
    %4866 = vmatprep.subr.bf16.mxu0 0
    %4867 = vmatpush1.bf16.msra.mxu0 %v2286
    %4868 = vmatprep.subr.bf16.mxu0 0
    %4869 = vmatpush1.bf16.msra.mxu0 %v2287
    %4870 = vmatprep.subr.bf16.mxu0 0
    %4871 = vmatpush1.bf16.msra.mxu0 %v2288
    %4872 = vmatprep.subr.bf16.mxu0 0
    %4873 = vmatpush1.bf16.msra.mxu0 %v2289
    %4874 = vmatprep.subr.bf16.mxu0 0
    %4875 = vmatpush1.bf16.msra.mxu0 %v2290
    %4876 = vmatprep.subr.bf16.mxu0 0
    %4877 = vmatpush1.bf16.msra.mxu0 %v2291
    %4878 = vmatprep.subr.bf16.mxu0 0
    %4879 = vmatpush1.bf16.msra.mxu0 %v2292
    %4880 = vmatprep.subr.bf16.mxu0 0
    %4881 = vmatpush1.bf16.msra.mxu0 %v2293
    %4882 = vmatprep.subr.bf16.mxu0 0
    %4883 = vmatpush1.bf16.msra.mxu0 0
    %4884 = vmatprep.subr.bf16.mxu0 0
    %4885 = vmatpush1.bf16.msra.mxu0 0
    %4886 = vmatprep.subr.bf16.mxu0 0
    %4887 = vmatpush1.bf16.msra.mxu0 0
    %4888 = vmatprep.subr.bf16.mxu0 0
    %4889 = vmatpush1.bf16.msra.mxu0 0
    %4890 = vmatprep.subr.bf16.mxu0 0
    %4891 = vmatpush1.bf16.msra.mxu0 0
    %4892 = vmatprep.subr.bf16.mxu0 0
    %4893 = vmatpush1.bf16.msra.mxu0 0
    %4894 = vmatprep.subr.bf16.mxu0 0
    %4895 = vmatpush1.bf16.msra.mxu0 0
    %4896 = vmatprep.subr.bf16.mxu0 0
    %4897 = vmatpush1.bf16.msra.mxu0 0
    %4898 = vmatprep.mubr.bf16.mxu0 0
    %4899 = vmatmul.mubr.bf16.gmra.mrb[0].mxu0 %v4535
    %v4900 = vpop.f32.mrb[0].mxu0
    %v4901 = vadd.f32 0.0, %v4900
    %v4902 = vpop.f32.mrb[0].mxu0
    %v4903 = vpop.f32.mrb[0].mxu0
    %v4904 = vadd.f32 0.0, %v4903
    %v4905 = vpop.f32.mrb[0].mxu0
    %4906 = vmatprep.mubr.bf16.mxu0 0
    %4907 = vmatmul.mubr.bf16.gmra.mrb[0].mxu0 %v4536
    %v4908 = vpop.f32.mrb[0].mxu0
    %v4909 = vadd.f32 0.0, %v4908
    %v4910 = vpop.f32.mrb[0].mxu0
    %v4911 = vpop.f32.mrb[0].mxu0
    %v4912 = vadd.f32 0.0, %v4911
    %v4913 = vpop.f32.mrb[0].mxu0
    %4914 = vmatprep.mubr.bf16.mxu0 0
    %4915 = vmatmul.mubr.bf16.gmra.mrb[0].mxu0 %v4537
    %v4916 = vpop.f32.mrb[0].mxu0
    %v4917 = vadd.f32 0.0, %v4916
    %v4918 = vpop.f32.mrb[0].mxu0
    %v4919 = vpop.f32.mrb[0].mxu0
    %v4920 = vadd.f32 0.0, %v4919
    %v4921 = vpop.f32.mrb[0].mxu0
    %4922 = vmatprep.mubr.bf16.mxu0 0
    %4923 = vmatmul.mubr.bf16.gmra.mrb[0].mxu0 %v4538
    %v4924 = vpop.f32.mrb[0].mxu0
    %v4925 = vadd.f32 0.0, %v4924
    %v4926 = vpop.f32.mrb[0].mxu0
    %v4927 = vpop.f32.mrb[0].mxu0
    %v4928 = vadd.f32 0.0, %v4927
    %v4929 = vpop.f32.mrb[0].mxu0
    %4930 = vmatprep.mubr.bf16.mxu0 0
    %4931 = vmatmul.mubr.bf16.gmra.mrb[0].mxu0 %v4539
    %v4932 = vpop.f32.mrb[0].mxu0
    %v4933 = vadd.f32 0.0, %v4932
    %v4934 = vpop.f32.mrb[0].mxu0
    %v4935 = vpop.f32.mrb[0].mxu0
    %v4936 = vadd.f32 0.0, %v4935
    %v4937 = vpop.f32.mrb[0].mxu0
    %4938 = vmatprep.mubr.bf16.mxu0 0
    %4939 = vmatmul.mubr.bf16.gmra.mrb[0].mxu0 %v4540
    %v4940 = vpop.f32.mrb[0].mxu0
    %v4941 = vadd.f32 0.0, %v4940
    %v4942 = vpop.f32.mrb[0].mxu0
    %v4943 = vpop.f32.mrb[0].mxu0
    %v4944 = vadd.f32 0.0, %v4943
    %v4945 = vpop.f32.mrb[0].mxu0
    %4946 = vmatprep.mubr.bf16.mxu0 0
    %4947 = vmatmul.mubr.bf16.gmra.mrb[0].mxu0 %v4541
    %v4948 = vpop.f32.mrb[0].mxu0
    %v4949 = vadd.f32 0.0, %v4948
    %v4950 = vpop.f32.mrb[0].mxu0
    %v4951 = vpop.f32.mrb[0].mxu0
    %v4952 = vadd.f32 0.0, %v4951
    %v4953 = vpop.f32.mrb[0].mxu0
    %4954 = vmatprep.mubr.bf16.mxu0 0
    %4955 = vmatmul.mubr.bf16.gmra.mrb[0].mxu0 %v4542
    %v4956 = vpop.f32.mrb[0].mxu0
    %v4957 = vadd.f32 0.0, %v4956
    %v4958 = vpop.f32.mrb[0].mxu0
    %v4959 = vpop.f32.mrb[0].mxu0
    %v4960 = vadd.f32 0.0, %v4959
    %v4961 = vpop.f32.mrb[0].mxu0
    %4962 = vdwg.mxu0
    %4963 = vmatprep.subr.bf16.mxu0 0
    %4964 = vmatpush1.bf16.msra.mxu0 %v2294
    %4965 = vmatprep.subr.bf16.mxu0 0
    %4966 = vmatpush1.bf16.msra.mxu0 %v2295
    %4967 = vmatprep.subr.bf16.mxu0 0
    %4968 = vmatpush1.bf16.msra.mxu0 %v2296
    %4969 = vmatprep.subr.bf16.mxu0 0
    %4970 = vmatpush1.bf16.msra.mxu0 %v2297
    %4971 = vmatprep.subr.bf16.mxu0 0
    %4972 = vmatpush1.bf16.msra.mxu0 %v2298
    %4973 = vmatprep.subr.bf16.mxu0 0
    %4974 = vmatpush1.bf16.msra.mxu0 %v2299
    %4975 = vmatprep.subr.bf16.mxu0 0
    %4976 = vmatpush1.bf16.msra.mxu0 %v2300
    %4977 = vmatprep.subr.bf16.mxu0 0
    %4978 = vmatpush1.bf16.msra.mxu0 %v2301
    %4979 = vmatprep.subr.bf16.mxu0 0
    %4980 = vmatpush1.bf16.msra.mxu0 0
    %4981 = vmatprep.subr.bf16.mxu0 0
    %4982 = vmatpush1.bf16.msra.mxu0 0
    %4983 = vmatprep.subr.bf16.mxu0 0
    %4984 = vmatpush1.bf16.msra.mxu0 0
    %4985 = vmatprep.subr.bf16.mxu0 0
    %4986 = vmatpush1.bf16.msra.mxu0 0
    %4987 = vmatprep.subr.bf16.mxu0 0
    %4988 = vmatpush1.bf16.msra.mxu0 0
    %4989 = vmatprep.subr.bf16.mxu0 0
    %4990 = vmatpush1.bf16.msra.mxu0 0
    %4991 = vmatprep.subr.bf16.mxu0 0
    %4992 = vmatpush1.bf16.msra.mxu0 0
    %4993 = vmatprep.subr.bf16.mxu0 0
    %4994 = vmatpush1.bf16.msra.mxu0 0
    %4995 = vmatprep.mubr.bf16.mxu0 0
    %4996 = vmatmul.mubr.bf16.gmra.mrb[0].mxu0 %v4543
    %v4997 = vpop.f32.mrb[0].mxu0
    %v4998 = vadd.f32 0.0, %v4997
    %v4999 = vpop.f32.mrb[0].mxu0
    %v5000 = vpop.f32.mrb[0].mxu0
    %v5001 = vadd.f32 0.0, %v5000
    %v5002 = vpop.f32.mrb[0].mxu0
    %5003 = vmatprep.mubr.bf16.mxu0 0
    %5004 = vmatmul.mubr.bf16.gmra.mrb[0].mxu0 %v4544
    %v5005 = vpop.f32.mrb[0].mxu0
    %v5006 = vadd.f32 0.0, %v5005
    %v5007 = vpop.f32.mrb[0].mxu0
    %v5008 = vpop.f32.mrb[0].mxu0
    %v5009 = vadd.f32 0.0, %v5008
    %v5010 = vpop.f32.mrb[0].mxu0
    %5011 = vmatprep.mubr.bf16.mxu0 0
    %5012 = vmatmul.mubr.bf16.gmra.mrb[0].mxu0 %v4545
    %v5013 = vpop.f32.mrb[0].mxu0
    %v5014 = vadd.f32 0.0, %v5013
    %v5015 = vpop.f32.mrb[0].mxu0
    %v5016 = vpop.f32.mrb[0].mxu0
    %v5017 = vadd.f32 0.0, %v5016
    %v5018 = vpop.f32.mrb[0].mxu0
    %5019 = vmatprep.mubr.bf16.mxu0 0
    %5020 = vmatmul.mubr.bf16.gmra.mrb[0].mxu0 %v4546
    %v5021 = vpop.f32.mrb[0].mxu0
    %v5022 = vadd.f32 0.0, %v5021
    %v5023 = vpop.f32.mrb[0].mxu0
    %v5024 = vpop.f32.mrb[0].mxu0
    %v5025 = vadd.f32 0.0, %v5024
    %v5026 = vpop.f32.mrb[0].mxu0
    %5027 = vmatprep.mubr.bf16.mxu0 0
    %5028 = vmatmul.mubr.bf16.gmra.mrb[0].mxu0 %v4547
    %v5029 = vpop.f32.mrb[0].mxu0
    %v5030 = vadd.f32 0.0, %v5029
    %v5031 = vpop.f32.mrb[0].mxu0
    %v5032 = vpop.f32.mrb[0].mxu0
    %v5033 = vadd.f32 0.0, %v5032
    %v5034 = vpop.f32.mrb[0].mxu0
    %5035 = vmatprep.mubr.bf16.mxu0 0
    %5036 = vmatmul.mubr.bf16.gmra.mrb[0].mxu0 %v4548
    %v5037 = vpop.f32.mrb[0].mxu0
    %v5038 = vadd.f32 0.0, %v5037
    %v5039 = vpop.f32.mrb[0].mxu0
    %v5040 = vpop.f32.mrb[0].mxu0
    %v5041 = vadd.f32 0.0, %v5040
    %v5042 = vpop.f32.mrb[0].mxu0
    %5043 = vmatprep.mubr.bf16.mxu0 0
    %5044 = vmatmul.mubr.bf16.gmra.mrb[0].mxu0 %v4549
    %v5045 = vpop.f32.mrb[0].mxu0
    %v5046 = vadd.f32 0.0, %v5045
    %v5047 = vpop.f32.mrb[0].mxu0
    %v5048 = vpop.f32.mrb[0].mxu0
    %v5049 = vadd.f32 0.0, %v5048
    %v5050 = vpop.f32.mrb[0].mxu0
    %5051 = vmatprep.mubr.bf16.mxu0 0
    %5052 = vmatmul.mubr.bf16.gmra.mrb[0].mxu0 %v4550
    %v5053 = vpop.f32.mrb[0].mxu0
    %v5054 = vadd.f32 0.0, %v5053
    %v5055 = vpop.f32.mrb[0].mxu0
    %v5056 = vpop.f32.mrb[0].mxu0
    %v5057 = vadd.f32 0.0, %v5056
    %v5058 = vpop.f32.mrb[0].mxu0
    %5059 = vdwg.mxu0
    %5060 = vmatprep.subr.bf16.mxu0 0
    %5061 = vmatpush1.bf16.msra.mxu0 %v2302
    %5062 = vmatprep.subr.bf16.mxu0 0
    %5063 = vmatpush1.bf16.msra.mxu0 %v2303
    %5064 = vmatprep.subr.bf16.mxu0 0
    %5065 = vmatpush1.bf16.msra.mxu0 %v2304
    %5066 = vmatprep.subr.bf16.mxu0 0
    %5067 = vmatpush1.bf16.msra.mxu0 %v2305
    %5068 = vmatprep.subr.bf16.mxu0 0
    %5069 = vmatpush1.bf16.msra.mxu0 %v2306
    %5070 = vmatprep.subr.bf16.mxu0 0
    %5071 = vmatpush1.bf16.msra.mxu0 %v2307
    %5072 = vmatprep.subr.bf16.mxu0 0
    %5073 = vmatpush1.bf16.msra.mxu0 %v2308
    %5074 = vmatprep.subr.bf16.mxu0 0
    %5075 = vmatpush1.bf16.msra.mxu0 %v2309
    %5076 = vmatprep.subr.bf16.mxu0 0
    %5077 = vmatpush1.bf16.msra.mxu0 0
    %5078 = vmatprep.subr.bf16.mxu0 0
    %5079 = vmatpush1.bf16.msra.mxu0 0
    %5080 = vmatprep.subr.bf16.mxu0 0
    %5081 = vmatpush1.bf16.msra.mxu0 0
    %5082 = vmatprep.subr.bf16.mxu0 0
    %5083 = vmatpush1.bf16.msra.mxu0 0
    %5084 = vmatprep.subr.bf16.mxu0 0
    %5085 = vmatpush1.bf16.msra.mxu0 0
    %5086 = vmatprep.subr.bf16.mxu0 0
    %5087 = vmatpush1.bf16.msra.mxu0 0
    %5088 = vmatprep.subr.bf16.mxu0 0
    %5089 = vmatpush1.bf16.msra.mxu0 0
    %5090 = vmatprep.subr.bf16.mxu0 0
    %5091 = vmatpush1.bf16.msra.mxu0 0
    %5092 = vmatprep.mubr.bf16.mxu0 0
    %5093 = vmatmul.mubr.bf16.gmra.mrb[0].mxu0 %v4551
    %v5094 = vpop.f32.mrb[0].mxu0
    %v5095 = vadd.f32 0.0, %v5094
    %v5096 = vpop.f32.mrb[0].mxu0
    %v5097 = vpop.f32.mrb[0].mxu0
    %v5098 = vadd.f32 0.0, %v5097
    %v5099 = vpop.f32.mrb[0].mxu0
    %5100 = vmatprep.mubr.bf16.mxu0 0
    %5101 = vmatmul.mubr.bf16.gmra.mrb[0].mxu0 %v4552
    %v5102 = vpop.f32.mrb[0].mxu0
    %v5103 = vadd.f32 0.0, %v5102
    %v5104 = vpop.f32.mrb[0].mxu0
    %v5105 = vpop.f32.mrb[0].mxu0
    %v5106 = vadd.f32 0.0, %v5105
    %v5107 = vpop.f32.mrb[0].mxu0
    %5108 = vmatprep.mubr.bf16.mxu0 0
    %5109 = vmatmul.mubr.bf16.gmra.mrb[0].mxu0 %v4553
    %v5110 = vpop.f32.mrb[0].mxu0
    %v5111 = vadd.f32 0.0, %v5110
    %v5112 = vpop.f32.mrb[0].mxu0
    %v5113 = vpop.f32.mrb[0].mxu0
    %v5114 = vadd.f32 0.0, %v5113
    %v5115 = vpop.f32.mrb[0].mxu0
    %5116 = vmatprep.mubr.bf16.mxu0 0
    %5117 = vmatmul.mubr.bf16.gmra.mrb[0].mxu0 %v4554
    %v5118 = vpop.f32.mrb[0].mxu0
    %v5119 = vadd.f32 0.0, %v5118
    %v5120 = vpop.f32.mrb[0].mxu0
    %v5121 = vpop.f32.mrb[0].mxu0
    %v5122 = vadd.f32 0.0, %v5121
    %v5123 = vpop.f32.mrb[0].mxu0
    %5124 = vmatprep.mubr.bf16.mxu0 0
    %5125 = vmatmul.mubr.bf16.gmra.mrb[0].mxu0 %v4555
    %v5126 = vpop.f32.mrb[0].mxu0
    %v5127 = vadd.f32 0.0, %v5126
    %v5128 = vpop.f32.mrb[0].mxu0
    %v5129 = vpop.f32.mrb[0].mxu0
    %v5130 = vadd.f32 0.0, %v5129
    %v5131 = vpop.f32.mrb[0].mxu0
    %5132 = vmatprep.mubr.bf16.mxu0 0
    %5133 = vmatmul.mubr.bf16.gmra.mrb[0].mxu0 %v4556
    %v5134 = vpop.f32.mrb[0].mxu0
    %v5135 = vadd.f32 0.0, %v5134
    %v5136 = vpop.f32.mrb[0].mxu0
    %v5137 = vpop.f32.mrb[0].mxu0
    %v5138 = vadd.f32 0.0, %v5137
    %v5139 = vpop.f32.mrb[0].mxu0
    %5140 = vmatprep.mubr.bf16.mxu0 0
    %5141 = vmatmul.mubr.bf16.gmra.mrb[0].mxu0 %v4557
    %v5142 = vpop.f32.mrb[0].mxu0
    %v5143 = vadd.f32 0.0, %v5142
    %v5144 = vpop.f32.mrb[0].mxu0
    %v5145 = vpop.f32.mrb[0].mxu0
    %v5146 = vadd.f32 0.0, %v5145
    %v5147 = vpop.f32.mrb[0].mxu0
    %5148 = vmatprep.mubr.bf16.mxu0 0
    %5149 = vmatmul.mubr.bf16.gmra.mrb[0].mxu0 %v4558
    %v5150 = vpop.f32.mrb[0].mxu0
    %v5151 = vadd.f32 0.0, %v5150
    %v5152 = vpop.f32.mrb[0].mxu0
    %v5153 = vpop.f32.mrb[0].mxu0
    %v5154 = vadd.f32 0.0, %v5153
    %v5155 = vpop.f32.mrb[0].mxu0
    %5156 = vdwg.mxu0
    %5157 = vmatprep.subr.bf16.mxu0 0
    %5158 = vmatpush1.bf16.msra.mxu0 %v2310
    %5159 = vmatprep.subr.bf16.mxu0 0
    %5160 = vmatpush1.bf16.msra.mxu0 %v2311
    %5161 = vmatprep.subr.bf16.mxu0 0
    %5162 = vmatpush1.bf16.msra.mxu0 %v2312
    %5163 = vmatprep.subr.bf16.mxu0 0
    %5164 = vmatpush1.bf16.msra.mxu0 %v2313
    %5165 = vmatprep.subr.bf16.mxu0 0
    %5166 = vmatpush1.bf16.msra.mxu0 %v2314
    %5167 = vmatprep.subr.bf16.mxu0 0
    %5168 = vmatpush1.bf16.msra.mxu0 %v2315
    %5169 = vmatprep.subr.bf16.mxu0 0
    %5170 = vmatpush1.bf16.msra.mxu0 %v2316
    %5171 = vmatprep.subr.bf16.mxu0 0
    %5172 = vmatpush1.bf16.msra.mxu0 %v2317
    %5173 = vmatprep.subr.bf16.mxu0 0
    %5174 = vmatpush1.bf16.msra.mxu0 0
    %5175 = vmatprep.subr.bf16.mxu0 0
    %5176 = vmatpush1.bf16.msra.mxu0 0
    %5177 = vmatprep.subr.bf16.mxu0 0
    %5178 = vmatpush1.bf16.msra.mxu0 0
    %5179 = vmatprep.subr.bf16.mxu0 0
    %5180 = vmatpush1.bf16.msra.mxu0 0
    %5181 = vmatprep.subr.bf16.mxu0 0
    %5182 = vmatpush1.bf16.msra.mxu0 0
    %5183 = vmatprep.subr.bf16.mxu0 0
    %5184 = vmatpush1.bf16.msra.mxu0 0
    %5185 = vmatprep.subr.bf16.mxu0 0
    %5186 = vmatpush1.bf16.msra.mxu0 0
    %5187 = vmatprep.subr.bf16.mxu0 0
    %5188 = vmatpush1.bf16.msra.mxu0 0
    %5189 = vmatprep.mubr.bf16.mxu0 0
    %5190 = vmatmul.mubr.bf16.gmra.mrb[0].mxu0 %v4559
    %v5191 = vpop.f32.mrb[0].mxu0
    %v5192 = vadd.f32 0.0, %v5191
    %v5193 = vpop.f32.mrb[0].mxu0
    %v5194 = vpop.f32.mrb[0].mxu0
    %v5195 = vadd.f32 0.0, %v5194
    %v5196 = vpop.f32.mrb[0].mxu0
    %5197 = vmatprep.mubr.bf16.mxu0 0
    %5198 = vmatmul.mubr.bf16.gmra.mrb[0].mxu0 %v4560
    %v5199 = vpop.f32.mrb[0].mxu0
    %v5200 = vadd.f32 0.0, %v5199
    %v5201 = vpop.f32.mrb[0].mxu0
    %v5202 = vpop.f32.mrb[0].mxu0
    %v5203 = vadd.f32 0.0, %v5202
    %v5204 = vpop.f32.mrb[0].mxu0
    %5205 = vmatprep.mubr.bf16.mxu0 0
    %5206 = vmatmul.mubr.bf16.gmra.mrb[0].mxu0 %v4561
    %v5207 = vpop.f32.mrb[0].mxu0
    %v5208 = vadd.f32 0.0, %v5207
    %v5209 = vpop.f32.mrb[0].mxu0
    %v5210 = vpop.f32.mrb[0].mxu0
    %v5211 = vadd.f32 0.0, %v5210
    %v5212 = vpop.f32.mrb[0].mxu0
    %5213 = vmatprep.mubr.bf16.mxu0 0
    %5214 = vmatmul.mubr.bf16.gmra.mrb[0].mxu0 %v4562
    %v5215 = vpop.f32.mrb[0].mxu0
    %v5216 = vadd.f32 0.0, %v5215
    %v5217 = vpop.f32.mrb[0].mxu0
    %v5218 = vpop.f32.mrb[0].mxu0
    %v5219 = vadd.f32 0.0, %v5218
    %v5220 = vpop.f32.mrb[0].mxu0
    %5221 = vmatprep.mubr.bf16.mxu0 0
    %5222 = vmatmul.mubr.bf16.gmra.mrb[0].mxu0 %v4563
    %v5223 = vpop.f32.mrb[0].mxu0
    %v5224 = vadd.f32 0.0, %v5223
    %v5225 = vpop.f32.mrb[0].mxu0
    %v5226 = vpop.f32.mrb[0].mxu0
    %v5227 = vadd.f32 0.0, %v5226
    %v5228 = vpop.f32.mrb[0].mxu0
    %5229 = vmatprep.mubr.bf16.mxu0 0
    %5230 = vmatmul.mubr.bf16.gmra.mrb[0].mxu0 %v4564
    %v5231 = vpop.f32.mrb[0].mxu0
    %v5232 = vadd.f32 0.0, %v5231
    %v5233 = vpop.f32.mrb[0].mxu0
    %v5234 = vpop.f32.mrb[0].mxu0
    %v5235 = vadd.f32 0.0, %v5234
    %v5236 = vpop.f32.mrb[0].mxu0
    %5237 = vmatprep.mubr.bf16.mxu0 0
    %5238 = vmatmul.mubr.bf16.gmra.mrb[0].mxu0 %v4565
    %v5239 = vpop.f32.mrb[0].mxu0
    %v5240 = vadd.f32 0.0, %v5239
    %v5241 = vpop.f32.mrb[0].mxu0
    %v5242 = vpop.f32.mrb[0].mxu0
    %v5243 = vadd.f32 0.0, %v5242
    %v5244 = vpop.f32.mrb[0].mxu0
    %5245 = vmatprep.mubr.bf16.mxu0 0
    %5246 = vmatmul.mubr.bf16.gmra.mrb[0].mxu0 %v4566
    %v5247 = vpop.f32.mrb[0].mxu0
    %v5248 = vadd.f32 0.0, %v5247
    %v5249 = vpop.f32.mrb[0].mxu0
    %v5250 = vpop.f32.mrb[0].mxu0
    %v5251 = vadd.f32 0.0, %v5250
    %v5252 = vpop.f32.mrb[0].mxu0
    %5253 = vdwg.mxu0
    %5254 = vmatprep.subr.bf16.mxu0 0
    %5255 = vmatpush1.bf16.msra.mxu0 %v2318
    %5256 = vmatprep.subr.bf16.mxu0 0
    %5257 = vmatpush1.bf16.msra.mxu0 %v2319
    %5258 = vmatprep.subr.bf16.mxu0 0
    %5259 = vmatpush1.bf16.msra.mxu0 %v2320
    %5260 = vmatprep.subr.bf16.mxu0 0
    %5261 = vmatpush1.bf16.msra.mxu0 %v2321
    %5262 = vmatprep.subr.bf16.mxu0 0
    %5263 = vmatpush1.bf16.msra.mxu0 %v2322
    %5264 = vmatprep.subr.bf16.mxu0 0
    %5265 = vmatpush1.bf16.msra.mxu0 %v2323
    %5266 = vmatprep.subr.bf16.mxu0 0
    %5267 = vmatpush1.bf16.msra.mxu0 %v2324
    %5268 = vmatprep.subr.bf16.mxu0 0
    %5269 = vmatpush1.bf16.msra.mxu0 %v2325
    %5270 = vmatprep.subr.bf16.mxu0 0
    %5271 = vmatpush1.bf16.msra.mxu0 0
    %5272 = vmatprep.subr.bf16.mxu0 0
    %5273 = vmatpush1.bf16.msra.mxu0 0
    %5274 = vmatprep.subr.bf16.mxu0 0
    %5275 = vmatpush1.bf16.msra.mxu0 0
    %5276 = vmatprep.subr.bf16.mxu0 0
    %5277 = vmatpush1.bf16.msra.mxu0 0
    %5278 = vmatprep.subr.bf16.mxu0 0
    %5279 = vmatpush1.bf16.msra.mxu0 0
    %5280 = vmatprep.subr.bf16.mxu0 0
    %5281 = vmatpush1.bf16.msra.mxu0 0
    %5282 = vmatprep.subr.bf16.mxu0 0
    %5283 = vmatpush1.bf16.msra.mxu0 0
    %5284 = vmatprep.subr.bf16.mxu0 0
    %5285 = vmatpush1.bf16.msra.mxu0 0
    %5286 = vmatprep.mubr.bf16.mxu0 0
    %5287 = vmatmul.mubr.bf16.gmra.mrb[0].mxu0 %v4567
    %v5288 = vpop.f32.mrb[0].mxu0
    %v5289 = vadd.f32 0.0, %v5288
    %v5290 = vpop.f32.mrb[0].mxu0
    %v5291 = vpop.f32.mrb[0].mxu0
    %v5292 = vadd.f32 0.0, %v5291
    %v5293 = vpop.f32.mrb[0].mxu0
    %5294 = vmatprep.mubr.bf16.mxu0 0
    %5295 = vmatmul.mubr.bf16.gmra.mrb[0].mxu0 %v4568
    %v5296 = vpop.f32.mrb[0].mxu0
    %v5297 = vadd.f32 0.0, %v5296
    %v5298 = vpop.f32.mrb[0].mxu0
    %v5299 = vpop.f32.mrb[0].mxu0
    %v5300 = vadd.f32 0.0, %v5299
    %v5301 = vpop.f32.mrb[0].mxu0
    %5302 = vmatprep.mubr.bf16.mxu0 0
    %5303 = vmatmul.mubr.bf16.gmra.mrb[0].mxu0 %v4569
    %v5304 = vpop.f32.mrb[0].mxu0
    %v5305 = vadd.f32 0.0, %v5304
    %v5306 = vpop.f32.mrb[0].mxu0
    %v5307 = vpop.f32.mrb[0].mxu0
    %v5308 = vadd.f32 0.0, %v5307
    %v5309 = vpop.f32.mrb[0].mxu0
    %5310 = vmatprep.mubr.bf16.mxu0 0
    %5311 = vmatmul.mubr.bf16.gmra.mrb[0].mxu0 %v4570
    %v5312 = vpop.f32.mrb[0].mxu0
    %v5313 = vadd.f32 0.0, %v5312
    %v5314 = vpop.f32.mrb[0].mxu0
    %v5315 = vpop.f32.mrb[0].mxu0
    %v5316 = vadd.f32 0.0, %v5315
    %v5317 = vpop.f32.mrb[0].mxu0
    %5318 = vmatprep.mubr.bf16.mxu0 0
    %5319 = vmatmul.mubr.bf16.gmra.mrb[0].mxu0 %v4571
    %v5320 = vpop.f32.mrb[0].mxu0
    %v5321 = vadd.f32 0.0, %v5320
    %v5322 = vpop.f32.mrb[0].mxu0
    %v5323 = vpop.f32.mrb[0].mxu0
    %v5324 = vadd.f32 0.0, %v5323
    %v5325 = vpop.f32.mrb[0].mxu0
    %5326 = vmatprep.mubr.bf16.mxu0 0
    %5327 = vmatmul.mubr.bf16.gmra.mrb[0].mxu0 %v4572
    %v5328 = vpop.f32.mrb[0].mxu0
    %v5329 = vadd.f32 0.0, %v5328
    %v5330 = vpop.f32.mrb[0].mxu0
    %v5331 = vpop.f32.mrb[0].mxu0
    %v5332 = vadd.f32 0.0, %v5331
    %v5333 = vpop.f32.mrb[0].mxu0
    %5334 = vmatprep.mubr.bf16.mxu0 0
    %5335 = vmatmul.mubr.bf16.gmra.mrb[0].mxu0 %v4573
    %v5336 = vpop.f32.mrb[0].mxu0
    %v5337 = vadd.f32 0.0, %v5336
    %v5338 = vpop.f32.mrb[0].mxu0
    %v5339 = vpop.f32.mrb[0].mxu0
    %v5340 = vadd.f32 0.0, %v5339
    %v5341 = vpop.f32.mrb[0].mxu0
    %5342 = vmatprep.mubr.bf16.mxu0 0
    %5343 = vmatmul.mubr.bf16.gmra.mrb[0].mxu0 %v4574
    %v5344 = vpop.f32.mrb[0].mxu0
    %v5345 = vadd.f32 0.0, %v5344
    %v5346 = vpop.f32.mrb[0].mxu0
    %v5347 = vpop.f32.mrb[0].mxu0
    %v5348 = vadd.f32 0.0, %v5347
    %v5349 = vpop.f32.mrb[0].mxu0
    %5350 = vdwg.mxu0
    %v5351 = vrcp.pop %v4256
    %v5352 = vrcp.pop %v4258
    %v5353 = vrcp.pop %v4260
    %v5354 = vrcp.pop %v4262
    %v5355 = vrcp.pop %v4264
    %v5356 = vrcp.pop %v4266
    %v5357 = vrcp.pop %v4268
    %v5358 = vrcp.pop %v4270
    %v5359 = vrcp.pop %v4272
    %v5360 = vrcp.pop %v4274
    %v5361 = vrcp.pop %v4276
    %v5362 = vrcp.pop %v4278
    %v5363 = vrcp.pop %v4280
    %v5364 = vrcp.pop %v4282
    %v5365 = vrcp.pop %v4284
    %v5366 = vrcp.pop %v4286
    %v5367 = vrcp.pop %v4288
    %v5368 = vrcp.pop %v4290
    %v5369 = vrcp.pop %v4292
    %v5370 = vrcp.pop %v4294
    %v5371 = vrcp.pop %v4296
    %v5372 = vrcp.pop %v4298
    %v5373 = vrcp.pop %v4300
    %v5374 = vrcp.pop %v4302
    %v5375 = vrcp.pop %v4304
    %v5376 = vrcp.pop %v4306
    %v5377 = vrcp.pop %v4308
    %v5378 = vrcp.pop %v4310
    %v5379 = vrcp.pop %v4312
    %v5380 = vrcp.pop %v4314
    %v5381 = vrcp.pop %v4316
    %v5382 = vrcp.pop %v4318
    %v5383 = vrcp.pop %v4320
    %v5384 = vrcp.pop %v4322
    %v5385 = vrcp.pop %v4324
    %v5386 = vrcp.pop %v4326
    %v5387 = vrcp.pop %v4328
    %v5388 = vrcp.pop %v4330
    %v5389 = vrcp.pop %v4332
    %v5390 = vrcp.pop %v4334
    %v5391 = vrcp.pop %v4336
    %v5392 = vrcp.pop %v4338
    %v5393 = vrcp.pop %v4340
    %v5394 = vrcp.pop %v4342
    %v5395 = vrcp.pop %v4344
    %v5396 = vrcp.pop %v4346
    %v5397 = vrcp.pop %v4348
    %v5398 = vrcp.pop %v4350
    %v5399 = vrcp.pop %v4352
    %v5400 = vrcp.pop %v4354
    %v5401 = vrcp.pop %v4356
    %v5402 = vrcp.pop %v4358
    %v5403 = vrcp.pop %v4360
    %v5404 = vrcp.pop %v4362
    %v5405 = vrcp.pop %v4364
    %v5406 = vrcp.pop %v4366
    %v5407 = vrcp.pop %v4368
    %v5408 = vrcp.pop %v4370
    %v5409 = vrcp.pop %v4372
    %v5410 = vrcp.pop %v4374
    %v5411 = vrcp.pop %v4376
    %v5412 = vrcp.pop %v4378
    %v5413 = vrcp.pop %v4380
    %v5414 = vrcp.pop %v4382
    %v5415 = vrcp.pop %v4384
    %v5416 = vrcp.pop %v4386
    %v5417 = vrcp.pop %v4388
    %v5418 = vrcp.pop %v4390
    %v5419 = vrcp.pop %v4392
    %v5420 = vrcp.pop %v4394
    %v5421 = vrcp.pop %v4396
    %v5422 = vrcp.pop %v4398
    %v5423 = vrcp.pop %v4400
    %v5424 = vrcp.pop %v4402
    %v5425 = vrcp.pop %v4404
    %v5426 = vrcp.pop %v4406
    %v5427 = vrcp.pop %v4408
    %v5428 = vrcp.pop %v4410
    %v5429 = vrcp.pop %v4412
    %v5430 = vrcp.pop %v4414
    %v5431 = vrcp.pop %v4416
    %v5432 = vrcp.pop %v4418
    %v5433 = vrcp.pop %v4420
    %v5434 = vrcp.pop %v4422
    %v5435 = vrcp.pop %v4424
    %v5436 = vrcp.pop %v4426
    %v5437 = vrcp.pop %v4428
    %v5438 = vrcp.pop %v4430
    %v5439 = vrcp.pop %v4432
    %v5440 = vrcp.pop %v4434
    %v5441 = vrcp.pop %v4436
    %v5442 = vrcp.pop %v4438
    %v5443 = vrcp.pop %v4440
    %v5444 = vrcp.pop %v4442
    %v5445 = vrcp.pop %v4444
    %v5446 = vrcp.pop %v4446
    %v5447 = vrcp.pop %v4448
    %v5448 = vrcp.pop %v4450
    %v5449 = vrcp.pop %v4452
    %v5450 = vrcp.pop %v4454
    %v5451 = vrcp.pop %v4456
    %v5452 = vrcp.pop %v4458
    %v5453 = vrcp.pop %v4460
    %v5454 = vrcp.pop %v4462
    %v5455 = vrcp.pop %v4464
    %v5456 = vrcp.pop %v4466
    %v5457 = vrcp.pop %v4468
    %v5458 = vrcp.pop %v4470
    %v5459 = vrcp.pop %v4472
    %v5460 = vrcp.pop %v4474
    %v5461 = vrcp.pop %v4476
    %v5462 = vrcp.pop %v4478
    %v5463 = vrcp.pop %v4480
    %v5464 = vrcp.pop %v4482
    %v5465 = vrcp.pop %v4484
    %v5466 = vrcp.pop %v4486
    %v5467 = vrcp.pop %v4488
    %v5468 = vrcp.pop %v4490
    %v5469 = vrcp.pop %v4492
    %v5470 = vrcp.pop %v4494
    %v5471 = vrcp.pop %v4496
    %v5472 = vrcp.pop %v4498
    %v5473 = vrcp.pop %v4500
    %v5474 = vrcp.pop %v4502
    %v5475 = vrcp.pop %v4504
    %v5476 = vrcp.pop %v4506
    %v5477 = vrcp.pop %v4508
    %v5478 = vrcp.pop %v4510
    %v5479 = vmul.f32 %v4610, %v5351
    %v5480 = vmul.f32 %v4613, %v5352
    %v5481 = vmul.f32 %v4618, %v5353
    %v5482 = vmul.f32 %v4621, %v5354
    %v5483 = vmul.f32 %v4626, %v5355
    %v5484 = vmul.f32 %v4629, %v5356
    %v5485 = vmul.f32 %v4634, %v5357
    %v5486 = vmul.f32 %v4637, %v5358
    %v5487 = vmul.f32 %v4642, %v5359
    %v5488 = vmul.f32 %v4645, %v5360
    %v5489 = vmul.f32 %v4650, %v5361
    %v5490 = vmul.f32 %v4653, %v5362
    %v5491 = vmul.f32 %v4658, %v5363
    %v5492 = vmul.f32 %v4661, %v5364
    %v5493 = vmul.f32 %v4666, %v5365
    %v5494 = vmul.f32 %v4669, %v5366
    %v5495 = vmul.f32 %v4707, %v5367
    %v5496 = vmul.f32 %v4710, %v5368
    %v5497 = vmul.f32 %v4715, %v5369
    %v5498 = vmul.f32 %v4718, %v5370
    %v5499 = vmul.f32 %v4723, %v5371
    %v5500 = vmul.f32 %v4726, %v5372
    %v5501 = vmul.f32 %v4731, %v5373
    %v5502 = vmul.f32 %v4734, %v5374
    %v5503 = vmul.f32 %v4739, %v5375
    %v5504 = vmul.f32 %v4742, %v5376
    %v5505 = vmul.f32 %v4747, %v5377
    %v5506 = vmul.f32 %v4750, %v5378
    %v5507 = vmul.f32 %v4755, %v5379
    %v5508 = vmul.f32 %v4758, %v5380
    %v5509 = vmul.f32 %v4763, %v5381
    %v5510 = vmul.f32 %v4766, %v5382
    %v5511 = vmul.f32 %v4804, %v5383
    %v5512 = vmul.f32 %v4807, %v5384
    %v5513 = vmul.f32 %v4812, %v5385
    %v5514 = vmul.f32 %v4815, %v5386
    %v5515 = vmul.f32 %v4820, %v5387
    %v5516 = vmul.f32 %v4823, %v5388
    %v5517 = vmul.f32 %v4828, %v5389
    %v5518 = vmul.f32 %v4831, %v5390
    %v5519 = vmul.f32 %v4836, %v5391
    %v5520 = vmul.f32 %v4839, %v5392
    %v5521 = vmul.f32 %v4844, %v5393
    %v5522 = vmul.f32 %v4847, %v5394
    %v5523 = vmul.f32 %v4852, %v5395
    %v5524 = vmul.f32 %v4855, %v5396
    %v5525 = vmul.f32 %v4860, %v5397
    %v5526 = vmul.f32 %v4863, %v5398
    %v5527 = vmul.f32 %v4901, %v5399
    %v5528 = vmul.f32 %v4904, %v5400
    %v5529 = vmul.f32 %v4909, %v5401
    %v5530 = vmul.f32 %v4912, %v5402
    %v5531 = vmul.f32 %v4917, %v5403
    %v5532 = vmul.f32 %v4920, %v5404
    %v5533 = vmul.f32 %v4925, %v5405
    %v5534 = vmul.f32 %v4928, %v5406
    %v5535 = vmul.f32 %v4933, %v5407
    %v5536 = vmul.f32 %v4936, %v5408
    %v5537 = vmul.f32 %v4941, %v5409
    %v5538 = vmul.f32 %v4944, %v5410
    %v5539 = vmul.f32 %v4949, %v5411
    %v5540 = vmul.f32 %v4952, %v5412
    %v5541 = vmul.f32 %v4957, %v5413
    %v5542 = vmul.f32 %v4960, %v5414
    %v5543 = vmul.f32 %v4998, %v5415
    %v5544 = vmul.f32 %v5001, %v5416
    %v5545 = vmul.f32 %v5006, %v5417
    %v5546 = vmul.f32 %v5009, %v5418
    %v5547 = vmul.f32 %v5014, %v5419
    %v5548 = vmul.f32 %v5017, %v5420
    %v5549 = vmul.f32 %v5022, %v5421
    %v5550 = vmul.f32 %v5025, %v5422
    %v5551 = vmul.f32 %v5030, %v5423
    %v5552 = vmul.f32 %v5033, %v5424
    %v5553 = vmul.f32 %v5038, %v5425
    %v5554 = vmul.f32 %v5041, %v5426
    %v5555 = vmul.f32 %v5046, %v5427
    %v5556 = vmul.f32 %v5049, %v5428
    %v5557 = vmul.f32 %v5054, %v5429
    %v5558 = vmul.f32 %v5057, %v5430
    %v5559 = vmul.f32 %v5095, %v5431
    %v5560 = vmul.f32 %v5098, %v5432
    %v5561 = vmul.f32 %v5103, %v5433
    %v5562 = vmul.f32 %v5106, %v5434
    %v5563 = vmul.f32 %v5111, %v5435
    %v5564 = vmul.f32 %v5114, %v5436
    %v5565 = vmul.f32 %v5119, %v5437
    %v5566 = vmul.f32 %v5122, %v5438
    %v5567 = vmul.f32 %v5127, %v5439
    %v5568 = vmul.f32 %v5130, %v5440
    %v5569 = vmul.f32 %v5135, %v5441
    %v5570 = vmul.f32 %v5138, %v5442
    %v5571 = vmul.f32 %v5143, %v5443
    %v5572 = vmul.f32 %v5146, %v5444
    %v5573 = vmul.f32 %v5151, %v5445
    %v5574 = vmul.f32 %v5154, %v5446
    %v5575 = vmul.f32 %v5192, %v5447
    %v5576 = vmul.f32 %v5195, %v5448
    %v5577 = vmul.f32 %v5200, %v5449
    %v5578 = vmul.f32 %v5203, %v5450
    %v5579 = vmul.f32 %v5208, %v5451
    %v5580 = vmul.f32 %v5211, %v5452
    %v5581 = vmul.f32 %v5216, %v5453
    %v5582 = vmul.f32 %v5219, %v5454
    %v5583 = vmul.f32 %v5224, %v5455
    %v5584 = vmul.f32 %v5227, %v5456
    %v5585 = vmul.f32 %v5232, %v5457
    %v5586 = vmul.f32 %v5235, %v5458
    %v5587 = vmul.f32 %v5240, %v5459
    %v5588 = vmul.f32 %v5243, %v5460
    %v5589 = vmul.f32 %v5248, %v5461
    %v5590 = vmul.f32 %v5251, %v5462
    %v5591 = vmul.f32 %v5289, %v5463
    %v5592 = vmul.f32 %v5292, %v5464
    %v5593 = vmul.f32 %v5297, %v5465
    %v5594 = vmul.f32 %v5300, %v5466
    %v5595 = vmul.f32 %v5305, %v5467
    %v5596 = vmul.f32 %v5308, %v5468
    %v5597 = vmul.f32 %v5313, %v5469
    %v5598 = vmul.f32 %v5316, %v5470
    %v5599 = vmul.f32 %v5321, %v5471
    %v5600 = vmul.f32 %v5324, %v5472
    %v5601 = vmul.f32 %v5329, %v5473
    %v5602 = vmul.f32 %v5332, %v5474
    %v5603 = vmul.f32 %v5337, %v5475
    %v5604 = vmul.f32 %v5340, %v5476
    %v5605 = vmul.f32 %v5345, %v5477
    %v5606 = vmul.f32 %v5348, %v5478
    %v5607 = vpack.c.bf16 %v5480, %v5479
    %v5608 = vpack.c.bf16 %v5482, %v5481
    %v5609 = vpack.c.bf16 %v5496, %v5495
    %v5610 = vpack.c.bf16 %v5498, %v5497
    %v5611 = vpack.c.bf16 %v5512, %v5511
    %v5612 = vpack.c.bf16 %v5514, %v5513
    %v5613 = vpack.c.bf16 %v5528, %v5527
    %v5614 = vpack.c.bf16 %v5530, %v5529
    %v5615 = vpack.c.bf16 %v5544, %v5543
    %v5616 = vpack.c.bf16 %v5546, %v5545
    %v5617 = vpack.c.bf16 %v5560, %v5559
    %v5618 = vpack.c.bf16 %v5562, %v5561
    %v5619 = vpack.c.bf16 %v5576, %v5575
    %v5620 = vpack.c.bf16 %v5578, %v5577
    %v5621 = vpack.c.bf16 %v5592, %v5591
    %v5622 = vpack.c.bf16 %v5594, %v5593
    %v5623 = vld [vmem:[%s5] sm:$0xf]
    %v5624 = vld [vmem:[%s5 + $0x4] sm:$0xf]
    %v5625 = vld [vmem:[%s5 + $0x8] sm:$0xf]
    %v5626 = vld [vmem:[%s5 + $0xc] sm:$0xf]
    %v5627 = vpack.c.bf16 %v5484, %v5483
    %v5628 = vpack.c.bf16 %v5486, %v5485
    %v5629 = vpack.c.bf16 %v5500, %v5499
    %v5630 = vpack.c.bf16 %v5502, %v5501
    %v5631 = vpack.c.bf16 %v5516, %v5515
    %v5632 = vpack.c.bf16 %v5518, %v5517
    %v5633 = vpack.c.bf16 %v5532, %v5531
    %v5634 = vpack.c.bf16 %v5534, %v5533
    %v5635 = vpack.c.bf16 %v5548, %v5547
    %v5636 = vpack.c.bf16 %v5550, %v5549
    %v5637 = vpack.c.bf16 %v5564, %v5563
    %v5638 = vpack.c.bf16 %v5566, %v5565
    %v5639 = vpack.c.bf16 %v5580, %v5579
    %v5640 = vpack.c.bf16 %v5582, %v5581
    %v5641 = vpack.c.bf16 %v5596, %v5595
    %v5642 = vpack.c.bf16 %v5598, %v5597
    %v5643 = vld [vmem:[%s5 + $0x10] sm:$0xf]
    %v5644 = vld [vmem:[%s5 + $0x14] sm:$0xf]
    %v5645 = vld [vmem:[%s5 + $0x18] sm:$0xf]
    %v5646 = vld [vmem:[%s5 + $0x1c] sm:$0xf]
    %v5651 = vunpack.c.l.b16 %v5643
    %v5652 = vunpack.c.l.b16 %v5644
    %v5653 = vunpack.c.l.b16 %v5645
    %v5654 = vunpack.c.l.b16 %v5646
    %v5655 = vpack.c.b16 %v5652, %v5651
    %v5656 = vpack.c.b16 %v5654, %v5653
    %v5660 = vsel %vm2326, %v5627, 0
    %v5663 = vsel %vm2326, %v5628, 0
    %v5666 = vsel %vm2326, %v5629, 0
    %v5669 = vsel %vm2326, %v5630, 0
    %v5672 = vsel %vm2326, %v5631, 0
    %v5675 = vsel %vm2326, %v5632, 0
    %v5678 = vsel %vm2326, %v5633, 0
    %v5681 = vsel %vm2326, %v5634, 0
    %v5684 = vsel %vm2326, %v5635, 0
    %v5687 = vsel %vm2326, %v5636, 0
    %v5690 = vsel %vm2326, %v5637, 0
    %v5693 = vsel %vm2326, %v5638, 0
    %v5696 = vsel %vm2326, %v5639, 0
    %v5699 = vsel %vm2326, %v5640, 0
    %v5702 = vsel %vm2326, %v5641, 0
    %v5705 = vsel %vm2326, %v5642, 0
    %5707 = vmatprep.subr.bf16.mxu0 0
    %5708 = vmatpush1.bf16.msra.mxu0 %v5655
    %5709 = vmatprep.subr.bf16.mxu0 0
    %5710 = vmatpush1.bf16.msra.mxu0 %v5656
    %5711 = vmatprep.subr.bf16.mxu0 0
    %5712 = vmatpush1.bf16.msra.mxu0 0
    %5713 = vmatprep.subr.bf16.mxu0 0
    %5714 = vmatpush1.bf16.msra.mxu0 0
    %5715 = vmatprep.subr.bf16.mxu0 0
    %5716 = vmatpush1.bf16.msra.mxu0 0
    %5717 = vmatprep.subr.bf16.mxu0 0
    %5718 = vmatpush1.bf16.msra.mxu0 0
    %5719 = vmatprep.subr.bf16.mxu0 0
    %5720 = vmatpush1.bf16.msra.mxu0 0
    %5721 = vmatprep.subr.bf16.mxu0 0
    %5722 = vmatpush1.bf16.msra.mxu0 0
    %5723 = vmatprep.subr.bf16.mxu0 0
    %5724 = vmatpush1.bf16.msra.mxu0 0
    %5725 = vmatprep.subr.bf16.mxu0 0
    %5726 = vmatpush1.bf16.msra.mxu0 0
    %5727 = vmatprep.subr.bf16.mxu0 0
    %5728 = vmatpush1.bf16.msra.mxu0 0
    %5729 = vmatprep.subr.bf16.mxu0 0
    %5730 = vmatpush1.bf16.msra.mxu0 0
    %5731 = vmatprep.subr.bf16.mxu0 0
    %5732 = vmatpush1.bf16.msra.mxu0 0
    %5733 = vmatprep.subr.bf16.mxu0 0
    %5734 = vmatpush1.bf16.msra.mxu0 0
    %5735 = vmatprep.subr.bf16.mxu0 0
    %5736 = vmatpush1.bf16.msra.mxu0 0
    %5737 = vmatprep.subr.bf16.mxu0 0
    %5738 = vmatpush1.bf16.msra.mxu0 0
    %5739 = vmatprep.mubr.bf16.mxu0 0
    %5740 = vmatmul.mubr.bf16.gmra.mrb[0].mxu0 %v5660
    %v5741 = vpop.f32.mrb[0].mxu0
    %v5742 = vadd.f32 0.0, %v5741
    %v5743 = vpop.f32.mrb[0].mxu0
    %v5744 = vpop.f32.mrb[0].mxu0
    %v5745 = vadd.f32 0.0, %v5744
    %v5746 = vpop.f32.mrb[0].mxu0
    %5747 = vmatprep.mubr.bf16.mxu0 0
    %5748 = vmatmul.mubr.bf16.gmra.mrb[0].mxu0 %v5663
    %v5749 = vpop.f32.mrb[0].mxu0
    %v5750 = vadd.f32 0.0, %v5749
    %v5751 = vpop.f32.mrb[0].mxu0
    %v5752 = vpop.f32.mrb[0].mxu0
    %v5753 = vadd.f32 0.0, %v5752
    %v5754 = vpop.f32.mrb[0].mxu0
    %5755 = vmatprep.mubr.bf16.mxu0 0
    %5756 = vmatmul.mubr.bf16.gmra.mrb[0].mxu0 %v5666
    %v5757 = vpop.f32.mrb[0].mxu0
    %v5758 = vadd.f32 0.0, %v5757
    %v5759 = vpop.f32.mrb[0].mxu0
    %v5760 = vpop.f32.mrb[0].mxu0
    %v5761 = vadd.f32 0.0, %v5760
    %v5762 = vpop.f32.mrb[0].mxu0
    %5763 = vmatprep.mubr.bf16.mxu0 0
    %5764 = vmatmul.mubr.bf16.gmra.mrb[0].mxu0 %v5669
    %v5765 = vpop.f32.mrb[0].mxu0
    %v5766 = vadd.f32 0.0, %v5765
    %v5767 = vpop.f32.mrb[0].mxu0
    %v5768 = vpop.f32.mrb[0].mxu0
    %v5769 = vadd.f32 0.0, %v5768
    %v5770 = vpop.f32.mrb[0].mxu0
    %5771 = vmatprep.mubr.bf16.mxu0 0
    %5772 = vmatmul.mubr.bf16.gmra.mrb[0].mxu0 %v5672
    %v5773 = vpop.f32.mrb[0].mxu0
    %v5774 = vadd.f32 0.0, %v5773
    %v5775 = vpop.f32.mrb[0].mxu0
    %v5776 = vpop.f32.mrb[0].mxu0
    %v5777 = vadd.f32 0.0, %v5776
    %v5778 = vpop.f32.mrb[0].mxu0
    %5779 = vmatprep.mubr.bf16.mxu0 0
    %5780 = vmatmul.mubr.bf16.gmra.mrb[0].mxu0 %v5675
    %v5781 = vpop.f32.mrb[0].mxu0
    %v5782 = vadd.f32 0.0, %v5781
    %v5783 = vpop.f32.mrb[0].mxu0
    %v5784 = vpop.f32.mrb[0].mxu0
    %v5785 = vadd.f32 0.0, %v5784
    %v5786 = vpop.f32.mrb[0].mxu0
    %5787 = vmatprep.mubr.bf16.mxu0 0
    %5788 = vmatmul.mubr.bf16.gmra.mrb[0].mxu0 %v5678
    %v5789 = vpop.f32.mrb[0].mxu0
    %v5790 = vadd.f32 0.0, %v5789
    %v5791 = vpop.f32.mrb[0].mxu0
    %v5792 = vpop.f32.mrb[0].mxu0
    %v5793 = vadd.f32 0.0, %v5792
    %v5794 = vpop.f32.mrb[0].mxu0
    %5795 = vmatprep.mubr.bf16.mxu0 0
    %5796 = vmatmul.mubr.bf16.gmra.mrb[0].mxu0 %v5681
    %v5797 = vpop.f32.mrb[0].mxu0
    %v5798 = vadd.f32 0.0, %v5797
    %v5799 = vpop.f32.mrb[0].mxu0
    %v5800 = vpop.f32.mrb[0].mxu0
    %v5801 = vadd.f32 0.0, %v5800
    %v5802 = vpop.f32.mrb[0].mxu0
    %5803 = vmatprep.mubr.bf16.mxu0 0
    %5804 = vmatmul.mubr.bf16.gmra.mrb[0].mxu0 %v5684
    %v5805 = vpop.f32.mrb[0].mxu0
    %v5806 = vadd.f32 0.0, %v5805
    %v5807 = vpop.f32.mrb[0].mxu0
    %v5808 = vpop.f32.mrb[0].mxu0
    %v5809 = vadd.f32 0.0, %v5808
    %v5810 = vpop.f32.mrb[0].mxu0
    %5811 = vmatprep.mubr.bf16.mxu0 0
    %5812 = vmatmul.mubr.bf16.gmra.mrb[0].mxu0 %v5687
    %v5813 = vpop.f32.mrb[0].mxu0
    %v5814 = vadd.f32 0.0, %v5813
    %v5815 = vpop.f32.mrb[0].mxu0
    %v5816 = vpop.f32.mrb[0].mxu0
    %v5817 = vadd.f32 0.0, %v5816
    %v5818 = vpop.f32.mrb[0].mxu0
    %5819 = vmatprep.mubr.bf16.mxu0 0
    %5820 = vmatmul.mubr.bf16.gmra.mrb[0].mxu0 %v5690
    %v5821 = vpop.f32.mrb[0].mxu0
    %v5822 = vadd.f32 0.0, %v5821
    %v5823 = vpop.f32.mrb[0].mxu0
    %v5824 = vpop.f32.mrb[0].mxu0
    %v5825 = vadd.f32 0.0, %v5824
    %v5826 = vpop.f32.mrb[0].mxu0
    %5827 = vmatprep.mubr.bf16.mxu0 0
    %5828 = vmatmul.mubr.bf16.gmra.mrb[0].mxu0 %v5693
    %v5829 = vpop.f32.mrb[0].mxu0
    %v5830 = vadd.f32 0.0, %v5829
    %v5831 = vpop.f32.mrb[0].mxu0
    %v5832 = vpop.f32.mrb[0].mxu0
    %v5833 = vadd.f32 0.0, %v5832
    %v5834 = vpop.f32.mrb[0].mxu0
    %5835 = vmatprep.mubr.bf16.mxu0 0
    %5836 = vmatmul.mubr.bf16.gmra.mrb[0].mxu0 %v5696
    %v5837 = vpop.f32.mrb[0].mxu0
    %v5838 = vadd.f32 0.0, %v5837
    %v5839 = vpop.f32.mrb[0].mxu0
    %v5840 = vpop.f32.mrb[0].mxu0
    %v5841 = vadd.f32 0.0, %v5840
    %v5842 = vpop.f32.mrb[0].mxu0
    %5843 = vmatprep.mubr.bf16.mxu0 0
    %5844 = vmatmul.mubr.bf16.gmra.mrb[0].mxu0 %v5699
    %v5845 = vpop.f32.mrb[0].mxu0
    %v5846 = vadd.f32 0.0, %v5845
    %v5847 = vpop.f32.mrb[0].mxu0
    %v5848 = vpop.f32.mrb[0].mxu0
    %v5849 = vadd.f32 0.0, %v5848
    %v5850 = vpop.f32.mrb[0].mxu0
    %5851 = vmatprep.mubr.bf16.mxu0 0
    %5852 = vmatmul.mubr.bf16.gmra.mrb[0].mxu0 %v5702
    %v5853 = vpop.f32.mrb[0].mxu0
    %v5854 = vadd.f32 0.0, %v5853
    %v5855 = vpop.f32.mrb[0].mxu0
    %v5856 = vpop.f32.mrb[0].mxu0
    %v5857 = vadd.f32 0.0, %v5856
    %v5858 = vpop.f32.mrb[0].mxu0
    %5859 = vmatprep.mubr.bf16.mxu0 0
    %5860 = vmatmul.mubr.bf16.gmra.mrb[0].mxu0 %v5705
    %v5861 = vpop.f32.mrb[0].mxu0
    %v5862 = vadd.f32 0.0, %v5861
    %v5863 = vpop.f32.mrb[0].mxu0
    %v5864 = vpop.f32.mrb[0].mxu0
    %v5865 = vadd.f32 0.0, %v5864
    %v5866 = vpop.f32.mrb[0].mxu0
    %5867 = vdwg.mxu0
    %v5872 = vunpack.c.l.b16 %v5623
    %v5873 = vunpack.c.l.b16 %v5624
    %v5874 = vunpack.c.l.b16 %v5625
    %v5875 = vunpack.c.l.b16 %v5626
    %v5876 = vpack.c.b16 %v5873, %v5872
    %v5877 = vpack.c.b16 %v5875, %v5874
    %v5881 = vsel %vm2326, %v5607, 0
    %v5884 = vsel %vm2326, %v5608, 0
    %v5887 = vsel %vm2326, %v5609, 0
    %v5890 = vsel %vm2326, %v5610, 0
    %v5893 = vsel %vm2326, %v5611, 0
    %v5896 = vsel %vm2326, %v5612, 0
    %v5899 = vsel %vm2326, %v5613, 0
    %v5902 = vsel %vm2326, %v5614, 0
    %v5905 = vsel %vm2326, %v5615, 0
    %v5908 = vsel %vm2326, %v5616, 0
    %v5911 = vsel %vm2326, %v5617, 0
    %v5914 = vsel %vm2326, %v5618, 0
    %v5917 = vsel %vm2326, %v5619, 0
    %v5920 = vsel %vm2326, %v5620, 0
    %v5923 = vsel %vm2326, %v5621, 0
    %v5926 = vsel %vm2326, %v5622, 0
    %5928 = vmatprep.subr.bf16.mxu0 0
    %5929 = vmatpush1.bf16.msra.mxu0 %v5876
    %5930 = vmatprep.subr.bf16.mxu0 0
    %5931 = vmatpush1.bf16.msra.mxu0 %v5877
    %5932 = vmatprep.subr.bf16.mxu0 0
    %5933 = vmatpush1.bf16.msra.mxu0 0
    %5934 = vmatprep.subr.bf16.mxu0 0
    %5935 = vmatpush1.bf16.msra.mxu0 0
    %5936 = vmatprep.subr.bf16.mxu0 0
    %5937 = vmatpush1.bf16.msra.mxu0 0
    %5938 = vmatprep.subr.bf16.mxu0 0
    %5939 = vmatpush1.bf16.msra.mxu0 0
    %5940 = vmatprep.subr.bf16.mxu0 0
    %5941 = vmatpush1.bf16.msra.mxu0 0
    %5942 = vmatprep.subr.bf16.mxu0 0
    %5943 = vmatpush1.bf16.msra.mxu0 0
    %5944 = vmatprep.subr.bf16.mxu0 0
    %5945 = vmatpush1.bf16.msra.mxu0 0
    %5946 = vmatprep.subr.bf16.mxu0 0
    %5947 = vmatpush1.bf16.msra.mxu0 0
    %5948 = vmatprep.subr.bf16.mxu0 0
    %5949 = vmatpush1.bf16.msra.mxu0 0
    %5950 = vmatprep.subr.bf16.mxu0 0
    %5951 = vmatpush1.bf16.msra.mxu0 0
    %5952 = vmatprep.subr.bf16.mxu0 0
    %5953 = vmatpush1.bf16.msra.mxu0 0
    %5954 = vmatprep.subr.bf16.mxu0 0
    %5955 = vmatpush1.bf16.msra.mxu0 0
    %5956 = vmatprep.subr.bf16.mxu0 0
    %5957 = vmatpush1.bf16.msra.mxu0 0
    %5958 = vmatprep.subr.bf16.mxu0 0
    %5959 = vmatpush1.bf16.msra.mxu0 0
    %5960 = vmatprep.mubr.bf16.mxu0 0
    %5961 = vmatmul.mubr.bf16.gmra.mrb[0].mxu0 %v5881
    %v5962 = vpop.f32.mrb[0].mxu0
    %v5963 = vadd.f32 %v5742, %v5962
    %v5964 = vpop.f32.mrb[0].mxu0
    %v5965 = vpop.f32.mrb[0].mxu0
    %v5966 = vadd.f32 %v5745, %v5965
    %v5967 = vpop.f32.mrb[0].mxu0
    %5968 = vmatprep.mubr.bf16.mxu0 0
    %5969 = vmatmul.mubr.bf16.gmra.mrb[0].mxu0 %v5884
    %v5970 = vpop.f32.mrb[0].mxu0
    %v5971 = vadd.f32 %v5750, %v5970
    %v5972 = vpop.f32.mrb[0].mxu0
    %v5973 = vpop.f32.mrb[0].mxu0
    %v5974 = vadd.f32 %v5753, %v5973
    %v5975 = vpop.f32.mrb[0].mxu0
    %5976 = vmatprep.mubr.bf16.mxu0 0
    %5977 = vmatmul.mubr.bf16.gmra.mrb[0].mxu0 %v5887
    %v5978 = vpop.f32.mrb[0].mxu0
    %v5979 = vadd.f32 %v5758, %v5978
    %v5980 = vpop.f32.mrb[0].mxu0
    %v5981 = vpop.f32.mrb[0].mxu0
    %v5982 = vadd.f32 %v5761, %v5981
    %v5983 = vpop.f32.mrb[0].mxu0
    %5984 = vmatprep.mubr.bf16.mxu0 0
    %5985 = vmatmul.mubr.bf16.gmra.mrb[0].mxu0 %v5890
    %v5986 = vpop.f32.mrb[0].mxu0
    %v5987 = vadd.f32 %v5766, %v5986
    %v5988 = vpop.f32.mrb[0].mxu0
    %v5989 = vpop.f32.mrb[0].mxu0
    %v5990 = vadd.f32 %v5769, %v5989
    %v5991 = vpop.f32.mrb[0].mxu0
    %5992 = vmatprep.mubr.bf16.mxu0 0
    %5993 = vmatmul.mubr.bf16.gmra.mrb[0].mxu0 %v5893
    %v5994 = vpop.f32.mrb[0].mxu0
    %v5995 = vadd.f32 %v5774, %v5994
    %v5996 = vpop.f32.mrb[0].mxu0
    %v5997 = vpop.f32.mrb[0].mxu0
    %v5998 = vadd.f32 %v5777, %v5997
    %v5999 = vpop.f32.mrb[0].mxu0
    %6000 = vmatprep.mubr.bf16.mxu0 0
    %6001 = vmatmul.mubr.bf16.gmra.mrb[0].mxu0 %v5896
    %v6002 = vpop.f32.mrb[0].mxu0
    %v6003 = vadd.f32 %v5782, %v6002
    %v6004 = vpop.f32.mrb[0].mxu0
    %v6005 = vpop.f32.mrb[0].mxu0
    %v6006 = vadd.f32 %v5785, %v6005
    %v6007 = vpop.f32.mrb[0].mxu0
    %6008 = vmatprep.mubr.bf16.mxu0 0
    %6009 = vmatmul.mubr.bf16.gmra.mrb[0].mxu0 %v5899
    %v6010 = vpop.f32.mrb[0].mxu0
    %v6011 = vadd.f32 %v5790, %v6010
    %v6012 = vpop.f32.mrb[0].mxu0
    %v6013 = vpop.f32.mrb[0].mxu0
    %v6014 = vadd.f32 %v5793, %v6013
    %v6015 = vpop.f32.mrb[0].mxu0
    %6016 = vmatprep.mubr.bf16.mxu0 0
    %6017 = vmatmul.mubr.bf16.gmra.mrb[0].mxu0 %v5902
    %v6018 = vpop.f32.mrb[0].mxu0
    %v6019 = vadd.f32 %v5798, %v6018
    %v6020 = vpop.f32.mrb[0].mxu0
    %v6021 = vpop.f32.mrb[0].mxu0
    %v6022 = vadd.f32 %v5801, %v6021
    %v6023 = vpop.f32.mrb[0].mxu0
    %6024 = vmatprep.mubr.bf16.mxu0 0
    %6025 = vmatmul.mubr.bf16.gmra.mrb[0].mxu0 %v5905
    %v6026 = vpop.f32.mrb[0].mxu0
    %v6027 = vadd.f32 %v5806, %v6026
    %v6028 = vpop.f32.mrb[0].mxu0
    %v6029 = vpop.f32.mrb[0].mxu0
    %v6030 = vadd.f32 %v5809, %v6029
    %v6031 = vpop.f32.mrb[0].mxu0
    %6032 = vmatprep.mubr.bf16.mxu0 0
    %6033 = vmatmul.mubr.bf16.gmra.mrb[0].mxu0 %v5908
    %v6034 = vpop.f32.mrb[0].mxu0
    %v6035 = vadd.f32 %v5814, %v6034
    %v6036 = vpop.f32.mrb[0].mxu0
    %v6037 = vpop.f32.mrb[0].mxu0
    %v6038 = vadd.f32 %v5817, %v6037
    %v6039 = vpop.f32.mrb[0].mxu0
    %6040 = vmatprep.mubr.bf16.mxu0 0
    %6041 = vmatmul.mubr.bf16.gmra.mrb[0].mxu0 %v5911
    %v6042 = vpop.f32.mrb[0].mxu0
    %v6043 = vadd.f32 %v5822, %v6042
    %v6044 = vpop.f32.mrb[0].mxu0
    %v6045 = vpop.f32.mrb[0].mxu0
    %v6046 = vadd.f32 %v5825, %v6045
    %v6047 = vpop.f32.mrb[0].mxu0
    %6048 = vmatprep.mubr.bf16.mxu0 0
    %6049 = vmatmul.mubr.bf16.gmra.mrb[0].mxu0 %v5914
    %v6050 = vpop.f32.mrb[0].mxu0
    %v6051 = vadd.f32 %v5830, %v6050
    %v6052 = vpop.f32.mrb[0].mxu0
    %v6053 = vpop.f32.mrb[0].mxu0
    %v6054 = vadd.f32 %v5833, %v6053
    %v6055 = vpop.f32.mrb[0].mxu0
    %6056 = vmatprep.mubr.bf16.mxu0 0
    %6057 = vmatmul.mubr.bf16.gmra.mrb[0].mxu0 %v5917
    %v6058 = vpop.f32.mrb[0].mxu0
    %v6059 = vadd.f32 %v5838, %v6058
    %v6060 = vpop.f32.mrb[0].mxu0
    %v6061 = vpop.f32.mrb[0].mxu0
    %v6062 = vadd.f32 %v5841, %v6061
    %v6063 = vpop.f32.mrb[0].mxu0
    %6064 = vmatprep.mubr.bf16.mxu0 0
    %6065 = vmatmul.mubr.bf16.gmra.mrb[0].mxu0 %v5920
    %v6066 = vpop.f32.mrb[0].mxu0
    %v6067 = vadd.f32 %v5846, %v6066
    %v6068 = vpop.f32.mrb[0].mxu0
    %v6069 = vpop.f32.mrb[0].mxu0
    %v6070 = vadd.f32 %v5849, %v6069
    %v6071 = vpop.f32.mrb[0].mxu0
    %6072 = vmatprep.mubr.bf16.mxu0 0
    %6073 = vmatmul.mubr.bf16.gmra.mrb[0].mxu0 %v5923
    %v6074 = vpop.f32.mrb[0].mxu0
    %v6075 = vadd.f32 %v5854, %v6074
    %v6076 = vpop.f32.mrb[0].mxu0
    %v6077 = vpop.f32.mrb[0].mxu0
    %v6078 = vadd.f32 %v5857, %v6077
    %v6079 = vpop.f32.mrb[0].mxu0
    %6080 = vmatprep.mubr.bf16.mxu0 0
    %6081 = vmatmul.mubr.bf16.gmra.mrb[0].mxu0 %v5926
    %v6082 = vpop.f32.mrb[0].mxu0
    %v6083 = vadd.f32 %v5862, %v6082
    %v6084 = vpop.f32.mrb[0].mxu0
    %v6085 = vpop.f32.mrb[0].mxu0
    %v6086 = vadd.f32 %v5865, %v6085
    %v6087 = vpop.f32.mrb[0].mxu0
    %6088 = vdwg.mxu0
    %v6089 = vpack.c.bf16 %v5488, %v5487
    %v6090 = vpack.c.bf16 %v5490, %v5489
    %v6091 = vpack.c.bf16 %v5504, %v5503
    %v6092 = vpack.c.bf16 %v5506, %v5505
    %v6093 = vpack.c.bf16 %v5520, %v5519
    %v6094 = vpack.c.bf16 %v5522, %v5521
    %v6095 = vpack.c.bf16 %v5536, %v5535
    %v6096 = vpack.c.bf16 %v5538, %v5537
    %v6097 = vpack.c.bf16 %v5552, %v5551
    %v6098 = vpack.c.bf16 %v5554, %v5553
    %v6099 = vpack.c.bf16 %v5568, %v5567
    %v6100 = vpack.c.bf16 %v5570, %v5569
    %v6101 = vpack.c.bf16 %v5584, %v5583
    %v6102 = vpack.c.bf16 %v5586, %v5585
    %v6103 = vpack.c.bf16 %v5600, %v5599
    %v6104 = vpack.c.bf16 %v5602, %v5601
    %v6105 = vld [vmem:[%s5 + $0x20] sm:$0xf]
    %v6106 = vld [vmem:[%s5 + $0x24] sm:$0xf]
    %v6107 = vld [vmem:[%s5 + $0x28] sm:$0xf]
    %v6108 = vld [vmem:[%s5 + $0x2c] sm:$0xf]
    %v6113 = vunpack.c.l.b16 %v6105
    %v6114 = vunpack.c.l.b16 %v6106
    %v6115 = vunpack.c.l.b16 %v6107
    %v6116 = vunpack.c.l.b16 %v6108
    %v6117 = vpack.c.b16 %v6114, %v6113
    %v6118 = vpack.c.b16 %v6116, %v6115
    %v6122 = vsel %vm2326, %v6089, 0
    %v6125 = vsel %vm2326, %v6090, 0
    %v6128 = vsel %vm2326, %v6091, 0
    %v6131 = vsel %vm2326, %v6092, 0
    %v6134 = vsel %vm2326, %v6093, 0
    %v6137 = vsel %vm2326, %v6094, 0
    %v6140 = vsel %vm2326, %v6095, 0
    %v6143 = vsel %vm2326, %v6096, 0
    %v6146 = vsel %vm2326, %v6097, 0
    %v6149 = vsel %vm2326, %v6098, 0
    %v6152 = vsel %vm2326, %v6099, 0
    %v6155 = vsel %vm2326, %v6100, 0
    %v6158 = vsel %vm2326, %v6101, 0
    %v6161 = vsel %vm2326, %v6102, 0
    %v6164 = vsel %vm2326, %v6103, 0
    %v6167 = vsel %vm2326, %v6104, 0
    %6169 = vmatprep.subr.bf16.mxu0 0
    %6170 = vmatpush1.bf16.msra.mxu0 %v6117
    %6171 = vmatprep.subr.bf16.mxu0 0
    %6172 = vmatpush1.bf16.msra.mxu0 %v6118
    %6173 = vmatprep.subr.bf16.mxu0 0
    %6174 = vmatpush1.bf16.msra.mxu0 0
    %6175 = vmatprep.subr.bf16.mxu0 0
    %6176 = vmatpush1.bf16.msra.mxu0 0
    %6177 = vmatprep.subr.bf16.mxu0 0
    %6178 = vmatpush1.bf16.msra.mxu0 0
    %6179 = vmatprep.subr.bf16.mxu0 0
    %6180 = vmatpush1.bf16.msra.mxu0 0
    %6181 = vmatprep.subr.bf16.mxu0 0
    %6182 = vmatpush1.bf16.msra.mxu0 0
    %6183 = vmatprep.subr.bf16.mxu0 0
    %6184 = vmatpush1.bf16.msra.mxu0 0
    %6185 = vmatprep.subr.bf16.mxu0 0
    %6186 = vmatpush1.bf16.msra.mxu0 0
    %6187 = vmatprep.subr.bf16.mxu0 0
    %6188 = vmatpush1.bf16.msra.mxu0 0
    %6189 = vmatprep.subr.bf16.mxu0 0
    %6190 = vmatpush1.bf16.msra.mxu0 0
    %6191 = vmatprep.subr.bf16.mxu0 0
    %6192 = vmatpush1.bf16.msra.mxu0 0
    %6193 = vmatprep.subr.bf16.mxu0 0
    %6194 = vmatpush1.bf16.msra.mxu0 0
    %6195 = vmatprep.subr.bf16.mxu0 0
    %6196 = vmatpush1.bf16.msra.mxu0 0
    %6197 = vmatprep.subr.bf16.mxu0 0
    %6198 = vmatpush1.bf16.msra.mxu0 0
    %6199 = vmatprep.subr.bf16.mxu0 0
    %6200 = vmatpush1.bf16.msra.mxu0 0
    %6201 = vmatprep.mubr.bf16.mxu0 0
    %6202 = vmatmul.mubr.bf16.gmra.mrb[0].mxu0 %v6122
    %v6203 = vpop.f32.mrb[0].mxu0
    %v6204 = vadd.f32 0.0, %v6203
    %v6205 = vpop.f32.mrb[0].mxu0
    %v6206 = vpop.f32.mrb[0].mxu0
    %v6207 = vadd.f32 0.0, %v6206
    %v6208 = vpop.f32.mrb[0].mxu0
    %6209 = vmatprep.mubr.bf16.mxu0 0
    %6210 = vmatmul.mubr.bf16.gmra.mrb[0].mxu0 %v6125
    %v6211 = vpop.f32.mrb[0].mxu0
    %v6212 = vadd.f32 0.0, %v6211
    %v6213 = vpop.f32.mrb[0].mxu0
    %v6214 = vpop.f32.mrb[0].mxu0
    %v6215 = vadd.f32 0.0, %v6214
    %v6216 = vpop.f32.mrb[0].mxu0
    %6217 = vmatprep.mubr.bf16.mxu0 0
    %6218 = vmatmul.mubr.bf16.gmra.mrb[0].mxu0 %v6128
    %v6219 = vpop.f32.mrb[0].mxu0
    %v6220 = vadd.f32 0.0, %v6219
    %v6221 = vpop.f32.mrb[0].mxu0
    %v6222 = vpop.f32.mrb[0].mxu0
    %v6223 = vadd.f32 0.0, %v6222
    %v6224 = vpop.f32.mrb[0].mxu0
    %6225 = vmatprep.mubr.bf16.mxu0 0
    %6226 = vmatmul.mubr.bf16.gmra.mrb[0].mxu0 %v6131
    %v6227 = vpop.f32.mrb[0].mxu0
    %v6228 = vadd.f32 0.0, %v6227
    %v6229 = vpop.f32.mrb[0].mxu0
    %v6230 = vpop.f32.mrb[0].mxu0
    %v6231 = vadd.f32 0.0, %v6230
    %v6232 = vpop.f32.mrb[0].mxu0
    %6233 = vmatprep.mubr.bf16.mxu0 0
    %6234 = vmatmul.mubr.bf16.gmra.mrb[0].mxu0 %v6134
    %v6235 = vpop.f32.mrb[0].mxu0
    %v6236 = vadd.f32 0.0, %v6235
    %v6237 = vpop.f32.mrb[0].mxu0
    %v6238 = vpop.f32.mrb[0].mxu0
    %v6239 = vadd.f32 0.0, %v6238
    %v6240 = vpop.f32.mrb[0].mxu0
    %6241 = vmatprep.mubr.bf16.mxu0 0
    %6242 = vmatmul.mubr.bf16.gmra.mrb[0].mxu0 %v6137
    %v6243 = vpop.f32.mrb[0].mxu0
    %v6244 = vadd.f32 0.0, %v6243
    %v6245 = vpop.f32.mrb[0].mxu0
    %v6246 = vpop.f32.mrb[0].mxu0
    %v6247 = vadd.f32 0.0, %v6246
    %v6248 = vpop.f32.mrb[0].mxu0
    %6249 = vmatprep.mubr.bf16.mxu0 0
    %6250 = vmatmul.mubr.bf16.gmra.mrb[0].mxu0 %v6140
    %v6251 = vpop.f32.mrb[0].mxu0
    %v6252 = vadd.f32 0.0, %v6251
    %v6253 = vpop.f32.mrb[0].mxu0
    %v6254 = vpop.f32.mrb[0].mxu0
    %v6255 = vadd.f32 0.0, %v6254
    %v6256 = vpop.f32.mrb[0].mxu0
    %6257 = vmatprep.mubr.bf16.mxu0 0
    %6258 = vmatmul.mubr.bf16.gmra.mrb[0].mxu0 %v6143
    %v6259 = vpop.f32.mrb[0].mxu0
    %v6260 = vadd.f32 0.0, %v6259
    %v6261 = vpop.f32.mrb[0].mxu0
    %v6262 = vpop.f32.mrb[0].mxu0
    %v6263 = vadd.f32 0.0, %v6262
    %v6264 = vpop.f32.mrb[0].mxu0
    %6265 = vmatprep.mubr.bf16.mxu0 0
    %6266 = vmatmul.mubr.bf16.gmra.mrb[0].mxu0 %v6146
    %v6267 = vpop.f32.mrb[0].mxu0
    %v6268 = vadd.f32 0.0, %v6267
    %v6269 = vpop.f32.mrb[0].mxu0
    %v6270 = vpop.f32.mrb[0].mxu0
    %v6271 = vadd.f32 0.0, %v6270
    %v6272 = vpop.f32.mrb[0].mxu0
    %6273 = vmatprep.mubr.bf16.mxu0 0
    %6274 = vmatmul.mubr.bf16.gmra.mrb[0].mxu0 %v6149
    %v6275 = vpop.f32.mrb[0].mxu0
    %v6276 = vadd.f32 0.0, %v6275
    %v6277 = vpop.f32.mrb[0].mxu0
    %v6278 = vpop.f32.mrb[0].mxu0
    %v6279 = vadd.f32 0.0, %v6278
    %v6280 = vpop.f32.mrb[0].mxu0
    %6281 = vmatprep.mubr.bf16.mxu0 0
    %6282 = vmatmul.mubr.bf16.gmra.mrb[0].mxu0 %v6152
    %v6283 = vpop.f32.mrb[0].mxu0
    %v6284 = vadd.f32 0.0, %v6283
    %v6285 = vpop.f32.mrb[0].mxu0
    %v6286 = vpop.f32.mrb[0].mxu0
    %v6287 = vadd.f32 0.0, %v6286
    %v6288 = vpop.f32.mrb[0].mxu0
    %6289 = vmatprep.mubr.bf16.mxu0 0
    %6290 = vmatmul.mubr.bf16.gmra.mrb[0].mxu0 %v6155
    %v6291 = vpop.f32.mrb[0].mxu0
    %v6292 = vadd.f32 0.0, %v6291
    %v6293 = vpop.f32.mrb[0].mxu0
    %v6294 = vpop.f32.mrb[0].mxu0
    %v6295 = vadd.f32 0.0, %v6294
    %v6296 = vpop.f32.mrb[0].mxu0
    %6297 = vmatprep.mubr.bf16.mxu0 0
    %6298 = vmatmul.mubr.bf16.gmra.mrb[0].mxu0 %v6158
    %v6299 = vpop.f32.mrb[0].mxu0
    %v6300 = vadd.f32 0.0, %v6299
    %v6301 = vpop.f32.mrb[0].mxu0
    %v6302 = vpop.f32.mrb[0].mxu0
    %v6303 = vadd.f32 0.0, %v6302
    %v6304 = vpop.f32.mrb[0].mxu0
    %6305 = vmatprep.mubr.bf16.mxu0 0
    %6306 = vmatmul.mubr.bf16.gmra.mrb[0].mxu0 %v6161
    %v6307 = vpop.f32.mrb[0].mxu0
    %v6308 = vadd.f32 0.0, %v6307
    %v6309 = vpop.f32.mrb[0].mxu0
    %v6310 = vpop.f32.mrb[0].mxu0
    %v6311 = vadd.f32 0.0, %v6310
    %v6312 = vpop.f32.mrb[0].mxu0
    %6313 = vmatprep.mubr.bf16.mxu0 0
    %6314 = vmatmul.mubr.bf16.gmra.mrb[0].mxu0 %v6164
    %v6315 = vpop.f32.mrb[0].mxu0
    %v6316 = vadd.f32 0.0, %v6315
    %v6317 = vpop.f32.mrb[0].mxu0
    %v6318 = vpop.f32.mrb[0].mxu0
    %v6319 = vadd.f32 0.0, %v6318
    %v6320 = vpop.f32.mrb[0].mxu0
    %6321 = vmatprep.mubr.bf16.mxu0 0
    %6322 = vmatmul.mubr.bf16.gmra.mrb[0].mxu0 %v6167
    %v6323 = vpop.f32.mrb[0].mxu0
    %v6324 = vadd.f32 0.0, %v6323
    %v6325 = vpop.f32.mrb[0].mxu0
    %v6326 = vpop.f32.mrb[0].mxu0
    %v6327 = vadd.f32 0.0, %v6326
    %v6328 = vpop.f32.mrb[0].mxu0
    %6329 = vdwg.mxu0
    %v6330 = vadd.f32 %v5963, %v6204
    %v6331 = vadd.f32 %v5966, %v6207
    %v6332 = vadd.f32 %v5971, %v6212
    %v6333 = vadd.f32 %v5974, %v6215
    %v6334 = vadd.f32 %v5979, %v6220
    %v6335 = vadd.f32 %v5982, %v6223
    %v6336 = vadd.f32 %v5987, %v6228
    %v6337 = vadd.f32 %v5990, %v6231
    %v6338 = vadd.f32 %v5995, %v6236
    %v6339 = vadd.f32 %v5998, %v6239
    %v6340 = vadd.f32 %v6003, %v6244
    %v6341 = vadd.f32 %v6006, %v6247
    %v6342 = vadd.f32 %v6011, %v6252
    %v6343 = vadd.f32 %v6014, %v6255
    %v6344 = vadd.f32 %v6019, %v6260
    %v6345 = vadd.f32 %v6022, %v6263
    %v6346 = vadd.f32 %v6027, %v6268
    %v6347 = vadd.f32 %v6030, %v6271
    %v6348 = vadd.f32 %v6035, %v6276
    %v6349 = vadd.f32 %v6038, %v6279
    %v6350 = vadd.f32 %v6043, %v6284
    %v6351 = vadd.f32 %v6046, %v6287
    %v6352 = vadd.f32 %v6051, %v6292
    %v6353 = vadd.f32 %v6054, %v6295
    %v6354 = vadd.f32 %v6059, %v6300
    %v6355 = vadd.f32 %v6062, %v6303
    %v6356 = vadd.f32 %v6067, %v6308
    %v6357 = vadd.f32 %v6070, %v6311
    %v6358 = vadd.f32 %v6075, %v6316
    %v6359 = vadd.f32 %v6078, %v6319
    %v6360 = vadd.f32 %v6083, %v6324
    %v6361 = vadd.f32 %v6086, %v6327
    %v6362 = vpack.c.bf16 %v5492, %v5491
    %v6363 = vpack.c.bf16 %v5494, %v5493
    %v6364 = vpack.c.bf16 %v5508, %v5507
    %v6365 = vpack.c.bf16 %v5510, %v5509
    %v6366 = vpack.c.bf16 %v5524, %v5523
    %v6367 = vpack.c.bf16 %v5526, %v5525
    %v6368 = vpack.c.bf16 %v5540, %v5539
    %v6369 = vpack.c.bf16 %v5542, %v5541
    %v6370 = vpack.c.bf16 %v5556, %v5555
    %v6371 = vpack.c.bf16 %v5558, %v5557
    %v6372 = vpack.c.bf16 %v5572, %v5571
    %v6373 = vpack.c.bf16 %v5574, %v5573
    %v6374 = vpack.c.bf16 %v5588, %v5587
    %v6375 = vpack.c.bf16 %v5590, %v5589
    %v6376 = vpack.c.bf16 %v5604, %v5603
    %v6377 = vpack.c.bf16 %v5606, %v5605
    %v6378 = vld [vmem:[%s5 + $0x30] sm:$0xf]
    %v6379 = vld [vmem:[%s5 + $0x34] sm:$0xf]
    %v6380 = vld [vmem:[%s5 + $0x38] sm:$0xf]
    %v6381 = vld [vmem:[%s5 + $0x3c] sm:$0xf]
    %v6386 = vunpack.c.l.b16 %v6378
    %v6387 = vunpack.c.l.b16 %v6379
    %v6388 = vunpack.c.l.b16 %v6380
    %v6389 = vunpack.c.l.b16 %v6381
    %v6390 = vpack.c.b16 %v6387, %v6386
    %v6391 = vpack.c.b16 %v6389, %v6388
    %v6395 = vsel %vm2326, %v6362, 0
    %v6398 = vsel %vm2326, %v6363, 0
    %v6401 = vsel %vm2326, %v6364, 0
    %v6404 = vsel %vm2326, %v6365, 0
    %v6407 = vsel %vm2326, %v6366, 0
    %v6410 = vsel %vm2326, %v6367, 0
    %v6413 = vsel %vm2326, %v6368, 0
    %v6416 = vsel %vm2326, %v6369, 0
    %v6419 = vsel %vm2326, %v6370, 0
    %v6422 = vsel %vm2326, %v6371, 0
    %v6425 = vsel %vm2326, %v6372, 0
    %v6428 = vsel %vm2326, %v6373, 0
    %v6431 = vsel %vm2326, %v6374, 0
    %v6434 = vsel %vm2326, %v6375, 0
    %v6437 = vsel %vm2326, %v6376, 0
    %v6440 = vsel %vm2326, %v6377, 0
    %6442 = vmatprep.subr.bf16.mxu0 0
    %6443 = vmatpush1.bf16.msra.mxu0 %v6390
    %6444 = vmatprep.subr.bf16.mxu0 0
    %6445 = vmatpush1.bf16.msra.mxu0 %v6391
    %6446 = vmatprep.subr.bf16.mxu0 0
    %6447 = vmatpush1.bf16.msra.mxu0 0
    %6448 = vmatprep.subr.bf16.mxu0 0
    %6449 = vmatpush1.bf16.msra.mxu0 0
    %6450 = vmatprep.subr.bf16.mxu0 0
    %6451 = vmatpush1.bf16.msra.mxu0 0
    %6452 = vmatprep.subr.bf16.mxu0 0
    %6453 = vmatpush1.bf16.msra.mxu0 0
    %6454 = vmatprep.subr.bf16.mxu0 0
    %6455 = vmatpush1.bf16.msra.mxu0 0
    %6456 = vmatprep.subr.bf16.mxu0 0
    %6457 = vmatpush1.bf16.msra.mxu0 0
    %6458 = vmatprep.subr.bf16.mxu0 0
    %6459 = vmatpush1.bf16.msra.mxu0 0
    %6460 = vmatprep.subr.bf16.mxu0 0
    %6461 = vmatpush1.bf16.msra.mxu0 0
    %6462 = vmatprep.subr.bf16.mxu0 0
    %6463 = vmatpush1.bf16.msra.mxu0 0
    %6464 = vmatprep.subr.bf16.mxu0 0
    %6465 = vmatpush1.bf16.msra.mxu0 0
    %6466 = vmatprep.subr.bf16.mxu0 0
    %6467 = vmatpush1.bf16.msra.mxu0 0
    %6468 = vmatprep.subr.bf16.mxu0 0
    %6469 = vmatpush1.bf16.msra.mxu0 0
    %6470 = vmatprep.subr.bf16.mxu0 0
    %6471 = vmatpush1.bf16.msra.mxu0 0
    %6472 = vmatprep.subr.bf16.mxu0 0
    %6473 = vmatpush1.bf16.msra.mxu0 0
    %6474 = vmatprep.mubr.bf16.mxu0 0
    %6475 = vmatmul.mubr.bf16.gmra.mrb[0].mxu0 %v6395
    %v6476 = vpop.f32.mrb[0].mxu0
    %v6477 = vadd.f32 0.0, %v6476
    %v6478 = vpop.f32.mrb[0].mxu0
    %v6479 = vpop.f32.mrb[0].mxu0
    %v6480 = vadd.f32 0.0, %v6479
    %v6481 = vpop.f32.mrb[0].mxu0
    %6482 = vmatprep.mubr.bf16.mxu0 0
    %6483 = vmatmul.mubr.bf16.gmra.mrb[0].mxu0 %v6398
    %v6484 = vpop.f32.mrb[0].mxu0
    %v6485 = vadd.f32 0.0, %v6484
    %v6486 = vpop.f32.mrb[0].mxu0
    %v6487 = vpop.f32.mrb[0].mxu0
    %v6488 = vadd.f32 0.0, %v6487
    %v6489 = vpop.f32.mrb[0].mxu0
    %6490 = vmatprep.mubr.bf16.mxu0 0
    %6491 = vmatmul.mubr.bf16.gmra.mrb[0].mxu0 %v6401
    %v6492 = vpop.f32.mrb[0].mxu0
    %v6493 = vadd.f32 0.0, %v6492
    %v6494 = vpop.f32.mrb[0].mxu0
    %v6495 = vpop.f32.mrb[0].mxu0
    %v6496 = vadd.f32 0.0, %v6495
    %v6497 = vpop.f32.mrb[0].mxu0
    %6498 = vmatprep.mubr.bf16.mxu0 0
    %6499 = vmatmul.mubr.bf16.gmra.mrb[0].mxu0 %v6404
    %v6500 = vpop.f32.mrb[0].mxu0
    %v6501 = vadd.f32 0.0, %v6500
    %v6502 = vpop.f32.mrb[0].mxu0
    %v6503 = vpop.f32.mrb[0].mxu0
    %v6504 = vadd.f32 0.0, %v6503
    %v6505 = vpop.f32.mrb[0].mxu0
    %6506 = vmatprep.mubr.bf16.mxu0 0
    %6507 = vmatmul.mubr.bf16.gmra.mrb[0].mxu0 %v6407
    %v6508 = vpop.f32.mrb[0].mxu0
    %v6509 = vadd.f32 0.0, %v6508
    %v6510 = vpop.f32.mrb[0].mxu0
    %v6511 = vpop.f32.mrb[0].mxu0
    %v6512 = vadd.f32 0.0, %v6511
    %v6513 = vpop.f32.mrb[0].mxu0
    %6514 = vmatprep.mubr.bf16.mxu0 0
    %6515 = vmatmul.mubr.bf16.gmra.mrb[0].mxu0 %v6410
    %v6516 = vpop.f32.mrb[0].mxu0
    %v6517 = vadd.f32 0.0, %v6516
    %v6518 = vpop.f32.mrb[0].mxu0
    %v6519 = vpop.f32.mrb[0].mxu0
    %v6520 = vadd.f32 0.0, %v6519
    %v6521 = vpop.f32.mrb[0].mxu0
    %6522 = vmatprep.mubr.bf16.mxu0 0
    %6523 = vmatmul.mubr.bf16.gmra.mrb[0].mxu0 %v6413
    %v6524 = vpop.f32.mrb[0].mxu0
    %v6525 = vadd.f32 0.0, %v6524
    %v6526 = vpop.f32.mrb[0].mxu0
    %v6527 = vpop.f32.mrb[0].mxu0
    %v6528 = vadd.f32 0.0, %v6527
    %v6529 = vpop.f32.mrb[0].mxu0
    %6530 = vmatprep.mubr.bf16.mxu0 0
    %6531 = vmatmul.mubr.bf16.gmra.mrb[0].mxu0 %v6416
    %v6532 = vpop.f32.mrb[0].mxu0
    %v6533 = vadd.f32 0.0, %v6532
    %v6534 = vpop.f32.mrb[0].mxu0
    %v6535 = vpop.f32.mrb[0].mxu0
    %v6536 = vadd.f32 0.0, %v6535
    %v6537 = vpop.f32.mrb[0].mxu0
    %6538 = vmatprep.mubr.bf16.mxu0 0
    %6539 = vmatmul.mubr.bf16.gmra.mrb[0].mxu0 %v6419
    %v6540 = vpop.f32.mrb[0].mxu0
    %v6541 = vadd.f32 0.0, %v6540
    %v6542 = vpop.f32.mrb[0].mxu0
    %v6543 = vpop.f32.mrb[0].mxu0
    %v6544 = vadd.f32 0.0, %v6543
    %v6545 = vpop.f32.mrb[0].mxu0
    %6546 = vmatprep.mubr.bf16.mxu0 0
    %6547 = vmatmul.mubr.bf16.gmra.mrb[0].mxu0 %v6422
    %v6548 = vpop.f32.mrb[0].mxu0
    %v6549 = vadd.f32 0.0, %v6548
    %v6550 = vpop.f32.mrb[0].mxu0
    %v6551 = vpop.f32.mrb[0].mxu0
    %v6552 = vadd.f32 0.0, %v6551
    %v6553 = vpop.f32.mrb[0].mxu0
    %6554 = vmatprep.mubr.bf16.mxu0 0
    %6555 = vmatmul.mubr.bf16.gmra.mrb[0].mxu0 %v6425
    %v6556 = vpop.f32.mrb[0].mxu0
    %v6557 = vadd.f32 0.0, %v6556
    %v6558 = vpop.f32.mrb[0].mxu0
    %v6559 = vpop.f32.mrb[0].mxu0
    %v6560 = vadd.f32 0.0, %v6559
    %v6561 = vpop.f32.mrb[0].mxu0
    %6562 = vmatprep.mubr.bf16.mxu0 0
    %6563 = vmatmul.mubr.bf16.gmra.mrb[0].mxu0 %v6428
    %v6564 = vpop.f32.mrb[0].mxu0
    %v6565 = vadd.f32 0.0, %v6564
    %v6566 = vpop.f32.mrb[0].mxu0
    %v6567 = vpop.f32.mrb[0].mxu0
    %v6568 = vadd.f32 0.0, %v6567
    %v6569 = vpop.f32.mrb[0].mxu0
    %6570 = vmatprep.mubr.bf16.mxu0 0
    %6571 = vmatmul.mubr.bf16.gmra.mrb[0].mxu0 %v6431
    %v6572 = vpop.f32.mrb[0].mxu0
    %v6573 = vadd.f32 0.0, %v6572
    %v6574 = vpop.f32.mrb[0].mxu0
    %v6575 = vpop.f32.mrb[0].mxu0
    %v6576 = vadd.f32 0.0, %v6575
    %v6577 = vpop.f32.mrb[0].mxu0
    %6578 = vmatprep.mubr.bf16.mxu0 0
    %6579 = vmatmul.mubr.bf16.gmra.mrb[0].mxu0 %v6434
    %v6580 = vpop.f32.mrb[0].mxu0
    %v6581 = vadd.f32 0.0, %v6580
    %v6582 = vpop.f32.mrb[0].mxu0
    %v6583 = vpop.f32.mrb[0].mxu0
    %v6584 = vadd.f32 0.0, %v6583
    %v6585 = vpop.f32.mrb[0].mxu0
    %6586 = vmatprep.mubr.bf16.mxu0 0
    %6587 = vmatmul.mubr.bf16.gmra.mrb[0].mxu0 %v6437
    %v6588 = vpop.f32.mrb[0].mxu0
    %v6589 = vadd.f32 0.0, %v6588
    %v6590 = vpop.f32.mrb[0].mxu0
    %v6591 = vpop.f32.mrb[0].mxu0
    %v6592 = vadd.f32 0.0, %v6591
    %v6593 = vpop.f32.mrb[0].mxu0
    %6594 = vmatprep.mubr.bf16.mxu0 0
    %6595 = vmatmul.mubr.bf16.gmra.mrb[0].mxu0 %v6440
    %v6596 = vpop.f32.mrb[0].mxu0
    %v6597 = vadd.f32 0.0, %v6596
    %v6598 = vpop.f32.mrb[0].mxu0
    %v6599 = vpop.f32.mrb[0].mxu0
    %v6600 = vadd.f32 0.0, %v6599
    %v6601 = vpop.f32.mrb[0].mxu0
    %6602 = vdwg.mxu0
    %v6603 = vadd.f32 %v6330, %v6477
    %v6604 = vadd.f32 %v6331, %v6480
    %v6605 = vadd.f32 %v6332, %v6485
    %v6606 = vadd.f32 %v6333, %v6488
    %v6607 = vadd.f32 %v6334, %v6493
    %v6608 = vadd.f32 %v6335, %v6496
    %v6609 = vadd.f32 %v6336, %v6501
    %v6610 = vadd.f32 %v6337, %v6504
    %v6611 = vadd.f32 %v6338, %v6509
    %v6612 = vadd.f32 %v6339, %v6512
    %v6613 = vadd.f32 %v6340, %v6517
    %v6614 = vadd.f32 %v6341, %v6520
    %v6615 = vadd.f32 %v6342, %v6525
    %v6616 = vadd.f32 %v6343, %v6528
    %v6617 = vadd.f32 %v6344, %v6533
    %v6618 = vadd.f32 %v6345, %v6536
    %v6619 = vadd.f32 %v6346, %v6541
    %v6620 = vadd.f32 %v6347, %v6544
    %v6621 = vadd.f32 %v6348, %v6549
    %v6622 = vadd.f32 %v6349, %v6552
    %v6623 = vadd.f32 %v6350, %v6557
    %v6624 = vadd.f32 %v6351, %v6560
    %v6625 = vadd.f32 %v6352, %v6565
    %v6626 = vadd.f32 %v6353, %v6568
    %v6627 = vadd.f32 %v6354, %v6573
    %v6628 = vadd.f32 %v6355, %v6576
    %v6629 = vadd.f32 %v6356, %v6581
    %v6630 = vadd.f32 %v6357, %v6584
    %v6631 = vadd.f32 %v6358, %v6589
    %v6632 = vadd.f32 %v6359, %v6592
    %v6633 = vadd.f32 %v6360, %v6597
    %v6634 = vadd.f32 %v6361, %v6600
    %v6635 = vadd.f32 %v37, %v6603
    %v6636 = vadd.f32 %v38, %v6604
    %v6637 = vadd.f32 %v39, %v6605
    %v6638 = vadd.f32 %v40, %v6606
    %v6639 = vadd.f32 %v41, %v6607
    %v6640 = vadd.f32 %v42, %v6608
    %v6641 = vadd.f32 %v43, %v6609
    %v6642 = vadd.f32 %v44, %v6610
    %v6643 = vadd.f32 %v45, %v6611
    %v6644 = vadd.f32 %v46, %v6612
    %v6645 = vadd.f32 %v47, %v6613
    %v6646 = vadd.f32 %v48, %v6614
    %v6647 = vadd.f32 %v49, %v6615
    %v6648 = vadd.f32 %v50, %v6616
    %v6649 = vadd.f32 %v51, %v6617
    %v6650 = vadd.f32 %v52, %v6618
    %v6651 = vadd.f32 %v53, %v6619
    %v6652 = vadd.f32 %v54, %v6620
    %v6653 = vadd.f32 %v55, %v6621
    %v6654 = vadd.f32 %v56, %v6622
    %v6655 = vadd.f32 %v57, %v6623
    %v6656 = vadd.f32 %v58, %v6624
    %v6657 = vadd.f32 %v59, %v6625
    %v6658 = vadd.f32 %v60, %v6626
    %v6659 = vadd.f32 %v61, %v6627
    %v6660 = vadd.f32 %v62, %v6628
    %v6661 = vadd.f32 %v63, %v6629
    %v6662 = vadd.f32 %v64, %v6630
    %v6663 = vadd.f32 %v65, %v6631
    %v6664 = vadd.f32 %v66, %v6632
    %v6665 = vadd.f32 %v67, %v6633
    %v6666 = vadd.f32 %v68, %v6634
    %v6667 = vld [vmem:[%s6] sm:$0x1]
    %v6668 = vld [vmem:[%s7] sm:$0x1]
    %6669 = vadd.xlane.f32.xlu0 %v6635
    %v6670 = vpop.xlane.xlu0 %6669
    %6671 = vadd.xlane.f32.xlu0 %v6636
    %v6672 = vpop.xlane.xlu0 %6671
    %6673 = vadd.xlane.f32.xlu0 %v6637
    %v6674 = vpop.xlane.xlu0 %6673
    %6675 = vadd.xlane.f32.xlu0 %v6638
    %v6676 = vpop.xlane.xlu0 %6675
    %6677 = vadd.xlane.f32.xlu0 %v6639
    %v6678 = vpop.xlane.xlu0 %6677
    %6679 = vadd.xlane.f32.xlu0 %v6640
    %v6680 = vpop.xlane.xlu0 %6679
    %6681 = vadd.xlane.f32.xlu0 %v6641
    %v6682 = vpop.xlane.xlu0 %6681
    %6683 = vadd.xlane.f32.xlu0 %v6642
    %v6684 = vpop.xlane.xlu0 %6683
    %6685 = vadd.xlane.f32.xlu0 %v6643
    %v6686 = vpop.xlane.xlu0 %6685
    %6687 = vadd.xlane.f32.xlu0 %v6644
    %v6688 = vpop.xlane.xlu0 %6687
    %6689 = vadd.xlane.f32.xlu0 %v6645
    %v6690 = vpop.xlane.xlu0 %6689
    %6691 = vadd.xlane.f32.xlu0 %v6646
    %v6692 = vpop.xlane.xlu0 %6691
    %6693 = vadd.xlane.f32.xlu0 %v6647
    %v6694 = vpop.xlane.xlu0 %6693
    %6695 = vadd.xlane.f32.xlu0 %v6648
    %v6696 = vpop.xlane.xlu0 %6695
    %6697 = vadd.xlane.f32.xlu0 %v6649
    %v6698 = vpop.xlane.xlu0 %6697
    %6699 = vadd.xlane.f32.xlu0 %v6650
    %v6700 = vpop.xlane.xlu0 %6699
    %6701 = vadd.xlane.f32.xlu0 %v6651
    %v6702 = vpop.xlane.xlu0 %6701
    %6703 = vadd.xlane.f32.xlu0 %v6652
    %v6704 = vpop.xlane.xlu0 %6703
    %6705 = vadd.xlane.f32.xlu0 %v6653
    %v6706 = vpop.xlane.xlu0 %6705
    %6707 = vadd.xlane.f32.xlu0 %v6654
    %v6708 = vpop.xlane.xlu0 %6707
    %6709 = vadd.xlane.f32.xlu0 %v6655
    %v6710 = vpop.xlane.xlu0 %6709
    %6711 = vadd.xlane.f32.xlu0 %v6656
    %v6712 = vpop.xlane.xlu0 %6711
    %6713 = vadd.xlane.f32.xlu0 %v6657
    %v6714 = vpop.xlane.xlu0 %6713
    %6715 = vadd.xlane.f32.xlu0 %v6658
    %v6716 = vpop.xlane.xlu0 %6715
    %6717 = vadd.xlane.f32.xlu0 %v6659
    %v6718 = vpop.xlane.xlu0 %6717
    %6719 = vadd.xlane.f32.xlu0 %v6660
    %v6720 = vpop.xlane.xlu0 %6719
    %6721 = vadd.xlane.f32.xlu0 %v6661
    %v6722 = vpop.xlane.xlu0 %6721
    %6723 = vadd.xlane.f32.xlu0 %v6662
    %v6724 = vpop.xlane.xlu0 %6723
    %6725 = vadd.xlane.f32.xlu0 %v6663
    %v6726 = vpop.xlane.xlu0 %6725
    %6727 = vadd.xlane.f32.xlu0 %v6664
    %v6728 = vpop.xlane.xlu0 %6727
    %6729 = vadd.xlane.f32.xlu0 %v6665
    %v6730 = vpop.xlane.xlu0 %6729
    %6731 = vadd.xlane.f32.xlu0 %v6666
    %v6732 = vpop.xlane.xlu0 %6731
    %v6733 = vmul.f32 %v6670, %v135
    %v6734 = vmul.f32 %v6672, %v135
    %v6735 = vmul.f32 %v6674, %v135
    %v6736 = vmul.f32 %v6676, %v135
    %v6737 = vmul.f32 %v6678, %v135
    %v6738 = vmul.f32 %v6680, %v135
    %v6739 = vmul.f32 %v6682, %v135
    %v6740 = vmul.f32 %v6684, %v135
    %v6741 = vmul.f32 %v6686, %v135
    %v6742 = vmul.f32 %v6688, %v135
    %v6743 = vmul.f32 %v6690, %v135
    %v6744 = vmul.f32 %v6692, %v135
    %v6745 = vmul.f32 %v6694, %v135
    %v6746 = vmul.f32 %v6696, %v135
    %v6747 = vmul.f32 %v6698, %v135
    %v6748 = vmul.f32 %v6700, %v135
    %v6749 = vmul.f32 %v6702, %v135
    %v6750 = vmul.f32 %v6704, %v135
    %v6751 = vmul.f32 %v6706, %v135
    %v6752 = vmul.f32 %v6708, %v135
    %v6753 = vmul.f32 %v6710, %v135
    %v6754 = vmul.f32 %v6712, %v135
    %v6755 = vmul.f32 %v6714, %v135
    %v6756 = vmul.f32 %v6716, %v135
    %v6757 = vmul.f32 %v6718, %v135
    %v6758 = vmul.f32 %v6720, %v135
    %v6759 = vmul.f32 %v6722, %v135
    %v6760 = vmul.f32 %v6724, %v135
    %v6761 = vmul.f32 %v6726, %v135
    %v6762 = vmul.f32 %v6728, %v135
    %v6763 = vmul.f32 %v6730, %v135
    %v6764 = vmul.f32 %v6732, %v135
    %v6765 = vsub.f32 %v6635, %v6733
    %v6766 = vsub.f32 %v6636, %v6734
    %v6767 = vsub.f32 %v6637, %v6735
    %v6768 = vsub.f32 %v6638, %v6736
    %v6769 = vsub.f32 %v6639, %v6737
    %v6770 = vsub.f32 %v6640, %v6738
    %v6771 = vsub.f32 %v6641, %v6739
    %v6772 = vsub.f32 %v6642, %v6740
    %v6773 = vsub.f32 %v6643, %v6741
    %v6774 = vsub.f32 %v6644, %v6742
    %v6775 = vsub.f32 %v6645, %v6743
    %v6776 = vsub.f32 %v6646, %v6744
    %v6777 = vsub.f32 %v6647, %v6745
    %v6778 = vsub.f32 %v6648, %v6746
    %v6779 = vsub.f32 %v6649, %v6747
    %v6780 = vsub.f32 %v6650, %v6748
    %v6781 = vsub.f32 %v6651, %v6749
    %v6782 = vsub.f32 %v6652, %v6750
    %v6783 = vsub.f32 %v6653, %v6751
    %v6784 = vsub.f32 %v6654, %v6752
    %v6785 = vsub.f32 %v6655, %v6753
    %v6786 = vsub.f32 %v6656, %v6754
    %v6787 = vsub.f32 %v6657, %v6755
    %v6788 = vsub.f32 %v6658, %v6756
    %v6789 = vsub.f32 %v6659, %v6757
    %v6790 = vsub.f32 %v6660, %v6758
    %v6791 = vsub.f32 %v6661, %v6759
    %v6792 = vsub.f32 %v6662, %v6760
    %v6793 = vsub.f32 %v6663, %v6761
    %v6794 = vsub.f32 %v6664, %v6762
    %v6795 = vsub.f32 %v6665, %v6763
    %v6796 = vsub.f32 %v6666, %v6764
    %v6797 = vmul.f32 %v6765, %v6765
    %v6798 = vmul.f32 %v6766, %v6766
    %v6799 = vmul.f32 %v6767, %v6767
    %v6800 = vmul.f32 %v6768, %v6768
    %v6801 = vmul.f32 %v6769, %v6769
    %v6802 = vmul.f32 %v6770, %v6770
    %v6803 = vmul.f32 %v6771, %v6771
    %v6804 = vmul.f32 %v6772, %v6772
    %v6805 = vmul.f32 %v6773, %v6773
    %v6806 = vmul.f32 %v6774, %v6774
    %v6807 = vmul.f32 %v6775, %v6775
    %v6808 = vmul.f32 %v6776, %v6776
    %v6809 = vmul.f32 %v6777, %v6777
    %v6810 = vmul.f32 %v6778, %v6778
    %v6811 = vmul.f32 %v6779, %v6779
    %v6812 = vmul.f32 %v6780, %v6780
    %v6813 = vmul.f32 %v6781, %v6781
    %v6814 = vmul.f32 %v6782, %v6782
    %v6815 = vmul.f32 %v6783, %v6783
    %v6816 = vmul.f32 %v6784, %v6784
    %v6817 = vmul.f32 %v6785, %v6785
    %v6818 = vmul.f32 %v6786, %v6786
    %v6819 = vmul.f32 %v6787, %v6787
    %v6820 = vmul.f32 %v6788, %v6788
    %v6821 = vmul.f32 %v6789, %v6789
    %v6822 = vmul.f32 %v6790, %v6790
    %v6823 = vmul.f32 %v6791, %v6791
    %v6824 = vmul.f32 %v6792, %v6792
    %v6825 = vmul.f32 %v6793, %v6793
    %v6826 = vmul.f32 %v6794, %v6794
    %v6827 = vmul.f32 %v6795, %v6795
    %v6828 = vmul.f32 %v6796, %v6796
    %6829 = vadd.xlane.f32.xlu0 %v6797
    %v6830 = vpop.xlane.xlu0 %6829
    %6831 = vadd.xlane.f32.xlu0 %v6798
    %v6832 = vpop.xlane.xlu0 %6831
    %6833 = vadd.xlane.f32.xlu0 %v6799
    %v6834 = vpop.xlane.xlu0 %6833
    %6835 = vadd.xlane.f32.xlu0 %v6800
    %v6836 = vpop.xlane.xlu0 %6835
    %6837 = vadd.xlane.f32.xlu0 %v6801
    %v6838 = vpop.xlane.xlu0 %6837
    %6839 = vadd.xlane.f32.xlu0 %v6802
    %v6840 = vpop.xlane.xlu0 %6839
    %6841 = vadd.xlane.f32.xlu0 %v6803
    %v6842 = vpop.xlane.xlu0 %6841
    %6843 = vadd.xlane.f32.xlu0 %v6804
    %v6844 = vpop.xlane.xlu0 %6843
    %6845 = vadd.xlane.f32.xlu0 %v6805
    %v6846 = vpop.xlane.xlu0 %6845
    %6847 = vadd.xlane.f32.xlu0 %v6806
    %v6848 = vpop.xlane.xlu0 %6847
    %6849 = vadd.xlane.f32.xlu0 %v6807
    %v6850 = vpop.xlane.xlu0 %6849
    %6851 = vadd.xlane.f32.xlu0 %v6808
    %v6852 = vpop.xlane.xlu0 %6851
    %6853 = vadd.xlane.f32.xlu0 %v6809
    %v6854 = vpop.xlane.xlu0 %6853
    %6855 = vadd.xlane.f32.xlu0 %v6810
    %v6856 = vpop.xlane.xlu0 %6855
    %6857 = vadd.xlane.f32.xlu0 %v6811
    %v6858 = vpop.xlane.xlu0 %6857
    %6859 = vadd.xlane.f32.xlu0 %v6812
    %v6860 = vpop.xlane.xlu0 %6859
    %6861 = vadd.xlane.f32.xlu0 %v6813
    %v6862 = vpop.xlane.xlu0 %6861
    %6863 = vadd.xlane.f32.xlu0 %v6814
    %v6864 = vpop.xlane.xlu0 %6863
    %6865 = vadd.xlane.f32.xlu0 %v6815
    %v6866 = vpop.xlane.xlu0 %6865
    %6867 = vadd.xlane.f32.xlu0 %v6816
    %v6868 = vpop.xlane.xlu0 %6867
    %6869 = vadd.xlane.f32.xlu0 %v6817
    %v6870 = vpop.xlane.xlu0 %6869
    %6871 = vadd.xlane.f32.xlu0 %v6818
    %v6872 = vpop.xlane.xlu0 %6871
    %6873 = vadd.xlane.f32.xlu0 %v6819
    %v6874 = vpop.xlane.xlu0 %6873
    %6875 = vadd.xlane.f32.xlu0 %v6820
    %v6876 = vpop.xlane.xlu0 %6875
    %6877 = vadd.xlane.f32.xlu0 %v6821
    %v6878 = vpop.xlane.xlu0 %6877
    %6879 = vadd.xlane.f32.xlu0 %v6822
    %v6880 = vpop.xlane.xlu0 %6879
    %6881 = vadd.xlane.f32.xlu0 %v6823
    %v6882 = vpop.xlane.xlu0 %6881
    %6883 = vadd.xlane.f32.xlu0 %v6824
    %v6884 = vpop.xlane.xlu0 %6883
    %6885 = vadd.xlane.f32.xlu0 %v6825
    %v6886 = vpop.xlane.xlu0 %6885
    %6887 = vadd.xlane.f32.xlu0 %v6826
    %v6888 = vpop.xlane.xlu0 %6887
    %6889 = vadd.xlane.f32.xlu0 %v6827
    %v6890 = vpop.xlane.xlu0 %6889
    %6891 = vadd.xlane.f32.xlu0 %v6828
    %v6892 = vpop.xlane.xlu0 %6891
    %v6893 = vmul.f32 %v6830, %v135
    %v6894 = vmul.f32 %v6832, %v135
    %v6895 = vmul.f32 %v6834, %v135
    %v6896 = vmul.f32 %v6836, %v135
    %v6897 = vmul.f32 %v6838, %v135
    %v6898 = vmul.f32 %v6840, %v135
    %v6899 = vmul.f32 %v6842, %v135
    %v6900 = vmul.f32 %v6844, %v135
    %v6901 = vmul.f32 %v6846, %v135
    %v6902 = vmul.f32 %v6848, %v135
    %v6903 = vmul.f32 %v6850, %v135
    %v6904 = vmul.f32 %v6852, %v135
    %v6905 = vmul.f32 %v6854, %v135
    %v6906 = vmul.f32 %v6856, %v135
    %v6907 = vmul.f32 %v6858, %v135
    %v6908 = vmul.f32 %v6860, %v135
    %v6909 = vmul.f32 %v6862, %v135
    %v6910 = vmul.f32 %v6864, %v135
    %v6911 = vmul.f32 %v6866, %v135
    %v6912 = vmul.f32 %v6868, %v135
    %v6913 = vmul.f32 %v6870, %v135
    %v6914 = vmul.f32 %v6872, %v135
    %v6915 = vmul.f32 %v6874, %v135
    %v6916 = vmul.f32 %v6876, %v135
    %v6917 = vmul.f32 %v6878, %v135
    %v6918 = vmul.f32 %v6880, %v135
    %v6919 = vmul.f32 %v6882, %v135
    %v6920 = vmul.f32 %v6884, %v135
    %v6921 = vmul.f32 %v6886, %v135
    %v6922 = vmul.f32 %v6888, %v135
    %v6923 = vmul.f32 %v6890, %v135
    %v6924 = vmul.f32 %v6892, %v135
    %v6925 = vadd.f32 %v6893, 1e-05
    %v6926 = vadd.f32 %v6894, 1e-05
    %v6927 = vadd.f32 %v6895, 1e-05
    %v6928 = vadd.f32 %v6896, 1e-05
    %v6929 = vadd.f32 %v6897, 1e-05
    %v6930 = vadd.f32 %v6898, 1e-05
    %v6931 = vadd.f32 %v6899, 1e-05
    %v6932 = vadd.f32 %v6900, 1e-05
    %v6933 = vadd.f32 %v6901, 1e-05
    %v6934 = vadd.f32 %v6902, 1e-05
    %v6935 = vadd.f32 %v6903, 1e-05
    %v6936 = vadd.f32 %v6904, 1e-05
    %v6937 = vadd.f32 %v6905, 1e-05
    %v6938 = vadd.f32 %v6906, 1e-05
    %v6939 = vadd.f32 %v6907, 1e-05
    %v6940 = vadd.f32 %v6908, 1e-05
    %v6941 = vadd.f32 %v6909, 1e-05
    %v6942 = vadd.f32 %v6910, 1e-05
    %v6943 = vadd.f32 %v6911, 1e-05
    %v6944 = vadd.f32 %v6912, 1e-05
    %v6945 = vadd.f32 %v6913, 1e-05
    %v6946 = vadd.f32 %v6914, 1e-05
    %v6947 = vadd.f32 %v6915, 1e-05
    %v6948 = vadd.f32 %v6916, 1e-05
    %v6949 = vadd.f32 %v6917, 1e-05
    %v6950 = vadd.f32 %v6918, 1e-05
    %v6951 = vadd.f32 %v6919, 1e-05
    %v6952 = vadd.f32 %v6920, 1e-05
    %v6953 = vadd.f32 %v6921, 1e-05
    %v6954 = vadd.f32 %v6922, 1e-05
    %v6955 = vadd.f32 %v6923, 1e-05
    %v6956 = vadd.f32 %v6924, 1e-05
    %v6957 = vrsqrt.pop %v6925
    %v6958 = vrsqrt.pop %v6926
    %v6959 = vrsqrt.pop %v6927
    %v6960 = vrsqrt.pop %v6928
    %v6961 = vrsqrt.pop %v6929
    %v6962 = vrsqrt.pop %v6930
    %v6963 = vrsqrt.pop %v6931
    %v6964 = vrsqrt.pop %v6932
    %v6965 = vrsqrt.pop %v6933
    %v6966 = vrsqrt.pop %v6934
    %v6967 = vrsqrt.pop %v6935
    %v6968 = vrsqrt.pop %v6936
    %v6969 = vrsqrt.pop %v6937
    %v6970 = vrsqrt.pop %v6938
    %v6971 = vrsqrt.pop %v6939
    %v6972 = vrsqrt.pop %v6940
    %v6973 = vrsqrt.pop %v6941
    %v6974 = vrsqrt.pop %v6942
    %v6975 = vrsqrt.pop %v6943
    %v6976 = vrsqrt.pop %v6944
    %v6977 = vrsqrt.pop %v6945
    %v6978 = vrsqrt.pop %v6946
    %v6979 = vrsqrt.pop %v6947
    %v6980 = vrsqrt.pop %v6948
    %v6981 = vrsqrt.pop %v6949
    %v6982 = vrsqrt.pop %v6950
    %v6983 = vrsqrt.pop %v6951
    %v6984 = vrsqrt.pop %v6952
    %v6985 = vrsqrt.pop %v6953
    %v6986 = vrsqrt.pop %v6954
    %v6987 = vrsqrt.pop %v6955
    %v6988 = vrsqrt.pop %v6956
    %v6989 = vmul.f32 %v6765, %v6957
    %v6990 = vmul.f32 %v6766, %v6958
    %v6991 = vmul.f32 %v6767, %v6959
    %v6992 = vmul.f32 %v6768, %v6960
    %v6993 = vmul.f32 %v6769, %v6961
    %v6994 = vmul.f32 %v6770, %v6962
    %v6995 = vmul.f32 %v6771, %v6963
    %v6996 = vmul.f32 %v6772, %v6964
    %v6997 = vmul.f32 %v6773, %v6965
    %v6998 = vmul.f32 %v6774, %v6966
    %v6999 = vmul.f32 %v6775, %v6967
    %v7000 = vmul.f32 %v6776, %v6968
    %v7001 = vmul.f32 %v6777, %v6969
    %v7002 = vmul.f32 %v6778, %v6970
    %v7003 = vmul.f32 %v6779, %v6971
    %v7004 = vmul.f32 %v6780, %v6972
    %v7005 = vmul.f32 %v6781, %v6973
    %v7006 = vmul.f32 %v6782, %v6974
    %v7007 = vmul.f32 %v6783, %v6975
    %v7008 = vmul.f32 %v6784, %v6976
    %v7009 = vmul.f32 %v6785, %v6977
    %v7010 = vmul.f32 %v6786, %v6978
    %v7011 = vmul.f32 %v6787, %v6979
    %v7012 = vmul.f32 %v6788, %v6980
    %v7013 = vmul.f32 %v6789, %v6981
    %v7014 = vmul.f32 %v6790, %v6982
    %v7015 = vmul.f32 %v6791, %v6983
    %v7016 = vmul.f32 %v6792, %v6984
    %v7017 = vmul.f32 %v6793, %v6985
    %v7018 = vmul.f32 %v6794, %v6986
    %v7019 = vmul.f32 %v6795, %v6987
    %v7020 = vmul.f32 %v6796, %v6988
    %v7022 = vlaneseq
    %v7023 = vshrl.u32 %v7022, 7
    %v7024 = vsub.s32 0, %v7023
    %v7025 = vrot.slane %v6667, %v7024
    %v7027 = vmul.f32 %v6989, %v7025
    %v7028 = vmul.f32 %v6990, %v7025
    %v7029 = vmul.f32 %v6991, %v7025
    %v7030 = vmul.f32 %v6992, %v7025
    %v7031 = vmul.f32 %v6993, %v7025
    %v7032 = vmul.f32 %v6994, %v7025
    %v7033 = vmul.f32 %v6995, %v7025
    %v7034 = vmul.f32 %v6996, %v7025
    %v7035 = vmul.f32 %v6997, %v7025
    %v7036 = vmul.f32 %v6998, %v7025
    %v7037 = vmul.f32 %v6999, %v7025
    %v7038 = vmul.f32 %v7000, %v7025
    %v7039 = vmul.f32 %v7001, %v7025
    %v7040 = vmul.f32 %v7002, %v7025
    %v7041 = vmul.f32 %v7003, %v7025
    %v7042 = vmul.f32 %v7004, %v7025
    %v7043 = vmul.f32 %v7005, %v7025
    %v7044 = vmul.f32 %v7006, %v7025
    %v7045 = vmul.f32 %v7007, %v7025
    %v7046 = vmul.f32 %v7008, %v7025
    %v7047 = vmul.f32 %v7009, %v7025
    %v7048 = vmul.f32 %v7010, %v7025
    %v7049 = vmul.f32 %v7011, %v7025
    %v7050 = vmul.f32 %v7012, %v7025
    %v7051 = vmul.f32 %v7013, %v7025
    %v7052 = vmul.f32 %v7014, %v7025
    %v7053 = vmul.f32 %v7015, %v7025
    %v7054 = vmul.f32 %v7016, %v7025
    %v7055 = vmul.f32 %v7017, %v7025
    %v7056 = vmul.f32 %v7018, %v7025
    %v7057 = vmul.f32 %v7019, %v7025
    %v7058 = vmul.f32 %v7020, %v7025
    %v7060 = vlaneseq
    %v7061 = vshrl.u32 %v7060, 7
    %v7062 = vsub.s32 0, %v7061
    %v7063 = vrot.slane %v6668, %v7062
    %v7065 = vadd.f32 %v7027, %v7063
    %v7066 = vadd.f32 %v7028, %v7063
    %v7067 = vadd.f32 %v7029, %v7063
    %v7068 = vadd.f32 %v7030, %v7063
    %v7069 = vadd.f32 %v7031, %v7063
    %v7070 = vadd.f32 %v7032, %v7063
    %v7071 = vadd.f32 %v7033, %v7063
    %v7072 = vadd.f32 %v7034, %v7063
    %v7073 = vadd.f32 %v7035, %v7063
    %v7074 = vadd.f32 %v7036, %v7063
    %v7075 = vadd.f32 %v7037, %v7063
    %v7076 = vadd.f32 %v7038, %v7063
    %v7077 = vadd.f32 %v7039, %v7063
    %v7078 = vadd.f32 %v7040, %v7063
    %v7079 = vadd.f32 %v7041, %v7063
    %v7080 = vadd.f32 %v7042, %v7063
    %v7081 = vadd.f32 %v7043, %v7063
    %v7082 = vadd.f32 %v7044, %v7063
    %v7083 = vadd.f32 %v7045, %v7063
    %v7084 = vadd.f32 %v7046, %v7063
    %v7085 = vadd.f32 %v7047, %v7063
    %v7086 = vadd.f32 %v7048, %v7063
    %v7087 = vadd.f32 %v7049, %v7063
    %v7088 = vadd.f32 %v7050, %v7063
    %v7089 = vadd.f32 %v7051, %v7063
    %v7090 = vadd.f32 %v7052, %v7063
    %v7091 = vadd.f32 %v7053, %v7063
    %v7092 = vadd.f32 %v7054, %v7063
    %v7093 = vadd.f32 %v7055, %v7063
    %v7094 = vadd.f32 %v7056, %v7063
    %v7095 = vadd.f32 %v7057, %v7063
    %v7096 = vadd.f32 %v7058, %v7063
    %v7097 = vpack.c.bf16 %v7066, %v7065
    %v7098 = vpack.c.bf16 %v7068, %v7067
    %v7099 = vpack.c.bf16 %v7070, %v7069
    %v7100 = vpack.c.bf16 %v7072, %v7071
    %v7101 = vpack.c.bf16 %v7074, %v7073
    %v7102 = vpack.c.bf16 %v7076, %v7075
    %v7103 = vpack.c.bf16 %v7078, %v7077
    %v7104 = vpack.c.bf16 %v7080, %v7079
    %v7105 = vpack.c.bf16 %v7082, %v7081
    %v7106 = vpack.c.bf16 %v7084, %v7083
    %v7107 = vpack.c.bf16 %v7086, %v7085
    %v7108 = vpack.c.bf16 %v7088, %v7087
    %v7109 = vpack.c.bf16 %v7090, %v7089
    %v7110 = vpack.c.bf16 %v7092, %v7091
    %v7111 = vpack.c.bf16 %v7094, %v7093
    %v7112 = vpack.c.bf16 %v7096, %v7095
    %v7113 = vld [vmem:[%s8] sm:$0xff]
    %v7114 = vld [vmem:[%s8 + $0x8] sm:$0xff]
    %v7115 = vld [vmem:[%s8 + $0x10] sm:$0xff]
    %v7116 = vld [vmem:[%s8 + $0x18] sm:$0xff]
    %v7117 = vld [vmem:[%s8 + $0x20] sm:$0xff]
    %v7118 = vld [vmem:[%s8 + $0x28] sm:$0xff]
    %v7119 = vld [vmem:[%s8 + $0x30] sm:$0xff]
    %v7120 = vld [vmem:[%s8 + $0x38] sm:$0xff]
    %v7121 = vld [vmem:[%s8 + $0x40] sm:$0xff]
    %v7122 = vld [vmem:[%s8 + $0x48] sm:$0xff]
    %v7123 = vld [vmem:[%s8 + $0x50] sm:$0xff]
    %v7124 = vld [vmem:[%s8 + $0x58] sm:$0xff]
    %v7125 = vld [vmem:[%s8 + $0x60] sm:$0xff]
    %v7126 = vld [vmem:[%s8 + $0x68] sm:$0xff]
    %v7127 = vld [vmem:[%s8 + $0x70] sm:$0xff]
    %v7128 = vld [vmem:[%s8 + $0x78] sm:$0xff]
    %v7129 = vld [vmem:[%s8 + $0x80] sm:$0xff]
    %v7130 = vld [vmem:[%s8 + $0x88] sm:$0xff]
    %v7131 = vld [vmem:[%s8 + $0x90] sm:$0xff]
    %v7132 = vld [vmem:[%s8 + $0x98] sm:$0xff]
    %v7133 = vld [vmem:[%s8 + $0xa0] sm:$0xff]
    %v7134 = vld [vmem:[%s8 + $0xa8] sm:$0xff]
    %v7135 = vld [vmem:[%s8 + $0xb0] sm:$0xff]
    %v7136 = vld [vmem:[%s8 + $0xb8] sm:$0xff]
    %v7137 = vld [vmem:[%s8 + $0xc0] sm:$0xff]
    %v7138 = vld [vmem:[%s8 + $0xc8] sm:$0xff]
    %v7139 = vld [vmem:[%s8 + $0xd0] sm:$0xff]
    %v7140 = vld [vmem:[%s8 + $0xd8] sm:$0xff]
    %v7141 = vld [vmem:[%s8 + $0xe0] sm:$0xff]
    %v7142 = vld [vmem:[%s8 + $0xe8] sm:$0xff]
    %v7143 = vld [vmem:[%s8 + $0xf0] sm:$0xff]
    %v7144 = vld [vmem:[%s8 + $0xf8] sm:$0xff]
    %v7177 = vunpack.c.l.b16 %v7113
    %v7178 = vunpack.c.h.b16 %v7113
    %v7179 = vunpack.c.l.b16 %v7114
    %v7180 = vunpack.c.h.b16 %v7114
    %v7181 = vunpack.c.l.b16 %v7115
    %v7182 = vunpack.c.h.b16 %v7115
    %v7183 = vunpack.c.l.b16 %v7116
    %v7184 = vunpack.c.h.b16 %v7116
    %v7185 = vunpack.c.l.b16 %v7117
    %v7186 = vunpack.c.h.b16 %v7117
    %v7187 = vunpack.c.l.b16 %v7118
    %v7188 = vunpack.c.h.b16 %v7118
    %v7189 = vunpack.c.l.b16 %v7119
    %v7190 = vunpack.c.h.b16 %v7119
    %v7191 = vunpack.c.l.b16 %v7120
    %v7192 = vunpack.c.h.b16 %v7120
    %v7193 = vunpack.c.l.b16 %v7121
    %v7194 = vunpack.c.h.b16 %v7121
    %v7195 = vunpack.c.l.b16 %v7122
    %v7196 = vunpack.c.h.b16 %v7122
    %v7197 = vunpack.c.l.b16 %v7123
    %v7198 = vunpack.c.h.b16 %v7123
    %v7199 = vunpack.c.l.b16 %v7124
    %v7200 = vunpack.c.h.b16 %v7124
    %v7201 = vunpack.c.l.b16 %v7125
    %v7202 = vunpack.c.h.b16 %v7125
    %v7203 = vunpack.c.l.b16 %v7126
    %v7204 = vunpack.c.h.b16 %v7126
    %v7205 = vunpack.c.l.b16 %v7127
    %v7206 = vunpack.c.h.b16 %v7127
    %v7207 = vunpack.c.l.b16 %v7128
    %v7208 = vunpack.c.h.b16 %v7128
    %v7209 = vunpack.c.l.b16 %v7129
    %v7210 = vunpack.c.h.b16 %v7129
    %v7211 = vunpack.c.l.b16 %v7130
    %v7212 = vunpack.c.h.b16 %v7130
    %v7213 = vunpack.c.l.b16 %v7131
    %v7214 = vunpack.c.h.b16 %v7131
    %v7215 = vunpack.c.l.b16 %v7132
    %v7216 = vunpack.c.h.b16 %v7132
    %v7217 = vunpack.c.l.b16 %v7133
    %v7218 = vunpack.c.h.b16 %v7133
    %v7219 = vunpack.c.l.b16 %v7134
    %v7220 = vunpack.c.h.b16 %v7134
    %v7221 = vunpack.c.l.b16 %v7135
    %v7222 = vunpack.c.h.b16 %v7135
    %v7223 = vunpack.c.l.b16 %v7136
    %v7224 = vunpack.c.h.b16 %v7136
    %v7225 = vunpack.c.l.b16 %v7137
    %v7226 = vunpack.c.h.b16 %v7137
    %v7227 = vunpack.c.l.b16 %v7138
    %v7228 = vunpack.c.h.b16 %v7138
    %v7229 = vunpack.c.l.b16 %v7139
    %v7230 = vunpack.c.h.b16 %v7139
    %v7231 = vunpack.c.l.b16 %v7140
    %v7232 = vunpack.c.h.b16 %v7140
    %v7233 = vunpack.c.l.b16 %v7141
    %v7234 = vunpack.c.h.b16 %v7141
    %v7235 = vunpack.c.l.b16 %v7142
    %v7236 = vunpack.c.h.b16 %v7142
    %v7237 = vunpack.c.l.b16 %v7143
    %v7238 = vunpack.c.h.b16 %v7143
    %v7239 = vunpack.c.l.b16 %v7144
    %v7240 = vunpack.c.h.b16 %v7144
    %v7241 = vpack.c.b16 %v7181, %v7177
    %v7242 = vpack.c.b16 %v7182, %v7178
    %v7243 = vpack.c.b16 %v7183, %v7179
    %v7244 = vpack.c.b16 %v7184, %v7180
    %v7245 = vpack.c.b16 %v7189, %v7185
    %v7246 = vpack.c.b16 %v7190, %v7186
    %v7247 = vpack.c.b16 %v7191, %v7187
    %v7248 = vpack.c.b16 %v7192, %v7188
    %v7249 = vpack.c.b16 %v7197, %v7193
    %v7250 = vpack.c.b16 %v7198, %v7194
    %v7251 = vpack.c.b16 %v7199, %v7195
    %v7252 = vpack.c.b16 %v7200, %v7196
    %v7253 = vpack.c.b16 %v7205, %v7201
    %v7254 = vpack.c.b16 %v7206, %v7202
    %v7255 = vpack.c.b16 %v7207, %v7203
    %v7256 = vpack.c.b16 %v7208, %v7204
    %v7257 = vpack.c.b16 %v7213, %v7209
    %v7258 = vpack.c.b16 %v7214, %v7210
    %v7259 = vpack.c.b16 %v7215, %v7211
    %v7260 = vpack.c.b16 %v7216, %v7212
    %v7261 = vpack.c.b16 %v7221, %v7217
    %v7262 = vpack.c.b16 %v7222, %v7218
    %v7263 = vpack.c.b16 %v7223, %v7219
    %v7264 = vpack.c.b16 %v7224, %v7220
    %v7265 = vpack.c.b16 %v7229, %v7225
    %v7266 = vpack.c.b16 %v7230, %v7226
    %v7267 = vpack.c.b16 %v7231, %v7227
    %v7268 = vpack.c.b16 %v7232, %v7228
    %v7269 = vpack.c.b16 %v7237, %v7233
    %v7270 = vpack.c.b16 %v7238, %v7234
    %v7271 = vpack.c.b16 %v7239, %v7235
    %v7272 = vpack.c.b16 %v7240, %v7236
    %7305 = vmatprep.subr.bf16.mxu0 %v7242
    %7306 = vmatpush1.bf16.msra.mxu0 %v7241
    %7307 = vmatprep.subr.bf16.mxu0 %v7246
    %7308 = vmatpush1.bf16.msra.mxu0 %v7245
    %7309 = vmatprep.subr.bf16.mxu0 %v7250
    %7310 = vmatpush1.bf16.msra.mxu0 %v7249
    %7311 = vmatprep.subr.bf16.mxu0 %v7254
    %7312 = vmatpush1.bf16.msra.mxu0 %v7253
    %7313 = vmatprep.subr.bf16.mxu0 %v7258
    %7314 = vmatpush1.bf16.msra.mxu0 %v7257
    %7315 = vmatprep.subr.bf16.mxu0 %v7262
    %7316 = vmatpush1.bf16.msra.mxu0 %v7261
    %7317 = vmatprep.subr.bf16.mxu0 %v7266
    %7318 = vmatpush1.bf16.msra.mxu0 %v7265
    %7319 = vmatprep.subr.bf16.mxu0 %v7270
    %7320 = vmatpush1.bf16.msra.mxu0 %v7269
    %7321 = vmatprep.subr.bf16.mxu0 0
    %7322 = vmatpush1.bf16.msra.mxu0 0
    %7323 = vmatprep.subr.bf16.mxu0 0
    %7324 = vmatpush1.bf16.msra.mxu0 0
    %7325 = vmatprep.subr.bf16.mxu0 0
    %7326 = vmatpush1.bf16.msra.mxu0 0
    %7327 = vmatprep.subr.bf16.mxu0 0
    %7328 = vmatpush1.bf16.msra.mxu0 0
    %7329 = vmatprep.subr.bf16.mxu0 0
    %7330 = vmatpush1.bf16.msra.mxu0 0
    %7331 = vmatprep.subr.bf16.mxu0 0
    %7332 = vmatpush1.bf16.msra.mxu0 0
    %7333 = vmatprep.subr.bf16.mxu0 0
    %7334 = vmatpush1.bf16.msra.mxu0 0
    %7335 = vmatprep.subr.bf16.mxu0 0
    %7336 = vmatpush1.bf16.msra.mxu0 0
    %7337 = vmatprep.mubr.bf16.mxu0 0
    %7338 = vmatmul.mubr.bf16.gmra.mrb[0].mxu0 %v7097
    %v7339 = vpop.f32.mrb[0].mxu0
    %v7340 = vadd.f32 0.0, %v7339
    %v7341 = vpop.f32.mrb[0].mxu0
    %v7342 = vadd.f32 0.0, %v7341
    %v7343 = vpop.f32.mrb[0].mxu0
    %v7344 = vadd.f32 0.0, %v7343
    %v7345 = vpop.f32.mrb[0].mxu0
    %v7346 = vadd.f32 0.0, %v7345
    %7347 = vmatprep.mubr.bf16.mxu0 0
    %7348 = vmatmul.mubr.bf16.gmra.mrb[0].mxu0 %v7098
    %v7349 = vpop.f32.mrb[0].mxu0
    %v7350 = vadd.f32 0.0, %v7349
    %v7351 = vpop.f32.mrb[0].mxu0
    %v7352 = vadd.f32 0.0, %v7351
    %v7353 = vpop.f32.mrb[0].mxu0
    %v7354 = vadd.f32 0.0, %v7353
    %v7355 = vpop.f32.mrb[0].mxu0
    %v7356 = vadd.f32 0.0, %v7355
    %7357 = vmatprep.mubr.bf16.mxu0 0
    %7358 = vmatmul.mubr.bf16.gmra.mrb[0].mxu0 %v7099
    %v7359 = vpop.f32.mrb[0].mxu0
    %v7360 = vadd.f32 0.0, %v7359
    %v7361 = vpop.f32.mrb[0].mxu0
    %v7362 = vadd.f32 0.0, %v7361
    %v7363 = vpop.f32.mrb[0].mxu0
    %v7364 = vadd.f32 0.0, %v7363
    %v7365 = vpop.f32.mrb[0].mxu0
    %v7366 = vadd.f32 0.0, %v7365
    %7367 = vmatprep.mubr.bf16.mxu0 0
    %7368 = vmatmul.mubr.bf16.gmra.mrb[0].mxu0 %v7100
    %v7369 = vpop.f32.mrb[0].mxu0
    %v7370 = vadd.f32 0.0, %v7369
    %v7371 = vpop.f32.mrb[0].mxu0
    %v7372 = vadd.f32 0.0, %v7371
    %v7373 = vpop.f32.mrb[0].mxu0
    %v7374 = vadd.f32 0.0, %v7373
    %v7375 = vpop.f32.mrb[0].mxu0
    %v7376 = vadd.f32 0.0, %v7375
    %7377 = vmatprep.mubr.bf16.mxu0 0
    %7378 = vmatmul.mubr.bf16.gmra.mrb[0].mxu0 %v7101
    %v7379 = vpop.f32.mrb[0].mxu0
    %v7380 = vadd.f32 0.0, %v7379
    %v7381 = vpop.f32.mrb[0].mxu0
    %v7382 = vadd.f32 0.0, %v7381
    %v7383 = vpop.f32.mrb[0].mxu0
    %v7384 = vadd.f32 0.0, %v7383
    %v7385 = vpop.f32.mrb[0].mxu0
    %v7386 = vadd.f32 0.0, %v7385
    %7387 = vmatprep.mubr.bf16.mxu0 0
    %7388 = vmatmul.mubr.bf16.gmra.mrb[0].mxu0 %v7102
    %v7389 = vpop.f32.mrb[0].mxu0
    %v7390 = vadd.f32 0.0, %v7389
    %v7391 = vpop.f32.mrb[0].mxu0
    %v7392 = vadd.f32 0.0, %v7391
    %v7393 = vpop.f32.mrb[0].mxu0
    %v7394 = vadd.f32 0.0, %v7393
    %v7395 = vpop.f32.mrb[0].mxu0
    %v7396 = vadd.f32 0.0, %v7395
    %7397 = vmatprep.mubr.bf16.mxu0 0
    %7398 = vmatmul.mubr.bf16.gmra.mrb[0].mxu0 %v7103
    %v7399 = vpop.f32.mrb[0].mxu0
    %v7400 = vadd.f32 0.0, %v7399
    %v7401 = vpop.f32.mrb[0].mxu0
    %v7402 = vadd.f32 0.0, %v7401
    %v7403 = vpop.f32.mrb[0].mxu0
    %v7404 = vadd.f32 0.0, %v7403
    %v7405 = vpop.f32.mrb[0].mxu0
    %v7406 = vadd.f32 0.0, %v7405
    %7407 = vmatprep.mubr.bf16.mxu0 0
    %7408 = vmatmul.mubr.bf16.gmra.mrb[0].mxu0 %v7104
    %v7409 = vpop.f32.mrb[0].mxu0
    %v7410 = vadd.f32 0.0, %v7409
    %v7411 = vpop.f32.mrb[0].mxu0
    %v7412 = vadd.f32 0.0, %v7411
    %v7413 = vpop.f32.mrb[0].mxu0
    %v7414 = vadd.f32 0.0, %v7413
    %v7415 = vpop.f32.mrb[0].mxu0
    %v7416 = vadd.f32 0.0, %v7415
    %7417 = vmatprep.mubr.bf16.mxu0 0
    %7418 = vmatmul.mubr.bf16.gmra.mrb[0].mxu0 %v7105
    %v7419 = vpop.f32.mrb[0].mxu0
    %v7420 = vadd.f32 0.0, %v7419
    %v7421 = vpop.f32.mrb[0].mxu0
    %v7422 = vadd.f32 0.0, %v7421
    %v7423 = vpop.f32.mrb[0].mxu0
    %v7424 = vadd.f32 0.0, %v7423
    %v7425 = vpop.f32.mrb[0].mxu0
    %v7426 = vadd.f32 0.0, %v7425
    %7427 = vmatprep.mubr.bf16.mxu0 0
    %7428 = vmatmul.mubr.bf16.gmra.mrb[0].mxu0 %v7106
    %v7429 = vpop.f32.mrb[0].mxu0
    %v7430 = vadd.f32 0.0, %v7429
    %v7431 = vpop.f32.mrb[0].mxu0
    %v7432 = vadd.f32 0.0, %v7431
    %v7433 = vpop.f32.mrb[0].mxu0
    %v7434 = vadd.f32 0.0, %v7433
    %v7435 = vpop.f32.mrb[0].mxu0
    %v7436 = vadd.f32 0.0, %v7435
    %7437 = vmatprep.mubr.bf16.mxu0 0
    %7438 = vmatmul.mubr.bf16.gmra.mrb[0].mxu0 %v7107
    %v7439 = vpop.f32.mrb[0].mxu0
    %v7440 = vadd.f32 0.0, %v7439
    %v7441 = vpop.f32.mrb[0].mxu0
    %v7442 = vadd.f32 0.0, %v7441
    %v7443 = vpop.f32.mrb[0].mxu0
    %v7444 = vadd.f32 0.0, %v7443
    %v7445 = vpop.f32.mrb[0].mxu0
    %v7446 = vadd.f32 0.0, %v7445
    %7447 = vmatprep.mubr.bf16.mxu0 0
    %7448 = vmatmul.mubr.bf16.gmra.mrb[0].mxu0 %v7108
    %v7449 = vpop.f32.mrb[0].mxu0
    %v7450 = vadd.f32 0.0, %v7449
    %v7451 = vpop.f32.mrb[0].mxu0
    %v7452 = vadd.f32 0.0, %v7451
    %v7453 = vpop.f32.mrb[0].mxu0
    %v7454 = vadd.f32 0.0, %v7453
    %v7455 = vpop.f32.mrb[0].mxu0
    %v7456 = vadd.f32 0.0, %v7455
    %7457 = vmatprep.mubr.bf16.mxu0 0
    %7458 = vmatmul.mubr.bf16.gmra.mrb[0].mxu0 %v7109
    %v7459 = vpop.f32.mrb[0].mxu0
    %v7460 = vadd.f32 0.0, %v7459
    %v7461 = vpop.f32.mrb[0].mxu0
    %v7462 = vadd.f32 0.0, %v7461
    %v7463 = vpop.f32.mrb[0].mxu0
    %v7464 = vadd.f32 0.0, %v7463
    %v7465 = vpop.f32.mrb[0].mxu0
    %v7466 = vadd.f32 0.0, %v7465
    %7467 = vmatprep.mubr.bf16.mxu0 0
    %7468 = vmatmul.mubr.bf16.gmra.mrb[0].mxu0 %v7110
    %v7469 = vpop.f32.mrb[0].mxu0
    %v7470 = vadd.f32 0.0, %v7469
    %v7471 = vpop.f32.mrb[0].mxu0
    %v7472 = vadd.f32 0.0, %v7471
    %v7473 = vpop.f32.mrb[0].mxu0
    %v7474 = vadd.f32 0.0, %v7473
    %v7475 = vpop.f32.mrb[0].mxu0
    %v7476 = vadd.f32 0.0, %v7475
    %7477 = vmatprep.mubr.bf16.mxu0 0
    %7478 = vmatmul.mubr.bf16.gmra.mrb[0].mxu0 %v7111
    %v7479 = vpop.f32.mrb[0].mxu0
    %v7480 = vadd.f32 0.0, %v7479
    %v7481 = vpop.f32.mrb[0].mxu0
    %v7482 = vadd.f32 0.0, %v7481
    %v7483 = vpop.f32.mrb[0].mxu0
    %v7484 = vadd.f32 0.0, %v7483
    %v7485 = vpop.f32.mrb[0].mxu0
    %v7486 = vadd.f32 0.0, %v7485
    %7487 = vmatprep.mubr.bf16.mxu0 0
    %7488 = vmatmul.mubr.bf16.gmra.mrb[0].mxu0 %v7112
    %v7489 = vpop.f32.mrb[0].mxu0
    %v7490 = vadd.f32 0.0, %v7489
    %v7491 = vpop.f32.mrb[0].mxu0
    %v7492 = vadd.f32 0.0, %v7491
    %v7493 = vpop.f32.mrb[0].mxu0
    %v7494 = vadd.f32 0.0, %v7493
    %v7495 = vpop.f32.mrb[0].mxu0
    %v7496 = vadd.f32 0.0, %v7495
    %7497 = vdwg.mxu0
    %7498 = vmatprep.subr.bf16.mxu0 %v7244
    %7499 = vmatpush1.bf16.msra.mxu0 %v7243
    %7500 = vmatprep.subr.bf16.mxu0 %v7248
    %7501 = vmatpush1.bf16.msra.mxu0 %v7247
    %7502 = vmatprep.subr.bf16.mxu0 %v7252
    %7503 = vmatpush1.bf16.msra.mxu0 %v7251
    %7504 = vmatprep.subr.bf16.mxu0 %v7256
    %7505 = vmatpush1.bf16.msra.mxu0 %v7255
    %7506 = vmatprep.subr.bf16.mxu0 %v7260
    %7507 = vmatpush1.bf16.msra.mxu0 %v7259
    %7508 = vmatprep.subr.bf16.mxu0 %v7264
    %7509 = vmatpush1.bf16.msra.mxu0 %v7263
    %7510 = vmatprep.subr.bf16.mxu0 %v7268
    %7511 = vmatpush1.bf16.msra.mxu0 %v7267
    %7512 = vmatprep.subr.bf16.mxu0 %v7272
    %7513 = vmatpush1.bf16.msra.mxu0 %v7271
    %7514 = vmatprep.subr.bf16.mxu0 0
    %7515 = vmatpush1.bf16.msra.mxu0 0
    %7516 = vmatprep.subr.bf16.mxu0 0
    %7517 = vmatpush1.bf16.msra.mxu0 0
    %7518 = vmatprep.subr.bf16.mxu0 0
    %7519 = vmatpush1.bf16.msra.mxu0 0
    %7520 = vmatprep.subr.bf16.mxu0 0
    %7521 = vmatpush1.bf16.msra.mxu0 0
    %7522 = vmatprep.subr.bf16.mxu0 0
    %7523 = vmatpush1.bf16.msra.mxu0 0
    %7524 = vmatprep.subr.bf16.mxu0 0
    %7525 = vmatpush1.bf16.msra.mxu0 0
    %7526 = vmatprep.subr.bf16.mxu0 0
    %7527 = vmatpush1.bf16.msra.mxu0 0
    %7528 = vmatprep.subr.bf16.mxu0 0
    %7529 = vmatpush1.bf16.msra.mxu0 0
    %7530 = vmatprep.mubr.bf16.mxu0 0
    %7531 = vmatmul.mubr.bf16.gmra.mrb[0].mxu0 %v7097
    %v7532 = vpop.f32.mrb[0].mxu0
    %v7533 = vadd.f32 0.0, %v7532
    %v7534 = vpop.f32.mrb[0].mxu0
    %v7535 = vadd.f32 0.0, %v7534
    %v7536 = vpop.f32.mrb[0].mxu0
    %v7537 = vadd.f32 0.0, %v7536
    %v7538 = vpop.f32.mrb[0].mxu0
    %v7539 = vadd.f32 0.0, %v7538
    %7540 = vmatprep.mubr.bf16.mxu0 0
    %7541 = vmatmul.mubr.bf16.gmra.mrb[0].mxu0 %v7098
    %v7542 = vpop.f32.mrb[0].mxu0
    %v7543 = vadd.f32 0.0, %v7542
    %v7544 = vpop.f32.mrb[0].mxu0
    %v7545 = vadd.f32 0.0, %v7544
    %v7546 = vpop.f32.mrb[0].mxu0
    %v7547 = vadd.f32 0.0, %v7546
    %v7548 = vpop.f32.mrb[0].mxu0
    %v7549 = vadd.f32 0.0, %v7548
    %7550 = vmatprep.mubr.bf16.mxu0 0
    %7551 = vmatmul.mubr.bf16.gmra.mrb[0].mxu0 %v7099
    %v7552 = vpop.f32.mrb[0].mxu0
    %v7553 = vadd.f32 0.0, %v7552
    %v7554 = vpop.f32.mrb[0].mxu0
    %v7555 = vadd.f32 0.0, %v7554
    %v7556 = vpop.f32.mrb[0].mxu0
    %v7557 = vadd.f32 0.0, %v7556
    %v7558 = vpop.f32.mrb[0].mxu0
    %v7559 = vadd.f32 0.0, %v7558
    %7560 = vmatprep.mubr.bf16.mxu0 0
    %7561 = vmatmul.mubr.bf16.gmra.mrb[0].mxu0 %v7100
    %v7562 = vpop.f32.mrb[0].mxu0
    %v7563 = vadd.f32 0.0, %v7562
    %v7564 = vpop.f32.mrb[0].mxu0
    %v7565 = vadd.f32 0.0, %v7564
    %v7566 = vpop.f32.mrb[0].mxu0
    %v7567 = vadd.f32 0.0, %v7566
    %v7568 = vpop.f32.mrb[0].mxu0
    %v7569 = vadd.f32 0.0, %v7568
    %7570 = vmatprep.mubr.bf16.mxu0 0
    %7571 = vmatmul.mubr.bf16.gmra.mrb[0].mxu0 %v7101
    %v7572 = vpop.f32.mrb[0].mxu0
    %v7573 = vadd.f32 0.0, %v7572
    %v7574 = vpop.f32.mrb[0].mxu0
    %v7575 = vadd.f32 0.0, %v7574
    %v7576 = vpop.f32.mrb[0].mxu0
    %v7577 = vadd.f32 0.0, %v7576
    %v7578 = vpop.f32.mrb[0].mxu0
    %v7579 = vadd.f32 0.0, %v7578
    %7580 = vmatprep.mubr.bf16.mxu0 0
    %7581 = vmatmul.mubr.bf16.gmra.mrb[0].mxu0 %v7102
    %v7582 = vpop.f32.mrb[0].mxu0
    %v7583 = vadd.f32 0.0, %v7582
    %v7584 = vpop.f32.mrb[0].mxu0
    %v7585 = vadd.f32 0.0, %v7584
    %v7586 = vpop.f32.mrb[0].mxu0
    %v7587 = vadd.f32 0.0, %v7586
    %v7588 = vpop.f32.mrb[0].mxu0
    %v7589 = vadd.f32 0.0, %v7588
    %7590 = vmatprep.mubr.bf16.mxu0 0
    %7591 = vmatmul.mubr.bf16.gmra.mrb[0].mxu0 %v7103
    %v7592 = vpop.f32.mrb[0].mxu0
    %v7593 = vadd.f32 0.0, %v7592
    %v7594 = vpop.f32.mrb[0].mxu0
    %v7595 = vadd.f32 0.0, %v7594
    %v7596 = vpop.f32.mrb[0].mxu0
    %v7597 = vadd.f32 0.0, %v7596
    %v7598 = vpop.f32.mrb[0].mxu0
    %v7599 = vadd.f32 0.0, %v7598
    %7600 = vmatprep.mubr.bf16.mxu0 0
    %7601 = vmatmul.mubr.bf16.gmra.mrb[0].mxu0 %v7104
    %v7602 = vpop.f32.mrb[0].mxu0
    %v7603 = vadd.f32 0.0, %v7602
    %v7604 = vpop.f32.mrb[0].mxu0
    %v7605 = vadd.f32 0.0, %v7604
    %v7606 = vpop.f32.mrb[0].mxu0
    %v7607 = vadd.f32 0.0, %v7606
    %v7608 = vpop.f32.mrb[0].mxu0
    %v7609 = vadd.f32 0.0, %v7608
    %7610 = vmatprep.mubr.bf16.mxu0 0
    %7611 = vmatmul.mubr.bf16.gmra.mrb[0].mxu0 %v7105
    %v7612 = vpop.f32.mrb[0].mxu0
    %v7613 = vadd.f32 0.0, %v7612
    %v7614 = vpop.f32.mrb[0].mxu0
    %v7615 = vadd.f32 0.0, %v7614
    %v7616 = vpop.f32.mrb[0].mxu0
    %v7617 = vadd.f32 0.0, %v7616
    %v7618 = vpop.f32.mrb[0].mxu0
    %v7619 = vadd.f32 0.0, %v7618
    %7620 = vmatprep.mubr.bf16.mxu0 0
    %7621 = vmatmul.mubr.bf16.gmra.mrb[0].mxu0 %v7106
    %v7622 = vpop.f32.mrb[0].mxu0
    %v7623 = vadd.f32 0.0, %v7622
    %v7624 = vpop.f32.mrb[0].mxu0
    %v7625 = vadd.f32 0.0, %v7624
    %v7626 = vpop.f32.mrb[0].mxu0
    %v7627 = vadd.f32 0.0, %v7626
    %v7628 = vpop.f32.mrb[0].mxu0
    %v7629 = vadd.f32 0.0, %v7628
    %7630 = vmatprep.mubr.bf16.mxu0 0
    %7631 = vmatmul.mubr.bf16.gmra.mrb[0].mxu0 %v7107
    %v7632 = vpop.f32.mrb[0].mxu0
    %v7633 = vadd.f32 0.0, %v7632
    %v7634 = vpop.f32.mrb[0].mxu0
    %v7635 = vadd.f32 0.0, %v7634
    %v7636 = vpop.f32.mrb[0].mxu0
    %v7637 = vadd.f32 0.0, %v7636
    %v7638 = vpop.f32.mrb[0].mxu0
    %v7639 = vadd.f32 0.0, %v7638
    %7640 = vmatprep.mubr.bf16.mxu0 0
    %7641 = vmatmul.mubr.bf16.gmra.mrb[0].mxu0 %v7108
    %v7642 = vpop.f32.mrb[0].mxu0
    %v7643 = vadd.f32 0.0, %v7642
    %v7644 = vpop.f32.mrb[0].mxu0
    %v7645 = vadd.f32 0.0, %v7644
    %v7646 = vpop.f32.mrb[0].mxu0
    %v7647 = vadd.f32 0.0, %v7646
    %v7648 = vpop.f32.mrb[0].mxu0
    %v7649 = vadd.f32 0.0, %v7648
    %7650 = vmatprep.mubr.bf16.mxu0 0
    %7651 = vmatmul.mubr.bf16.gmra.mrb[0].mxu0 %v7109
    %v7652 = vpop.f32.mrb[0].mxu0
    %v7653 = vadd.f32 0.0, %v7652
    %v7654 = vpop.f32.mrb[0].mxu0
    %v7655 = vadd.f32 0.0, %v7654
    %v7656 = vpop.f32.mrb[0].mxu0
    %v7657 = vadd.f32 0.0, %v7656
    %v7658 = vpop.f32.mrb[0].mxu0
    %v7659 = vadd.f32 0.0, %v7658
    %7660 = vmatprep.mubr.bf16.mxu0 0
    %7661 = vmatmul.mubr.bf16.gmra.mrb[0].mxu0 %v7110
    %v7662 = vpop.f32.mrb[0].mxu0
    %v7663 = vadd.f32 0.0, %v7662
    %v7664 = vpop.f32.mrb[0].mxu0
    %v7665 = vadd.f32 0.0, %v7664
    %v7666 = vpop.f32.mrb[0].mxu0
    %v7667 = vadd.f32 0.0, %v7666
    %v7668 = vpop.f32.mrb[0].mxu0
    %v7669 = vadd.f32 0.0, %v7668
    %7670 = vmatprep.mubr.bf16.mxu0 0
    %7671 = vmatmul.mubr.bf16.gmra.mrb[0].mxu0 %v7111
    %v7672 = vpop.f32.mrb[0].mxu0
    %v7673 = vadd.f32 0.0, %v7672
    %v7674 = vpop.f32.mrb[0].mxu0
    %v7675 = vadd.f32 0.0, %v7674
    %v7676 = vpop.f32.mrb[0].mxu0
    %v7677 = vadd.f32 0.0, %v7676
    %v7678 = vpop.f32.mrb[0].mxu0
    %v7679 = vadd.f32 0.0, %v7678
    %7680 = vmatprep.mubr.bf16.mxu0 0
    %7681 = vmatmul.mubr.bf16.gmra.mrb[0].mxu0 %v7112
    %v7682 = vpop.f32.mrb[0].mxu0
    %v7683 = vadd.f32 0.0, %v7682
    %v7684 = vpop.f32.mrb[0].mxu0
    %v7685 = vadd.f32 0.0, %v7684
    %v7686 = vpop.f32.mrb[0].mxu0
    %v7687 = vadd.f32 0.0, %v7686
    %v7688 = vpop.f32.mrb[0].mxu0
    %v7689 = vadd.f32 0.0, %v7688
    %7690 = vdwg.mxu0
    %v7691 = vmul.f32 %v7340, 0.5
    %v7692 = vmul.f32 %v7342, 0.5
    %v7693 = vmul.f32 %v7344, 0.5
    %v7694 = vmul.f32 %v7346, 0.5
    %v7695 = vmul.f32 %v7350, 0.5
    %v7696 = vmul.f32 %v7352, 0.5
    %v7697 = vmul.f32 %v7354, 0.5
    %v7698 = vmul.f32 %v7356, 0.5
    %v7699 = vmul.f32 %v7360, 0.5
    %v7700 = vmul.f32 %v7362, 0.5
    %v7701 = vmul.f32 %v7364, 0.5
    %v7702 = vmul.f32 %v7366, 0.5
    %v7703 = vmul.f32 %v7370, 0.5
    %v7704 = vmul.f32 %v7372, 0.5
    %v7705 = vmul.f32 %v7374, 0.5
    %v7706 = vmul.f32 %v7376, 0.5
    %v7707 = vmul.f32 %v7380, 0.5
    %v7708 = vmul.f32 %v7382, 0.5
    %v7709 = vmul.f32 %v7384, 0.5
    %v7710 = vmul.f32 %v7386, 0.5
    %v7711 = vmul.f32 %v7390, 0.5
    %v7712 = vmul.f32 %v7392, 0.5
    %v7713 = vmul.f32 %v7394, 0.5
    %v7714 = vmul.f32 %v7396, 0.5
    %v7715 = vmul.f32 %v7400, 0.5
    %v7716 = vmul.f32 %v7402, 0.5
    %v7717 = vmul.f32 %v7404, 0.5
    %v7718 = vmul.f32 %v7406, 0.5
    %v7719 = vmul.f32 %v7410, 0.5
    %v7720 = vmul.f32 %v7412, 0.5
    %v7721 = vmul.f32 %v7414, 0.5
    %v7722 = vmul.f32 %v7416, 0.5
    %v7723 = vmul.f32 %v7420, 0.5
    %v7724 = vmul.f32 %v7422, 0.5
    %v7725 = vmul.f32 %v7424, 0.5
    %v7726 = vmul.f32 %v7426, 0.5
    %v7727 = vmul.f32 %v7430, 0.5
    %v7728 = vmul.f32 %v7432, 0.5
    %v7729 = vmul.f32 %v7434, 0.5
    %v7730 = vmul.f32 %v7436, 0.5
    %v7731 = vmul.f32 %v7440, 0.5
    %v7732 = vmul.f32 %v7442, 0.5
    %v7733 = vmul.f32 %v7444, 0.5
    %v7734 = vmul.f32 %v7446, 0.5
    %v7735 = vmul.f32 %v7450, 0.5
    %v7736 = vmul.f32 %v7452, 0.5
    %v7737 = vmul.f32 %v7454, 0.5
    %v7738 = vmul.f32 %v7456, 0.5
    %v7739 = vmul.f32 %v7460, 0.5
    %v7740 = vmul.f32 %v7462, 0.5
    %v7741 = vmul.f32 %v7464, 0.5
    %v7742 = vmul.f32 %v7466, 0.5
    %v7743 = vmul.f32 %v7470, 0.5
    %v7744 = vmul.f32 %v7472, 0.5
    %v7745 = vmul.f32 %v7474, 0.5
    %v7746 = vmul.f32 %v7476, 0.5
    %v7747 = vmul.f32 %v7480, 0.5
    %v7748 = vmul.f32 %v7482, 0.5
    %v7749 = vmul.f32 %v7484, 0.5
    %v7750 = vmul.f32 %v7486, 0.5
    %v7751 = vmul.f32 %v7490, 0.5
    %v7752 = vmul.f32 %v7492, 0.5
    %v7753 = vmul.f32 %v7494, 0.5
    %v7754 = vmul.f32 %v7496, 0.5
    %v7755 = vmul.f32 %v7340, 0.70710677
    %v7756 = vmul.f32 %v7342, 0.70710677
    %v7757 = vmul.f32 %v7344, 0.70710677
    %v7758 = vmul.f32 %v7346, 0.70710677
    %v7759 = vmul.f32 %v7350, 0.70710677
    %v7760 = vmul.f32 %v7352, 0.70710677
    %v7761 = vmul.f32 %v7354, 0.70710677
    %v7762 = vmul.f32 %v7356, 0.70710677
    %v7763 = vmul.f32 %v7360, 0.70710677
    %v7764 = vmul.f32 %v7362, 0.70710677
    %v7765 = vmul.f32 %v7364, 0.70710677
    %v7766 = vmul.f32 %v7366, 0.70710677
    %v7767 = vmul.f32 %v7370, 0.70710677
    %v7768 = vmul.f32 %v7372, 0.70710677
    %v7769 = vmul.f32 %v7374, 0.70710677
    %v7770 = vmul.f32 %v7376, 0.70710677
    %v7771 = vmul.f32 %v7380, 0.70710677
    %v7772 = vmul.f32 %v7382, 0.70710677
    %v7773 = vmul.f32 %v7384, 0.70710677
    %v7774 = vmul.f32 %v7386, 0.70710677
    %v7775 = vmul.f32 %v7390, 0.70710677
    %v7776 = vmul.f32 %v7392, 0.70710677
    %v7777 = vmul.f32 %v7394, 0.70710677
    %v7778 = vmul.f32 %v7396, 0.70710677
    %v7779 = vmul.f32 %v7400, 0.70710677
    %v7780 = vmul.f32 %v7402, 0.70710677
    %v7781 = vmul.f32 %v7404, 0.70710677
    %v7782 = vmul.f32 %v7406, 0.70710677
    %v7783 = vmul.f32 %v7410, 0.70710677
    %v7784 = vmul.f32 %v7412, 0.70710677
    %v7785 = vmul.f32 %v7414, 0.70710677
    %v7786 = vmul.f32 %v7416, 0.70710677
    %v7787 = vmul.f32 %v7420, 0.70710677
    %v7788 = vmul.f32 %v7422, 0.70710677
    %v7789 = vmul.f32 %v7424, 0.70710677
    %v7790 = vmul.f32 %v7426, 0.70710677
    %v7791 = vmul.f32 %v7430, 0.70710677
    %v7792 = vmul.f32 %v7432, 0.70710677
    %v7793 = vmul.f32 %v7434, 0.70710677
    %v7794 = vmul.f32 %v7436, 0.70710677
    %v7795 = vmul.f32 %v7440, 0.70710677
    %v7796 = vmul.f32 %v7442, 0.70710677
    %v7797 = vmul.f32 %v7444, 0.70710677
    %v7798 = vmul.f32 %v7446, 0.70710677
    %v7799 = vmul.f32 %v7450, 0.70710677
    %v7800 = vmul.f32 %v7452, 0.70710677
    %v7801 = vmul.f32 %v7454, 0.70710677
    %v7802 = vmul.f32 %v7456, 0.70710677
    %v7803 = vmul.f32 %v7460, 0.70710677
    %v7804 = vmul.f32 %v7462, 0.70710677
    %v7805 = vmul.f32 %v7464, 0.70710677
    %v7806 = vmul.f32 %v7466, 0.70710677
    %v7807 = vmul.f32 %v7470, 0.70710677
    %v7808 = vmul.f32 %v7472, 0.70710677
    %v7809 = vmul.f32 %v7474, 0.70710677
    %v7810 = vmul.f32 %v7476, 0.70710677
    %v7811 = vmul.f32 %v7480, 0.70710677
    %v7812 = vmul.f32 %v7482, 0.70710677
    %v7813 = vmul.f32 %v7484, 0.70710677
    %v7814 = vmul.f32 %v7486, 0.70710677
    %v7815 = vmul.f32 %v7490, 0.70710677
    %v7816 = vmul.f32 %v7492, 0.70710677
    %v7817 = vmul.f32 %v7494, 0.70710677
    %v7818 = vmul.f32 %v7496, 0.70710677
    %v7819 = vand.u32 2147483647, %v7755
    %v7820 = vand.u32 2147483647, %v7756
    %v7821 = vand.u32 2147483647, %v7757
    %v7822 = vand.u32 2147483647, %v7758
    %v7823 = vand.u32 2147483647, %v7759
    %v7824 = vand.u32 2147483647, %v7760
    %v7825 = vand.u32 2147483647, %v7761
    %v7826 = vand.u32 2147483647, %v7762
    %v7827 = vand.u32 2147483647, %v7763
    %v7828 = vand.u32 2147483647, %v7764
    %v7829 = vand.u32 2147483647, %v7765
    %v7830 = vand.u32 2147483647, %v7766
    %v7831 = vand.u32 2147483647, %v7767
    %v7832 = vand.u32 2147483647, %v7768
    %v7833 = vand.u32 2147483647, %v7769
    %v7834 = vand.u32 2147483647, %v7770
    %v7835 = vand.u32 2147483647, %v7771
    %v7836 = vand.u32 2147483647, %v7772
    %v7837 = vand.u32 2147483647, %v7773
    %v7838 = vand.u32 2147483647, %v7774
    %v7839 = vand.u32 2147483647, %v7775
    %v7840 = vand.u32 2147483647, %v7776
    %v7841 = vand.u32 2147483647, %v7777
    %v7842 = vand.u32 2147483647, %v7778
    %v7843 = vand.u32 2147483647, %v7779
    %v7844 = vand.u32 2147483647, %v7780
    %v7845 = vand.u32 2147483647, %v7781
    %v7846 = vand.u32 2147483647, %v7782
    %v7847 = vand.u32 2147483647, %v7783
    %v7848 = vand.u32 2147483647, %v7784
    %v7849 = vand.u32 2147483647, %v7785
    %v7850 = vand.u32 2147483647, %v7786
    %v7851 = vand.u32 2147483647, %v7787
    %v7852 = vand.u32 2147483647, %v7788
    %v7853 = vand.u32 2147483647, %v7789
    %v7854 = vand.u32 2147483647, %v7790
    %v7855 = vand.u32 2147483647, %v7791
    %v7856 = vand.u32 2147483647, %v7792
    %v7857 = vand.u32 2147483647, %v7793
    %v7858 = vand.u32 2147483647, %v7794
    %v7859 = vand.u32 2147483647, %v7795
    %v7860 = vand.u32 2147483647, %v7796
    %v7861 = vand.u32 2147483647, %v7797
    %v7862 = vand.u32 2147483647, %v7798
    %v7863 = vand.u32 2147483647, %v7799
    %v7864 = vand.u32 2147483647, %v7800
    %v7865 = vand.u32 2147483647, %v7801
    %v7866 = vand.u32 2147483647, %v7802
    %v7867 = vand.u32 2147483647, %v7803
    %v7868 = vand.u32 2147483647, %v7804
    %v7869 = vand.u32 2147483647, %v7805
    %v7870 = vand.u32 2147483647, %v7806
    %v7871 = vand.u32 2147483647, %v7807
    %v7872 = vand.u32 2147483647, %v7808
    %v7873 = vand.u32 2147483647, %v7809
    %v7874 = vand.u32 2147483647, %v7810
    %v7875 = vand.u32 2147483647, %v7811
    %v7876 = vand.u32 2147483647, %v7812
    %v7877 = vand.u32 2147483647, %v7813
    %v7878 = vand.u32 2147483647, %v7814
    %v7879 = vand.u32 2147483647, %v7815
    %v7880 = vand.u32 2147483647, %v7816
    %v7881 = vand.u32 2147483647, %v7817
    %v7882 = vand.u32 2147483647, %v7818
    %v7883 = vmul.f32 %v7819, 0.3275911
    %v7884 = vmul.f32 %v7820, 0.3275911
    %v7885 = vmul.f32 %v7821, 0.3275911
    %v7886 = vmul.f32 %v7822, 0.3275911
    %v7887 = vmul.f32 %v7823, 0.3275911
    %v7888 = vmul.f32 %v7824, 0.3275911
    %v7889 = vmul.f32 %v7825, 0.3275911
    %v7890 = vmul.f32 %v7826, 0.3275911
    %v7891 = vmul.f32 %v7827, 0.3275911
    %v7892 = vmul.f32 %v7828, 0.3275911
    %v7893 = vmul.f32 %v7829, 0.3275911
    %v7894 = vmul.f32 %v7830, 0.3275911
    %v7895 = vmul.f32 %v7831, 0.3275911
    %v7896 = vmul.f32 %v7832, 0.3275911
    %v7897 = vmul.f32 %v7833, 0.3275911
    %v7898 = vmul.f32 %v7834, 0.3275911
    %v7899 = vmul.f32 %v7835, 0.3275911
    %v7900 = vmul.f32 %v7836, 0.3275911
    %v7901 = vmul.f32 %v7837, 0.3275911
    %v7902 = vmul.f32 %v7838, 0.3275911
    %v7903 = vmul.f32 %v7839, 0.3275911
    %v7904 = vmul.f32 %v7840, 0.3275911
    %v7905 = vmul.f32 %v7841, 0.3275911
    %v7906 = vmul.f32 %v7842, 0.3275911
    %v7907 = vmul.f32 %v7843, 0.3275911
    %v7908 = vmul.f32 %v7844, 0.3275911
    %v7909 = vmul.f32 %v7845, 0.3275911
    %v7910 = vmul.f32 %v7846, 0.3275911
    %v7911 = vmul.f32 %v7847, 0.3275911
    %v7912 = vmul.f32 %v7848, 0.3275911
    %v7913 = vmul.f32 %v7849, 0.3275911
    %v7914 = vmul.f32 %v7850, 0.3275911
    %v7915 = vmul.f32 %v7851, 0.3275911
    %v7916 = vmul.f32 %v7852, 0.3275911
    %v7917 = vmul.f32 %v7853, 0.3275911
    %v7918 = vmul.f32 %v7854, 0.3275911
    %v7919 = vmul.f32 %v7855, 0.3275911
    %v7920 = vmul.f32 %v7856, 0.3275911
    %v7921 = vmul.f32 %v7857, 0.3275911
    %v7922 = vmul.f32 %v7858, 0.3275911
    %v7923 = vmul.f32 %v7859, 0.3275911
    %v7924 = vmul.f32 %v7860, 0.3275911
    %v7925 = vmul.f32 %v7861, 0.3275911
    %v7926 = vmul.f32 %v7862, 0.3275911
    %v7927 = vmul.f32 %v7863, 0.3275911
    %v7928 = vmul.f32 %v7864, 0.3275911
    %v7929 = vmul.f32 %v7865, 0.3275911
    %v7930 = vmul.f32 %v7866, 0.3275911
    %v7931 = vmul.f32 %v7867, 0.3275911
    %v7932 = vmul.f32 %v7868, 0.3275911
    %v7933 = vmul.f32 %v7869, 0.3275911
    %v7934 = vmul.f32 %v7870, 0.3275911
    %v7935 = vmul.f32 %v7871, 0.3275911
    %v7936 = vmul.f32 %v7872, 0.3275911
    %v7937 = vmul.f32 %v7873, 0.3275911
    %v7938 = vmul.f32 %v7874, 0.3275911
    %v7939 = vmul.f32 %v7875, 0.3275911
    %v7940 = vmul.f32 %v7876, 0.3275911
    %v7941 = vmul.f32 %v7877, 0.3275911
    %v7942 = vmul.f32 %v7878, 0.3275911
    %v7943 = vmul.f32 %v7879, 0.3275911
    %v7944 = vmul.f32 %v7880, 0.3275911
    %v7945 = vmul.f32 %v7881, 0.3275911
    %v7946 = vmul.f32 %v7882, 0.3275911
    %v7947 = vadd.f32 %v7883, 1.0
    %v7948 = vadd.f32 %v7884, 1.0
    %v7949 = vadd.f32 %v7885, 1.0
    %v7950 = vadd.f32 %v7886, 1.0
    %v7951 = vadd.f32 %v7887, 1.0
    %v7952 = vadd.f32 %v7888, 1.0
    %v7953 = vadd.f32 %v7889, 1.0
    %v7954 = vadd.f32 %v7890, 1.0
    %v7955 = vadd.f32 %v7891, 1.0
    %v7956 = vadd.f32 %v7892, 1.0
    %v7957 = vadd.f32 %v7893, 1.0
    %v7958 = vadd.f32 %v7894, 1.0
    %v7959 = vadd.f32 %v7895, 1.0
    %v7960 = vadd.f32 %v7896, 1.0
    %v7961 = vadd.f32 %v7897, 1.0
    %v7962 = vadd.f32 %v7898, 1.0
    %v7963 = vadd.f32 %v7899, 1.0
    %v7964 = vadd.f32 %v7900, 1.0
    %v7965 = vadd.f32 %v7901, 1.0
    %v7966 = vadd.f32 %v7902, 1.0
    %v7967 = vadd.f32 %v7903, 1.0
    %v7968 = vadd.f32 %v7904, 1.0
    %v7969 = vadd.f32 %v7905, 1.0
    %v7970 = vadd.f32 %v7906, 1.0
    %v7971 = vadd.f32 %v7907, 1.0
    %v7972 = vadd.f32 %v7908, 1.0
    %v7973 = vadd.f32 %v7909, 1.0
    %v7974 = vadd.f32 %v7910, 1.0
    %v7975 = vadd.f32 %v7911, 1.0
    %v7976 = vadd.f32 %v7912, 1.0
    %v7977 = vadd.f32 %v7913, 1.0
    %v7978 = vadd.f32 %v7914, 1.0
    %v7979 = vadd.f32 %v7915, 1.0
    %v7980 = vadd.f32 %v7916, 1.0
    %v7981 = vadd.f32 %v7917, 1.0
    %v7982 = vadd.f32 %v7918, 1.0
    %v7983 = vadd.f32 %v7919, 1.0
    %v7984 = vadd.f32 %v7920, 1.0
    %v7985 = vadd.f32 %v7921, 1.0
    %v7986 = vadd.f32 %v7922, 1.0
    %v7987 = vadd.f32 %v7923, 1.0
    %v7988 = vadd.f32 %v7924, 1.0
    %v7989 = vadd.f32 %v7925, 1.0
    %v7990 = vadd.f32 %v7926, 1.0
    %v7991 = vadd.f32 %v7927, 1.0
    %v7992 = vadd.f32 %v7928, 1.0
    %v7993 = vadd.f32 %v7929, 1.0
    %v7994 = vadd.f32 %v7930, 1.0
    %v7995 = vadd.f32 %v7931, 1.0
    %v7996 = vadd.f32 %v7932, 1.0
    %v7997 = vadd.f32 %v7933, 1.0
    %v7998 = vadd.f32 %v7934, 1.0
    %v7999 = vadd.f32 %v7935, 1.0
    %v8000 = vadd.f32 %v7936, 1.0
    %v8001 = vadd.f32 %v7937, 1.0
    %v8002 = vadd.f32 %v7938, 1.0
    %v8003 = vadd.f32 %v7939, 1.0
    %v8004 = vadd.f32 %v7940, 1.0
    %v8005 = vadd.f32 %v7941, 1.0
    %v8006 = vadd.f32 %v7942, 1.0
    %v8007 = vadd.f32 %v7943, 1.0
    %v8008 = vadd.f32 %v7944, 1.0
    %v8009 = vadd.f32 %v7945, 1.0
    %v8010 = vadd.f32 %v7946, 1.0
    %v8011 = vrcp.pop %v7947
    %v8012 = vmul.f32 1.0, %v8011
    %v8013 = vrcp.pop %v7948
    %v8014 = vmul.f32 1.0, %v8013
    %v8015 = vrcp.pop %v7949
    %v8016 = vmul.f32 1.0, %v8015
    %v8017 = vrcp.pop %v7950
    %v8018 = vmul.f32 1.0, %v8017
    %v8019 = vrcp.pop %v7951
    %v8020 = vmul.f32 1.0, %v8019
    %v8021 = vrcp.pop %v7952
    %v8022 = vmul.f32 1.0, %v8021
    %v8023 = vrcp.pop %v7953
    %v8024 = vmul.f32 1.0, %v8023
    %v8025 = vrcp.pop %v7954
    %v8026 = vmul.f32 1.0, %v8025
    %v8027 = vrcp.pop %v7955
    %v8028 = vmul.f32 1.0, %v8027
    %v8029 = vrcp.pop %v7956
    %v8030 = vmul.f32 1.0, %v8029
    %v8031 = vrcp.pop %v7957
    %v8032 = vmul.f32 1.0, %v8031
    %v8033 = vrcp.pop %v7958
    %v8034 = vmul.f32 1.0, %v8033
    %v8035 = vrcp.pop %v7959
    %v8036 = vmul.f32 1.0, %v8035
    %v8037 = vrcp.pop %v7960
    %v8038 = vmul.f32 1.0, %v8037
    %v8039 = vrcp.pop %v7961
    %v8040 = vmul.f32 1.0, %v8039
    %v8041 = vrcp.pop %v7962
    %v8042 = vmul.f32 1.0, %v8041
    %v8043 = vrcp.pop %v7963
    %v8044 = vmul.f32 1.0, %v8043
    %v8045 = vrcp.pop %v7964
    %v8046 = vmul.f32 1.0, %v8045
    %v8047 = vrcp.pop %v7965
    %v8048 = vmul.f32 1.0, %v8047
    %v8049 = vrcp.pop %v7966
    %v8050 = vmul.f32 1.0, %v8049
    %v8051 = vrcp.pop %v7967
    %v8052 = vmul.f32 1.0, %v8051
    %v8053 = vrcp.pop %v7968
    %v8054 = vmul.f32 1.0, %v8053
    %v8055 = vrcp.pop %v7969
    %v8056 = vmul.f32 1.0, %v8055
    %v8057 = vrcp.pop %v7970
    %v8058 = vmul.f32 1.0, %v8057
    %v8059 = vrcp.pop %v7971
    %v8060 = vmul.f32 1.0, %v8059
    %v8061 = vrcp.pop %v7972
    %v8062 = vmul.f32 1.0, %v8061
    %v8063 = vrcp.pop %v7973
    %v8064 = vmul.f32 1.0, %v8063
    %v8065 = vrcp.pop %v7974
    %v8066 = vmul.f32 1.0, %v8065
    %v8067 = vrcp.pop %v7975
    %v8068 = vmul.f32 1.0, %v8067
    %v8069 = vrcp.pop %v7976
    %v8070 = vmul.f32 1.0, %v8069
    %v8071 = vrcp.pop %v7977
    %v8072 = vmul.f32 1.0, %v8071
    %v8073 = vrcp.pop %v7978
    %v8074 = vmul.f32 1.0, %v8073
    %v8075 = vrcp.pop %v7979
    %v8076 = vmul.f32 1.0, %v8075
    %v8077 = vrcp.pop %v7980
    %v8078 = vmul.f32 1.0, %v8077
    %v8079 = vrcp.pop %v7981
    %v8080 = vmul.f32 1.0, %v8079
    %v8081 = vrcp.pop %v7982
    %v8082 = vmul.f32 1.0, %v8081
    %v8083 = vrcp.pop %v7983
    %v8084 = vmul.f32 1.0, %v8083
    %v8085 = vrcp.pop %v7984
    %v8086 = vmul.f32 1.0, %v8085
    %v8087 = vrcp.pop %v7985
    %v8088 = vmul.f32 1.0, %v8087
    %v8089 = vrcp.pop %v7986
    %v8090 = vmul.f32 1.0, %v8089
    %v8091 = vrcp.pop %v7987
    %v8092 = vmul.f32 1.0, %v8091
    %v8093 = vrcp.pop %v7988
    %v8094 = vmul.f32 1.0, %v8093
    %v8095 = vrcp.pop %v7989
    %v8096 = vmul.f32 1.0, %v8095
    %v8097 = vrcp.pop %v7990
    %v8098 = vmul.f32 1.0, %v8097
    %v8099 = vrcp.pop %v7991
    %v8100 = vmul.f32 1.0, %v8099
    %v8101 = vrcp.pop %v7992
    %v8102 = vmul.f32 1.0, %v8101
    %v8103 = vrcp.pop %v7993
    %v8104 = vmul.f32 1.0, %v8103
    %v8105 = vrcp.pop %v7994
    %v8106 = vmul.f32 1.0, %v8105
    %v8107 = vrcp.pop %v7995
    %v8108 = vmul.f32 1.0, %v8107
    %v8109 = vrcp.pop %v7996
    %v8110 = vmul.f32 1.0, %v8109
    %v8111 = vrcp.pop %v7997
    %v8112 = vmul.f32 1.0, %v8111
    %v8113 = vrcp.pop %v7998
    %v8114 = vmul.f32 1.0, %v8113
    %v8115 = vrcp.pop %v7999
    %v8116 = vmul.f32 1.0, %v8115
    %v8117 = vrcp.pop %v8000
    %v8118 = vmul.f32 1.0, %v8117
    %v8119 = vrcp.pop %v8001
    %v8120 = vmul.f32 1.0, %v8119
    %v8121 = vrcp.pop %v8002
    %v8122 = vmul.f32 1.0, %v8121
    %v8123 = vrcp.pop %v8003
    %v8124 = vmul.f32 1.0, %v8123
    %v8125 = vrcp.pop %v8004
    %v8126 = vmul.f32 1.0, %v8125
    %v8127 = vrcp.pop %v8005
    %v8128 = vmul.f32 1.0, %v8127
    %v8129 = vrcp.pop %v8006
    %v8130 = vmul.f32 1.0, %v8129
    %v8131 = vrcp.pop %v8007
    %v8132 = vmul.f32 1.0, %v8131
    %v8133 = vrcp.pop %v8008
    %v8134 = vmul.f32 1.0, %v8133
    %v8135 = vrcp.pop %v8009
    %v8136 = vmul.f32 1.0, %v8135
    %v8137 = vrcp.pop %v8010
    %v8138 = vmul.f32 1.0, %v8137
    %v8139 = vmul.f32 %v8012, 1.0614054
    %v8140 = vmul.f32 %v8014, 1.0614054
    %v8141 = vmul.f32 %v8016, 1.0614054
    %v8142 = vmul.f32 %v8018, 1.0614054
    %v8143 = vmul.f32 %v8020, 1.0614054
    %v8144 = vmul.f32 %v8022, 1.0614054
    %v8145 = vmul.f32 %v8024, 1.0614054
    %v8146 = vmul.f32 %v8026, 1.0614054
    %v8147 = vmul.f32 %v8028, 1.0614054
    %v8148 = vmul.f32 %v8030, 1.0614054
    %v8149 = vmul.f32 %v8032, 1.0614054
    %v8150 = vmul.f32 %v8034, 1.0614054
    %v8151 = vmul.f32 %v8036, 1.0614054
    %v8152 = vmul.f32 %v8038, 1.0614054
    %v8153 = vmul.f32 %v8040, 1.0614054
    %v8154 = vmul.f32 %v8042, 1.0614054
    %v8155 = vmul.f32 %v8044, 1.0614054
    %v8156 = vmul.f32 %v8046, 1.0614054
    %v8157 = vmul.f32 %v8048, 1.0614054
    %v8158 = vmul.f32 %v8050, 1.0614054
    %v8159 = vmul.f32 %v8052, 1.0614054
    %v8160 = vmul.f32 %v8054, 1.0614054
    %v8161 = vmul.f32 %v8056, 1.0614054
    %v8162 = vmul.f32 %v8058, 1.0614054
    %v8163 = vmul.f32 %v8060, 1.0614054
    %v8164 = vmul.f32 %v8062, 1.0614054
    %v8165 = vmul.f32 %v8064, 1.0614054
    %v8166 = vmul.f32 %v8066, 1.0614054
    %v8167 = vmul.f32 %v8068, 1.0614054
    %v8168 = vmul.f32 %v8070, 1.0614054
    %v8169 = vmul.f32 %v8072, 1.0614054
    %v8170 = vmul.f32 %v8074, 1.0614054
    %v8171 = vmul.f32 %v8076, 1.0614054
    %v8172 = vmul.f32 %v8078, 1.0614054
    %v8173 = vmul.f32 %v8080, 1.0614054
    %v8174 = vmul.f32 %v8082, 1.0614054
    %v8175 = vmul.f32 %v8084, 1.0614054
    %v8176 = vmul.f32 %v8086, 1.0614054
    %v8177 = vmul.f32 %v8088, 1.0614054
    %v8178 = vmul.f32 %v8090, 1.0614054
    %v8179 = vmul.f32 %v8092, 1.0614054
    %v8180 = vmul.f32 %v8094, 1.0614054
    %v8181 = vmul.f32 %v8096, 1.0614054
    %v8182 = vmul.f32 %v8098, 1.0614054
    %v8183 = vmul.f32 %v8100, 1.0614054
    %v8184 = vmul.f32 %v8102, 1.0614054
    %v8185 = vmul.f32 %v8104, 1.0614054
    %v8186 = vmul.f32 %v8106, 1.0614054
    %v8187 = vmul.f32 %v8108, 1.0614054
    %v8188 = vmul.f32 %v8110, 1.0614054
    %v8189 = vmul.f32 %v8112, 1.0614054
    %v8190 = vmul.f32 %v8114, 1.0614054
    %v8191 = vmul.f32 %v8116, 1.0614054
    %v8192 = vmul.f32 %v8118, 1.0614054
    %v8193 = vmul.f32 %v8120, 1.0614054
    %v8194 = vmul.f32 %v8122, 1.0614054
    %v8195 = vmul.f32 %v8124, 1.0614054
    %v8196 = vmul.f32 %v8126, 1.0614054
    %v8197 = vmul.f32 %v8128, 1.0614054
    %v8198 = vmul.f32 %v8130, 1.0614054
    %v8199 = vmul.f32 %v8132, 1.0614054
    %v8200 = vmul.f32 %v8134, 1.0614054
    %v8201 = vmul.f32 %v8136, 1.0614054
    %v8202 = vmul.f32 %v8138, 1.0614054
    %v8203 = vadd.f32 %v8139, -1.4531521
    %v8204 = vadd.f32 %v8140, -1.4531521
    %v8205 = vadd.f32 %v8141, -1.4531521
    %v8206 = vadd.f32 %v8142, -1.4531521
    %v8207 = vadd.f32 %v8143, -1.4531521
    %v8208 = vadd.f32 %v8144, -1.4531521
    %v8209 = vadd.f32 %v8145, -1.4531521
    %v8210 = vadd.f32 %v8146, -1.4531521
    %v8211 = vadd.f32 %v8147, -1.4531521
    %v8212 = vadd.f32 %v8148, -1.4531521
    %v8213 = vadd.f32 %v8149, -1.4531521
    %v8214 = vadd.f32 %v8150, -1.4531521
    %v8215 = vadd.f32 %v8151, -1.4531521
    %v8216 = vadd.f32 %v8152, -1.4531521
    %v8217 = vadd.f32 %v8153, -1.4531521
    %v8218 = vadd.f32 %v8154, -1.4531521
    %v8219 = vadd.f32 %v8155, -1.4531521
    %v8220 = vadd.f32 %v8156, -1.4531521
    %v8221 = vadd.f32 %v8157, -1.4531521
    %v8222 = vadd.f32 %v8158, -1.4531521
    %v8223 = vadd.f32 %v8159, -1.4531521
    %v8224 = vadd.f32 %v8160, -1.4531521
    %v8225 = vadd.f32 %v8161, -1.4531521
    %v8226 = vadd.f32 %v8162, -1.4531521
    %v8227 = vadd.f32 %v8163, -1.4531521
    %v8228 = vadd.f32 %v8164, -1.4531521
    %v8229 = vadd.f32 %v8165, -1.4531521
    %v8230 = vadd.f32 %v8166, -1.4531521
    %v8231 = vadd.f32 %v8167, -1.4531521
    %v8232 = vadd.f32 %v8168, -1.4531521
    %v8233 = vadd.f32 %v8169, -1.4531521
    %v8234 = vadd.f32 %v8170, -1.4531521
    %v8235 = vadd.f32 %v8171, -1.4531521
    %v8236 = vadd.f32 %v8172, -1.4531521
    %v8237 = vadd.f32 %v8173, -1.4531521
    %v8238 = vadd.f32 %v8174, -1.4531521
    %v8239 = vadd.f32 %v8175, -1.4531521
    %v8240 = vadd.f32 %v8176, -1.4531521
    %v8241 = vadd.f32 %v8177, -1.4531521
    %v8242 = vadd.f32 %v8178, -1.4531521
    %v8243 = vadd.f32 %v8179, -1.4531521
    %v8244 = vadd.f32 %v8180, -1.4531521
    %v8245 = vadd.f32 %v8181, -1.4531521
    %v8246 = vadd.f32 %v8182, -1.4531521
    %v8247 = vadd.f32 %v8183, -1.4531521
    %v8248 = vadd.f32 %v8184, -1.4531521
    %v8249 = vadd.f32 %v8185, -1.4531521
    %v8250 = vadd.f32 %v8186, -1.4531521
    %v8251 = vadd.f32 %v8187, -1.4531521
    %v8252 = vadd.f32 %v8188, -1.4531521
    %v8253 = vadd.f32 %v8189, -1.4531521
    %v8254 = vadd.f32 %v8190, -1.4531521
    %v8255 = vadd.f32 %v8191, -1.4531521
    %v8256 = vadd.f32 %v8192, -1.4531521
    %v8257 = vadd.f32 %v8193, -1.4531521
    %v8258 = vadd.f32 %v8194, -1.4531521
    %v8259 = vadd.f32 %v8195, -1.4531521
    %v8260 = vadd.f32 %v8196, -1.4531521
    %v8261 = vadd.f32 %v8197, -1.4531521
    %v8262 = vadd.f32 %v8198, -1.4531521
    %v8263 = vadd.f32 %v8199, -1.4531521
    %v8264 = vadd.f32 %v8200, -1.4531521
    %v8265 = vadd.f32 %v8201, -1.4531521
    %v8266 = vadd.f32 %v8202, -1.4531521
    %v8267 = vmul.f32 %v8203, %v8012
    %v8268 = vmul.f32 %v8204, %v8014
    %v8269 = vmul.f32 %v8205, %v8016
    %v8270 = vmul.f32 %v8206, %v8018
    %v8271 = vmul.f32 %v8207, %v8020
    %v8272 = vmul.f32 %v8208, %v8022
    %v8273 = vmul.f32 %v8209, %v8024
    %v8274 = vmul.f32 %v8210, %v8026
    %v8275 = vmul.f32 %v8211, %v8028
    %v8276 = vmul.f32 %v8212, %v8030
    %v8277 = vmul.f32 %v8213, %v8032
    %v8278 = vmul.f32 %v8214, %v8034
    %v8279 = vmul.f32 %v8215, %v8036
    %v8280 = vmul.f32 %v8216, %v8038
    %v8281 = vmul.f32 %v8217, %v8040
    %v8282 = vmul.f32 %v8218, %v8042
    %v8283 = vmul.f32 %v8219, %v8044
    %v8284 = vmul.f32 %v8220, %v8046
    %v8285 = vmul.f32 %v8221, %v8048
    %v8286 = vmul.f32 %v8222, %v8050
    %v8287 = vmul.f32 %v8223, %v8052
    %v8288 = vmul.f32 %v8224, %v8054
    %v8289 = vmul.f32 %v8225, %v8056
    %v8290 = vmul.f32 %v8226, %v8058
    %v8291 = vmul.f32 %v8227, %v8060
    %v8292 = vmul.f32 %v8228, %v8062
    %v8293 = vmul.f32 %v8229, %v8064
    %v8294 = vmul.f32 %v8230, %v8066
    %v8295 = vmul.f32 %v8231, %v8068
    %v8296 = vmul.f32 %v8232, %v8070
    %v8297 = vmul.f32 %v8233, %v8072
    %v8298 = vmul.f32 %v8234, %v8074
    %v8299 = vmul.f32 %v8235, %v8076
    %v8300 = vmul.f32 %v8236, %v8078
    %v8301 = vmul.f32 %v8237, %v8080
    %v8302 = vmul.f32 %v8238, %v8082
    %v8303 = vmul.f32 %v8239, %v8084
    %v8304 = vmul.f32 %v8240, %v8086
    %v8305 = vmul.f32 %v8241, %v8088
    %v8306 = vmul.f32 %v8242, %v8090
    %v8307 = vmul.f32 %v8243, %v8092
    %v8308 = vmul.f32 %v8244, %v8094
    %v8309 = vmul.f32 %v8245, %v8096
    %v8310 = vmul.f32 %v8246, %v8098
    %v8311 = vmul.f32 %v8247, %v8100
    %v8312 = vmul.f32 %v8248, %v8102
    %v8313 = vmul.f32 %v8249, %v8104
    %v8314 = vmul.f32 %v8250, %v8106
    %v8315 = vmul.f32 %v8251, %v8108
    %v8316 = vmul.f32 %v8252, %v8110
    %v8317 = vmul.f32 %v8253, %v8112
    %v8318 = vmul.f32 %v8254, %v8114
    %v8319 = vmul.f32 %v8255, %v8116
    %v8320 = vmul.f32 %v8256, %v8118
    %v8321 = vmul.f32 %v8257, %v8120
    %v8322 = vmul.f32 %v8258, %v8122
    %v8323 = vmul.f32 %v8259, %v8124
    %v8324 = vmul.f32 %v8260, %v8126
    %v8325 = vmul.f32 %v8261, %v8128
    %v8326 = vmul.f32 %v8262, %v8130
    %v8327 = vmul.f32 %v8263, %v8132
    %v8328 = vmul.f32 %v8264, %v8134
    %v8329 = vmul.f32 %v8265, %v8136
    %v8330 = vmul.f32 %v8266, %v8138
    %v8331 = vadd.f32 %v8267, 1.4214138
    %v8332 = vadd.f32 %v8268, 1.4214138
    %v8333 = vadd.f32 %v8269, 1.4214138
    %v8334 = vadd.f32 %v8270, 1.4214138
    %v8335 = vadd.f32 %v8271, 1.4214138
    %v8336 = vadd.f32 %v8272, 1.4214138
    %v8337 = vadd.f32 %v8273, 1.4214138
    %v8338 = vadd.f32 %v8274, 1.4214138
    %v8339 = vadd.f32 %v8275, 1.4214138
    %v8340 = vadd.f32 %v8276, 1.4214138
    %v8341 = vadd.f32 %v8277, 1.4214138
    %v8342 = vadd.f32 %v8278, 1.4214138
    %v8343 = vadd.f32 %v8279, 1.4214138
    %v8344 = vadd.f32 %v8280, 1.4214138
    %v8345 = vadd.f32 %v8281, 1.4214138
    %v8346 = vadd.f32 %v8282, 1.4214138
    %v8347 = vadd.f32 %v8283, 1.4214138
    %v8348 = vadd.f32 %v8284, 1.4214138
    %v8349 = vadd.f32 %v8285, 1.4214138
    %v8350 = vadd.f32 %v8286, 1.4214138
    %v8351 = vadd.f32 %v8287, 1.4214138
    %v8352 = vadd.f32 %v8288, 1.4214138
    %v8353 = vadd.f32 %v8289, 1.4214138
    %v8354 = vadd.f32 %v8290, 1.4214138
    %v8355 = vadd.f32 %v8291, 1.4214138
    %v8356 = vadd.f32 %v8292, 1.4214138
    %v8357 = vadd.f32 %v8293, 1.4214138
    %v8358 = vadd.f32 %v8294, 1.4214138
    %v8359 = vadd.f32 %v8295, 1.4214138
    %v8360 = vadd.f32 %v8296, 1.4214138
    %v8361 = vadd.f32 %v8297, 1.4214138
    %v8362 = vadd.f32 %v8298, 1.4214138
    %v8363 = vadd.f32 %v8299, 1.4214138
    %v8364 = vadd.f32 %v8300, 1.4214138
    %v8365 = vadd.f32 %v8301, 1.4214138
    %v8366 = vadd.f32 %v8302, 1.4214138
    %v8367 = vadd.f32 %v8303, 1.4214138
    %v8368 = vadd.f32 %v8304, 1.4214138
    %v8369 = vadd.f32 %v8305, 1.4214138
    %v8370 = vadd.f32 %v8306, 1.4214138
    %v8371 = vadd.f32 %v8307, 1.4214138
    %v8372 = vadd.f32 %v8308, 1.4214138
    %v8373 = vadd.f32 %v8309, 1.4214138
    %v8374 = vadd.f32 %v8310, 1.4214138
    %v8375 = vadd.f32 %v8311, 1.4214138
    %v8376 = vadd.f32 %v8312, 1.4214138
    %v8377 = vadd.f32 %v8313, 1.4214138
    %v8378 = vadd.f32 %v8314, 1.4214138
    %v8379 = vadd.f32 %v8315, 1.4214138
    %v8380 = vadd.f32 %v8316, 1.4214138
    %v8381 = vadd.f32 %v8317, 1.4214138
    %v8382 = vadd.f32 %v8318, 1.4214138
    %v8383 = vadd.f32 %v8319, 1.4214138
    %v8384 = vadd.f32 %v8320, 1.4214138
    %v8385 = vadd.f32 %v8321, 1.4214138
    %v8386 = vadd.f32 %v8322, 1.4214138
    %v8387 = vadd.f32 %v8323, 1.4214138
    %v8388 = vadd.f32 %v8324, 1.4214138
    %v8389 = vadd.f32 %v8325, 1.4214138
    %v8390 = vadd.f32 %v8326, 1.4214138
    %v8391 = vadd.f32 %v8327, 1.4214138
    %v8392 = vadd.f32 %v8328, 1.4214138
    %v8393 = vadd.f32 %v8329, 1.4214138
    %v8394 = vadd.f32 %v8330, 1.4214138
    %v8395 = vmul.f32 %v8331, %v8012
    %v8396 = vmul.f32 %v8332, %v8014
    %v8397 = vmul.f32 %v8333, %v8016
    %v8398 = vmul.f32 %v8334, %v8018
    %v8399 = vmul.f32 %v8335, %v8020
    %v8400 = vmul.f32 %v8336, %v8022
    %v8401 = vmul.f32 %v8337, %v8024
    %v8402 = vmul.f32 %v8338, %v8026
    %v8403 = vmul.f32 %v8339, %v8028
    %v8404 = vmul.f32 %v8340, %v8030
    %v8405 = vmul.f32 %v8341, %v8032
    %v8406 = vmul.f32 %v8342, %v8034
    %v8407 = vmul.f32 %v8343, %v8036
    %v8408 = vmul.f32 %v8344, %v8038
    %v8409 = vmul.f32 %v8345, %v8040
    %v8410 = vmul.f32 %v8346, %v8042
    %v8411 = vmul.f32 %v8347, %v8044
    %v8412 = vmul.f32 %v8348, %v8046
    %v8413 = vmul.f32 %v8349, %v8048
    %v8414 = vmul.f32 %v8350, %v8050
    %v8415 = vmul.f32 %v8351, %v8052
    %v8416 = vmul.f32 %v8352, %v8054
    %v8417 = vmul.f32 %v8353, %v8056
    %v8418 = vmul.f32 %v8354, %v8058
    %v8419 = vmul.f32 %v8355, %v8060
    %v8420 = vmul.f32 %v8356, %v8062
    %v8421 = vmul.f32 %v8357, %v8064
    %v8422 = vmul.f32 %v8358, %v8066
    %v8423 = vmul.f32 %v8359, %v8068
    %v8424 = vmul.f32 %v8360, %v8070
    %v8425 = vmul.f32 %v8361, %v8072
    %v8426 = vmul.f32 %v8362, %v8074
    %v8427 = vmul.f32 %v8363, %v8076
    %v8428 = vmul.f32 %v8364, %v8078
    %v8429 = vmul.f32 %v8365, %v8080
    %v8430 = vmul.f32 %v8366, %v8082
    %v8431 = vmul.f32 %v8367, %v8084
    %v8432 = vmul.f32 %v8368, %v8086
    %v8433 = vmul.f32 %v8369, %v8088
    %v8434 = vmul.f32 %v8370, %v8090
    %v8435 = vmul.f32 %v8371, %v8092
    %v8436 = vmul.f32 %v8372, %v8094
    %v8437 = vmul.f32 %v8373, %v8096
    %v8438 = vmul.f32 %v8374, %v8098
    %v8439 = vmul.f32 %v8375, %v8100
    %v8440 = vmul.f32 %v8376, %v8102
    %v8441 = vmul.f32 %v8377, %v8104
    %v8442 = vmul.f32 %v8378, %v8106
    %v8443 = vmul.f32 %v8379, %v8108
    %v8444 = vmul.f32 %v8380, %v8110
    %v8445 = vmul.f32 %v8381, %v8112
    %v8446 = vmul.f32 %v8382, %v8114
    %v8447 = vmul.f32 %v8383, %v8116
    %v8448 = vmul.f32 %v8384, %v8118
    %v8449 = vmul.f32 %v8385, %v8120
    %v8450 = vmul.f32 %v8386, %v8122
    %v8451 = vmul.f32 %v8387, %v8124
    %v8452 = vmul.f32 %v8388, %v8126
    %v8453 = vmul.f32 %v8389, %v8128
    %v8454 = vmul.f32 %v8390, %v8130
    %v8455 = vmul.f32 %v8391, %v8132
    %v8456 = vmul.f32 %v8392, %v8134
    %v8457 = vmul.f32 %v8393, %v8136
    %v8458 = vmul.f32 %v8394, %v8138
    %v8459 = vadd.f32 %v8395, -0.28449672
    %v8460 = vadd.f32 %v8396, -0.28449672
    %v8461 = vadd.f32 %v8397, -0.28449672
    %v8462 = vadd.f32 %v8398, -0.28449672
    %v8463 = vadd.f32 %v8399, -0.28449672
    %v8464 = vadd.f32 %v8400, -0.28449672
    %v8465 = vadd.f32 %v8401, -0.28449672
    %v8466 = vadd.f32 %v8402, -0.28449672
    %v8467 = vadd.f32 %v8403, -0.28449672
    %v8468 = vadd.f32 %v8404, -0.28449672
    %v8469 = vadd.f32 %v8405, -0.28449672
    %v8470 = vadd.f32 %v8406, -0.28449672
    %v8471 = vadd.f32 %v8407, -0.28449672
    %v8472 = vadd.f32 %v8408, -0.28449672
    %v8473 = vadd.f32 %v8409, -0.28449672
    %v8474 = vadd.f32 %v8410, -0.28449672
    %v8475 = vadd.f32 %v8411, -0.28449672
    %v8476 = vadd.f32 %v8412, -0.28449672
    %v8477 = vadd.f32 %v8413, -0.28449672
    %v8478 = vadd.f32 %v8414, -0.28449672
    %v8479 = vadd.f32 %v8415, -0.28449672
    %v8480 = vadd.f32 %v8416, -0.28449672
    %v8481 = vadd.f32 %v8417, -0.28449672
    %v8482 = vadd.f32 %v8418, -0.28449672
    %v8483 = vadd.f32 %v8419, -0.28449672
    %v8484 = vadd.f32 %v8420, -0.28449672
    %v8485 = vadd.f32 %v8421, -0.28449672
    %v8486 = vadd.f32 %v8422, -0.28449672
    %v8487 = vadd.f32 %v8423, -0.28449672
    %v8488 = vadd.f32 %v8424, -0.28449672
    %v8489 = vadd.f32 %v8425, -0.28449672
    %v8490 = vadd.f32 %v8426, -0.28449672
    %v8491 = vadd.f32 %v8427, -0.28449672
    %v8492 = vadd.f32 %v8428, -0.28449672
    %v8493 = vadd.f32 %v8429, -0.28449672
    %v8494 = vadd.f32 %v8430, -0.28449672
    %v8495 = vadd.f32 %v8431, -0.28449672
    %v8496 = vadd.f32 %v8432, -0.28449672
    %v8497 = vadd.f32 %v8433, -0.28449672
    %v8498 = vadd.f32 %v8434, -0.28449672
    %v8499 = vadd.f32 %v8435, -0.28449672
    %v8500 = vadd.f32 %v8436, -0.28449672
    %v8501 = vadd.f32 %v8437, -0.28449672
    %v8502 = vadd.f32 %v8438, -0.28449672
    %v8503 = vadd.f32 %v8439, -0.28449672
    %v8504 = vadd.f32 %v8440, -0.28449672
    %v8505 = vadd.f32 %v8441, -0.28449672
    %v8506 = vadd.f32 %v8442, -0.28449672
    %v8507 = vadd.f32 %v8443, -0.28449672
    %v8508 = vadd.f32 %v8444, -0.28449672
    %v8509 = vadd.f32 %v8445, -0.28449672
    %v8510 = vadd.f32 %v8446, -0.28449672
    %v8511 = vadd.f32 %v8447, -0.28449672
    %v8512 = vadd.f32 %v8448, -0.28449672
    %v8513 = vadd.f32 %v8449, -0.28449672
    %v8514 = vadd.f32 %v8450, -0.28449672
    %v8515 = vadd.f32 %v8451, -0.28449672
    %v8516 = vadd.f32 %v8452, -0.28449672
    %v8517 = vadd.f32 %v8453, -0.28449672
    %v8518 = vadd.f32 %v8454, -0.28449672
    %v8519 = vadd.f32 %v8455, -0.28449672
    %v8520 = vadd.f32 %v8456, -0.28449672
    %v8521 = vadd.f32 %v8457, -0.28449672
    %v8522 = vadd.f32 %v8458, -0.28449672
    %v8523 = vmul.f32 %v8459, %v8012
    %v8524 = vmul.f32 %v8460, %v8014
    %v8525 = vmul.f32 %v8461, %v8016
    %v8526 = vmul.f32 %v8462, %v8018
    %v8527 = vmul.f32 %v8463, %v8020
    %v8528 = vmul.f32 %v8464, %v8022
    %v8529 = vmul.f32 %v8465, %v8024
    %v8530 = vmul.f32 %v8466, %v8026
    %v8531 = vmul.f32 %v8467, %v8028
    %v8532 = vmul.f32 %v8468, %v8030
    %v8533 = vmul.f32 %v8469, %v8032
    %v8534 = vmul.f32 %v8470, %v8034
    %v8535 = vmul.f32 %v8471, %v8036
    %v8536 = vmul.f32 %v8472, %v8038
    %v8537 = vmul.f32 %v8473, %v8040
    %v8538 = vmul.f32 %v8474, %v8042
    %v8539 = vmul.f32 %v8475, %v8044
    %v8540 = vmul.f32 %v8476, %v8046
    %v8541 = vmul.f32 %v8477, %v8048
    %v8542 = vmul.f32 %v8478, %v8050
    %v8543 = vmul.f32 %v8479, %v8052
    %v8544 = vmul.f32 %v8480, %v8054
    %v8545 = vmul.f32 %v8481, %v8056
    %v8546 = vmul.f32 %v8482, %v8058
    %v8547 = vmul.f32 %v8483, %v8060
    %v8548 = vmul.f32 %v8484, %v8062
    %v8549 = vmul.f32 %v8485, %v8064
    %v8550 = vmul.f32 %v8486, %v8066
    %v8551 = vmul.f32 %v8487, %v8068
    %v8552 = vmul.f32 %v8488, %v8070
    %v8553 = vmul.f32 %v8489, %v8072
    %v8554 = vmul.f32 %v8490, %v8074
    %v8555 = vmul.f32 %v8491, %v8076
    %v8556 = vmul.f32 %v8492, %v8078
    %v8557 = vmul.f32 %v8493, %v8080
    %v8558 = vmul.f32 %v8494, %v8082
    %v8559 = vmul.f32 %v8495, %v8084
    %v8560 = vmul.f32 %v8496, %v8086
    %v8561 = vmul.f32 %v8497, %v8088
    %v8562 = vmul.f32 %v8498, %v8090
    %v8563 = vmul.f32 %v8499, %v8092
    %v8564 = vmul.f32 %v8500, %v8094
    %v8565 = vmul.f32 %v8501, %v8096
    %v8566 = vmul.f32 %v8502, %v8098
    %v8567 = vmul.f32 %v8503, %v8100
    %v8568 = vmul.f32 %v8504, %v8102
    %v8569 = vmul.f32 %v8505, %v8104
    %v8570 = vmul.f32 %v8506, %v8106
    %v8571 = vmul.f32 %v8507, %v8108
    %v8572 = vmul.f32 %v8508, %v8110
    %v8573 = vmul.f32 %v8509, %v8112
    %v8574 = vmul.f32 %v8510, %v8114
    %v8575 = vmul.f32 %v8511, %v8116
    %v8576 = vmul.f32 %v8512, %v8118
    %v8577 = vmul.f32 %v8513, %v8120
    %v8578 = vmul.f32 %v8514, %v8122
    %v8579 = vmul.f32 %v8515, %v8124
    %v8580 = vmul.f32 %v8516, %v8126
    %v8581 = vmul.f32 %v8517, %v8128
    %v8582 = vmul.f32 %v8518, %v8130
    %v8583 = vmul.f32 %v8519, %v8132
    %v8584 = vmul.f32 %v8520, %v8134
    %v8585 = vmul.f32 %v8521, %v8136
    %v8586 = vmul.f32 %v8522, %v8138
    %v8587 = vadd.f32 %v8523, 0.2548296
    %v8588 = vadd.f32 %v8524, 0.2548296
    %v8589 = vadd.f32 %v8525, 0.2548296
    %v8590 = vadd.f32 %v8526, 0.2548296
    %v8591 = vadd.f32 %v8527, 0.2548296
    %v8592 = vadd.f32 %v8528, 0.2548296
    %v8593 = vadd.f32 %v8529, 0.2548296
    %v8594 = vadd.f32 %v8530, 0.2548296
    %v8595 = vadd.f32 %v8531, 0.2548296
    %v8596 = vadd.f32 %v8532, 0.2548296
    %v8597 = vadd.f32 %v8533, 0.2548296
    %v8598 = vadd.f32 %v8534, 0.2548296
    %v8599 = vadd.f32 %v8535, 0.2548296
    %v8600 = vadd.f32 %v8536, 0.2548296
    %v8601 = vadd.f32 %v8537, 0.2548296
    %v8602 = vadd.f32 %v8538, 0.2548296
    %v8603 = vadd.f32 %v8539, 0.2548296
    %v8604 = vadd.f32 %v8540, 0.2548296
    %v8605 = vadd.f32 %v8541, 0.2548296
    %v8606 = vadd.f32 %v8542, 0.2548296
    %v8607 = vadd.f32 %v8543, 0.2548296
    %v8608 = vadd.f32 %v8544, 0.2548296
    %v8609 = vadd.f32 %v8545, 0.2548296
    %v8610 = vadd.f32 %v8546, 0.2548296
    %v8611 = vadd.f32 %v8547, 0.2548296
    %v8612 = vadd.f32 %v8548, 0.2548296
    %v8613 = vadd.f32 %v8549, 0.2548296
    %v8614 = vadd.f32 %v8550, 0.2548296
    %v8615 = vadd.f32 %v8551, 0.2548296
    %v8616 = vadd.f32 %v8552, 0.2548296
    %v8617 = vadd.f32 %v8553, 0.2548296
    %v8618 = vadd.f32 %v8554, 0.2548296
    %v8619 = vadd.f32 %v8555, 0.2548296
    %v8620 = vadd.f32 %v8556, 0.2548296
    %v8621 = vadd.f32 %v8557, 0.2548296
    %v8622 = vadd.f32 %v8558, 0.2548296
    %v8623 = vadd.f32 %v8559, 0.2548296
    %v8624 = vadd.f32 %v8560, 0.2548296
    %v8625 = vadd.f32 %v8561, 0.2548296
    %v8626 = vadd.f32 %v8562, 0.2548296
    %v8627 = vadd.f32 %v8563, 0.2548296
    %v8628 = vadd.f32 %v8564, 0.2548296
    %v8629 = vadd.f32 %v8565, 0.2548296
    %v8630 = vadd.f32 %v8566, 0.2548296
    %v8631 = vadd.f32 %v8567, 0.2548296
    %v8632 = vadd.f32 %v8568, 0.2548296
    %v8633 = vadd.f32 %v8569, 0.2548296
    %v8634 = vadd.f32 %v8570, 0.2548296
    %v8635 = vadd.f32 %v8571, 0.2548296
    %v8636 = vadd.f32 %v8572, 0.2548296
    %v8637 = vadd.f32 %v8573, 0.2548296
    %v8638 = vadd.f32 %v8574, 0.2548296
    %v8639 = vadd.f32 %v8575, 0.2548296
    %v8640 = vadd.f32 %v8576, 0.2548296
    %v8641 = vadd.f32 %v8577, 0.2548296
    %v8642 = vadd.f32 %v8578, 0.2548296
    %v8643 = vadd.f32 %v8579, 0.2548296
    %v8644 = vadd.f32 %v8580, 0.2548296
    %v8645 = vadd.f32 %v8581, 0.2548296
    %v8646 = vadd.f32 %v8582, 0.2548296
    %v8647 = vadd.f32 %v8583, 0.2548296
    %v8648 = vadd.f32 %v8584, 0.2548296
    %v8649 = vadd.f32 %v8585, 0.2548296
    %v8650 = vadd.f32 %v8586, 0.2548296
    %v8651 = vmul.f32 %v8587, %v8012
    %v8652 = vmul.f32 %v8588, %v8014
    %v8653 = vmul.f32 %v8589, %v8016
    %v8654 = vmul.f32 %v8590, %v8018
    %v8655 = vmul.f32 %v8591, %v8020
    %v8656 = vmul.f32 %v8592, %v8022
    %v8657 = vmul.f32 %v8593, %v8024
    %v8658 = vmul.f32 %v8594, %v8026
    %v8659 = vmul.f32 %v8595, %v8028
    %v8660 = vmul.f32 %v8596, %v8030
    %v8661 = vmul.f32 %v8597, %v8032
    %v8662 = vmul.f32 %v8598, %v8034
    %v8663 = vmul.f32 %v8599, %v8036
    %v8664 = vmul.f32 %v8600, %v8038
    %v8665 = vmul.f32 %v8601, %v8040
    %v8666 = vmul.f32 %v8602, %v8042
    %v8667 = vmul.f32 %v8603, %v8044
    %v8668 = vmul.f32 %v8604, %v8046
    %v8669 = vmul.f32 %v8605, %v8048
    %v8670 = vmul.f32 %v8606, %v8050
    %v8671 = vmul.f32 %v8607, %v8052
    %v8672 = vmul.f32 %v8608, %v8054
    %v8673 = vmul.f32 %v8609, %v8056
    %v8674 = vmul.f32 %v8610, %v8058
    %v8675 = vmul.f32 %v8611, %v8060
    %v8676 = vmul.f32 %v8612, %v8062
    %v8677 = vmul.f32 %v8613, %v8064
    %v8678 = vmul.f32 %v8614, %v8066
    %v8679 = vmul.f32 %v8615, %v8068
    %v8680 = vmul.f32 %v8616, %v8070
    %v8681 = vmul.f32 %v8617, %v8072
    %v8682 = vmul.f32 %v8618, %v8074
    %v8683 = vmul.f32 %v8619, %v8076
    %v8684 = vmul.f32 %v8620, %v8078
    %v8685 = vmul.f32 %v8621, %v8080
    %v8686 = vmul.f32 %v8622, %v8082
    %v8687 = vmul.f32 %v8623, %v8084
    %v8688 = vmul.f32 %v8624, %v8086
    %v8689 = vmul.f32 %v8625, %v8088
    %v8690 = vmul.f32 %v8626, %v8090
    %v8691 = vmul.f32 %v8627, %v8092
    %v8692 = vmul.f32 %v8628, %v8094
    %v8693 = vmul.f32 %v8629, %v8096
    %v8694 = vmul.f32 %v8630, %v8098
    %v8695 = vmul.f32 %v8631, %v8100
    %v8696 = vmul.f32 %v8632, %v8102
    %v8697 = vmul.f32 %v8633, %v8104
    %v8698 = vmul.f32 %v8634, %v8106
    %v8699 = vmul.f32 %v8635, %v8108
    %v8700 = vmul.f32 %v8636, %v8110
    %v8701 = vmul.f32 %v8637, %v8112
    %v8702 = vmul.f32 %v8638, %v8114
    %v8703 = vmul.f32 %v8639, %v8116
    %v8704 = vmul.f32 %v8640, %v8118
    %v8705 = vmul.f32 %v8641, %v8120
    %v8706 = vmul.f32 %v8642, %v8122
    %v8707 = vmul.f32 %v8643, %v8124
    %v8708 = vmul.f32 %v8644, %v8126
    %v8709 = vmul.f32 %v8645, %v8128
    %v8710 = vmul.f32 %v8646, %v8130
    %v8711 = vmul.f32 %v8647, %v8132
    %v8712 = vmul.f32 %v8648, %v8134
    %v8713 = vmul.f32 %v8649, %v8136
    %v8714 = vmul.f32 %v8650, %v8138
    %v8715 = vsub.f32 0.0, %v7819
    %v8716 = vsub.f32 0.0, %v7820
    %v8717 = vsub.f32 0.0, %v7821
    %v8718 = vsub.f32 0.0, %v7822
    %v8719 = vsub.f32 0.0, %v7823
    %v8720 = vsub.f32 0.0, %v7824
    %v8721 = vsub.f32 0.0, %v7825
    %v8722 = vsub.f32 0.0, %v7826
    %v8723 = vsub.f32 0.0, %v7827
    %v8724 = vsub.f32 0.0, %v7828
    %v8725 = vsub.f32 0.0, %v7829
    %v8726 = vsub.f32 0.0, %v7830
    %v8727 = vsub.f32 0.0, %v7831
    %v8728 = vsub.f32 0.0, %v7832
    %v8729 = vsub.f32 0.0, %v7833
    %v8730 = vsub.f32 0.0, %v7834
    %v8731 = vsub.f32 0.0, %v7835
    %v8732 = vsub.f32 0.0, %v7836
    %v8733 = vsub.f32 0.0, %v7837
    %v8734 = vsub.f32 0.0, %v7838
    %v8735 = vsub.f32 0.0, %v7839
    %v8736 = vsub.f32 0.0, %v7840
    %v8737 = vsub.f32 0.0, %v7841
    %v8738 = vsub.f32 0.0, %v7842
    %v8739 = vsub.f32 0.0, %v7843
    %v8740 = vsub.f32 0.0, %v7844
    %v8741 = vsub.f32 0.0, %v7845
    %v8742 = vsub.f32 0.0, %v7846
    %v8743 = vsub.f32 0.0, %v7847
    %v8744 = vsub.f32 0.0, %v7848
    %v8745 = vsub.f32 0.0, %v7849
    %v8746 = vsub.f32 0.0, %v7850
    %v8747 = vsub.f32 0.0, %v7851
    %v8748 = vsub.f32 0.0, %v7852
    %v8749 = vsub.f32 0.0, %v7853
    %v8750 = vsub.f32 0.0, %v7854
    %v8751 = vsub.f32 0.0, %v7855
    %v8752 = vsub.f32 0.0, %v7856
    %v8753 = vsub.f32 0.0, %v7857
    %v8754 = vsub.f32 0.0, %v7858
    %v8755 = vsub.f32 0.0, %v7859
    %v8756 = vsub.f32 0.0, %v7860
    %v8757 = vsub.f32 0.0, %v7861
    %v8758 = vsub.f32 0.0, %v7862
    %v8759 = vsub.f32 0.0, %v7863
    %v8760 = vsub.f32 0.0, %v7864
    %v8761 = vsub.f32 0.0, %v7865
    %v8762 = vsub.f32 0.0, %v7866
    %v8763 = vsub.f32 0.0, %v7867
    %v8764 = vsub.f32 0.0, %v7868
    %v8765 = vsub.f32 0.0, %v7869
    %v8766 = vsub.f32 0.0, %v7870
    %v8767 = vsub.f32 0.0, %v7871
    %v8768 = vsub.f32 0.0, %v7872
    %v8769 = vsub.f32 0.0, %v7873
    %v8770 = vsub.f32 0.0, %v7874
    %v8771 = vsub.f32 0.0, %v7875
    %v8772 = vsub.f32 0.0, %v7876
    %v8773 = vsub.f32 0.0, %v7877
    %v8774 = vsub.f32 0.0, %v7878
    %v8775 = vsub.f32 0.0, %v7879
    %v8776 = vsub.f32 0.0, %v7880
    %v8777 = vsub.f32 0.0, %v7881
    %v8778 = vsub.f32 0.0, %v7882
    %v8779 = vmul.f32 %v8715, %v7819
    %v8780 = vmul.f32 %v8716, %v7820
    %v8781 = vmul.f32 %v8717, %v7821
    %v8782 = vmul.f32 %v8718, %v7822
    %v8783 = vmul.f32 %v8719, %v7823
    %v8784 = vmul.f32 %v8720, %v7824
    %v8785 = vmul.f32 %v8721, %v7825
    %v8786 = vmul.f32 %v8722, %v7826
    %v8787 = vmul.f32 %v8723, %v7827
    %v8788 = vmul.f32 %v8724, %v7828
    %v8789 = vmul.f32 %v8725, %v7829
    %v8790 = vmul.f32 %v8726, %v7830
    %v8791 = vmul.f32 %v8727, %v7831
    %v8792 = vmul.f32 %v8728, %v7832
    %v8793 = vmul.f32 %v8729, %v7833
    %v8794 = vmul.f32 %v8730, %v7834
    %v8795 = vmul.f32 %v8731, %v7835
    %v8796 = vmul.f32 %v8732, %v7836
    %v8797 = vmul.f32 %v8733, %v7837
    %v8798 = vmul.f32 %v8734, %v7838
    %v8799 = vmul.f32 %v8735, %v7839
    %v8800 = vmul.f32 %v8736, %v7840
    %v8801 = vmul.f32 %v8737, %v7841
    %v8802 = vmul.f32 %v8738, %v7842
    %v8803 = vmul.f32 %v8739, %v7843
    %v8804 = vmul.f32 %v8740, %v7844
    %v8805 = vmul.f32 %v8741, %v7845
    %v8806 = vmul.f32 %v8742, %v7846
    %v8807 = vmul.f32 %v8743, %v7847
    %v8808 = vmul.f32 %v8744, %v7848
    %v8809 = vmul.f32 %v8745, %v7849
    %v8810 = vmul.f32 %v8746, %v7850
    %v8811 = vmul.f32 %v8747, %v7851
    %v8812 = vmul.f32 %v8748, %v7852
    %v8813 = vmul.f32 %v8749, %v7853
    %v8814 = vmul.f32 %v8750, %v7854
    %v8815 = vmul.f32 %v8751, %v7855
    %v8816 = vmul.f32 %v8752, %v7856
    %v8817 = vmul.f32 %v8753, %v7857
    %v8818 = vmul.f32 %v8754, %v7858
    %v8819 = vmul.f32 %v8755, %v7859
    %v8820 = vmul.f32 %v8756, %v7860
    %v8821 = vmul.f32 %v8757, %v7861
    %v8822 = vmul.f32 %v8758, %v7862
    %v8823 = vmul.f32 %v8759, %v7863
    %v8824 = vmul.f32 %v8760, %v7864
    %v8825 = vmul.f32 %v8761, %v7865
    %v8826 = vmul.f32 %v8762, %v7866
    %v8827 = vmul.f32 %v8763, %v7867
    %v8828 = vmul.f32 %v8764, %v7868
    %v8829 = vmul.f32 %v8765, %v7869
    %v8830 = vmul.f32 %v8766, %v7870
    %v8831 = vmul.f32 %v8767, %v7871
    %v8832 = vmul.f32 %v8768, %v7872
    %v8833 = vmul.f32 %v8769, %v7873
    %v8834 = vmul.f32 %v8770, %v7874
    %v8835 = vmul.f32 %v8771, %v7875
    %v8836 = vmul.f32 %v8772, %v7876
    %v8837 = vmul.f32 %v8773, %v7877
    %v8838 = vmul.f32 %v8774, %v7878
    %v8839 = vmul.f32 %v8775, %v7879
    %v8840 = vmul.f32 %v8776, %v7880
    %v8841 = vmul.f32 %v8777, %v7881
    %v8842 = vmul.f32 %v8778, %v7882
    %v8843 = vmul.f32 %v8779, 1.442695
    %v8844 = vpow.pop %v8843
    %v8845 = vmul.f32 %v8780, 1.442695
    %v8846 = vpow.pop %v8845
    %v8847 = vmul.f32 %v8781, 1.442695
    %v8848 = vpow.pop %v8847
    %v8849 = vmul.f32 %v8782, 1.442695
    %v8850 = vpow.pop %v8849
    %v8851 = vmul.f32 %v8783, 1.442695
    %v8852 = vpow.pop %v8851
    %v8853 = vmul.f32 %v8784, 1.442695
    %v8854 = vpow.pop %v8853
    %v8855 = vmul.f32 %v8785, 1.442695
    %v8856 = vpow.pop %v8855
    %v8857 = vmul.f32 %v8786, 1.442695
    %v8858 = vpow.pop %v8857
    %v8859 = vmul.f32 %v8787, 1.442695
    %v8860 = vpow.pop %v8859
    %v8861 = vmul.f32 %v8788, 1.442695
    %v8862 = vpow.pop %v8861
    %v8863 = vmul.f32 %v8789, 1.442695
    %v8864 = vpow.pop %v8863
    %v8865 = vmul.f32 %v8790, 1.442695
    %v8866 = vpow.pop %v8865
    %v8867 = vmul.f32 %v8791, 1.442695
    %v8868 = vpow.pop %v8867
    %v8869 = vmul.f32 %v8792, 1.442695
    %v8870 = vpow.pop %v8869
    %v8871 = vmul.f32 %v8793, 1.442695
    %v8872 = vpow.pop %v8871
    %v8873 = vmul.f32 %v8794, 1.442695
    %v8874 = vpow.pop %v8873
    %v8875 = vmul.f32 %v8795, 1.442695
    %v8876 = vpow.pop %v8875
    %v8877 = vmul.f32 %v8796, 1.442695
    %v8878 = vpow.pop %v8877
    %v8879 = vmul.f32 %v8797, 1.442695
    %v8880 = vpow.pop %v8879
    %v8881 = vmul.f32 %v8798, 1.442695
    %v8882 = vpow.pop %v8881
    %v8883 = vmul.f32 %v8799, 1.442695
    %v8884 = vpow.pop %v8883
    %v8885 = vmul.f32 %v8800, 1.442695
    %v8886 = vpow.pop %v8885
    %v8887 = vmul.f32 %v8801, 1.442695
    %v8888 = vpow.pop %v8887
    %v8889 = vmul.f32 %v8802, 1.442695
    %v8890 = vpow.pop %v8889
    %v8891 = vmul.f32 %v8803, 1.442695
    %v8892 = vpow.pop %v8891
    %v8893 = vmul.f32 %v8804, 1.442695
    %v8894 = vpow.pop %v8893
    %v8895 = vmul.f32 %v8805, 1.442695
    %v8896 = vpow.pop %v8895
    %v8897 = vmul.f32 %v8806, 1.442695
    %v8898 = vpow.pop %v8897
    %v8899 = vmul.f32 %v8807, 1.442695
    %v8900 = vpow.pop %v8899
    %v8901 = vmul.f32 %v8808, 1.442695
    %v8902 = vpow.pop %v8901
    %v8903 = vmul.f32 %v8809, 1.442695
    %v8904 = vpow.pop %v8903
    %v8905 = vmul.f32 %v8810, 1.442695
    %v8906 = vpow.pop %v8905
    %v8907 = vmul.f32 %v8811, 1.442695
    %v8908 = vpow.pop %v8907
    %v8909 = vmul.f32 %v8812, 1.442695
    %v8910 = vpow.pop %v8909
    %v8911 = vmul.f32 %v8813, 1.442695
    %v8912 = vpow.pop %v8911
    %v8913 = vmul.f32 %v8814, 1.442695
    %v8914 = vpow.pop %v8913
    %v8915 = vmul.f32 %v8815, 1.442695
    %v8916 = vpow.pop %v8915
    %v8917 = vmul.f32 %v8816, 1.442695
    %v8918 = vpow.pop %v8917
    %v8919 = vmul.f32 %v8817, 1.442695
    %v8920 = vpow.pop %v8919
    %v8921 = vmul.f32 %v8818, 1.442695
    %v8922 = vpow.pop %v8921
    %v8923 = vmul.f32 %v8819, 1.442695
    %v8924 = vpow.pop %v8923
    %v8925 = vmul.f32 %v8820, 1.442695
    %v8926 = vpow.pop %v8925
    %v8927 = vmul.f32 %v8821, 1.442695
    %v8928 = vpow.pop %v8927
    %v8929 = vmul.f32 %v8822, 1.442695
    %v8930 = vpow.pop %v8929
    %v8931 = vmul.f32 %v8823, 1.442695
    %v8932 = vpow.pop %v8931
    %v8933 = vmul.f32 %v8824, 1.442695
    %v8934 = vpow.pop %v8933
    %v8935 = vmul.f32 %v8825, 1.442695
    %v8936 = vpow.pop %v8935
    %v8937 = vmul.f32 %v8826, 1.442695
    %v8938 = vpow.pop %v8937
    %v8939 = vmul.f32 %v8827, 1.442695
    %v8940 = vpow.pop %v8939
    %v8941 = vmul.f32 %v8828, 1.442695
    %v8942 = vpow.pop %v8941
    %v8943 = vmul.f32 %v8829, 1.442695
    %v8944 = vpow.pop %v8943
    %v8945 = vmul.f32 %v8830, 1.442695
    %v8946 = vpow.pop %v8945
    %v8947 = vmul.f32 %v8831, 1.442695
    %v8948 = vpow.pop %v8947
    %v8949 = vmul.f32 %v8832, 1.442695
    %v8950 = vpow.pop %v8949
    %v8951 = vmul.f32 %v8833, 1.442695
    %v8952 = vpow.pop %v8951
    %v8953 = vmul.f32 %v8834, 1.442695
    %v8954 = vpow.pop %v8953
    %v8955 = vmul.f32 %v8835, 1.442695
    %v8956 = vpow.pop %v8955
    %v8957 = vmul.f32 %v8836, 1.442695
    %v8958 = vpow.pop %v8957
    %v8959 = vmul.f32 %v8837, 1.442695
    %v8960 = vpow.pop %v8959
    %v8961 = vmul.f32 %v8838, 1.442695
    %v8962 = vpow.pop %v8961
    %v8963 = vmul.f32 %v8839, 1.442695
    %v8964 = vpow.pop %v8963
    %v8965 = vmul.f32 %v8840, 1.442695
    %v8966 = vpow.pop %v8965
    %v8967 = vmul.f32 %v8841, 1.442695
    %v8968 = vpow.pop %v8967
    %v8969 = vmul.f32 %v8842, 1.442695
    %v8970 = vpow.pop %v8969
    %v8971 = vmul.f32 %v8651, %v8844
    %v8972 = vmul.f32 %v8652, %v8846
    %v8973 = vmul.f32 %v8653, %v8848
    %v8974 = vmul.f32 %v8654, %v8850
    %v8975 = vmul.f32 %v8655, %v8852
    %v8976 = vmul.f32 %v8656, %v8854
    %v8977 = vmul.f32 %v8657, %v8856
    %v8978 = vmul.f32 %v8658, %v8858
    %v8979 = vmul.f32 %v8659, %v8860
    %v8980 = vmul.f32 %v8660, %v8862
    %v8981 = vmul.f32 %v8661, %v8864
    %v8982 = vmul.f32 %v8662, %v8866
    %v8983 = vmul.f32 %v8663, %v8868
    %v8984 = vmul.f32 %v8664, %v8870
    %v8985 = vmul.f32 %v8665, %v8872
    %v8986 = vmul.f32 %v8666, %v8874
    %v8987 = vmul.f32 %v8667, %v8876
    %v8988 = vmul.f32 %v8668, %v8878
    %v8989 = vmul.f32 %v8669, %v8880
    %v8990 = vmul.f32 %v8670, %v8882
    %v8991 = vmul.f32 %v8671, %v8884
    %v8992 = vmul.f32 %v8672, %v8886
    %v8993 = vmul.f32 %v8673, %v8888
    %v8994 = vmul.f32 %v8674, %v8890
    %v8995 = vmul.f32 %v8675, %v8892
    %v8996 = vmul.f32 %v8676, %v8894
    %v8997 = vmul.f32 %v8677, %v8896
    %v8998 = vmul.f32 %v8678, %v8898
    %v8999 = vmul.f32 %v8679, %v8900
    %v9000 = vmul.f32 %v8680, %v8902
    %v9001 = vmul.f32 %v8681, %v8904
    %v9002 = vmul.f32 %v8682, %v8906
    %v9003 = vmul.f32 %v8683, %v8908
    %v9004 = vmul.f32 %v8684, %v8910
    %v9005 = vmul.f32 %v8685, %v8912
    %v9006 = vmul.f32 %v8686, %v8914
    %v9007 = vmul.f32 %v8687, %v8916
    %v9008 = vmul.f32 %v8688, %v8918
    %v9009 = vmul.f32 %v8689, %v8920
    %v9010 = vmul.f32 %v8690, %v8922
    %v9011 = vmul.f32 %v8691, %v8924
    %v9012 = vmul.f32 %v8692, %v8926
    %v9013 = vmul.f32 %v8693, %v8928
    %v9014 = vmul.f32 %v8694, %v8930
    %v9015 = vmul.f32 %v8695, %v8932
    %v9016 = vmul.f32 %v8696, %v8934
    %v9017 = vmul.f32 %v8697, %v8936
    %v9018 = vmul.f32 %v8698, %v8938
    %v9019 = vmul.f32 %v8699, %v8940
    %v9020 = vmul.f32 %v8700, %v8942
    %v9021 = vmul.f32 %v8701, %v8944
    %v9022 = vmul.f32 %v8702, %v8946
    %v9023 = vmul.f32 %v8703, %v8948
    %v9024 = vmul.f32 %v8704, %v8950
    %v9025 = vmul.f32 %v8705, %v8952
    %v9026 = vmul.f32 %v8706, %v8954
    %v9027 = vmul.f32 %v8707, %v8956
    %v9028 = vmul.f32 %v8708, %v8958
    %v9029 = vmul.f32 %v8709, %v8960
    %v9030 = vmul.f32 %v8710, %v8962
    %v9031 = vmul.f32 %v8711, %v8964
    %v9032 = vmul.f32 %v8712, %v8966
    %v9033 = vmul.f32 %v8713, %v8968
    %v9034 = vmul.f32 %v8714, %v8970
    %v9035 = vsub.f32 1.0, %v8971
    %v9036 = vsub.f32 1.0, %v8972
    %v9037 = vsub.f32 1.0, %v8973
    %v9038 = vsub.f32 1.0, %v8974
    %v9039 = vsub.f32 1.0, %v8975
    %v9040 = vsub.f32 1.0, %v8976
    %v9041 = vsub.f32 1.0, %v8977
    %v9042 = vsub.f32 1.0, %v8978
    %v9043 = vsub.f32 1.0, %v8979
    %v9044 = vsub.f32 1.0, %v8980
    %v9045 = vsub.f32 1.0, %v8981
    %v9046 = vsub.f32 1.0, %v8982
    %v9047 = vsub.f32 1.0, %v8983
    %v9048 = vsub.f32 1.0, %v8984
    %v9049 = vsub.f32 1.0, %v8985
    %v9050 = vsub.f32 1.0, %v8986
    %v9051 = vsub.f32 1.0, %v8987
    %v9052 = vsub.f32 1.0, %v8988
    %v9053 = vsub.f32 1.0, %v8989
    %v9054 = vsub.f32 1.0, %v8990
    %v9055 = vsub.f32 1.0, %v8991
    %v9056 = vsub.f32 1.0, %v8992
    %v9057 = vsub.f32 1.0, %v8993
    %v9058 = vsub.f32 1.0, %v8994
    %v9059 = vsub.f32 1.0, %v8995
    %v9060 = vsub.f32 1.0, %v8996
    %v9061 = vsub.f32 1.0, %v8997
    %v9062 = vsub.f32 1.0, %v8998
    %v9063 = vsub.f32 1.0, %v8999
    %v9064 = vsub.f32 1.0, %v9000
    %v9065 = vsub.f32 1.0, %v9001
    %v9066 = vsub.f32 1.0, %v9002
    %v9067 = vsub.f32 1.0, %v9003
    %v9068 = vsub.f32 1.0, %v9004
    %v9069 = vsub.f32 1.0, %v9005
    %v9070 = vsub.f32 1.0, %v9006
    %v9071 = vsub.f32 1.0, %v9007
    %v9072 = vsub.f32 1.0, %v9008
    %v9073 = vsub.f32 1.0, %v9009
    %v9074 = vsub.f32 1.0, %v9010
    %v9075 = vsub.f32 1.0, %v9011
    %v9076 = vsub.f32 1.0, %v9012
    %v9077 = vsub.f32 1.0, %v9013
    %v9078 = vsub.f32 1.0, %v9014
    %v9079 = vsub.f32 1.0, %v9015
    %v9080 = vsub.f32 1.0, %v9016
    %v9081 = vsub.f32 1.0, %v9017
    %v9082 = vsub.f32 1.0, %v9018
    %v9083 = vsub.f32 1.0, %v9019
    %v9084 = vsub.f32 1.0, %v9020
    %v9085 = vsub.f32 1.0, %v9021
    %v9086 = vsub.f32 1.0, %v9022
    %v9087 = vsub.f32 1.0, %v9023
    %v9088 = vsub.f32 1.0, %v9024
    %v9089 = vsub.f32 1.0, %v9025
    %v9090 = vsub.f32 1.0, %v9026
    %v9091 = vsub.f32 1.0, %v9027
    %v9092 = vsub.f32 1.0, %v9028
    %v9093 = vsub.f32 1.0, %v9029
    %v9094 = vsub.f32 1.0, %v9030
    %v9095 = vsub.f32 1.0, %v9031
    %v9096 = vsub.f32 1.0, %v9032
    %v9097 = vsub.f32 1.0, %v9033
    %v9098 = vsub.f32 1.0, %v9034
    %vm9099 = vcmp.lt.f32.partialorder %v7755, 0.0
    %vm9100 = vcmp.lt.f32.partialorder %v7756, 0.0
    %vm9101 = vcmp.lt.f32.partialorder %v7757, 0.0
    %vm9102 = vcmp.lt.f32.partialorder %v7758, 0.0
    %vm9103 = vcmp.lt.f32.partialorder %v7759, 0.0
    %vm9104 = vcmp.lt.f32.partialorder %v7760, 0.0
    %vm9105 = vcmp.lt.f32.partialorder %v7761, 0.0
    %vm9106 = vcmp.lt.f32.partialorder %v7762, 0.0
    %vm9107 = vcmp.lt.f32.partialorder %v7763, 0.0
    %vm9108 = vcmp.lt.f32.partialorder %v7764, 0.0
    %vm9109 = vcmp.lt.f32.partialorder %v7765, 0.0
    %vm9110 = vcmp.lt.f32.partialorder %v7766, 0.0
    %vm9111 = vcmp.lt.f32.partialorder %v7767, 0.0
    %vm9112 = vcmp.lt.f32.partialorder %v7768, 0.0
    %vm9113 = vcmp.lt.f32.partialorder %v7769, 0.0
    %vm9114 = vcmp.lt.f32.partialorder %v7770, 0.0
    %vm9115 = vcmp.lt.f32.partialorder %v7771, 0.0
    %vm9116 = vcmp.lt.f32.partialorder %v7772, 0.0
    %vm9117 = vcmp.lt.f32.partialorder %v7773, 0.0
    %vm9118 = vcmp.lt.f32.partialorder %v7774, 0.0
    %vm9119 = vcmp.lt.f32.partialorder %v7775, 0.0
    %vm9120 = vcmp.lt.f32.partialorder %v7776, 0.0
    %vm9121 = vcmp.lt.f32.partialorder %v7777, 0.0
    %vm9122 = vcmp.lt.f32.partialorder %v7778, 0.0
    %vm9123 = vcmp.lt.f32.partialorder %v7779, 0.0
    %vm9124 = vcmp.lt.f32.partialorder %v7780, 0.0
    %vm9125 = vcmp.lt.f32.partialorder %v7781, 0.0
    %vm9126 = vcmp.lt.f32.partialorder %v7782, 0.0
    %vm9127 = vcmp.lt.f32.partialorder %v7783, 0.0
    %vm9128 = vcmp.lt.f32.partialorder %v7784, 0.0
    %vm9129 = vcmp.lt.f32.partialorder %v7785, 0.0
    %vm9130 = vcmp.lt.f32.partialorder %v7786, 0.0
    %vm9131 = vcmp.lt.f32.partialorder %v7787, 0.0
    %vm9132 = vcmp.lt.f32.partialorder %v7788, 0.0
    %vm9133 = vcmp.lt.f32.partialorder %v7789, 0.0
    %vm9134 = vcmp.lt.f32.partialorder %v7790, 0.0
    %vm9135 = vcmp.lt.f32.partialorder %v7791, 0.0
    %vm9136 = vcmp.lt.f32.partialorder %v7792, 0.0
    %vm9137 = vcmp.lt.f32.partialorder %v7793, 0.0
    %vm9138 = vcmp.lt.f32.partialorder %v7794, 0.0
    %vm9139 = vcmp.lt.f32.partialorder %v7795, 0.0
    %vm9140 = vcmp.lt.f32.partialorder %v7796, 0.0
    %vm9141 = vcmp.lt.f32.partialorder %v7797, 0.0
    %vm9142 = vcmp.lt.f32.partialorder %v7798, 0.0
    %vm9143 = vcmp.lt.f32.partialorder %v7799, 0.0
    %vm9144 = vcmp.lt.f32.partialorder %v7800, 0.0
    %vm9145 = vcmp.lt.f32.partialorder %v7801, 0.0
    %vm9146 = vcmp.lt.f32.partialorder %v7802, 0.0
    %vm9147 = vcmp.lt.f32.partialorder %v7803, 0.0
    %vm9148 = vcmp.lt.f32.partialorder %v7804, 0.0
    %vm9149 = vcmp.lt.f32.partialorder %v7805, 0.0
    %vm9150 = vcmp.lt.f32.partialorder %v7806, 0.0
    %vm9151 = vcmp.lt.f32.partialorder %v7807, 0.0
    %vm9152 = vcmp.lt.f32.partialorder %v7808, 0.0
    %vm9153 = vcmp.lt.f32.partialorder %v7809, 0.0
    %vm9154 = vcmp.lt.f32.partialorder %v7810, 0.0
    %vm9155 = vcmp.lt.f32.partialorder %v7811, 0.0
    %vm9156 = vcmp.lt.f32.partialorder %v7812, 0.0
    %vm9157 = vcmp.lt.f32.partialorder %v7813, 0.0
    %vm9158 = vcmp.lt.f32.partialorder %v7814, 0.0
    %vm9159 = vcmp.lt.f32.partialorder %v7815, 0.0
    %vm9160 = vcmp.lt.f32.partialorder %v7816, 0.0
    %vm9161 = vcmp.lt.f32.partialorder %v7817, 0.0
    %vm9162 = vcmp.lt.f32.partialorder %v7818, 0.0
    %v9163 = vsub.f32 0.0, %v9035
    %v9164 = vsub.f32 0.0, %v9036
    %v9165 = vsub.f32 0.0, %v9037
    %v9166 = vsub.f32 0.0, %v9038
    %v9167 = vsub.f32 0.0, %v9039
    %v9168 = vsub.f32 0.0, %v9040
    %v9169 = vsub.f32 0.0, %v9041
    %v9170 = vsub.f32 0.0, %v9042
    %v9171 = vsub.f32 0.0, %v9043
    %v9172 = vsub.f32 0.0, %v9044
    %v9173 = vsub.f32 0.0, %v9045
    %v9174 = vsub.f32 0.0, %v9046
    %v9175 = vsub.f32 0.0, %v9047
    %v9176 = vsub.f32 0.0, %v9048
    %v9177 = vsub.f32 0.0, %v9049
    %v9178 = vsub.f32 0.0, %v9050
    %v9179 = vsub.f32 0.0, %v9051
    %v9180 = vsub.f32 0.0, %v9052
    %v9181 = vsub.f32 0.0, %v9053
    %v9182 = vsub.f32 0.0, %v9054
    %v9183 = vsub.f32 0.0, %v9055
    %v9184 = vsub.f32 0.0, %v9056
    %v9185 = vsub.f32 0.0, %v9057
    %v9186 = vsub.f32 0.0, %v9058
    %v9187 = vsub.f32 0.0, %v9059
    %v9188 = vsub.f32 0.0, %v9060
    %v9189 = vsub.f32 0.0, %v9061
    %v9190 = vsub.f32 0.0, %v9062
    %v9191 = vsub.f32 0.0, %v9063
    %v9192 = vsub.f32 0.0, %v9064
    %v9193 = vsub.f32 0.0, %v9065
    %v9194 = vsub.f32 0.0, %v9066
    %v9195 = vsub.f32 0.0, %v9067
    %v9196 = vsub.f32 0.0, %v9068
    %v9197 = vsub.f32 0.0, %v9069
    %v9198 = vsub.f32 0.0, %v9070
    %v9199 = vsub.f32 0.0, %v9071
    %v9200 = vsub.f32 0.0, %v9072
    %v9201 = vsub.f32 0.0, %v9073
    %v9202 = vsub.f32 0.0, %v9074
    %v9203 = vsub.f32 0.0, %v9075
    %v9204 = vsub.f32 0.0, %v9076
    %v9205 = vsub.f32 0.0, %v9077
    %v9206 = vsub.f32 0.0, %v9078
    %v9207 = vsub.f32 0.0, %v9079
    %v9208 = vsub.f32 0.0, %v9080
    %v9209 = vsub.f32 0.0, %v9081
    %v9210 = vsub.f32 0.0, %v9082
    %v9211 = vsub.f32 0.0, %v9083
    %v9212 = vsub.f32 0.0, %v9084
    %v9213 = vsub.f32 0.0, %v9085
    %v9214 = vsub.f32 0.0, %v9086
    %v9215 = vsub.f32 0.0, %v9087
    %v9216 = vsub.f32 0.0, %v9088
    %v9217 = vsub.f32 0.0, %v9089
    %v9218 = vsub.f32 0.0, %v9090
    %v9219 = vsub.f32 0.0, %v9091
    %v9220 = vsub.f32 0.0, %v9092
    %v9221 = vsub.f32 0.0, %v9093
    %v9222 = vsub.f32 0.0, %v9094
    %v9223 = vsub.f32 0.0, %v9095
    %v9224 = vsub.f32 0.0, %v9096
    %v9225 = vsub.f32 0.0, %v9097
    %v9226 = vsub.f32 0.0, %v9098
    %v9227 = vsel %vm9099, %v9163, %v9035
    %v9228 = vsel %vm9100, %v9164, %v9036
    %v9229 = vsel %vm9101, %v9165, %v9037
    %v9230 = vsel %vm9102, %v9166, %v9038
    %v9231 = vsel %vm9103, %v9167, %v9039
    %v9232 = vsel %vm9104, %v9168, %v9040
    %v9233 = vsel %vm9105, %v9169, %v9041
    %v9234 = vsel %vm9106, %v9170, %v9042
    %v9235 = vsel %vm9107, %v9171, %v9043
    %v9236 = vsel %vm9108, %v9172, %v9044
    %v9237 = vsel %vm9109, %v9173, %v9045
    %v9238 = vsel %vm9110, %v9174, %v9046
    %v9239 = vsel %vm9111, %v9175, %v9047
    %v9240 = vsel %vm9112, %v9176, %v9048
    %v9241 = vsel %vm9113, %v9177, %v9049
    %v9242 = vsel %vm9114, %v9178, %v9050
    %v9243 = vsel %vm9115, %v9179, %v9051
    %v9244 = vsel %vm9116, %v9180, %v9052
    %v9245 = vsel %vm9117, %v9181, %v9053
    %v9246 = vsel %vm9118, %v9182, %v9054
    %v9247 = vsel %vm9119, %v9183, %v9055
    %v9248 = vsel %vm9120, %v9184, %v9056
    %v9249 = vsel %vm9121, %v9185, %v9057
    %v9250 = vsel %vm9122, %v9186, %v9058
    %v9251 = vsel %vm9123, %v9187, %v9059
    %v9252 = vsel %vm9124, %v9188, %v9060
    %v9253 = vsel %vm9125, %v9189, %v9061
    %v9254 = vsel %vm9126, %v9190, %v9062
    %v9255 = vsel %vm9127, %v9191, %v9063
    %v9256 = vsel %vm9128, %v9192, %v9064
    %v9257 = vsel %vm9129, %v9193, %v9065
    %v9258 = vsel %vm9130, %v9194, %v9066
    %v9259 = vsel %vm9131, %v9195, %v9067
    %v9260 = vsel %vm9132, %v9196, %v9068
    %v9261 = vsel %vm9133, %v9197, %v9069
    %v9262 = vsel %vm9134, %v9198, %v9070
    %v9263 = vsel %vm9135, %v9199, %v9071
    %v9264 = vsel %vm9136, %v9200, %v9072
    %v9265 = vsel %vm9137, %v9201, %v9073
    %v9266 = vsel %vm9138, %v9202, %v9074
    %v9267 = vsel %vm9139, %v9203, %v9075
    %v9268 = vsel %vm9140, %v9204, %v9076
    %v9269 = vsel %vm9141, %v9205, %v9077
    %v9270 = vsel %vm9142, %v9206, %v9078
    %v9271 = vsel %vm9143, %v9207, %v9079
    %v9272 = vsel %vm9144, %v9208, %v9080
    %v9273 = vsel %vm9145, %v9209, %v9081
    %v9274 = vsel %vm9146, %v9210, %v9082
    %v9275 = vsel %vm9147, %v9211, %v9083
    %v9276 = vsel %vm9148, %v9212, %v9084
    %v9277 = vsel %vm9149, %v9213, %v9085
    %v9278 = vsel %vm9150, %v9214, %v9086
    %v9279 = vsel %vm9151, %v9215, %v9087
    %v9280 = vsel %vm9152, %v9216, %v9088
    %v9281 = vsel %vm9153, %v9217, %v9089
    %v9282 = vsel %vm9154, %v9218, %v9090
    %v9283 = vsel %vm9155, %v9219, %v9091
    %v9284 = vsel %vm9156, %v9220, %v9092
    %v9285 = vsel %vm9157, %v9221, %v9093
    %v9286 = vsel %vm9158, %v9222, %v9094
    %v9287 = vsel %vm9159, %v9223, %v9095
    %v9288 = vsel %vm9160, %v9224, %v9096
    %v9289 = vsel %vm9161, %v9225, %v9097
    %v9290 = vsel %vm9162, %v9226, %v9098
    %v9291 = vadd.f32 %v9227, 1.0
    %v9292 = vadd.f32 %v9228, 1.0
    %v9293 = vadd.f32 %v9229, 1.0
    %v9294 = vadd.f32 %v9230, 1.0
    %v9295 = vadd.f32 %v9231, 1.0
    %v9296 = vadd.f32 %v9232, 1.0
    %v9297 = vadd.f32 %v9233, 1.0
    %v9298 = vadd.f32 %v9234, 1.0
    %v9299 = vadd.f32 %v9235, 1.0
    %v9300 = vadd.f32 %v9236, 1.0
    %v9301 = vadd.f32 %v9237, 1.0
    %v9302 = vadd.f32 %v9238, 1.0
    %v9303 = vadd.f32 %v9239, 1.0
    %v9304 = vadd.f32 %v9240, 1.0
    %v9305 = vadd.f32 %v9241, 1.0
    %v9306 = vadd.f32 %v9242, 1.0
    %v9307 = vadd.f32 %v9243, 1.0
    %v9308 = vadd.f32 %v9244, 1.0
    %v9309 = vadd.f32 %v9245, 1.0
    %v9310 = vadd.f32 %v9246, 1.0
    %v9311 = vadd.f32 %v9247, 1.0
    %v9312 = vadd.f32 %v9248, 1.0
    %v9313 = vadd.f32 %v9249, 1.0
    %v9314 = vadd.f32 %v9250, 1.0
    %v9315 = vadd.f32 %v9251, 1.0
    %v9316 = vadd.f32 %v9252, 1.0
    %v9317 = vadd.f32 %v9253, 1.0
    %v9318 = vadd.f32 %v9254, 1.0
    %v9319 = vadd.f32 %v9255, 1.0
    %v9320 = vadd.f32 %v9256, 1.0
    %v9321 = vadd.f32 %v9257, 1.0
    %v9322 = vadd.f32 %v9258, 1.0
    %v9323 = vadd.f32 %v9259, 1.0
    %v9324 = vadd.f32 %v9260, 1.0
    %v9325 = vadd.f32 %v9261, 1.0
    %v9326 = vadd.f32 %v9262, 1.0
    %v9327 = vadd.f32 %v9263, 1.0
    %v9328 = vadd.f32 %v9264, 1.0
    %v9329 = vadd.f32 %v9265, 1.0
    %v9330 = vadd.f32 %v9266, 1.0
    %v9331 = vadd.f32 %v9267, 1.0
    %v9332 = vadd.f32 %v9268, 1.0
    %v9333 = vadd.f32 %v9269, 1.0
    %v9334 = vadd.f32 %v9270, 1.0
    %v9335 = vadd.f32 %v9271, 1.0
    %v9336 = vadd.f32 %v9272, 1.0
    %v9337 = vadd.f32 %v9273, 1.0
    %v9338 = vadd.f32 %v9274, 1.0
    %v9339 = vadd.f32 %v9275, 1.0
    %v9340 = vadd.f32 %v9276, 1.0
    %v9341 = vadd.f32 %v9277, 1.0
    %v9342 = vadd.f32 %v9278, 1.0
    %v9343 = vadd.f32 %v9279, 1.0
    %v9344 = vadd.f32 %v9280, 1.0
    %v9345 = vadd.f32 %v9281, 1.0
    %v9346 = vadd.f32 %v9282, 1.0
    %v9347 = vadd.f32 %v9283, 1.0
    %v9348 = vadd.f32 %v9284, 1.0
    %v9349 = vadd.f32 %v9285, 1.0
    %v9350 = vadd.f32 %v9286, 1.0
    %v9351 = vadd.f32 %v9287, 1.0
    %v9352 = vadd.f32 %v9288, 1.0
    %v9353 = vadd.f32 %v9289, 1.0
    %v9354 = vadd.f32 %v9290, 1.0
    %v9355 = vmul.f32 %v7691, %v9291
    %v9356 = vmul.f32 %v7692, %v9292
    %v9357 = vmul.f32 %v7693, %v9293
    %v9358 = vmul.f32 %v7694, %v9294
    %v9359 = vmul.f32 %v7695, %v9295
    %v9360 = vmul.f32 %v7696, %v9296
    %v9361 = vmul.f32 %v7697, %v9297
    %v9362 = vmul.f32 %v7698, %v9298
    %v9363 = vmul.f32 %v7699, %v9299
    %v9364 = vmul.f32 %v7700, %v9300
    %v9365 = vmul.f32 %v7701, %v9301
    %v9366 = vmul.f32 %v7702, %v9302
    %v9367 = vmul.f32 %v7703, %v9303
    %v9368 = vmul.f32 %v7704, %v9304
    %v9369 = vmul.f32 %v7705, %v9305
    %v9370 = vmul.f32 %v7706, %v9306
    %v9371 = vmul.f32 %v7707, %v9307
    %v9372 = vmul.f32 %v7708, %v9308
    %v9373 = vmul.f32 %v7709, %v9309
    %v9374 = vmul.f32 %v7710, %v9310
    %v9375 = vmul.f32 %v7711, %v9311
    %v9376 = vmul.f32 %v7712, %v9312
    %v9377 = vmul.f32 %v7713, %v9313
    %v9378 = vmul.f32 %v7714, %v9314
    %v9379 = vmul.f32 %v7715, %v9315
    %v9380 = vmul.f32 %v7716, %v9316
    %v9381 = vmul.f32 %v7717, %v9317
    %v9382 = vmul.f32 %v7718, %v9318
    %v9383 = vmul.f32 %v7719, %v9319
    %v9384 = vmul.f32 %v7720, %v9320
    %v9385 = vmul.f32 %v7721, %v9321
    %v9386 = vmul.f32 %v7722, %v9322
    %v9387 = vmul.f32 %v7723, %v9323
    %v9388 = vmul.f32 %v7724, %v9324
    %v9389 = vmul.f32 %v7725, %v9325
    %v9390 = vmul.f32 %v7726, %v9326
    %v9391 = vmul.f32 %v7727, %v9327
    %v9392 = vmul.f32 %v7728, %v9328
    %v9393 = vmul.f32 %v7729, %v9329
    %v9394 = vmul.f32 %v7730, %v9330
    %v9395 = vmul.f32 %v7731, %v9331
    %v9396 = vmul.f32 %v7732, %v9332
    %v9397 = vmul.f32 %v7733, %v9333
    %v9398 = vmul.f32 %v7734, %v9334
    %v9399 = vmul.f32 %v7735, %v9335
    %v9400 = vmul.f32 %v7736, %v9336
    %v9401 = vmul.f32 %v7737, %v9337
    %v9402 = vmul.f32 %v7738, %v9338
    %v9403 = vmul.f32 %v7739, %v9339
    %v9404 = vmul.f32 %v7740, %v9340
    %v9405 = vmul.f32 %v7741, %v9341
    %v9406 = vmul.f32 %v7742, %v9342
    %v9407 = vmul.f32 %v7743, %v9343
    %v9408 = vmul.f32 %v7744, %v9344
    %v9409 = vmul.f32 %v7745, %v9345
    %v9410 = vmul.f32 %v7746, %v9346
    %v9411 = vmul.f32 %v7747, %v9347
    %v9412 = vmul.f32 %v7748, %v9348
    %v9413 = vmul.f32 %v7749, %v9349
    %v9414 = vmul.f32 %v7750, %v9350
    %v9415 = vmul.f32 %v7751, %v9351
    %v9416 = vmul.f32 %v7752, %v9352
    %v9417 = vmul.f32 %v7753, %v9353
    %v9418 = vmul.f32 %v7754, %v9354
    %v9419 = vmul.f32 %v9355, %v7533
    %v9420 = vmul.f32 %v9356, %v7535
    %v9421 = vmul.f32 %v9357, %v7537
    %v9422 = vmul.f32 %v9358, %v7539
    %v9423 = vmul.f32 %v9359, %v7543
    %v9424 = vmul.f32 %v9360, %v7545
    %v9425 = vmul.f32 %v9361, %v7547
    %v9426 = vmul.f32 %v9362, %v7549
    %v9427 = vmul.f32 %v9363, %v7553
    %v9428 = vmul.f32 %v9364, %v7555
    %v9429 = vmul.f32 %v9365, %v7557
    %v9430 = vmul.f32 %v9366, %v7559
    %v9431 = vmul.f32 %v9367, %v7563
    %v9432 = vmul.f32 %v9368, %v7565
    %v9433 = vmul.f32 %v9369, %v7567
    %v9434 = vmul.f32 %v9370, %v7569
    %v9435 = vmul.f32 %v9371, %v7573
    %v9436 = vmul.f32 %v9372, %v7575
    %v9437 = vmul.f32 %v9373, %v7577
    %v9438 = vmul.f32 %v9374, %v7579
    %v9439 = vmul.f32 %v9375, %v7583
    %v9440 = vmul.f32 %v9376, %v7585
    %v9441 = vmul.f32 %v9377, %v7587
    %v9442 = vmul.f32 %v9378, %v7589
    %v9443 = vmul.f32 %v9379, %v7593
    %v9444 = vmul.f32 %v9380, %v7595
    %v9445 = vmul.f32 %v9381, %v7597
    %v9446 = vmul.f32 %v9382, %v7599
    %v9447 = vmul.f32 %v9383, %v7603
    %v9448 = vmul.f32 %v9384, %v7605
    %v9449 = vmul.f32 %v9385, %v7607
    %v9450 = vmul.f32 %v9386, %v7609
    %v9451 = vmul.f32 %v9387, %v7613
    %v9452 = vmul.f32 %v9388, %v7615
    %v9453 = vmul.f32 %v9389, %v7617
    %v9454 = vmul.f32 %v9390, %v7619
    %v9455 = vmul.f32 %v9391, %v7623
    %v9456 = vmul.f32 %v9392, %v7625
    %v9457 = vmul.f32 %v9393, %v7627
    %v9458 = vmul.f32 %v9394, %v7629
    %v9459 = vmul.f32 %v9395, %v7633
    %v9460 = vmul.f32 %v9396, %v7635
    %v9461 = vmul.f32 %v9397, %v7637
    %v9462 = vmul.f32 %v9398, %v7639
    %v9463 = vmul.f32 %v9399, %v7643
    %v9464 = vmul.f32 %v9400, %v7645
    %v9465 = vmul.f32 %v9401, %v7647
    %v9466 = vmul.f32 %v9402, %v7649
    %v9467 = vmul.f32 %v9403, %v7653
    %v9468 = vmul.f32 %v9404, %v7655
    %v9469 = vmul.f32 %v9405, %v7657
    %v9470 = vmul.f32 %v9406, %v7659
    %v9471 = vmul.f32 %v9407, %v7663
    %v9472 = vmul.f32 %v9408, %v7665
    %v9473 = vmul.f32 %v9409, %v7667
    %v9474 = vmul.f32 %v9410, %v7669
    %v9475 = vmul.f32 %v9411, %v7673
    %v9476 = vmul.f32 %v9412, %v7675
    %v9477 = vmul.f32 %v9413, %v7677
    %v9478 = vmul.f32 %v9414, %v7679
    %v9479 = vmul.f32 %v9415, %v7683
    %v9480 = vmul.f32 %v9416, %v7685
    %v9481 = vmul.f32 %v9417, %v7687
    %v9482 = vmul.f32 %v9418, %v7689
    %v9483 = vpack.c.bf16 %v9421, %v9419
    %v9484 = vpack.c.bf16 %v9422, %v9420
    %v9485 = vpack.c.bf16 %v9425, %v9423
    %v9486 = vpack.c.bf16 %v9426, %v9424
    %v9487 = vpack.c.bf16 %v9429, %v9427
    %v9488 = vpack.c.bf16 %v9430, %v9428
    %v9489 = vpack.c.bf16 %v9433, %v9431
    %v9490 = vpack.c.bf16 %v9434, %v9432
    %v9491 = vpack.c.bf16 %v9437, %v9435
    %v9492 = vpack.c.bf16 %v9438, %v9436
    %v9493 = vpack.c.bf16 %v9441, %v9439
    %v9494 = vpack.c.bf16 %v9442, %v9440
    %v9495 = vpack.c.bf16 %v9445, %v9443
    %v9496 = vpack.c.bf16 %v9446, %v9444
    %v9497 = vpack.c.bf16 %v9449, %v9447
    %v9498 = vpack.c.bf16 %v9450, %v9448
    %v9499 = vpack.c.bf16 %v9453, %v9451
    %v9500 = vpack.c.bf16 %v9454, %v9452
    %v9501 = vpack.c.bf16 %v9457, %v9455
    %v9502 = vpack.c.bf16 %v9458, %v9456
    %v9503 = vpack.c.bf16 %v9461, %v9459
    %v9504 = vpack.c.bf16 %v9462, %v9460
    %v9505 = vpack.c.bf16 %v9465, %v9463
    %v9506 = vpack.c.bf16 %v9466, %v9464
    %v9507 = vpack.c.bf16 %v9469, %v9467
    %v9508 = vpack.c.bf16 %v9470, %v9468
    %v9509 = vpack.c.bf16 %v9473, %v9471
    %v9510 = vpack.c.bf16 %v9474, %v9472
    %v9511 = vpack.c.bf16 %v9477, %v9475
    %v9512 = vpack.c.bf16 %v9478, %v9476
    %v9513 = vpack.c.bf16 %v9481, %v9479
    %v9514 = vpack.c.bf16 %v9482, %v9480
    %v9515 = vld [vmem:[%s9] sm:$0xf]
    %v9516 = vld [vmem:[%s9 + $0x4] sm:$0xf]
    %v9517 = vld [vmem:[%s9 + $0x8] sm:$0xf]
    %v9518 = vld [vmem:[%s9 + $0xc] sm:$0xf]
    %v9519 = vld [vmem:[%s9 + $0x10] sm:$0xf]
    %v9520 = vld [vmem:[%s9 + $0x14] sm:$0xf]
    %v9521 = vld [vmem:[%s9 + $0x18] sm:$0xf]
    %v9522 = vld [vmem:[%s9 + $0x1c] sm:$0xf]
    %v9523 = vld [vmem:[%s9 + $0x20] sm:$0xf]
    %v9524 = vld [vmem:[%s9 + $0x24] sm:$0xf]
    %v9525 = vld [vmem:[%s9 + $0x28] sm:$0xf]
    %v9526 = vld [vmem:[%s9 + $0x2c] sm:$0xf]
    %v9527 = vld [vmem:[%s9 + $0x30] sm:$0xf]
    %v9528 = vld [vmem:[%s9 + $0x34] sm:$0xf]
    %v9529 = vld [vmem:[%s9 + $0x38] sm:$0xf]
    %v9530 = vld [vmem:[%s9 + $0x3c] sm:$0xf]
    %v9531 = vld [vmem:[%s9 + $0x40] sm:$0xf]
    %v9532 = vld [vmem:[%s9 + $0x44] sm:$0xf]
    %v9533 = vld [vmem:[%s9 + $0x48] sm:$0xf]
    %v9534 = vld [vmem:[%s9 + $0x4c] sm:$0xf]
    %v9535 = vld [vmem:[%s9 + $0x50] sm:$0xf]
    %v9536 = vld [vmem:[%s9 + $0x54] sm:$0xf]
    %v9537 = vld [vmem:[%s9 + $0x58] sm:$0xf]
    %v9538 = vld [vmem:[%s9 + $0x5c] sm:$0xf]
    %v9539 = vld [vmem:[%s9 + $0x60] sm:$0xf]
    %v9540 = vld [vmem:[%s9 + $0x64] sm:$0xf]
    %v9541 = vld [vmem:[%s9 + $0x68] sm:$0xf]
    %v9542 = vld [vmem:[%s9 + $0x6c] sm:$0xf]
    %v9543 = vld [vmem:[%s9 + $0x70] sm:$0xf]
    %v9544 = vld [vmem:[%s9 + $0x74] sm:$0xf]
    %v9545 = vld [vmem:[%s9 + $0x78] sm:$0xf]
    %v9546 = vld [vmem:[%s9 + $0x7c] sm:$0xf]
    %v9579 = vunpack.c.l.b16 %v9515
    %v9580 = vunpack.c.l.b16 %v9516
    %v9581 = vunpack.c.l.b16 %v9517
    %v9582 = vunpack.c.l.b16 %v9518
    %v9583 = vunpack.c.l.b16 %v9519
    %v9584 = vunpack.c.l.b16 %v9520
    %v9585 = vunpack.c.l.b16 %v9521
    %v9586 = vunpack.c.l.b16 %v9522
    %v9587 = vunpack.c.l.b16 %v9523
    %v9588 = vunpack.c.l.b16 %v9524
    %v9589 = vunpack.c.l.b16 %v9525
    %v9590 = vunpack.c.l.b16 %v9526
    %v9591 = vunpack.c.l.b16 %v9527
    %v9592 = vunpack.c.l.b16 %v9528
    %v9593 = vunpack.c.l.b16 %v9529
    %v9594 = vunpack.c.l.b16 %v9530
    %v9595 = vunpack.c.l.b16 %v9531
    %v9596 = vunpack.c.l.b16 %v9532
    %v9597 = vunpack.c.l.b16 %v9533
    %v9598 = vunpack.c.l.b16 %v9534
    %v9599 = vunpack.c.l.b16 %v9535
    %v9600 = vunpack.c.l.b16 %v9536
    %v9601 = vunpack.c.l.b16 %v9537
    %v9602 = vunpack.c.l.b16 %v9538
    %v9603 = vunpack.c.l.b16 %v9539
    %v9604 = vunpack.c.l.b16 %v9540
    %v9605 = vunpack.c.l.b16 %v9541
    %v9606 = vunpack.c.l.b16 %v9542
    %v9607 = vunpack.c.l.b16 %v9543
    %v9608 = vunpack.c.l.b16 %v9544
    %v9609 = vunpack.c.l.b16 %v9545
    %v9610 = vunpack.c.l.b16 %v9546
    %v9611 = vpack.c.b16 %v9580, %v9579
    %v9612 = vpack.c.b16 %v9582, %v9581
    %v9613 = vpack.c.b16 %v9584, %v9583
    %v9614 = vpack.c.b16 %v9586, %v9585
    %v9615 = vpack.c.b16 %v9588, %v9587
    %v9616 = vpack.c.b16 %v9590, %v9589
    %v9617 = vpack.c.b16 %v9592, %v9591
    %v9618 = vpack.c.b16 %v9594, %v9593
    %v9619 = vpack.c.b16 %v9596, %v9595
    %v9620 = vpack.c.b16 %v9598, %v9597
    %v9621 = vpack.c.b16 %v9600, %v9599
    %v9622 = vpack.c.b16 %v9602, %v9601
    %v9623 = vpack.c.b16 %v9604, %v9603
    %v9624 = vpack.c.b16 %v9606, %v9605
    %v9625 = vpack.c.b16 %v9608, %v9607
    %v9626 = vpack.c.b16 %v9610, %v9609
    %9643 = vmatprep.subr.bf16.mxu0 0
    %9644 = vmatpush1.bf16.msra.mxu0 %v9611
    %9645 = vmatprep.subr.bf16.mxu0 0
    %9646 = vmatpush1.bf16.msra.mxu0 %v9612
    %9647 = vmatprep.subr.bf16.mxu0 0
    %9648 = vmatpush1.bf16.msra.mxu0 %v9613
    %9649 = vmatprep.subr.bf16.mxu0 0
    %9650 = vmatpush1.bf16.msra.mxu0 %v9614
    %9651 = vmatprep.subr.bf16.mxu0 0
    %9652 = vmatpush1.bf16.msra.mxu0 %v9615
    %9653 = vmatprep.subr.bf16.mxu0 0
    %9654 = vmatpush1.bf16.msra.mxu0 %v9616
    %9655 = vmatprep.subr.bf16.mxu0 0
    %9656 = vmatpush1.bf16.msra.mxu0 %v9617
    %9657 = vmatprep.subr.bf16.mxu0 0
    %9658 = vmatpush1.bf16.msra.mxu0 %v9618
    %9659 = vmatprep.subr.bf16.mxu0 0
    %9660 = vmatpush1.bf16.msra.mxu0 %v9619
    %9661 = vmatprep.subr.bf16.mxu0 0
    %9662 = vmatpush1.bf16.msra.mxu0 %v9620
    %9663 = vmatprep.subr.bf16.mxu0 0
    %9664 = vmatpush1.bf16.msra.mxu0 %v9621
    %9665 = vmatprep.subr.bf16.mxu0 0
    %9666 = vmatpush1.bf16.msra.mxu0 %v9622
    %9667 = vmatprep.subr.bf16.mxu0 0
    %9668 = vmatpush1.bf16.msra.mxu0 %v9623
    %9669 = vmatprep.subr.bf16.mxu0 0
    %9670 = vmatpush1.bf16.msra.mxu0 %v9624
    %9671 = vmatprep.subr.bf16.mxu0 0
    %9672 = vmatpush1.bf16.msra.mxu0 %v9625
    %9673 = vmatprep.subr.bf16.mxu0 0
    %9674 = vmatpush1.bf16.msra.mxu0 %v9626
    %9675 = vmatprep.mubr.bf16.mxu0 %v9484
    %9676 = vmatmul.mubr.bf16.gmra.mrb[0].mxu0 %v9483
    %v9677 = vpop.f32.mrb[0].mxu0
    %v9678 = vadd.f32 0.0, %v9677
    %v9679 = vpop.f32.mrb[0].mxu0
    %v9680 = vpop.f32.mrb[0].mxu0
    %v9681 = vadd.f32 0.0, %v9680
    %v9682 = vpop.f32.mrb[0].mxu0
    %9683 = vmatprep.mubr.bf16.mxu0 %v9486
    %9684 = vmatmul.mubr.bf16.gmra.mrb[0].mxu0 %v9485
    %v9685 = vpop.f32.mrb[0].mxu0
    %v9686 = vadd.f32 0.0, %v9685
    %v9687 = vpop.f32.mrb[0].mxu0
    %v9688 = vpop.f32.mrb[0].mxu0
    %v9689 = vadd.f32 0.0, %v9688
    %v9690 = vpop.f32.mrb[0].mxu0
    %9691 = vmatprep.mubr.bf16.mxu0 %v9488
    %9692 = vmatmul.mubr.bf16.gmra.mrb[0].mxu0 %v9487
    %v9693 = vpop.f32.mrb[0].mxu0
    %v9694 = vadd.f32 0.0, %v9693
    %v9695 = vpop.f32.mrb[0].mxu0
    %v9696 = vpop.f32.mrb[0].mxu0
    %v9697 = vadd.f32 0.0, %v9696
    %v9698 = vpop.f32.mrb[0].mxu0
    %9699 = vmatprep.mubr.bf16.mxu0 %v9490
    %9700 = vmatmul.mubr.bf16.gmra.mrb[0].mxu0 %v9489
    %v9701 = vpop.f32.mrb[0].mxu0
    %v9702 = vadd.f32 0.0, %v9701
    %v9703 = vpop.f32.mrb[0].mxu0
    %v9704 = vpop.f32.mrb[0].mxu0
    %v9705 = vadd.f32 0.0, %v9704
    %v9706 = vpop.f32.mrb[0].mxu0
    %9707 = vmatprep.mubr.bf16.mxu0 %v9492
    %9708 = vmatmul.mubr.bf16.gmra.mrb[0].mxu0 %v9491
    %v9709 = vpop.f32.mrb[0].mxu0
    %v9710 = vadd.f32 0.0, %v9709
    %v9711 = vpop.f32.mrb[0].mxu0
    %v9712 = vpop.f32.mrb[0].mxu0
    %v9713 = vadd.f32 0.0, %v9712
    %v9714 = vpop.f32.mrb[0].mxu0
    %9715 = vmatprep.mubr.bf16.mxu0 %v9494
    %9716 = vmatmul.mubr.bf16.gmra.mrb[0].mxu0 %v9493
    %v9717 = vpop.f32.mrb[0].mxu0
    %v9718 = vadd.f32 0.0, %v9717
    %v9719 = vpop.f32.mrb[0].mxu0
    %v9720 = vpop.f32.mrb[0].mxu0
    %v9721 = vadd.f32 0.0, %v9720
    %v9722 = vpop.f32.mrb[0].mxu0
    %9723 = vmatprep.mubr.bf16.mxu0 %v9496
    %9724 = vmatmul.mubr.bf16.gmra.mrb[0].mxu0 %v9495
    %v9725 = vpop.f32.mrb[0].mxu0
    %v9726 = vadd.f32 0.0, %v9725
    %v9727 = vpop.f32.mrb[0].mxu0
    %v9728 = vpop.f32.mrb[0].mxu0
    %v9729 = vadd.f32 0.0, %v9728
    %v9730 = vpop.f32.mrb[0].mxu0
    %9731 = vmatprep.mubr.bf16.mxu0 %v9498
    %9732 = vmatmul.mubr.bf16.gmra.mrb[0].mxu0 %v9497
    %v9733 = vpop.f32.mrb[0].mxu0
    %v9734 = vadd.f32 0.0, %v9733
    %v9735 = vpop.f32.mrb[0].mxu0
    %v9736 = vpop.f32.mrb[0].mxu0
    %v9737 = vadd.f32 0.0, %v9736
    %v9738 = vpop.f32.mrb[0].mxu0
    %9739 = vmatprep.mubr.bf16.mxu0 %v9500
    %9740 = vmatmul.mubr.bf16.gmra.mrb[0].mxu0 %v9499
    %v9741 = vpop.f32.mrb[0].mxu0
    %v9742 = vadd.f32 0.0, %v9741
    %v9743 = vpop.f32.mrb[0].mxu0
    %v9744 = vpop.f32.mrb[0].mxu0
    %v9745 = vadd.f32 0.0, %v9744
    %v9746 = vpop.f32.mrb[0].mxu0
    %9747 = vmatprep.mubr.bf16.mxu0 %v9502
    %9748 = vmatmul.mubr.bf16.gmra.mrb[0].mxu0 %v9501
    %v9749 = vpop.f32.mrb[0].mxu0
    %v9750 = vadd.f32 0.0, %v9749
    %v9751 = vpop.f32.mrb[0].mxu0
    %v9752 = vpop.f32.mrb[0].mxu0
    %v9753 = vadd.f32 0.0, %v9752
    %v9754 = vpop.f32.mrb[0].mxu0
    %9755 = vmatprep.mubr.bf16.mxu0 %v9504
    %9756 = vmatmul.mubr.bf16.gmra.mrb[0].mxu0 %v9503
    %v9757 = vpop.f32.mrb[0].mxu0
    %v9758 = vadd.f32 0.0, %v9757
    %v9759 = vpop.f32.mrb[0].mxu0
    %v9760 = vpop.f32.mrb[0].mxu0
    %v9761 = vadd.f32 0.0, %v9760
    %v9762 = vpop.f32.mrb[0].mxu0
    %9763 = vmatprep.mubr.bf16.mxu0 %v9506
    %9764 = vmatmul.mubr.bf16.gmra.mrb[0].mxu0 %v9505
    %v9765 = vpop.f32.mrb[0].mxu0
    %v9766 = vadd.f32 0.0, %v9765
    %v9767 = vpop.f32.mrb[0].mxu0
    %v9768 = vpop.f32.mrb[0].mxu0
    %v9769 = vadd.f32 0.0, %v9768
    %v9770 = vpop.f32.mrb[0].mxu0
    %9771 = vmatprep.mubr.bf16.mxu0 %v9508
    %9772 = vmatmul.mubr.bf16.gmra.mrb[0].mxu0 %v9507
    %v9773 = vpop.f32.mrb[0].mxu0
    %v9774 = vadd.f32 0.0, %v9773
    %v9775 = vpop.f32.mrb[0].mxu0
    %v9776 = vpop.f32.mrb[0].mxu0
    %v9777 = vadd.f32 0.0, %v9776
    %v9778 = vpop.f32.mrb[0].mxu0
    %9779 = vmatprep.mubr.bf16.mxu0 %v9510
    %9780 = vmatmul.mubr.bf16.gmra.mrb[0].mxu0 %v9509
    %v9781 = vpop.f32.mrb[0].mxu0
    %v9782 = vadd.f32 0.0, %v9781
    %v9783 = vpop.f32.mrb[0].mxu0
    %v9784 = vpop.f32.mrb[0].mxu0
    %v9785 = vadd.f32 0.0, %v9784
    %v9786 = vpop.f32.mrb[0].mxu0
    %9787 = vmatprep.mubr.bf16.mxu0 %v9512
    %9788 = vmatmul.mubr.bf16.gmra.mrb[0].mxu0 %v9511
    %v9789 = vpop.f32.mrb[0].mxu0
    %v9790 = vadd.f32 0.0, %v9789
    %v9791 = vpop.f32.mrb[0].mxu0
    %v9792 = vpop.f32.mrb[0].mxu0
    %v9793 = vadd.f32 0.0, %v9792
    %v9794 = vpop.f32.mrb[0].mxu0
    %9795 = vmatprep.mubr.bf16.mxu0 %v9514
    %9796 = vmatmul.mubr.bf16.gmra.mrb[0].mxu0 %v9513
    %v9797 = vpop.f32.mrb[0].mxu0
    %v9798 = vadd.f32 0.0, %v9797
    %v9799 = vpop.f32.mrb[0].mxu0
    %v9800 = vpop.f32.mrb[0].mxu0
    %v9801 = vadd.f32 0.0, %v9800
    %v9802 = vpop.f32.mrb[0].mxu0
    %9803 = vdwg.mxu0
    %v9804 = vadd.f32 %v6635, %v9678
    %v9805 = vadd.f32 %v6636, %v9681
    %v9806 = vadd.f32 %v6637, %v9686
    %v9807 = vadd.f32 %v6638, %v9689
    %v9808 = vadd.f32 %v6639, %v9694
    %v9809 = vadd.f32 %v6640, %v9697
    %v9810 = vadd.f32 %v6641, %v9702
    %v9811 = vadd.f32 %v6642, %v9705
    %v9812 = vadd.f32 %v6643, %v9710
    %v9813 = vadd.f32 %v6644, %v9713
    %v9814 = vadd.f32 %v6645, %v9718
    %v9815 = vadd.f32 %v6646, %v9721
    %v9816 = vadd.f32 %v6647, %v9726
    %v9817 = vadd.f32 %v6648, %v9729
    %v9818 = vadd.f32 %v6649, %v9734
    %v9819 = vadd.f32 %v6650, %v9737
    %v9820 = vadd.f32 %v6651, %v9742
    %v9821 = vadd.f32 %v6652, %v9745
    %v9822 = vadd.f32 %v6653, %v9750
    %v9823 = vadd.f32 %v6654, %v9753
    %v9824 = vadd.f32 %v6655, %v9758
    %v9825 = vadd.f32 %v6656, %v9761
    %v9826 = vadd.f32 %v6657, %v9766
    %v9827 = vadd.f32 %v6658, %v9769
    %v9828 = vadd.f32 %v6659, %v9774
    %v9829 = vadd.f32 %v6660, %v9777
    %v9830 = vadd.f32 %v6661, %v9782
    %v9831 = vadd.f32 %v6662, %v9785
    %v9832 = vadd.f32 %v6663, %v9790
    %v9833 = vadd.f32 %v6664, %v9793
    %v9834 = vadd.f32 %v6665, %v9798
    %v9835 = vadd.f32 %v6666, %v9801
    %9836 = vst [vmem:[#allocation2] sm:$0xff] %v9804
    %9837 = vst [vmem:[#allocation2 + $0x8] sm:$0xff] %v9805
    %9838 = vst [vmem:[#allocation2 + $0x10] sm:$0xff] %v9806
    %9839 = vst [vmem:[#allocation2 + $0x18] sm:$0xff] %v9807
    %9840 = vst [vmem:[#allocation2 + $0x20] sm:$0xff] %v9808
    %9841 = vst [vmem:[#allocation2 + $0x28] sm:$0xff] %v9809
    %9842 = vst [vmem:[#allocation2 + $0x30] sm:$0xff] %v9810
    %9843 = vst [vmem:[#allocation2 + $0x38] sm:$0xff] %v9811
    %9844 = vst [vmem:[#allocation2 + $0x40] sm:$0xff] %v9812
    %9845 = vst [vmem:[#allocation2 + $0x48] sm:$0xff] %v9813
    %9846 = vst [vmem:[#allocation2 + $0x50] sm:$0xff] %v9814
    %9847 = vst [vmem:[#allocation2 + $0x58] sm:$0xff] %v9815
    %9848 = vst [vmem:[#allocation2 + $0x60] sm:$0xff] %v9816
    %9849 = vst [vmem:[#allocation2 + $0x68] sm:$0xff] %v9817
    %9850 = vst [vmem:[#allocation2 + $0x70] sm:$0xff] %v9818
    %9851 = vst [vmem:[#allocation2 + $0x78] sm:$0xff] %v9819
    %9852 = vst [vmem:[#allocation2 + $0x80] sm:$0xff] %v9820
    %9853 = vst [vmem:[#allocation2 + $0x88] sm:$0xff] %v9821
    %9854 = vst [vmem:[#allocation2 + $0x90] sm:$0xff] %v9822
    %9855 = vst [vmem:[#allocation2 + $0x98] sm:$0xff] %v9823
    %9856 = vst [vmem:[#allocation2 + $0xa0] sm:$0xff] %v9824
    %9857 = vst [vmem:[#allocation2 + $0xa8] sm:$0xff] %v9825
    %9858 = vst [vmem:[#allocation2 + $0xb0] sm:$0xff] %v9826
    %9859 = vst [vmem:[#allocation2 + $0xb8] sm:$0xff] %v9827
    %9860 = vst [vmem:[#allocation2 + $0xc0] sm:$0xff] %v9828
    %9861 = vst [vmem:[#allocation2 + $0xc8] sm:$0xff] %v9829
    %9862 = vst [vmem:[#allocation2 + $0xd0] sm:$0xff] %v9830
    %9863 = vst [vmem:[#allocation2 + $0xd8] sm:$0xff] %v9831
    %9864 = vst [vmem:[#allocation2 + $0xe0] sm:$0xff] %v9832
    %9865 = vst [vmem:[#allocation2 + $0xe8] sm:$0xff] %v9833
    %9866 = vst [vmem:[#allocation2 + $0xf0] sm:$0xff] %v9834
    %9867 = vst [vmem:[#allocation2 + $0xf8] sm:$0xff] %v9835
    // Predicated region
    $region42: #{transformer_block_forward.1} parent=1 // pred_check
      _
    $region43: #{transformer_block_forward.1} parent=1 // pred_check_branch
      %9869 = sbr.rel (0) target = $region45
    $region44: #{transformer_block_forward.1} parent=1 // pred_region
      %s9871 = ssub.s32 4096, 4096
      %9872 = vsyncadd [#allocation3], %s9871
      %s9873 = sshll.u32 [#allocation2], 4
      %s9874 = int_to_ptr.vmem [resolvable:$true] %s9873
      %9879 = dma.vmem_to_hbm [thread:$0]  %s9874, 4096, %s10, [#allocation3], 128, 128, 8
    $region45: #{transformer_block_forward.1} parent=1 // pred_fallthru
      _
    // Predicated region
    $region46: #{transformer_block_forward.1} parent=1 // pred_check
      _
    $region47: #{transformer_block_forward.1} parent=1 // pred_check_branch
      %9881 = sbr.rel (0) target = $region49
    $region48: #{transformer_block_forward.1} parent=1 // pred_region
      %9882 = dma.done [#allocation3], 4096
    $region49: #{transformer_block_forward.1} parent=1 // pred_fallthru
      _
    %9883 = vsyncpa [#allocation3], 1

</llo_original>
